<compile_context>
chip_gen: v7x
topology: tpu7x:2x2x1
jax: 0.10.0
libtpu: 0.0.40
codegen_flags: <defaults>
</compile_context>

<pallas_src>
import jax
import jax.numpy as jnp
from jax.experimental import pallas as pl
from jax.experimental.pallas import tpu as pltpu


def _round_up(x, m):
    return (x + m - 1) // m * m


# ----------------------------------------------------------------------------
# Pallas kernel: fused 5-layer MLP (relu x4, final linear), bf16 MXU / f32 acc.
# ----------------------------------------------------------------------------
def _mlp_kernel(x_ref,
                w1_ref, b1_ref,
                w2_ref, b2_ref,
                w3_ref, b3_ref,
                w4_ref, b4_ref,
                w5_ref, b5_ref,
                out_ref):
    h = jnp.dot(x_ref[...].astype(jnp.bfloat16), w1_ref[...],
                preferred_element_type=jnp.float32) + b1_ref[...]
    h = jnp.maximum(h, 0.0)
    h = jnp.dot(h.astype(jnp.bfloat16), w2_ref[...],
                preferred_element_type=jnp.float32) + b2_ref[...]
    h = jnp.maximum(h, 0.0)
    h = jnp.dot(h.astype(jnp.bfloat16), w3_ref[...],
                preferred_element_type=jnp.float32) + b3_ref[...]
    h = jnp.maximum(h, 0.0)
    h = jnp.dot(h.astype(jnp.bfloat16), w4_ref[...],
                preferred_element_type=jnp.float32) + b4_ref[...]
    h = jnp.maximum(h, 0.0)
    h = jnp.dot(h.astype(jnp.bfloat16), w5_ref[...],
                preferred_element_type=jnp.float32) + b5_ref[...]
    out_ref[...] = h  # final layer has no activation (raw Q values)


def _run_mlp(x_padded, params, *, tile_b):
    """x_padded: (B_pad, D0) f32, B_pad % tile_b == 0, D0 % 128 == 0."""
    B_pad, D0 = x_padded.shape
    D5 = params["w5"].shape[1]
    grid = (B_pad // tile_b,)

    def _resident(arr):
        # Whole array every step; constant block index -> stays in VMEM.
        return pl.BlockSpec(arr.shape, lambda i: (0, 0))

    wb = []
    for k in range(1, 6):
        wb.append(params[f"w{k}"])
        wb.append(params[f"b{k}"])

    in_specs = [pl.BlockSpec((tile_b, D0), lambda i: (i, 0))]
    in_specs += [_resident(a) for a in wb]

    return pl.pallas_call(
        _mlp_kernel,
        grid=grid,
        in_specs=in_specs,
        out_specs=pl.BlockSpec((tile_b, D5), lambda i: (i, 0)),
        out_shape=jax.ShapeDtypeStruct((B_pad, D5), jnp.float32),
        compiler_params=pltpu.CompilerParams(
            dimension_semantics=("parallel",),   # megacore sharding on v7x
            vmem_limit_bytes=32 * 1024 * 1024,
        ),
    )(x_padded, *wb)


# ----------------------------------------------------------------------------
# Envelope operator H: preference-weighted argmax over actions, gather row.
# Small, data-dependent glue -> plain JAX (runs on the kernel's Q output).
# ----------------------------------------------------------------------------
def _H(Q_flat, w, s_num, w_num, action_size, reward_size):
    # Q_flat: (B*A, R), w: (B, R), B = s_num * w_num  (matches torch H()).
    perm = jnp.concatenate(
        [jnp.arange(i, s_num * w_num + i, s_num) for i in range(s_num)])
    reQ = Q_flat.reshape(-1, action_size * reward_size)[perm]
    reQ = reQ.reshape(-1, reward_size)                      # (B*A, R)
    reQ_ext = jnp.tile(reQ, (w_num, 1))                     # (w_num*B*A, R)
    w_ext = jnp.repeat(w, action_size * w_num, axis=0)      # (B*A*w_num, R)
    prod = jnp.sum(reQ_ext * w_ext, axis=-1)
    prod = prod.reshape(-1, action_size * w_num)            # (B, A*w_num)
    inds = jnp.argmax(prod, axis=1)
    hq = reQ_ext.reshape(-1, action_size * w_num, reward_size)[
        jnp.arange(prod.shape[0]), inds]
    return hq


# ----------------------------------------------------------------------------
# Module wrapper (forward semantics of EnvelopeLinearCQN.forward).
# ----------------------------------------------------------------------------
def envelope_linear_cqn_forward(state, preference, params, w_num=1, *,
                                tile_b=128):
    A = params["action_size"]
    R = params["reward_size"]
    B = preference.shape[0]

    x = jnp.concatenate(
        [state.reshape(B, -1), preference.reshape(B, -1)], axis=1
    ).astype(jnp.float32)

    # Pad feature dim to the (128-multiple) padded input width of w1.
    D0 = params["w1"].shape[0]
    x = jnp.pad(x, ((0, 0), (0, D0 - x.shape[1])))

    # Pad the batch to a multiple of the batch tile (tile is a multiple of 8;
    # for tiny B we shrink the tile instead of padding all the way to 128).
    tb = min(tile_b, max(8, _round_up(B, 8)))
    B_pad = _round_up(B, tb)
    x = jnp.pad(x, ((0, B_pad - B), (0, 0)))

    q_pad = _run_mlp(x, params, tile_b=tb)          # (B_pad, D5) f32
    q_flat = q_pad[:B, :A * R]                      # drop batch + lane padding
    q = q_flat.reshape(B, A, R)

    s_num = B // w_num
    hq = _H(jax.lax.stop_gradient(q_flat).reshape(-1, R),
            preference, s_num, w_num, A, R)
    return hq, q


# ----------------------------------------------------------------------------
# Parameter init: matches nn.Linear default (uniform +-1/sqrt(fan_in)), stored
# transposed (in, out), zero-padded to multiples of 128, weights in bf16.
# ----------------------------------------------------------------------------
def init_params(key, state_size, action_size, reward_size):
    d0 = state_size + reward_size
    logical = [d0, 16 * d0, 32 * d0, 64 * d0, 32 * d0,
               action_size * reward_size]
    padded = [_round_up(d, 128) for d in logical]
    params = {"action_size": action_size, "reward_size": reward_size}
    for i in range(5):
        fi, fo = logical[i], logical[i + 1]
        Fi, Fo = padded[i], padded[i + 1]
        key, kw, kb = jax.random.split(key, 3)
        bound = 1.0 / float(fi) ** 0.5
        w = jax.random.uniform(kw, (fi, fo), jnp.float32, -bound, bound)
        b = jax.random.uniform(kb, (fo,), jnp.float32, -bound, bound)
        w_pad = jnp.zeros((Fi, Fo), jnp.float32).at[:fi, :fo].set(w)
        b_pad = jnp.zeros((1, Fo), jnp.float32).at[0, :fo].set(b)
        params[f"w{i + 1}"] = w_pad.astype(jnp.bfloat16)  # MXU-native dtype
        params[f"b{i + 1}"] = b_pad                       # bias stays f32
    return params


if __name__ == "__main__":
    state_size, action_size, reward_size = 16, 8, 4
    batch = 6

    key = jax.random.PRNGKey(0)
    key, ks, kp = jax.random.split(key, 3)
    state = jax.random.normal(ks, (batch, state_size), jnp.float32)
    preference = jax.random.normal(kp, (batch, reward_size), jnp.float32)
    params = init_params(key, state_size, action_size, reward_size)

    fwd = jax.jit(lambda s, p: envelope_linear_cqn_forward(s, p, params))
    hq, q = fwd(state, preference)
    jax.block_until_ready((hq, q))

    # --- pure-JAX reference (same bf16-at-dot-inputs math) -------------------
    D0 = params["w1"].shape[0]
    x = jnp.concatenate([state, preference], axis=1)
    h = jnp.pad(x, ((0, 0), (0, D0 - x.shape[1])))
    for i in range(1, 6):
        h = jnp.dot(h.astype(jnp.bfloat16), params[f"w{i}"],
                    preferred_element_type=jnp.float32) + params[f"b{i}"]
        if i < 5:
            h = jnp.maximum(h, 0.0)
    q_ref = h[:, :action_size * reward_size].reshape(
        batch, action_size, reward_size)

    assert q.shape == (batch, action_size, reward_size)
    assert hq.shape == (batch, reward_size)
    assert jnp.allclose(q, q_ref, atol=1e-2, rtol=1e-2), "q mismatch vs reference"

    # hq reference for w_num=1: pick the action maximizing q[b,a,:] @ pref[b].
    scores = jnp.einsum("bar,br->ba", q, preference)
    best = jnp.argmax(scores, axis=1)
    hq_ref = q[jnp.arange(batch), best]
    assert jnp.allclose(hq, hq_ref, atol=1e-5), "hq mismatch vs reference"

    print("KERNEL_OK")
</pallas_src>

<mosaic_0001>
module attributes {stable_mosaic.version = 11 : i64} {
  func.func @_mlp_kernel(%arg0: i32, %arg1: memref<8x128xf32, #tpu.memory_space<vmem>>, %arg2: memref<128x384xbf16, #tpu.memory_space<vmem>>, %arg3: memref<1x384xf32, #tpu.memory_space<vmem>>, %arg4: memref<384x640xbf16, #tpu.memory_space<vmem>>, %arg5: memref<1x640xf32, #tpu.memory_space<vmem>>, %arg6: memref<640x1280xbf16, #tpu.memory_space<vmem>>, %arg7: memref<1x1280xf32, #tpu.memory_space<vmem>>, %arg8: memref<1280x640xbf16, #tpu.memory_space<vmem>>, %arg9: memref<1x640xf32, #tpu.memory_space<vmem>>, %arg10: memref<640x128xbf16, #tpu.memory_space<vmem>>, %arg11: memref<1x128xf32, #tpu.memory_space<vmem>>, %arg12: memref<8x128xf32, #tpu.memory_space<vmem>>) attributes {dimension_semantics = [#tpu.dimension_semantics<parallel>], iteration_bounds = array<i64: 1>, scalar_prefetch = 0 : i64, scratch_operands = 0 : i64, tpu.core_type = #tpu.core_type<tc>, window_params = [{transform_indices = @transform_0, window_bounds = array<i64: 8, 128>}, {pipeline_mode = #tpu.pipeline_mode<synchronous>, transform_indices = @transform_1, window_bounds = array<i64: 128, 384>}, {pipeline_mode = #tpu.pipeline_mode<synchronous>, transform_indices = @transform_2, window_bounds = array<i64: 1, 384>}, {pipeline_mode = #tpu.pipeline_mode<synchronous>, transform_indices = @transform_3, window_bounds = array<i64: 384, 640>}, {pipeline_mode = #tpu.pipeline_mode<synchronous>, transform_indices = @transform_4, window_bounds = array<i64: 1, 640>}, {pipeline_mode = #tpu.pipeline_mode<synchronous>, transform_indices = @transform_5, window_bounds = array<i64: 640, 1280>}, {pipeline_mode = #tpu.pipeline_mode<synchronous>, transform_indices = @transform_6, window_bounds = array<i64: 1, 1280>}, {pipeline_mode = #tpu.pipeline_mode<synchronous>, transform_indices = @transform_7, window_bounds = array<i64: 1280, 640>}, {pipeline_mode = #tpu.pipeline_mode<synchronous>, transform_indices = @transform_8, window_bounds = array<i64: 1, 640>}, {pipeline_mode = #tpu.pipeline_mode<synchronous>, transform_indices = @transform_9, window_bounds = array<i64: 640, 128>}, {pipeline_mode = #tpu.pipeline_mode<synchronous>, transform_indices = @transform_10, window_bounds = array<i64: 1, 128>}, {transform_indices = @transform_11, window_bounds = array<i64: 8, 128>}]} {
    %c0 = arith.constant 0 : index
    %c0_0 = arith.constant 0 : index
    %0 = vector.load %arg1[%c0, %c0_0] : memref<8x128xf32, #tpu.memory_space<vmem>>, vector<8x128xf32>
    %1 = arith.truncf %0 : vector<8x128xf32> to vector<8x128xbf16>
    %c0_1 = arith.constant 0 : index
    %c0_2 = arith.constant 0 : index
    %2 = vector.load %arg2[%c0_1, %c0_2] : memref<128x384xbf16, #tpu.memory_space<vmem>>, vector<128x384xbf16>
    %cst = arith.constant dense<0.000000e+00> : vector<8x384xf32>
    %3 = tpu.matmul %1, %2, %cst {dimension_numbers = #tpu.dot_dimension_numbers<[1], [0], [0], [1], [0, 0, 1, 1], [], []>} : vector<8x128xbf16>, vector<128x384xbf16>, vector<8x384xf32> -> vector<8x384xf32>
    %c0_3 = arith.constant 0 : index
    %c0_4 = arith.constant 0 : index
    %4 = vector.load %arg3[%c0_3, %c0_4] : memref<1x384xf32, #tpu.memory_space<vmem>>, vector<1x384xf32>
    %5 = vector.broadcast %4 : vector<1x384xf32> to vector<8x384xf32>
    %6 = arith.addf %3, %5 : vector<8x384xf32>
    %cst_5 = arith.constant 0.000000e+00 : f32
    %7 = vector.broadcast %cst_5 : f32 to vector<8x384xf32>
    %8 = arith.maximumf %6, %7 : vector<8x384xf32>
    %9 = arith.truncf %8 : vector<8x384xf32> to vector<8x384xbf16>
    %c0_6 = arith.constant 0 : index
    %c0_7 = arith.constant 0 : index
    %10 = vector.load %arg4[%c0_6, %c0_7] : memref<384x640xbf16, #tpu.memory_space<vmem>>, vector<384x640xbf16>
    %cst_8 = arith.constant dense<0.000000e+00> : vector<8x640xf32>
    %11 = tpu.matmul %9, %10, %cst_8 {dimension_numbers = #tpu.dot_dimension_numbers<[1], [0], [0], [1], [0, 0, 1, 1], [], []>} : vector<8x384xbf16>, vector<384x640xbf16>, vector<8x640xf32> -> vector<8x640xf32>
    %c0_9 = arith.constant 0 : index
    %c0_10 = arith.constant 0 : index
    %12 = vector.load %arg5[%c0_9, %c0_10] : memref<1x640xf32, #tpu.memory_space<vmem>>, vector<1x640xf32>
    %13 = vector.broadcast %12 : vector<1x640xf32> to vector<8x640xf32>
    %14 = arith.addf %11, %13 : vector<8x640xf32>
    %cst_11 = arith.constant 0.000000e+00 : f32
    %15 = vector.broadcast %cst_11 : f32 to vector<8x640xf32>
    %16 = arith.maximumf %14, %15 : vector<8x640xf32>
    %17 = arith.truncf %16 : vector<8x640xf32> to vector<8x640xbf16>
    %c0_12 = arith.constant 0 : index
    %c0_13 = arith.constant 0 : index
    %18 = vector.load %arg6[%c0_12, %c0_13] : memref<640x1280xbf16, #tpu.memory_space<vmem>>, vector<640x1280xbf16>
    %cst_14 = arith.constant dense<0.000000e+00> : vector<8x1280xf32>
    %19 = tpu.matmul %17, %18, %cst_14 {dimension_numbers = #tpu.dot_dimension_numbers<[1], [0], [0], [1], [0, 0, 1, 1], [], []>} : vector<8x640xbf16>, vector<640x1280xbf16>, vector<8x1280xf32> -> vector<8x1280xf32>
    %c0_15 = arith.constant 0 : index
    %c0_16 = arith.constant 0 : index
    %20 = vector.load %arg7[%c0_15, %c0_16] : memref<1x1280xf32, #tpu.memory_space<vmem>>, vector<1x1280xf32>
    %21 = vector.broadcast %20 : vector<1x1280xf32> to vector<8x1280xf32>
    %22 = arith.addf %19, %21 : vector<8x1280xf32>
    %cst_17 = arith.constant 0.000000e+00 : f32
    %23 = vector.broadcast %cst_17 : f32 to vector<8x1280xf32>
    %24 = arith.maximumf %22, %23 : vector<8x1280xf32>
    %25 = arith.truncf %24 : vector<8x1280xf32> to vector<8x1280xbf16>
    %c0_18 = arith.constant 0 : index
    %c0_19 = arith.constant 0 : index
    %26 = vector.load %arg8[%c0_18, %c0_19] : memref<1280x640xbf16, #tpu.memory_space<vmem>>, vector<1280x640xbf16>
    %cst_20 = arith.constant dense<0.000000e+00> : vector<8x640xf32>
    %27 = tpu.matmul %25, %26, %cst_20 {dimension_numbers = #tpu.dot_dimension_numbers<[1], [0], [0], [1], [0, 0, 1, 1], [], []>} : vector<8x1280xbf16>, vector<1280x640xbf16>, vector<8x640xf32> -> vector<8x640xf32>
    %c0_21 = arith.constant 0 : index
    %c0_22 = arith.constant 0 : index
    %28 = vector.load %arg9[%c0_21, %c0_22] : memref<1x640xf32, #tpu.memory_space<vmem>>, vector<1x640xf32>
    %29 = vector.broadcast %28 : vector<1x640xf32> to vector<8x640xf32>
    %30 = arith.addf %27, %29 : vector<8x640xf32>
    %cst_23 = arith.constant 0.000000e+00 : f32
    %31 = vector.broadcast %cst_23 : f32 to vector<8x640xf32>
    %32 = arith.maximumf %30, %31 : vector<8x640xf32>
    %33 = arith.truncf %32 : vector<8x640xf32> to vector<8x640xbf16>
    %c0_24 = arith.constant 0 : index
    %c0_25 = arith.constant 0 : index
    %34 = vector.load %arg10[%c0_24, %c0_25] : memref<640x128xbf16, #tpu.memory_space<vmem>>, vector<640x128xbf16>
    %cst_26 = arith.constant dense<0.000000e+00> : vector<8x128xf32>
    %35 = tpu.matmul %33, %34, %cst_26 {dimension_numbers = #tpu.dot_dimension_numbers<[1], [0], [0], [1], [0, 0, 1, 1], [], []>} : vector<8x640xbf16>, vector<640x128xbf16>, vector<8x128xf32> -> vector<8x128xf32>
    %c0_27 = arith.constant 0 : index
    %c0_28 = arith.constant 0 : index
    %36 = vector.load %arg11[%c0_27, %c0_28] : memref<1x128xf32, #tpu.memory_space<vmem>>, vector<1x128xf32>
    %37 = vector.broadcast %36 : vector<1x128xf32> to vector<8x128xf32>
    %38 = arith.addf %35, %37 : vector<8x128xf32>
    %c0_29 = arith.constant 0 : index
    %c0_30 = arith.constant 0 : index
    %39 = vector.load %arg12[%c0_29, %c0_30] : memref<8x128xf32, #tpu.memory_space<vmem>>, vector<8x128xf32>
    tpu.vector_store %arg12[%c0_29, %c0_30], %38 {strides = array<i32>} : memref<8x128xf32, #tpu.memory_space<vmem>>, vector<8x128xf32>,
    return
  }
  func.func @transform_0(%arg0: i32) -> (i32, i32) {
    %c0_i32 = arith.constant 0 : i32
    %c0_i32_0 = arith.constant 0 : i32
    return %arg0, %c0_i32 : i32, i32
  }
  func.func @transform_1(%arg0: i32) -> (i32, i32) {
    %c0_i32 = arith.constant 0 : i32
    %c0_i32_0 = arith.constant 0 : i32
    %c0_i32_1 = arith.constant 0 : i32
    return %c0_i32, %c0_i32_0 : i32, i32
  }
  func.func @transform_2(%arg0: i32) -> (i32, i32) {
    %c0_i32 = arith.constant 0 : i32
    %c0_i32_0 = arith.constant 0 : i32
    %c0_i32_1 = arith.constant 0 : i32
    return %c0_i32, %c0_i32_0 : i32, i32
  }
  func.func @transform_3(%arg0: i32) -> (i32, i32) {
    %c0_i32 = arith.constant 0 : i32
    %c0_i32_0 = arith.constant 0 : i32
    %c0_i32_1 = arith.constant 0 : i32
    return %c0_i32, %c0_i32_0 : i32, i32
  }
  func.func @transform_4(%arg0: i32) -> (i32, i32) {
    %c0_i32 = arith.constant 0 : i32
    %c0_i32_0 = arith.constant 0 : i32
    %c0_i32_1 = arith.constant 0 : i32
    return %c0_i32, %c0_i32_0 : i32, i32
  }
  func.func @transform_5(%arg0: i32) -> (i32, i32) {
    %c0_i32 = arith.constant 0 : i32
    %c0_i32_0 = arith.constant 0 : i32
    %c0_i32_1 = arith.constant 0 : i32
    return %c0_i32, %c0_i32_0 : i32, i32
  }
  func.func @transform_6(%arg0: i32) -> (i32, i32) {
    %c0_i32 = arith.constant 0 : i32
    %c0_i32_0 = arith.constant 0 : i32
    %c0_i32_1 = arith.constant 0 : i32
    return %c0_i32, %c0_i32_0 : i32, i32
  }
  func.func @transform_7(%arg0: i32) -> (i32, i32) {
    %c0_i32 = arith.constant 0 : i32
    %c0_i32_0 = arith.constant 0 : i32
    %c0_i32_1 = arith.constant 0 : i32
    return %c0_i32, %c0_i32_0 : i32, i32
  }
  func.func @transform_8(%arg0: i32) -> (i32, i32) {
    %c0_i32 = arith.constant 0 : i32
    %c0_i32_0 = arith.constant 0 : i32
    %c0_i32_1 = arith.constant 0 : i32
    return %c0_i32, %c0_i32_0 : i32, i32
  }
  func.func @transform_9(%arg0: i32) -> (i32, i32) {
    %c0_i32 = arith.constant 0 : i32
    %c0_i32_0 = arith.constant 0 : i32
    %c0_i32_1 = arith.constant 0 : i32
    return %c0_i32, %c0_i32_0 : i32, i32
  }
  func.func @transform_10(%arg0: i32) -> (i32, i32) {
    %c0_i32 = arith.constant 0 : i32
    %c0_i32_0 = arith.constant 0 : i32
    %c0_i32_1 = arith.constant 0 : i32
    return %c0_i32, %c0_i32_0 : i32, i32
  }
  func.func @transform_11(%arg0: i32) -> (i32, i32) {
    %c0_i32 = arith.constant 0 : i32
    %c0_i32_0 = arith.constant 0 : i32
    return %arg0, %c0_i32 : i32, i32
  }
}

</mosaic_0001>

<llo_original>
// kernel: _lambda_.1
$region0: #{_lambda_.1}
  #allocation0 [shape = 'u32[]', space=smem, size = 0x4, offset = 0x4, fixed_abs, tag = 'smem constant byte address 0x4 - core index']
  #allocation1 [shape = 'u32[144,128]{1,0:T(1,128)}', space=vmem, size = 0x12000, scoped, tag = 'internal scratch']
  %s0 = inlined_call_operand.vmem [shape: f32[8,128], index: 0, kind: input, shape index: {}]
  %s1 = inlined_call_operand.vmem [shape: bf16[128,384], index: 1, kind: input, shape index: {}]
  %s2 = inlined_call_operand.vmem [shape: f32[1,384], index: 2, kind: input, shape index: {}]
  %s3 = inlined_call_operand.vmem [shape: bf16[384,640], index: 3, kind: input, shape index: {}]
  %s4 = inlined_call_operand.vmem [shape: f32[1,640], index: 4, kind: input, shape index: {}]
  %s5 = inlined_call_operand.vmem [shape: bf16[640,1280], index: 5, kind: input, shape index: {}]
  %s6 = inlined_call_operand.vmem [shape: f32[1,1280], index: 6, kind: input, shape index: {}]
  %s7 = inlined_call_operand.vmem [shape: bf16[1280,640], index: 7, kind: input, shape index: {}]
  %s8 = inlined_call_operand.vmem [shape: f32[1,640], index: 8, kind: input, shape index: {}]
  %s9 = inlined_call_operand.vmem [shape: bf16[640,128], index: 9, kind: input, shape index: {}]
  %s10 = inlined_call_operand.vmem [shape: f32[1,128], index: 10, kind: input, shape index: {}]
  %s11 = inlined_call_operand.vmem [shape: f32[8,128], index: 11, kind: output, shape index: {}]
  %s12 = sld [smem:[#allocation0]]
  $region54: #{_lambda_.1} parent=0
    _
  %s14 = ssub.s32 1, %s12
  %s15 = scalar_select 0, %s14, %s12
  // Predicated region
  $region2: #{_lambda_.1} parent=0 // pred_check
    _
  $region3: #{_lambda_.1} parent=0 // pred_check_branch
    %17 = sbr.rel (0) target = $region5
  $region4: #{_lambda_.1} parent=0 // pred_region
    _
  $region5: #{_lambda_.1} parent=0 // pred_fallthru
    _
  // Predicated region
  $region6: #{_lambda_.1} parent=0 // pred_check
    _
  $region7: #{_lambda_.1} parent=0 // pred_check_branch
    %19 = sbr.rel (0) target = $region9
  $region8: #{_lambda_.1} parent=0 // pred_region
    _
  $region9: #{_lambda_.1} parent=0 // pred_fallthru
    _
  // Predicated region
  $region10: #{_lambda_.1} parent=0 // pred_check
    _
  $region11: #{_lambda_.1} parent=0 // pred_check_branch
    %21 = sbr.rel (0) target = $region13
  $region12: #{_lambda_.1} parent=0 // pred_region
    _
  $region13: #{_lambda_.1} parent=0 // pred_fallthru
    _
  // Predicated region
  $region14: #{_lambda_.1} parent=0 // pred_check
    _
  $region15: #{_lambda_.1} parent=0 // pred_check_branch
    %23 = sbr.rel (0) target = $region17
  $region16: #{_lambda_.1} parent=0 // pred_region
    _
  $region17: #{_lambda_.1} parent=0 // pred_fallthru
    _
  // Predicated region
  $region18: #{_lambda_.1} parent=0 // pred_check
    _
  $region19: #{_lambda_.1} parent=0 // pred_check_branch
    %25 = sbr.rel (0) target = $region21
  $region20: #{_lambda_.1} parent=0 // pred_region
    _
  $region21: #{_lambda_.1} parent=0 // pred_fallthru
    _
  // Predicated region
  $region22: #{_lambda_.1} parent=0 // pred_check
    _
  $region23: #{_lambda_.1} parent=0 // pred_check_branch
    %27 = sbr.rel (0) target = $region25
  $region24: #{_lambda_.1} parent=0 // pred_region
    _
  $region25: #{_lambda_.1} parent=0 // pred_fallthru
    _
  // Predicated region
  $region26: #{_lambda_.1} parent=0 // pred_check
    _
  $region27: #{_lambda_.1} parent=0 // pred_check_branch
    %29 = sbr.rel (0) target = $region29
  $region28: #{_lambda_.1} parent=0 // pred_region
    _
  $region29: #{_lambda_.1} parent=0 // pred_fallthru
    _
  // Predicated region
  $region30: #{_lambda_.1} parent=0 // pred_check
    _
  $region31: #{_lambda_.1} parent=0 // pred_check_branch
    %31 = sbr.rel (0) target = $region33
  $region32: #{_lambda_.1} parent=0 // pred_region
    _
  $region33: #{_lambda_.1} parent=0 // pred_fallthru
    _
  // Predicated region
  $region34: #{_lambda_.1} parent=0 // pred_check
    _
  $region35: #{_lambda_.1} parent=0 // pred_check_branch
    %33 = sbr.rel (0) target = $region37
  $region36: #{_lambda_.1} parent=0 // pred_region
    _
  $region37: #{_lambda_.1} parent=0 // pred_fallthru
    _
  // Predicated region
  $region38: #{_lambda_.1} parent=0 // pred_check
    _
  $region39: #{_lambda_.1} parent=0 // pred_check_branch
    %35 = sbr.rel (0) target = $region41
  $region40: #{_lambda_.1} parent=0 // pred_region
    _
  $region41: #{_lambda_.1} parent=0 // pred_fallthru
    _
  // Predicated region
  $region42: #{_lambda_.1} parent=0 // pred_check
    _
  $region43: #{_lambda_.1} parent=0 // pred_check_branch
    %37 = sbr.rel (0) target = $region45
  $region44: #{_lambda_.1} parent=0 // pred_region
    _
  $region45: #{_lambda_.1} parent=0 // pred_fallthru
    _
  %v39 = vld [vmem:[%s0] sm:$0xff]
  %v40 = vpack.c.bf16 %v39, %v39
  %v41 = vld [vmem:[%s1] sm:$0xff]
  %v42 = vld [vmem:[%s1 + $0x8] sm:$0xf]
  %v43 = vld [vmem:[%s1 + $0xc] sm:$0xff]
  %v44 = vld [vmem:[%s1 + $0x14] sm:$0xf]
  %v45 = vld [vmem:[%s1 + $0x18] sm:$0xff]
  %v46 = vld [vmem:[%s1 + $0x20] sm:$0xf]
  %v47 = vld [vmem:[%s1 + $0x24] sm:$0xff]
  %v48 = vld [vmem:[%s1 + $0x2c] sm:$0xf]
  %v49 = vld [vmem:[%s1 + $0x30] sm:$0xff]
  %v50 = vld [vmem:[%s1 + $0x38] sm:$0xf]
  %v51 = vld [vmem:[%s1 + $0x3c] sm:$0xff]
  %v52 = vld [vmem:[%s1 + $0x44] sm:$0xf]
  %v53 = vld [vmem:[%s1 + $0x48] sm:$0xff]
  %v54 = vld [vmem:[%s1 + $0x50] sm:$0xf]
  %v55 = vld [vmem:[%s1 + $0x54] sm:$0xff]
  %v56 = vld [vmem:[%s1 + $0x5c] sm:$0xf]
  %v57 = vld [vmem:[%s1 + $0x60] sm:$0xff]
  %v58 = vld [vmem:[%s1 + $0x68] sm:$0xf]
  %v59 = vld [vmem:[%s1 + $0x6c] sm:$0xff]
  %v60 = vld [vmem:[%s1 + $0x74] sm:$0xf]
  %v61 = vld [vmem:[%s1 + $0x78] sm:$0xff]
  %v62 = vld [vmem:[%s1 + $0x80] sm:$0xf]
  %v63 = vld [vmem:[%s1 + $0x84] sm:$0xff]
  %v64 = vld [vmem:[%s1 + $0x8c] sm:$0xf]
  %v65 = vld [vmem:[%s1 + $0x90] sm:$0xff]
  %v66 = vld [vmem:[%s1 + $0x98] sm:$0xf]
  %v67 = vld [vmem:[%s1 + $0x9c] sm:$0xff]
  %v68 = vld [vmem:[%s1 + $0xa4] sm:$0xf]
  %v69 = vld [vmem:[%s1 + $0xa8] sm:$0xff]
  %v70 = vld [vmem:[%s1 + $0xb0] sm:$0xf]
  %v71 = vld [vmem:[%s1 + $0xb4] sm:$0xff]
  %v72 = vld [vmem:[%s1 + $0xbc] sm:$0xf]
  %v73 = vld [vmem:[%s2] sm:$0x7]
  %v75 = vlaneseq
  %v76 = vshrl.u32 %v75, 7
  %v77 = vsub.s32 0, %v76
  %v78 = vrot.slane %v73, %v77
  %v79 = vlaneseq
  %v80 = vshrl.u32 %v79, 7
  %v81 = vsub.s32 1, %v80
  %v82 = vrot.slane %v73, %v81
  %v83 = vlaneseq
  %v84 = vshrl.u32 %v83, 7
  %v85 = vsub.s32 2, %v84
  %v86 = vrot.slane %v73, %v85
  %v122 = vunpack.c.l.b16 %v41
  %v123 = vunpack.c.h.b16 %v41
  %v124 = vunpack.c.l.b16 %v42
  %v125 = vunpack.c.l.b16 %v43
  %v126 = vunpack.c.h.b16 %v43
  %v127 = vunpack.c.l.b16 %v44
  %v128 = vunpack.c.l.b16 %v45
  %v129 = vunpack.c.h.b16 %v45
  %v130 = vunpack.c.l.b16 %v46
  %v131 = vunpack.c.l.b16 %v47
  %v132 = vunpack.c.h.b16 %v47
  %v133 = vunpack.c.l.b16 %v48
  %v134 = vunpack.c.l.b16 %v49
  %v135 = vunpack.c.h.b16 %v49
  %v136 = vunpack.c.l.b16 %v50
  %v137 = vunpack.c.l.b16 %v51
  %v138 = vunpack.c.h.b16 %v51
  %v139 = vunpack.c.l.b16 %v52
  %v140 = vunpack.c.l.b16 %v53
  %v141 = vunpack.c.h.b16 %v53
  %v142 = vunpack.c.l.b16 %v54
  %v143 = vunpack.c.l.b16 %v55
  %v144 = vunpack.c.h.b16 %v55
  %v145 = vunpack.c.l.b16 %v56
  %v146 = vunpack.c.l.b16 %v57
  %v147 = vunpack.c.h.b16 %v57
  %v148 = vunpack.c.l.b16 %v58
  %v149 = vunpack.c.l.b16 %v59
  %v150 = vunpack.c.h.b16 %v59
  %v151 = vunpack.c.l.b16 %v60
  %v152 = vunpack.c.l.b16 %v61
  %v153 = vunpack.c.h.b16 %v61
  %v154 = vunpack.c.l.b16 %v62
  %v155 = vunpack.c.l.b16 %v63
  %v156 = vunpack.c.h.b16 %v63
  %v157 = vunpack.c.l.b16 %v64
  %v158 = vunpack.c.l.b16 %v65
  %v159 = vunpack.c.h.b16 %v65
  %v160 = vunpack.c.l.b16 %v66
  %v161 = vunpack.c.l.b16 %v67
  %v162 = vunpack.c.h.b16 %v67
  %v163 = vunpack.c.l.b16 %v68
  %v164 = vunpack.c.l.b16 %v69
  %v165 = vunpack.c.h.b16 %v69
  %v166 = vunpack.c.l.b16 %v70
  %v167 = vunpack.c.l.b16 %v71
  %v168 = vunpack.c.h.b16 %v71
  %v169 = vunpack.c.l.b16 %v72
  %v170 = vpack.c.b16 %v125, %v122
  %v171 = vpack.c.b16 %v126, %v123
  %v172 = vpack.c.b16 %v127, %v124
  %v173 = vpack.c.b16 %v131, %v128
  %v174 = vpack.c.b16 %v132, %v129
  %v175 = vpack.c.b16 %v133, %v130
  %v176 = vpack.c.b16 %v137, %v134
  %v177 = vpack.c.b16 %v138, %v135
  %v178 = vpack.c.b16 %v139, %v136
  %v179 = vpack.c.b16 %v143, %v140
  %v180 = vpack.c.b16 %v144, %v141
  %v181 = vpack.c.b16 %v145, %v142
  %v182 = vpack.c.b16 %v149, %v146
  %v183 = vpack.c.b16 %v150, %v147
  %v184 = vpack.c.b16 %v151, %v148
  %v185 = vpack.c.b16 %v155, %v152
  %v186 = vpack.c.b16 %v156, %v153
  %v187 = vpack.c.b16 %v157, %v154
  %v188 = vpack.c.b16 %v161, %v158
  %v189 = vpack.c.b16 %v162, %v159
  %v190 = vpack.c.b16 %v163, %v160
  %v191 = vpack.c.b16 %v167, %v164
  %v192 = vpack.c.b16 %v168, %v165
  %v193 = vpack.c.b16 %v169, %v166
  %218 = vmatprep.subr.bf16.mxu0 %v171
  %219 = vmatpush1.bf16.msra.mxu0 %v170
  %220 = vmatprep.subr.bf16.mxu0 %v174
  %221 = vmatpush1.bf16.msra.mxu0 %v173
  %222 = vmatprep.subr.bf16.mxu0 %v177
  %223 = vmatpush1.bf16.msra.mxu0 %v176
  %224 = vmatprep.subr.bf16.mxu0 %v180
  %225 = vmatpush1.bf16.msra.mxu0 %v179
  %226 = vmatprep.subr.bf16.mxu0 %v183
  %227 = vmatpush1.bf16.msra.mxu0 %v182
  %228 = vmatprep.subr.bf16.mxu0 %v186
  %229 = vmatpush1.bf16.msra.mxu0 %v185
  %230 = vmatprep.subr.bf16.mxu0 %v189
  %231 = vmatpush1.bf16.msra.mxu0 %v188
  %232 = vmatprep.subr.bf16.mxu0 %v192
  %233 = vmatpush1.bf16.msra.mxu0 %v191
  %234 = vmatprep.subr.bf16.mxu0 0
  %235 = vmatpush1.bf16.msra.mxu0 0
  %236 = vmatprep.subr.bf16.mxu0 0
  %237 = vmatpush1.bf16.msra.mxu0 0
  %238 = vmatprep.subr.bf16.mxu0 0
  %239 = vmatpush1.bf16.msra.mxu0 0
  %240 = vmatprep.subr.bf16.mxu0 0
  %241 = vmatpush1.bf16.msra.mxu0 0
  %242 = vmatprep.subr.bf16.mxu0 0
  %243 = vmatpush1.bf16.msra.mxu0 0
  %244 = vmatprep.subr.bf16.mxu0 0
  %245 = vmatpush1.bf16.msra.mxu0 0
  %246 = vmatprep.subr.bf16.mxu0 0
  %247 = vmatpush1.bf16.msra.mxu0 0
  %248 = vmatprep.subr.bf16.mxu0 0
  %249 = vmatpush1.bf16.msra.mxu0 0
  %250 = vmatprep.mubr.bf16.mxu0 0
  %251 = vmatmul.mubr.bf16.gmra.mrb[0].mxu0 %v40
  %v252 = vpop.f32.mrb[0].mxu0
  %v253 = vadd.f32 %v78, %v252
  %v254 = vpop.f32.mrb[0].mxu0
  %v255 = vadd.f32 %v82, %v254
  %v256 = vpop.f32.mrb[0].mxu0
  %v257 = vpop.f32.mrb[0].mxu0
  %258 = vdwg.mxu0
  %259 = vmatprep.subr.bf16.mxu0 0
  %260 = vmatpush1.bf16.msra.mxu0 %v172
  %261 = vmatprep.subr.bf16.mxu0 0
  %262 = vmatpush1.bf16.msra.mxu0 %v175
  %263 = vmatprep.subr.bf16.mxu0 0
  %264 = vmatpush1.bf16.msra.mxu0 %v178
  %265 = vmatprep.subr.bf16.mxu0 0
  %266 = vmatpush1.bf16.msra.mxu0 %v181
  %267 = vmatprep.subr.bf16.mxu0 0
  %268 = vmatpush1.bf16.msra.mxu0 %v184
  %269 = vmatprep.subr.bf16.mxu0 0
  %270 = vmatpush1.bf16.msra.mxu0 %v187
  %271 = vmatprep.subr.bf16.mxu0 0
  %272 = vmatpush1.bf16.msra.mxu0 %v190
  %273 = vmatprep.subr.bf16.mxu0 0
  %274 = vmatpush1.bf16.msra.mxu0 %v193
  %275 = vmatprep.subr.bf16.mxu0 0
  %276 = vmatpush1.bf16.msra.mxu0 0
  %277 = vmatprep.subr.bf16.mxu0 0
  %278 = vmatpush1.bf16.msra.mxu0 0
  %279 = vmatprep.subr.bf16.mxu0 0
  %280 = vmatpush1.bf16.msra.mxu0 0
  %281 = vmatprep.subr.bf16.mxu0 0
  %282 = vmatpush1.bf16.msra.mxu0 0
  %283 = vmatprep.subr.bf16.mxu0 0
  %284 = vmatpush1.bf16.msra.mxu0 0
  %285 = vmatprep.subr.bf16.mxu0 0
  %286 = vmatpush1.bf16.msra.mxu0 0
  %287 = vmatprep.subr.bf16.mxu0 0
  %288 = vmatpush1.bf16.msra.mxu0 0
  %289 = vmatprep.subr.bf16.mxu0 0
  %290 = vmatpush1.bf16.msra.mxu0 0
  %291 = vmatprep.mubr.bf16.mxu0 0
  %292 = vmatmul.mubr.bf16.gmra.mrb[0].mxu0 %v40
  %v293 = vpop.f32.mrb[0].mxu0
  %v294 = vadd.f32 %v86, %v293
  %v295 = vpop.f32.mrb[0].mxu0
  %v296 = vpop.f32.mrb[0].mxu0
  %v297 = vpop.f32.mrb[0].mxu0
  %298 = vdwg.mxu0
  %v299 = vmax.f32 %v253, 0.0
  %v300 = vmax.f32 %v255, 0.0
  %v301 = vmax.f32 %v294, 0.0
  %v302 = vpack.c.bf16 %v299, %v299
  %v303 = vpack.c.bf16 %v300, %v300
  %v304 = vpack.c.bf16 %v301, %v301
  %v305 = vld [vmem:[%s3] sm:$0xff]
  %v306 = vld [vmem:[%s3 + $0x8] sm:$0xff]
  %v307 = vld [vmem:[%s3 + $0x10] sm:$0xf]
  %v308 = vld [vmem:[%s3 + $0x14] sm:$0xff]
  %v309 = vld [vmem:[%s3 + $0x1c] sm:$0xff]
  %v310 = vld [vmem:[%s3 + $0x24] sm:$0xf]
  %v311 = vld [vmem:[%s3 + $0x28] sm:$0xff]
  %v312 = vld [vmem:[%s3 + $0x30] sm:$0xff]
  %v313 = vld [vmem:[%s3 + $0x38] sm:$0xf]
  %v314 = vld [vmem:[%s3 + $0x3c] sm:$0xff]
  %v315 = vld [vmem:[%s3 + $0x44] sm:$0xff]
  %v316 = vld [vmem:[%s3 + $0x4c] sm:$0xf]
  %v317 = vld [vmem:[%s3 + $0x50] sm:$0xff]
  %v318 = vld [vmem:[%s3 + $0x58] sm:$0xff]
  %v319 = vld [vmem:[%s3 + $0x60] sm:$0xf]
  %v320 = vld [vmem:[%s3 + $0x64] sm:$0xff]
  %v321 = vld [vmem:[%s3 + $0x6c] sm:$0xff]
  %v322 = vld [vmem:[%s3 + $0x74] sm:$0xf]
  %v323 = vld [vmem:[%s3 + $0x78] sm:$0xff]
  %v324 = vld [vmem:[%s3 + $0x80] sm:$0xff]
  %v325 = vld [vmem:[%s3 + $0x88] sm:$0xf]
  %v326 = vld [vmem:[%s3 + $0x8c] sm:$0xff]
  %v327 = vld [vmem:[%s3 + $0x94] sm:$0xff]
  %v328 = vld [vmem:[%s3 + $0x9c] sm:$0xf]
  %v329 = vld [vmem:[%s3 + $0xa0] sm:$0xff]
  %v330 = vld [vmem:[%s3 + $0xa8] sm:$0xff]
  %v331 = vld [vmem:[%s3 + $0xb0] sm:$0xf]
  %v332 = vld [vmem:[%s3 + $0xb4] sm:$0xff]
  %v333 = vld [vmem:[%s3 + $0xbc] sm:$0xff]
  %v334 = vld [vmem:[%s3 + $0xc4] sm:$0xf]
  %v335 = vld [vmem:[%s3 + $0xc8] sm:$0xff]
  %v336 = vld [vmem:[%s3 + $0xd0] sm:$0xff]
  %v337 = vld [vmem:[%s3 + $0xd8] sm:$0xf]
  %v338 = vld [vmem:[%s3 + $0xdc] sm:$0xff]
  %v339 = vld [vmem:[%s3 + $0xe4] sm:$0xff]
  %v340 = vld [vmem:[%s3 + $0xec] sm:$0xf]
  %v341 = vld [vmem:[%s3 + $0xf0] sm:$0xff]
  %v342 = vld [vmem:[%s3 + $0xf8] sm:$0xff]
  %v343 = vld [vmem:[%s3 + $0x100] sm:$0xf]
  %v344 = vld [vmem:[%s3 + $0x104] sm:$0xff]
  %v345 = vld [vmem:[%s3 + $0x10c] sm:$0xff]
  %v346 = vld [vmem:[%s3 + $0x114] sm:$0xf]
  %v347 = vld [vmem:[%s3 + $0x118] sm:$0xff]
  %v348 = vld [vmem:[%s3 + $0x120] sm:$0xff]
  %v349 = vld [vmem:[%s3 + $0x128] sm:$0xf]
  %v350 = vld [vmem:[%s3 + $0x12c] sm:$0xff]
  %v351 = vld [vmem:[%s3 + $0x134] sm:$0xff]
  %v352 = vld [vmem:[%s3 + $0x13c] sm:$0xf]
  %v353 = vld [vmem:[%s3 + $0x140] sm:$0xff]
  %v354 = vld [vmem:[%s3 + $0x148] sm:$0xff]
  %v355 = vld [vmem:[%s3 + $0x150] sm:$0xf]
  %v356 = vld [vmem:[%s3 + $0x154] sm:$0xff]
  %v357 = vld [vmem:[%s3 + $0x15c] sm:$0xff]
  %v358 = vld [vmem:[%s3 + $0x164] sm:$0xf]
  %v359 = vld [vmem:[%s3 + $0x168] sm:$0xff]
  %v360 = vld [vmem:[%s3 + $0x170] sm:$0xff]
  %v361 = vld [vmem:[%s3 + $0x178] sm:$0xf]
  %v362 = vld [vmem:[%s3 + $0x17c] sm:$0xff]
  %v363 = vld [vmem:[%s3 + $0x184] sm:$0xff]
  %v364 = vld [vmem:[%s3 + $0x18c] sm:$0xf]
  %v365 = vld [vmem:[%s3 + $0x190] sm:$0xff]
  %v366 = vld [vmem:[%s3 + $0x198] sm:$0xff]
  %v367 = vld [vmem:[%s3 + $0x1a0] sm:$0xf]
  %v368 = vld [vmem:[%s3 + $0x1a4] sm:$0xff]
  %v369 = vld [vmem:[%s3 + $0x1ac] sm:$0xff]
  %v370 = vld [vmem:[%s3 + $0x1b4] sm:$0xf]
  %v371 = vld [vmem:[%s3 + $0x1b8] sm:$0xff]
  %v372 = vld [vmem:[%s3 + $0x1c0] sm:$0xff]
  %v373 = vld [vmem:[%s3 + $0x1c8] sm:$0xf]
  %v374 = vld [vmem:[%s3 + $0x1cc] sm:$0xff]
  %v375 = vld [vmem:[%s3 + $0x1d4] sm:$0xff]
  %v376 = vld [vmem:[%s3 + $0x1dc] sm:$0xf]
  %v377 = vld [vmem:[%s3 + $0x1e0] sm:$0xff]
  %v378 = vld [vmem:[%s3 + $0x1e8] sm:$0xff]
  %v379 = vld [vmem:[%s3 + $0x1f0] sm:$0xf]
  %v380 = vld [vmem:[%s3 + $0x1f4] sm:$0xff]
  %v381 = vld [vmem:[%s3 + $0x1fc] sm:$0xff]
  %v382 = vld [vmem:[%s3 + $0x204] sm:$0xf]
  %v383 = vld [vmem:[%s3 + $0x208] sm:$0xff]
  %v384 = vld [vmem:[%s3 + $0x210] sm:$0xff]
  %v385 = vld [vmem:[%s3 + $0x218] sm:$0xf]
  %v386 = vld [vmem:[%s3 + $0x21c] sm:$0xff]
  %v387 = vld [vmem:[%s3 + $0x224] sm:$0xff]
  %v388 = vld [vmem:[%s3 + $0x22c] sm:$0xf]
  %v389 = vld [vmem:[%s3 + $0x230] sm:$0xff]
  %v390 = vld [vmem:[%s3 + $0x238] sm:$0xff]
  %v391 = vld [vmem:[%s3 + $0x240] sm:$0xf]
  %v392 = vld [vmem:[%s3 + $0x244] sm:$0xff]
  %v393 = vld [vmem:[%s3 + $0x24c] sm:$0xff]
  %v394 = vld [vmem:[%s3 + $0x254] sm:$0xf]
  %v395 = vld [vmem:[%s3 + $0x258] sm:$0xff]
  %v396 = vld [vmem:[%s3 + $0x260] sm:$0xff]
  %v397 = vld [vmem:[%s3 + $0x268] sm:$0xf]
  %v398 = vld [vmem:[%s3 + $0x26c] sm:$0xff]
  %v399 = vld [vmem:[%s3 + $0x274] sm:$0xff]
  %v400 = vld [vmem:[%s3 + $0x27c] sm:$0xf]
  %v401 = vld [vmem:[%s3 + $0x280] sm:$0xff]
  %v402 = vld [vmem:[%s3 + $0x288] sm:$0xff]
  %v403 = vld [vmem:[%s3 + $0x290] sm:$0xf]
  %v404 = vld [vmem:[%s3 + $0x294] sm:$0xff]
  %v405 = vld [vmem:[%s3 + $0x29c] sm:$0xff]
  %v406 = vld [vmem:[%s3 + $0x2a4] sm:$0xf]
  %v407 = vld [vmem:[%s3 + $0x2a8] sm:$0xff]
  %v408 = vld [vmem:[%s3 + $0x2b0] sm:$0xff]
  %v409 = vld [vmem:[%s3 + $0x2b8] sm:$0xf]
  %v410 = vld [vmem:[%s3 + $0x2bc] sm:$0xff]
  %v411 = vld [vmem:[%s3 + $0x2c4] sm:$0xff]
  %v412 = vld [vmem:[%s3 + $0x2cc] sm:$0xf]
  %v413 = vld [vmem:[%s3 + $0x2d0] sm:$0xff]
  %v414 = vld [vmem:[%s3 + $0x2d8] sm:$0xff]
  %v415 = vld [vmem:[%s3 + $0x2e0] sm:$0xf]
  %v416 = vld [vmem:[%s3 + $0x2e4] sm:$0xff]
  %v417 = vld [vmem:[%s3 + $0x2ec] sm:$0xff]
  %v418 = vld [vmem:[%s3 + $0x2f4] sm:$0xf]
  %v419 = vld [vmem:[%s3 + $0x2f8] sm:$0xff]
  %v420 = vld [vmem:[%s3 + $0x300] sm:$0xff]
  %v421 = vld [vmem:[%s3 + $0x308] sm:$0xf]
  %v422 = vld [vmem:[%s3 + $0x30c] sm:$0xff]
  %v423 = vld [vmem:[%s3 + $0x314] sm:$0xff]
  %v424 = vld [vmem:[%s3 + $0x31c] sm:$0xf]
  %v425 = vld [vmem:[%s3 + $0x320] sm:$0xff]
  %v426 = vld [vmem:[%s3 + $0x328] sm:$0xff]
  %v427 = vld [vmem:[%s3 + $0x330] sm:$0xf]
  %v428 = vld [vmem:[%s3 + $0x334] sm:$0xff]
  %v429 = vld [vmem:[%s3 + $0x33c] sm:$0xff]
  %v430 = vld [vmem:[%s3 + $0x344] sm:$0xf]
  %v431 = vld [vmem:[%s3 + $0x348] sm:$0xff]
  %v432 = vld [vmem:[%s3 + $0x350] sm:$0xff]
  %v433 = vld [vmem:[%s3 + $0x358] sm:$0xf]
  %v434 = vld [vmem:[%s3 + $0x35c] sm:$0xff]
  %v435 = vld [vmem:[%s3 + $0x364] sm:$0xff]
  %v436 = vld [vmem:[%s3 + $0x36c] sm:$0xf]
  %v437 = vld [vmem:[%s3 + $0x370] sm:$0xff]
  %v438 = vld [vmem:[%s3 + $0x378] sm:$0xff]
  %v439 = vld [vmem:[%s3 + $0x380] sm:$0xf]
  %v440 = vld [vmem:[%s3 + $0x384] sm:$0xff]
  %v441 = vld [vmem:[%s3 + $0x38c] sm:$0xff]
  %v442 = vld [vmem:[%s3 + $0x394] sm:$0xf]
  %v443 = vld [vmem:[%s3 + $0x398] sm:$0xff]
  %v444 = vld [vmem:[%s3 + $0x3a0] sm:$0xff]
  %v445 = vld [vmem:[%s3 + $0x3a8] sm:$0xf]
  %v446 = vld [vmem:[%s3 + $0x3ac] sm:$0xff]
  %v447 = vld [vmem:[%s3 + $0x3b4] sm:$0xff]
  %v448 = vld [vmem:[%s3 + $0x3bc] sm:$0xf]
  %v449 = vld [vmem:[%s4] sm:$0x1f]
  %v451 = vlaneseq
  %v452 = vshrl.u32 %v451, 7
  %v453 = vsub.s32 0, %v452
  %v454 = vrot.slane %v449, %v453
  %v455 = vlaneseq
  %v456 = vshrl.u32 %v455, 7
  %v457 = vsub.s32 1, %v456
  %v458 = vrot.slane %v449, %v457
  %v459 = vlaneseq
  %v460 = vshrl.u32 %v459, 7
  %v461 = vsub.s32 2, %v460
  %v462 = vrot.slane %v449, %v461
  %v463 = vlaneseq
  %v464 = vshrl.u32 %v463, 7
  %v465 = vsub.s32 3, %v464
  %v466 = vrot.slane %v449, %v465
  %v467 = vlaneseq
  %v468 = vshrl.u32 %v467, 7
  %v469 = vsub.s32 4, %v468
  %v470 = vrot.slane %v449, %v469
  %v620 = vunpack.c.l.b16 %v305
  %v621 = vunpack.c.h.b16 %v305
  %v622 = vunpack.c.l.b16 %v306
  %v623 = vunpack.c.h.b16 %v306
  %v624 = vunpack.c.l.b16 %v307
  %v625 = vunpack.c.l.b16 %v308
  %v626 = vunpack.c.h.b16 %v308
  %v627 = vunpack.c.l.b16 %v309
  %v628 = vunpack.c.h.b16 %v309
  %v629 = vunpack.c.l.b16 %v310
  %v630 = vunpack.c.l.b16 %v311
  %v631 = vunpack.c.h.b16 %v311
  %v632 = vunpack.c.l.b16 %v312
  %v633 = vunpack.c.h.b16 %v312
  %v634 = vunpack.c.l.b16 %v313
  %v635 = vunpack.c.l.b16 %v314
  %v636 = vunpack.c.h.b16 %v314
  %v637 = vunpack.c.l.b16 %v315
  %v638 = vunpack.c.h.b16 %v315
  %v639 = vunpack.c.l.b16 %v316
  %v640 = vunpack.c.l.b16 %v317
  %v641 = vunpack.c.h.b16 %v317
  %v642 = vunpack.c.l.b16 %v318
  %v643 = vunpack.c.h.b16 %v318
  %v644 = vunpack.c.l.b16 %v319
  %v645 = vunpack.c.l.b16 %v320
  %v646 = vunpack.c.h.b16 %v320
  %v647 = vunpack.c.l.b16 %v321
  %v648 = vunpack.c.h.b16 %v321
  %v649 = vunpack.c.l.b16 %v322
  %v650 = vunpack.c.l.b16 %v323
  %v651 = vunpack.c.h.b16 %v323
  %v652 = vunpack.c.l.b16 %v324
  %v653 = vunpack.c.h.b16 %v324
  %v654 = vunpack.c.l.b16 %v325
  %v655 = vunpack.c.l.b16 %v326
  %v656 = vunpack.c.h.b16 %v326
  %v657 = vunpack.c.l.b16 %v327
  %v658 = vunpack.c.h.b16 %v327
  %v659 = vunpack.c.l.b16 %v328
  %v660 = vunpack.c.l.b16 %v329
  %v661 = vunpack.c.h.b16 %v329
  %v662 = vunpack.c.l.b16 %v330
  %v663 = vunpack.c.h.b16 %v330
  %v664 = vunpack.c.l.b16 %v331
  %v665 = vunpack.c.l.b16 %v332
  %v666 = vunpack.c.h.b16 %v332
  %v667 = vunpack.c.l.b16 %v333
  %v668 = vunpack.c.h.b16 %v333
  %v669 = vunpack.c.l.b16 %v334
  %v670 = vunpack.c.l.b16 %v335
  %v671 = vunpack.c.h.b16 %v335
  %v672 = vunpack.c.l.b16 %v336
  %v673 = vunpack.c.h.b16 %v336
  %v674 = vunpack.c.l.b16 %v337
  %v675 = vunpack.c.l.b16 %v338
  %v676 = vunpack.c.h.b16 %v338
  %v677 = vunpack.c.l.b16 %v339
  %v678 = vunpack.c.h.b16 %v339
  %v679 = vunpack.c.l.b16 %v340
  %v680 = vunpack.c.l.b16 %v341
  %v681 = vunpack.c.h.b16 %v341
  %v682 = vunpack.c.l.b16 %v342
  %v683 = vunpack.c.h.b16 %v342
  %v684 = vunpack.c.l.b16 %v343
  %v685 = vunpack.c.l.b16 %v344
  %v686 = vunpack.c.h.b16 %v344
  %v687 = vunpack.c.l.b16 %v345
  %v688 = vunpack.c.h.b16 %v345
  %v689 = vunpack.c.l.b16 %v346
  %v690 = vunpack.c.l.b16 %v347
  %v691 = vunpack.c.h.b16 %v347
  %v692 = vunpack.c.l.b16 %v348
  %v693 = vunpack.c.h.b16 %v348
  %v694 = vunpack.c.l.b16 %v349
  %v695 = vunpack.c.l.b16 %v350
  %v696 = vunpack.c.h.b16 %v350
  %v697 = vunpack.c.l.b16 %v351
  %v698 = vunpack.c.h.b16 %v351
  %v699 = vunpack.c.l.b16 %v352
  %v700 = vunpack.c.l.b16 %v353
  %v701 = vunpack.c.h.b16 %v353
  %v702 = vunpack.c.l.b16 %v354
  %v703 = vunpack.c.h.b16 %v354
  %v704 = vunpack.c.l.b16 %v355
  %v705 = vunpack.c.l.b16 %v356
  %v706 = vunpack.c.h.b16 %v356
  %v707 = vunpack.c.l.b16 %v357
  %v708 = vunpack.c.h.b16 %v357
  %v709 = vunpack.c.l.b16 %v358
  %v710 = vunpack.c.l.b16 %v359
  %v711 = vunpack.c.h.b16 %v359
  %v712 = vunpack.c.l.b16 %v360
  %v713 = vunpack.c.h.b16 %v360
  %v714 = vunpack.c.l.b16 %v361
  %v715 = vunpack.c.l.b16 %v362
  %v716 = vunpack.c.h.b16 %v362
  %v717 = vunpack.c.l.b16 %v363
  %v718 = vunpack.c.h.b16 %v363
  %v719 = vunpack.c.l.b16 %v364
  %v720 = vunpack.c.l.b16 %v365
  %v721 = vunpack.c.h.b16 %v365
  %v722 = vunpack.c.l.b16 %v366
  %v723 = vunpack.c.h.b16 %v366
  %v724 = vunpack.c.l.b16 %v367
  %v725 = vunpack.c.l.b16 %v368
  %v726 = vunpack.c.h.b16 %v368
  %v727 = vunpack.c.l.b16 %v369
  %v728 = vunpack.c.h.b16 %v369
  %v729 = vunpack.c.l.b16 %v370
  %v730 = vunpack.c.l.b16 %v371
  %v731 = vunpack.c.h.b16 %v371
  %v732 = vunpack.c.l.b16 %v372
  %v733 = vunpack.c.h.b16 %v372
  %v734 = vunpack.c.l.b16 %v373
  %v735 = vunpack.c.l.b16 %v374
  %v736 = vunpack.c.h.b16 %v374
  %v737 = vunpack.c.l.b16 %v375
  %v738 = vunpack.c.h.b16 %v375
  %v739 = vunpack.c.l.b16 %v376
  %v740 = vunpack.c.l.b16 %v377
  %v741 = vunpack.c.h.b16 %v377
  %v742 = vunpack.c.l.b16 %v378
  %v743 = vunpack.c.h.b16 %v378
  %v744 = vunpack.c.l.b16 %v379
  %v745 = vunpack.c.l.b16 %v380
  %v746 = vunpack.c.h.b16 %v380
  %v747 = vunpack.c.l.b16 %v381
  %v748 = vunpack.c.h.b16 %v381
  %v749 = vunpack.c.l.b16 %v382
  %v750 = vunpack.c.l.b16 %v383
  %v751 = vunpack.c.h.b16 %v383
  %v752 = vunpack.c.l.b16 %v384
  %v753 = vunpack.c.h.b16 %v384
  %v754 = vunpack.c.l.b16 %v385
  %v755 = vunpack.c.l.b16 %v386
  %v756 = vunpack.c.h.b16 %v386
  %v757 = vunpack.c.l.b16 %v387
  %v758 = vunpack.c.h.b16 %v387
  %v759 = vunpack.c.l.b16 %v388
  %v760 = vunpack.c.l.b16 %v389
  %v761 = vunpack.c.h.b16 %v389
  %v762 = vunpack.c.l.b16 %v390
  %v763 = vunpack.c.h.b16 %v390
  %v764 = vunpack.c.l.b16 %v391
  %v765 = vunpack.c.l.b16 %v392
  %v766 = vunpack.c.h.b16 %v392
  %v767 = vunpack.c.l.b16 %v393
  %v768 = vunpack.c.h.b16 %v393
  %v769 = vunpack.c.l.b16 %v394
  %v770 = vunpack.c.l.b16 %v395
  %v771 = vunpack.c.h.b16 %v395
  %v772 = vunpack.c.l.b16 %v396
  %v773 = vunpack.c.h.b16 %v396
  %v774 = vunpack.c.l.b16 %v397
  %v775 = vunpack.c.l.b16 %v398
  %v776 = vunpack.c.h.b16 %v398
  %v777 = vunpack.c.l.b16 %v399
  %v778 = vunpack.c.h.b16 %v399
  %v779 = vunpack.c.l.b16 %v400
  %v780 = vunpack.c.l.b16 %v401
  %v781 = vunpack.c.h.b16 %v401
  %v782 = vunpack.c.l.b16 %v402
  %v783 = vunpack.c.h.b16 %v402
  %v784 = vunpack.c.l.b16 %v403
  %v785 = vunpack.c.l.b16 %v404
  %v786 = vunpack.c.h.b16 %v404
  %v787 = vunpack.c.l.b16 %v405
  %v788 = vunpack.c.h.b16 %v405
  %v789 = vunpack.c.l.b16 %v406
  %v790 = vunpack.c.l.b16 %v407
  %v791 = vunpack.c.h.b16 %v407
  %v792 = vunpack.c.l.b16 %v408
  %v793 = vunpack.c.h.b16 %v408
  %v794 = vunpack.c.l.b16 %v409
  %v795 = vunpack.c.l.b16 %v410
  %v796 = vunpack.c.h.b16 %v410
  %v797 = vunpack.c.l.b16 %v411
  %v798 = vunpack.c.h.b16 %v411
  %v799 = vunpack.c.l.b16 %v412
  %v800 = vunpack.c.l.b16 %v413
  %v801 = vunpack.c.h.b16 %v413
  %v802 = vunpack.c.l.b16 %v414
  %v803 = vunpack.c.h.b16 %v414
  %v804 = vunpack.c.l.b16 %v415
  %v805 = vunpack.c.l.b16 %v416
  %v806 = vunpack.c.h.b16 %v416
  %v807 = vunpack.c.l.b16 %v417
  %v808 = vunpack.c.h.b16 %v417
  %v809 = vunpack.c.l.b16 %v418
  %v810 = vunpack.c.l.b16 %v419
  %v811 = vunpack.c.h.b16 %v419
  %v812 = vunpack.c.l.b16 %v420
  %v813 = vunpack.c.h.b16 %v420
  %v814 = vunpack.c.l.b16 %v421
  %v815 = vunpack.c.l.b16 %v422
  %v816 = vunpack.c.h.b16 %v422
  %v817 = vunpack.c.l.b16 %v423
  %v818 = vunpack.c.h.b16 %v423
  %v819 = vunpack.c.l.b16 %v424
  %v820 = vunpack.c.l.b16 %v425
  %v821 = vunpack.c.h.b16 %v425
  %v822 = vunpack.c.l.b16 %v426
  %v823 = vunpack.c.h.b16 %v426
  %v824 = vunpack.c.l.b16 %v427
  %v825 = vunpack.c.l.b16 %v428
  %v826 = vunpack.c.h.b16 %v428
  %v827 = vunpack.c.l.b16 %v429
  %v828 = vunpack.c.h.b16 %v429
  %v829 = vunpack.c.l.b16 %v430
  %v830 = vunpack.c.l.b16 %v431
  %v831 = vunpack.c.h.b16 %v431
  %v832 = vunpack.c.l.b16 %v432
  %v833 = vunpack.c.h.b16 %v432
  %v834 = vunpack.c.l.b16 %v433
  %v835 = vunpack.c.l.b16 %v434
  %v836 = vunpack.c.h.b16 %v434
  %v837 = vunpack.c.l.b16 %v435
  %v838 = vunpack.c.h.b16 %v435
  %v839 = vunpack.c.l.b16 %v436
  %v840 = vunpack.c.l.b16 %v437
  %v841 = vunpack.c.h.b16 %v437
  %v842 = vunpack.c.l.b16 %v438
  %v843 = vunpack.c.h.b16 %v438
  %v844 = vunpack.c.l.b16 %v439
  %v845 = vunpack.c.l.b16 %v440
  %v846 = vunpack.c.h.b16 %v440
  %v847 = vunpack.c.l.b16 %v441
  %v848 = vunpack.c.h.b16 %v441
  %v849 = vunpack.c.l.b16 %v442
  %v850 = vunpack.c.l.b16 %v443
  %v851 = vunpack.c.h.b16 %v443
  %v852 = vunpack.c.l.b16 %v444
  %v853 = vunpack.c.h.b16 %v444
  %v854 = vunpack.c.l.b16 %v445
  %v855 = vunpack.c.l.b16 %v446
  %v856 = vunpack.c.h.b16 %v446
  %v857 = vunpack.c.l.b16 %v447
  %v858 = vunpack.c.h.b16 %v447
  %v859 = vunpack.c.l.b16 %v448
  %v860 = vpack.c.b16 %v625, %v620
  %v861 = vpack.c.b16 %v626, %v621
  %v862 = vpack.c.b16 %v627, %v622
  %v863 = vpack.c.b16 %v628, %v623
  %v864 = vpack.c.b16 %v629, %v624
  %v865 = vpack.c.b16 %v635, %v630
  %v866 = vpack.c.b16 %v636, %v631
  %v867 = vpack.c.b16 %v637, %v632
  %v868 = vpack.c.b16 %v638, %v633
  %v869 = vpack.c.b16 %v639, %v634
  %v870 = vpack.c.b16 %v645, %v640
  %v871 = vpack.c.b16 %v646, %v641
  %v872 = vpack.c.b16 %v647, %v642
  %v873 = vpack.c.b16 %v648, %v643
  %v874 = vpack.c.b16 %v649, %v644
  %v875 = vpack.c.b16 %v655, %v650
  %v876 = vpack.c.b16 %v656, %v651
  %v877 = vpack.c.b16 %v657, %v652
  %v878 = vpack.c.b16 %v658, %v653
  %v879 = vpack.c.b16 %v659, %v654
  %v880 = vpack.c.b16 %v665, %v660
  %v881 = vpack.c.b16 %v666, %v661
  %v882 = vpack.c.b16 %v667, %v662
  %v883 = vpack.c.b16 %v668, %v663
  %v884 = vpack.c.b16 %v669, %v664
  %v885 = vpack.c.b16 %v675, %v670
  %v886 = vpack.c.b16 %v676, %v671
  %v887 = vpack.c.b16 %v677, %v672
  %v888 = vpack.c.b16 %v678, %v673
  %v889 = vpack.c.b16 %v679, %v674
  %v890 = vpack.c.b16 %v685, %v680
  %v891 = vpack.c.b16 %v686, %v681
  %v892 = vpack.c.b16 %v687, %v682
  %v893 = vpack.c.b16 %v688, %v683
  %v894 = vpack.c.b16 %v689, %v684
  %v895 = vpack.c.b16 %v695, %v690
  %v896 = vpack.c.b16 %v696, %v691
  %v897 = vpack.c.b16 %v697, %v692
  %v898 = vpack.c.b16 %v698, %v693
  %v899 = vpack.c.b16 %v699, %v694
  %v900 = vpack.c.b16 %v705, %v700
  %v901 = vpack.c.b16 %v706, %v701
  %v902 = vpack.c.b16 %v707, %v702
  %v903 = vpack.c.b16 %v708, %v703
  %v904 = vpack.c.b16 %v709, %v704
  %v905 = vpack.c.b16 %v715, %v710
  %v906 = vpack.c.b16 %v716, %v711
  %v907 = vpack.c.b16 %v717, %v712
  %v908 = vpack.c.b16 %v718, %v713
  %v909 = vpack.c.b16 %v719, %v714
  %v910 = vpack.c.b16 %v725, %v720
  %v911 = vpack.c.b16 %v726, %v721
  %v912 = vpack.c.b16 %v727, %v722
  %v913 = vpack.c.b16 %v728, %v723
  %v914 = vpack.c.b16 %v729, %v724
  %v915 = vpack.c.b16 %v735, %v730
  %v916 = vpack.c.b16 %v736, %v731
  %v917 = vpack.c.b16 %v737, %v732
  %v918 = vpack.c.b16 %v738, %v733
  %v919 = vpack.c.b16 %v739, %v734
  %v920 = vpack.c.b16 %v745, %v740
  %v921 = vpack.c.b16 %v746, %v741
  %v922 = vpack.c.b16 %v747, %v742
  %v923 = vpack.c.b16 %v748, %v743
  %v924 = vpack.c.b16 %v749, %v744
  %v925 = vpack.c.b16 %v755, %v750
  %v926 = vpack.c.b16 %v756, %v751
  %v927 = vpack.c.b16 %v757, %v752
  %v928 = vpack.c.b16 %v758, %v753
  %v929 = vpack.c.b16 %v759, %v754
  %v930 = vpack.c.b16 %v765, %v760
  %v931 = vpack.c.b16 %v766, %v761
  %v932 = vpack.c.b16 %v767, %v762
  %v933 = vpack.c.b16 %v768, %v763
  %v934 = vpack.c.b16 %v769, %v764
  %v935 = vpack.c.b16 %v775, %v770
  %v936 = vpack.c.b16 %v776, %v771
  %v937 = vpack.c.b16 %v777, %v772
  %v938 = vpack.c.b16 %v778, %v773
  %v939 = vpack.c.b16 %v779, %v774
  %v940 = vpack.c.b16 %v785, %v780
  %v941 = vpack.c.b16 %v786, %v781
  %v942 = vpack.c.b16 %v787, %v782
  %v943 = vpack.c.b16 %v788, %v783
  %v944 = vpack.c.b16 %v789, %v784
  %v945 = vpack.c.b16 %v795, %v790
  %v946 = vpack.c.b16 %v796, %v791
  %v947 = vpack.c.b16 %v797, %v792
  %v948 = vpack.c.b16 %v798, %v793
  %v949 = vpack.c.b16 %v799, %v794
  %v950 = vpack.c.b16 %v805, %v800
  %v951 = vpack.c.b16 %v806, %v801
  %v952 = vpack.c.b16 %v807, %v802
  %v953 = vpack.c.b16 %v808, %v803
  %v954 = vpack.c.b16 %v809, %v804
  %v955 = vpack.c.b16 %v815, %v810
  %v956 = vpack.c.b16 %v816, %v811
  %v957 = vpack.c.b16 %v817, %v812
  %v958 = vpack.c.b16 %v818, %v813
  %v959 = vpack.c.b16 %v819, %v814
  %v960 = vpack.c.b16 %v825, %v820
  %v961 = vpack.c.b16 %v826, %v821
  %v962 = vpack.c.b16 %v827, %v822
  %v963 = vpack.c.b16 %v828, %v823
  %v964 = vpack.c.b16 %v829, %v824
  %v965 = vpack.c.b16 %v835, %v830
  %v966 = vpack.c.b16 %v836, %v831
  %v967 = vpack.c.b16 %v837, %v832
  %v968 = vpack.c.b16 %v838, %v833
  %v969 = vpack.c.b16 %v839, %v834
  %v970 = vpack.c.b16 %v845, %v840
  %v971 = vpack.c.b16 %v846, %v841
  %v972 = vpack.c.b16 %v847, %v842
  %v973 = vpack.c.b16 %v848, %v843
  %v974 = vpack.c.b16 %v849, %v844
  %v975 = vpack.c.b16 %v855, %v850
  %v976 = vpack.c.b16 %v856, %v851
  %v977 = vpack.c.b16 %v857, %v852
  %v978 = vpack.c.b16 %v858, %v853
  %v979 = vpack.c.b16 %v859, %v854
  %1100 = vmatprep.subr.bf16.mxu0 %v861
  %1101 = vmatpush1.bf16.msra.mxu0 %v860
  %1102 = vmatprep.subr.bf16.mxu0 %v866
  %1103 = vmatpush1.bf16.msra.mxu0 %v865
  %1104 = vmatprep.subr.bf16.mxu0 %v871
  %1105 = vmatpush1.bf16.msra.mxu0 %v870
  %1106 = vmatprep.subr.bf16.mxu0 %v876
  %1107 = vmatpush1.bf16.msra.mxu0 %v875
  %1108 = vmatprep.subr.bf16.mxu0 %v881
  %1109 = vmatpush1.bf16.msra.mxu0 %v880
  %1110 = vmatprep.subr.bf16.mxu0 %v886
  %1111 = vmatpush1.bf16.msra.mxu0 %v885
  %1112 = vmatprep.subr.bf16.mxu0 %v891
  %1113 = vmatpush1.bf16.msra.mxu0 %v890
  %1114 = vmatprep.subr.bf16.mxu0 %v896
  %1115 = vmatpush1.bf16.msra.mxu0 %v895
  %1116 = vmatprep.subr.bf16.mxu0 %v901
  %1117 = vmatpush1.bf16.msra.mxu0 %v900
  %1118 = vmatprep.subr.bf16.mxu0 %v906
  %1119 = vmatpush1.bf16.msra.mxu0 %v905
  %1120 = vmatprep.subr.bf16.mxu0 %v911
  %1121 = vmatpush1.bf16.msra.mxu0 %v910
  %1122 = vmatprep.subr.bf16.mxu0 %v916
  %1123 = vmatpush1.bf16.msra.mxu0 %v915
  %1124 = vmatprep.subr.bf16.mxu0 %v921
  %1125 = vmatpush1.bf16.msra.mxu0 %v920
  %1126 = vmatprep.subr.bf16.mxu0 %v926
  %1127 = vmatpush1.bf16.msra.mxu0 %v925
  %1128 = vmatprep.subr.bf16.mxu0 %v931
  %1129 = vmatpush1.bf16.msra.mxu0 %v930
  %1130 = vmatprep.subr.bf16.mxu0 %v936
  %1131 = vmatpush1.bf16.msra.mxu0 %v935
  %1132 = vmatprep.mubr.bf16.mxu0 %v303
  %1133 = vmatmul.mubr.bf16.gmra.mrb[0].mxu0 %v302
  %v1134 = vpop.f32.mrb[0].mxu0
  %v1135 = vadd.f32 %v454, %v1134
  %v1136 = vpop.f32.mrb[0].mxu0
  %v1137 = vadd.f32 %v458, %v1136
  %v1138 = vpop.f32.mrb[0].mxu0
  %v1139 = vpop.f32.mrb[0].mxu0
  %1140 = vdwg.mxu0
  %1141 = vmatprep.subr.bf16.mxu0 %v941
  %1142 = vmatpush1.bf16.msra.mxu0 %v940
  %1143 = vmatprep.subr.bf16.mxu0 %v946
  %1144 = vmatpush1.bf16.msra.mxu0 %v945
  %1145 = vmatprep.subr.bf16.mxu0 %v951
  %1146 = vmatpush1.bf16.msra.mxu0 %v950
  %1147 = vmatprep.subr.bf16.mxu0 %v956
  %1148 = vmatpush1.bf16.msra.mxu0 %v955
  %1149 = vmatprep.subr.bf16.mxu0 %v961
  %1150 = vmatpush1.bf16.msra.mxu0 %v960
  %1151 = vmatprep.subr.bf16.mxu0 %v966
  %1152 = vmatpush1.bf16.msra.mxu0 %v965
  %1153 = vmatprep.subr.bf16.mxu0 %v971
  %1154 = vmatpush1.bf16.msra.mxu0 %v970
  %1155 = vmatprep.subr.bf16.mxu0 %v976
  %1156 = vmatpush1.bf16.msra.mxu0 %v975
  %1157 = vmatprep.subr.bf16.mxu0 0
  %1158 = vmatpush1.bf16.msra.mxu0 0
  %1159 = vmatprep.subr.bf16.mxu0 0
  %1160 = vmatpush1.bf16.msra.mxu0 0
  %1161 = vmatprep.subr.bf16.mxu0 0
  %1162 = vmatpush1.bf16.msra.mxu0 0
  %1163 = vmatprep.subr.bf16.mxu0 0
  %1164 = vmatpush1.bf16.msra.mxu0 0
  %1165 = vmatprep.subr.bf16.mxu0 0
  %1166 = vmatpush1.bf16.msra.mxu0 0
  %1167 = vmatprep.subr.bf16.mxu0 0
  %1168 = vmatpush1.bf16.msra.mxu0 0
  %1169 = vmatprep.subr.bf16.mxu0 0
  %1170 = vmatpush1.bf16.msra.mxu0 0
  %1171 = vmatprep.subr.bf16.mxu0 0
  %1172 = vmatpush1.bf16.msra.mxu0 0
  %1173 = vmatprep.mubr.bf16.mxu0 0
  %1174 = vmatmul.mubr.bf16.gmra.mrb[0].mxu0 %v304
  %v1175 = vpop.f32.mrb[0].mxu0
  %v1176 = vadd.f32 %v1135, %v1175
  %v1177 = vpop.f32.mrb[0].mxu0
  %v1178 = vadd.f32 %v1137, %v1177
  %v1179 = vpop.f32.mrb[0].mxu0
  %v1180 = vpop.f32.mrb[0].mxu0
  %1181 = vdwg.mxu0
  %1182 = vmatprep.subr.bf16.mxu0 %v863
  %1183 = vmatpush1.bf16.msra.mxu0 %v862
  %1184 = vmatprep.subr.bf16.mxu0 %v868
  %1185 = vmatpush1.bf16.msra.mxu0 %v867
  %1186 = vmatprep.subr.bf16.mxu0 %v873
  %1187 = vmatpush1.bf16.msra.mxu0 %v872
  %1188 = vmatprep.subr.bf16.mxu0 %v878
  %1189 = vmatpush1.bf16.msra.mxu0 %v877
  %1190 = vmatprep.subr.bf16.mxu0 %v883
  %1191 = vmatpush1.bf16.msra.mxu0 %v882
  %1192 = vmatprep.subr.bf16.mxu0 %v888
  %1193 = vmatpush1.bf16.msra.mxu0 %v887
  %1194 = vmatprep.subr.bf16.mxu0 %v893
  %1195 = vmatpush1.bf16.msra.mxu0 %v892
  %1196 = vmatprep.subr.bf16.mxu0 %v898
  %1197 = vmatpush1.bf16.msra.mxu0 %v897
  %1198 = vmatprep.subr.bf16.mxu0 %v903
  %1199 = vmatpush1.bf16.msra.mxu0 %v902
  %1200 = vmatprep.subr.bf16.mxu0 %v908
  %1201 = vmatpush1.bf16.msra.mxu0 %v907
  %1202 = vmatprep.subr.bf16.mxu0 %v913
  %1203 = vmatpush1.bf16.msra.mxu0 %v912
  %1204 = vmatprep.subr.bf16.mxu0 %v918
  %1205 = vmatpush1.bf16.msra.mxu0 %v917
  %1206 = vmatprep.subr.bf16.mxu0 %v923
  %1207 = vmatpush1.bf16.msra.mxu0 %v922
  %1208 = vmatprep.subr.bf16.mxu0 %v928
  %1209 = vmatpush1.bf16.msra.mxu0 %v927
  %1210 = vmatprep.subr.bf16.mxu0 %v933
  %1211 = vmatpush1.bf16.msra.mxu0 %v932
  %1212 = vmatprep.subr.bf16.mxu0 %v938
  %1213 = vmatpush1.bf16.msra.mxu0 %v937
  %1214 = vmatprep.mubr.bf16.mxu0 %v303
  %1215 = vmatmul.mubr.bf16.gmra.mrb[0].mxu0 %v302
  %v1216 = vpop.f32.mrb[0].mxu0
  %v1217 = vadd.f32 %v462, %v1216
  %v1218 = vpop.f32.mrb[0].mxu0
  %v1219 = vadd.f32 %v466, %v1218
  %v1220 = vpop.f32.mrb[0].mxu0
  %v1221 = vpop.f32.mrb[0].mxu0
  %1222 = vdwg.mxu0
  %1223 = vmatprep.subr.bf16.mxu0 %v943
  %1224 = vmatpush1.bf16.msra.mxu0 %v942
  %1225 = vmatprep.subr.bf16.mxu0 %v948
  %1226 = vmatpush1.bf16.msra.mxu0 %v947
  %1227 = vmatprep.subr.bf16.mxu0 %v953
  %1228 = vmatpush1.bf16.msra.mxu0 %v952
  %1229 = vmatprep.subr.bf16.mxu0 %v958
  %1230 = vmatpush1.bf16.msra.mxu0 %v957
  %1231 = vmatprep.subr.bf16.mxu0 %v963
  %1232 = vmatpush1.bf16.msra.mxu0 %v962
  %1233 = vmatprep.subr.bf16.mxu0 %v968
  %1234 = vmatpush1.bf16.msra.mxu0 %v967
  %1235 = vmatprep.subr.bf16.mxu0 %v973
  %1236 = vmatpush1.bf16.msra.mxu0 %v972
  %1237 = vmatprep.subr.bf16.mxu0 %v978
  %1238 = vmatpush1.bf16.msra.mxu0 %v977
  %1239 = vmatprep.subr.bf16.mxu0 0
  %1240 = vmatpush1.bf16.msra.mxu0 0
  %1241 = vmatprep.subr.bf16.mxu0 0
  %1242 = vmatpush1.bf16.msra.mxu0 0
  %1243 = vmatprep.subr.bf16.mxu0 0
  %1244 = vmatpush1.bf16.msra.mxu0 0
  %1245 = vmatprep.subr.bf16.mxu0 0
  %1246 = vmatpush1.bf16.msra.mxu0 0
  %1247 = vmatprep.subr.bf16.mxu0 0
  %1248 = vmatpush1.bf16.msra.mxu0 0
  %1249 = vmatprep.subr.bf16.mxu0 0
  %1250 = vmatpush1.bf16.msra.mxu0 0
  %1251 = vmatprep.subr.bf16.mxu0 0
  %1252 = vmatpush1.bf16.msra.mxu0 0
  %1253 = vmatprep.subr.bf16.mxu0 0
  %1254 = vmatpush1.bf16.msra.mxu0 0
  %1255 = vmatprep.mubr.bf16.mxu0 0
  %1256 = vmatmul.mubr.bf16.gmra.mrb[0].mxu0 %v304
  %v1257 = vpop.f32.mrb[0].mxu0
  %v1258 = vadd.f32 %v1217, %v1257
  %v1259 = vpop.f32.mrb[0].mxu0
  %v1260 = vadd.f32 %v1219, %v1259
  %v1261 = vpop.f32.mrb[0].mxu0
  %v1262 = vpop.f32.mrb[0].mxu0
  %1263 = vdwg.mxu0
  %1264 = vmatprep.subr.bf16.mxu0 0
  %1265 = vmatpush1.bf16.msra.mxu0 %v864
  %1266 = vmatprep.subr.bf16.mxu0 0
  %1267 = vmatpush1.bf16.msra.mxu0 %v869
  %1268 = vmatprep.subr.bf16.mxu0 0
  %1269 = vmatpush1.bf16.msra.mxu0 %v874
  %1270 = vmatprep.subr.bf16.mxu0 0
  %1271 = vmatpush1.bf16.msra.mxu0 %v879
  %1272 = vmatprep.subr.bf16.mxu0 0
  %1273 = vmatpush1.bf16.msra.mxu0 %v884
  %1274 = vmatprep.subr.bf16.mxu0 0
  %1275 = vmatpush1.bf16.msra.mxu0 %v889
  %1276 = vmatprep.subr.bf16.mxu0 0
  %1277 = vmatpush1.bf16.msra.mxu0 %v894
  %1278 = vmatprep.subr.bf16.mxu0 0
  %1279 = vmatpush1.bf16.msra.mxu0 %v899
  %1280 = vmatprep.subr.bf16.mxu0 0
  %1281 = vmatpush1.bf16.msra.mxu0 %v904
  %1282 = vmatprep.subr.bf16.mxu0 0
  %1283 = vmatpush1.bf16.msra.mxu0 %v909
  %1284 = vmatprep.subr.bf16.mxu0 0
  %1285 = vmatpush1.bf16.msra.mxu0 %v914
  %1286 = vmatprep.subr.bf16.mxu0 0
  %1287 = vmatpush1.bf16.msra.mxu0 %v919
  %1288 = vmatprep.subr.bf16.mxu0 0
  %1289 = vmatpush1.bf16.msra.mxu0 %v924
  %1290 = vmatprep.subr.bf16.mxu0 0
  %1291 = vmatpush1.bf16.msra.mxu0 %v929
  %1292 = vmatprep.subr.bf16.mxu0 0
  %1293 = vmatpush1.bf16.msra.mxu0 %v934
  %1294 = vmatprep.subr.bf16.mxu0 0
  %1295 = vmatpush1.bf16.msra.mxu0 %v939
  %1296 = vmatprep.mubr.bf16.mxu0 %v303
  %1297 = vmatmul.mubr.bf16.gmra.mrb[0].mxu0 %v302
  %v1298 = vpop.f32.mrb[0].mxu0
  %v1299 = vadd.f32 %v470, %v1298
  %v1300 = vpop.f32.mrb[0].mxu0
  %v1301 = vpop.f32.mrb[0].mxu0
  %v1302 = vpop.f32.mrb[0].mxu0
  %1303 = vdwg.mxu0
  %1304 = vmatprep.subr.bf16.mxu0 0
  %1305 = vmatpush1.bf16.msra.mxu0 %v944
  %1306 = vmatprep.subr.bf16.mxu0 0
  %1307 = vmatpush1.bf16.msra.mxu0 %v949
  %1308 = vmatprep.subr.bf16.mxu0 0
  %1309 = vmatpush1.bf16.msra.mxu0 %v954
  %1310 = vmatprep.subr.bf16.mxu0 0
  %1311 = vmatpush1.bf16.msra.mxu0 %v959
  %1312 = vmatprep.subr.bf16.mxu0 0
  %1313 = vmatpush1.bf16.msra.mxu0 %v964
  %1314 = vmatprep.subr.bf16.mxu0 0
  %1315 = vmatpush1.bf16.msra.mxu0 %v969
  %1316 = vmatprep.subr.bf16.mxu0 0
  %1317 = vmatpush1.bf16.msra.mxu0 %v974
  %1318 = vmatprep.subr.bf16.mxu0 0
  %1319 = vmatpush1.bf16.msra.mxu0 %v979
  %1320 = vmatprep.subr.bf16.mxu0 0
  %1321 = vmatpush1.bf16.msra.mxu0 0
  %1322 = vmatprep.subr.bf16.mxu0 0
  %1323 = vmatpush1.bf16.msra.mxu0 0
  %1324 = vmatprep.subr.bf16.mxu0 0
  %1325 = vmatpush1.bf16.msra.mxu0 0
  %1326 = vmatprep.subr.bf16.mxu0 0
  %1327 = vmatpush1.bf16.msra.mxu0 0
  %1328 = vmatprep.subr.bf16.mxu0 0
  %1329 = vmatpush1.bf16.msra.mxu0 0
  %1330 = vmatprep.subr.bf16.mxu0 0
  %1331 = vmatpush1.bf16.msra.mxu0 0
  %1332 = vmatprep.subr.bf16.mxu0 0
  %1333 = vmatpush1.bf16.msra.mxu0 0
  %1334 = vmatprep.subr.bf16.mxu0 0
  %1335 = vmatpush1.bf16.msra.mxu0 0
  %1336 = vmatprep.mubr.bf16.mxu0 0
  %1337 = vmatmul.mubr.bf16.gmra.mrb[0].mxu0 %v304
  %v1338 = vpop.f32.mrb[0].mxu0
  %v1339 = vadd.f32 %v1299, %v1338
  %v1340 = vpop.f32.mrb[0].mxu0
  %v1341 = vpop.f32.mrb[0].mxu0
  %v1342 = vpop.f32.mrb[0].mxu0
  %1343 = vdwg.mxu0
  %v1344 = vmax.f32 %v1176, 0.0
  %v1345 = vmax.f32 %v1178, 0.0
  %v1346 = vmax.f32 %v1258, 0.0
  %v1347 = vmax.f32 %v1260, 0.0
  %v1348 = vmax.f32 %v1339, 0.0
  %v1349 = vpack.c.bf16 %v1344, %v1344
  %v1350 = vpack.c.bf16 %v1345, %v1345
  %v1351 = vpack.c.bf16 %v1346, %v1346
  %v1352 = vpack.c.bf16 %v1347, %v1347
  %v1353 = vpack.c.bf16 %v1348, %v1348
  %v1354 = vld [vmem:[%s5] sm:$0xff]
  %v1355 = vld [vmem:[%s5 + $0x8] sm:$0xff]
  %v1356 = vld [vmem:[%s5 + $0x10] sm:$0xff]
  %v1357 = vld [vmem:[%s5 + $0x18] sm:$0xff]
  %v1358 = vld [vmem:[%s5 + $0x20] sm:$0xff]
  %v1359 = vld [vmem:[%s5 + $0x28] sm:$0xff]
  %v1360 = vld [vmem:[%s5 + $0x30] sm:$0xff]
  %v1361 = vld [vmem:[%s5 + $0x38] sm:$0xff]
  %v1362 = vld [vmem:[%s5 + $0x40] sm:$0xff]
  %v1363 = vld [vmem:[%s5 + $0x48] sm:$0xff]
  %v1364 = vld [vmem:[%s5 + $0x50] sm:$0xff]
  %v1365 = vld [vmem:[%s5 + $0x58] sm:$0xff]
  %v1366 = vld [vmem:[%s5 + $0x60] sm:$0xff]
  %v1367 = vld [vmem:[%s5 + $0x68] sm:$0xff]
  %v1368 = vld [vmem:[%s5 + $0x70] sm:$0xff]
  %v1369 = vld [vmem:[%s5 + $0x78] sm:$0xff]
  %v1370 = vld [vmem:[%s5 + $0x80] sm:$0xff]
  %v1371 = vld [vmem:[%s5 + $0x88] sm:$0xff]
  %v1372 = vld [vmem:[%s5 + $0x90] sm:$0xff]
  %v1373 = vld [vmem:[%s5 + $0x98] sm:$0xff]
  %v1374 = vld [vmem:[%s5 + $0xa0] sm:$0xff]
  %v1375 = vld [vmem:[%s5 + $0xa8] sm:$0xff]
  %v1376 = vld [vmem:[%s5 + $0xb0] sm:$0xff]
  %v1377 = vld [vmem:[%s5 + $0xb8] sm:$0xff]
  %v1378 = vld [vmem:[%s5 + $0xc0] sm:$0xff]
  %v1379 = vld [vmem:[%s5 + $0xc8] sm:$0xff]
  %v1380 = vld [vmem:[%s5 + $0xd0] sm:$0xff]
  %v1381 = vld [vmem:[%s5 + $0xd8] sm:$0xff]
  %v1382 = vld [vmem:[%s5 + $0xe0] sm:$0xff]
  %v1383 = vld [vmem:[%s5 + $0xe8] sm:$0xff]
  %v1384 = vld [vmem:[%s5 + $0xf0] sm:$0xff]
  %v1385 = vld [vmem:[%s5 + $0xf8] sm:$0xff]
  %v1386 = vld [vmem:[%s5 + $0x100] sm:$0xff]
  %v1387 = vld [vmem:[%s5 + $0x108] sm:$0xff]
  %v1388 = vld [vmem:[%s5 + $0x110] sm:$0xff]
  %v1389 = vld [vmem:[%s5 + $0x118] sm:$0xff]
  %v1390 = vld [vmem:[%s5 + $0x120] sm:$0xff]
  %v1391 = vld [vmem:[%s5 + $0x128] sm:$0xff]
  %v1392 = vld [vmem:[%s5 + $0x130] sm:$0xff]
  %v1393 = vld [vmem:[%s5 + $0x138] sm:$0xff]
  %v1394 = vld [vmem:[%s5 + $0x140] sm:$0xff]
  %v1395 = vld [vmem:[%s5 + $0x148] sm:$0xff]
  %v1396 = vld [vmem:[%s5 + $0x150] sm:$0xff]
  %v1397 = vld [vmem:[%s5 + $0x158] sm:$0xff]
  %v1398 = vld [vmem:[%s5 + $0x160] sm:$0xff]
  %v1399 = vld [vmem:[%s5 + $0x168] sm:$0xff]
  %v1400 = vld [vmem:[%s5 + $0x170] sm:$0xff]
  %v1401 = vld [vmem:[%s5 + $0x178] sm:$0xff]
  %v1402 = vld [vmem:[%s5 + $0x180] sm:$0xff]
  %v1403 = vld [vmem:[%s5 + $0x188] sm:$0xff]
  %v1404 = vld [vmem:[%s5 + $0x190] sm:$0xff]
  %v1405 = vld [vmem:[%s5 + $0x198] sm:$0xff]
  %v1406 = vld [vmem:[%s5 + $0x1a0] sm:$0xff]
  %v1407 = vld [vmem:[%s5 + $0x1a8] sm:$0xff]
  %v1408 = vld [vmem:[%s5 + $0x1b0] sm:$0xff]
  %v1409 = vld [vmem:[%s5 + $0x1b8] sm:$0xff]
  %v1410 = vld [vmem:[%s5 + $0x1c0] sm:$0xff]
  %v1411 = vld [vmem:[%s5 + $0x1c8] sm:$0xff]
  %v1412 = vld [vmem:[%s5 + $0x1d0] sm:$0xff]
  %v1413 = vld [vmem:[%s5 + $0x1d8] sm:$0xff]
  %v1414 = vld [vmem:[%s5 + $0x1e0] sm:$0xff]
  %v1415 = vld [vmem:[%s5 + $0x1e8] sm:$0xff]
  %v1416 = vld [vmem:[%s5 + $0x1f0] sm:$0xff]
  %v1417 = vld [vmem:[%s5 + $0x1f8] sm:$0xff]
  %v1418 = vld [vmem:[%s5 + $0x200] sm:$0xff]
  %v1419 = vld [vmem:[%s5 + $0x208] sm:$0xff]
  %v1420 = vld [vmem:[%s5 + $0x210] sm:$0xff]
  %v1421 = vld [vmem:[%s5 + $0x218] sm:$0xff]
  %v1422 = vld [vmem:[%s5 + $0x220] sm:$0xff]
  %v1423 = vld [vmem:[%s5 + $0x228] sm:$0xff]
  %v1424 = vld [vmem:[%s5 + $0x230] sm:$0xff]
  %v1425 = vld [vmem:[%s5 + $0x238] sm:$0xff]
  %v1426 = vld [vmem:[%s5 + $0x240] sm:$0xff]
  %v1427 = vld [vmem:[%s5 + $0x248] sm:$0xff]
  %v1428 = vld [vmem:[%s5 + $0x250] sm:$0xff]
  %v1429 = vld [vmem:[%s5 + $0x258] sm:$0xff]
  %v1430 = vld [vmem:[%s5 + $0x260] sm:$0xff]
  %v1431 = vld [vmem:[%s5 + $0x268] sm:$0xff]
  %v1432 = vld [vmem:[%s5 + $0x270] sm:$0xff]
  %v1433 = vld [vmem:[%s5 + $0x278] sm:$0xff]
  %v1434 = vld [vmem:[%s5 + $0x280] sm:$0xff]
  %v1435 = vld [vmem:[%s5 + $0x288] sm:$0xff]
  %v1436 = vld [vmem:[%s5 + $0x290] sm:$0xff]
  %v1437 = vld [vmem:[%s5 + $0x298] sm:$0xff]
  %v1438 = vld [vmem:[%s5 + $0x2a0] sm:$0xff]
  %v1439 = vld [vmem:[%s5 + $0x2a8] sm:$0xff]
  %v1440 = vld [vmem:[%s5 + $0x2b0] sm:$0xff]
  %v1441 = vld [vmem:[%s5 + $0x2b8] sm:$0xff]
  %v1442 = vld [vmem:[%s5 + $0x2c0] sm:$0xff]
  %v1443 = vld [vmem:[%s5 + $0x2c8] sm:$0xff]
  %v1444 = vld [vmem:[%s5 + $0x2d0] sm:$0xff]
  %v1445 = vld [vmem:[%s5 + $0x2d8] sm:$0xff]
  %v1446 = vld [vmem:[%s5 + $0x2e0] sm:$0xff]
  %v1447 = vld [vmem:[%s5 + $0x2e8] sm:$0xff]
  %v1448 = vld [vmem:[%s5 + $0x2f0] sm:$0xff]
  %v1449 = vld [vmem:[%s5 + $0x2f8] sm:$0xff]
  %v1450 = vld [vmem:[%s5 + $0x300] sm:$0xff]
  %v1451 = vld [vmem:[%s5 + $0x308] sm:$0xff]
  %v1452 = vld [vmem:[%s5 + $0x310] sm:$0xff]
  %v1453 = vld [vmem:[%s5 + $0x318] sm:$0xff]
  %v1454 = vld [vmem:[%s5 + $0x320] sm:$0xff]
  %v1455 = vld [vmem:[%s5 + $0x328] sm:$0xff]
  %v1456 = vld [vmem:[%s5 + $0x330] sm:$0xff]
  %v1457 = vld [vmem:[%s5 + $0x338] sm:$0xff]
  %v1458 = vld [vmem:[%s5 + $0x340] sm:$0xff]
  %v1459 = vld [vmem:[%s5 + $0x348] sm:$0xff]
  %v1460 = vld [vmem:[%s5 + $0x350] sm:$0xff]
  %v1461 = vld [vmem:[%s5 + $0x358] sm:$0xff]
  %v1462 = vld [vmem:[%s5 + $0x360] sm:$0xff]
  %v1463 = vld [vmem:[%s5 + $0x368] sm:$0xff]
  %v1464 = vld [vmem:[%s5 + $0x370] sm:$0xff]
  %v1465 = vld [vmem:[%s5 + $0x378] sm:$0xff]
  %v1466 = vld [vmem:[%s5 + $0x380] sm:$0xff]
  %v1467 = vld [vmem:[%s5 + $0x388] sm:$0xff]
  %v1468 = vld [vmem:[%s5 + $0x390] sm:$0xff]
  %v1469 = vld [vmem:[%s5 + $0x398] sm:$0xff]
  %v1470 = vld [vmem:[%s5 + $0x3a0] sm:$0xff]
  %v1471 = vld [vmem:[%s5 + $0x3a8] sm:$0xff]
  %v1472 = vld [vmem:[%s5 + $0x3b0] sm:$0xff]
  %v1473 = vld [vmem:[%s5 + $0x3b8] sm:$0xff]
  %v1474 = vld [vmem:[%s5 + $0x3c0] sm:$0xff]
  %v1475 = vld [vmem:[%s5 + $0x3c8] sm:$0xff]
  %v1476 = vld [vmem:[%s5 + $0x3d0] sm:$0xff]
  %v1477 = vld [vmem:[%s5 + $0x3d8] sm:$0xff]
  %v1478 = vld [vmem:[%s5 + $0x3e0] sm:$0xff]
  %v1479 = vld [vmem:[%s5 + $0x3e8] sm:$0xff]
  %v1480 = vld [vmem:[%s5 + $0x3f0] sm:$0xff]
  %v1481 = vld [vmem:[%s5 + $0x3f8] sm:$0xff]
  %v1482 = vld [vmem:[%s5 + $0x400] sm:$0xff]
  %v1483 = vld [vmem:[%s5 + $0x408] sm:$0xff]
  %v1484 = vld [vmem:[%s5 + $0x410] sm:$0xff]
  %v1485 = vld [vmem:[%s5 + $0x418] sm:$0xff]
  %v1486 = vld [vmem:[%s5 + $0x420] sm:$0xff]
  %v1487 = vld [vmem:[%s5 + $0x428] sm:$0xff]
  %v1488 = vld [vmem:[%s5 + $0x430] sm:$0xff]
  %v1489 = vld [vmem:[%s5 + $0x438] sm:$0xff]
  %v1490 = vld [vmem:[%s5 + $0x440] sm:$0xff]
  %v1491 = vld [vmem:[%s5 + $0x448] sm:$0xff]
  %v1492 = vld [vmem:[%s5 + $0x450] sm:$0xff]
  %v1493 = vld [vmem:[%s5 + $0x458] sm:$0xff]
  %v1494 = vld [vmem:[%s5 + $0x460] sm:$0xff]
  %v1495 = vld [vmem:[%s5 + $0x468] sm:$0xff]
  %v1496 = vld [vmem:[%s5 + $0x470] sm:$0xff]
  %v1497 = vld [vmem:[%s5 + $0x478] sm:$0xff]
  %v1498 = vld [vmem:[%s5 + $0x480] sm:$0xff]
  %v1499 = vld [vmem:[%s5 + $0x488] sm:$0xff]
  %v1500 = vld [vmem:[%s5 + $0x490] sm:$0xff]
  %v1501 = vld [vmem:[%s5 + $0x498] sm:$0xff]
  %v1502 = vld [vmem:[%s5 + $0x4a0] sm:$0xff]
  %v1503 = vld [vmem:[%s5 + $0x4a8] sm:$0xff]
  %v1504 = vld [vmem:[%s5 + $0x4b0] sm:$0xff]
  %v1505 = vld [vmem:[%s5 + $0x4b8] sm:$0xff]
  %v1506 = vld [vmem:[%s5 + $0x4c0] sm:$0xff]
  %v1507 = vld [vmem:[%s5 + $0x4c8] sm:$0xff]
  %v1508 = vld [vmem:[%s5 + $0x4d0] sm:$0xff]
  %v1509 = vld [vmem:[%s5 + $0x4d8] sm:$0xff]
  %v1510 = vld [vmem:[%s5 + $0x4e0] sm:$0xff]
  %v1511 = vld [vmem:[%s5 + $0x4e8] sm:$0xff]
  %v1512 = vld [vmem:[%s5 + $0x4f0] sm:$0xff]
  %v1513 = vld [vmem:[%s5 + $0x4f8] sm:$0xff]
  %v1514 = vld [vmem:[%s5 + $0x500] sm:$0xff]
  %v1515 = vld [vmem:[%s5 + $0x508] sm:$0xff]
  %v1516 = vld [vmem:[%s5 + $0x510] sm:$0xff]
  %v1517 = vld [vmem:[%s5 + $0x518] sm:$0xff]
  %v1518 = vld [vmem:[%s5 + $0x520] sm:$0xff]
  %v1519 = vld [vmem:[%s5 + $0x528] sm:$0xff]
  %v1520 = vld [vmem:[%s5 + $0x530] sm:$0xff]
  %v1521 = vld [vmem:[%s5 + $0x538] sm:$0xff]
  %v1522 = vld [vmem:[%s5 + $0x540] sm:$0xff]
  %v1523 = vld [vmem:[%s5 + $0x548] sm:$0xff]
  %v1524 = vld [vmem:[%s5 + $0x550] sm:$0xff]
  %v1525 = vld [vmem:[%s5 + $0x558] sm:$0xff]
  %v1526 = vld [vmem:[%s5 + $0x560] sm:$0xff]
  %v1527 = vld [vmem:[%s5 + $0x568] sm:$0xff]
  %v1528 = vld [vmem:[%s5 + $0x570] sm:$0xff]
  %v1529 = vld [vmem:[%s5 + $0x578] sm:$0xff]
  %v1530 = vld [vmem:[%s5 + $0x580] sm:$0xff]
  %v1531 = vld [vmem:[%s5 + $0x588] sm:$0xff]
  %v1532 = vld [vmem:[%s5 + $0x590] sm:$0xff]
  %v1533 = vld [vmem:[%s5 + $0x598] sm:$0xff]
  %v1534 = vld [vmem:[%s5 + $0x5a0] sm:$0xff]
  %v1535 = vld [vmem:[%s5 + $0x5a8] sm:$0xff]
  %v1536 = vld [vmem:[%s5 + $0x5b0] sm:$0xff]
  %v1537 = vld [vmem:[%s5 + $0x5b8] sm:$0xff]
  %v1538 = vld [vmem:[%s5 + $0x5c0] sm:$0xff]
  %v1539 = vld [vmem:[%s5 + $0x5c8] sm:$0xff]
  %v1540 = vld [vmem:[%s5 + $0x5d0] sm:$0xff]
  %v1541 = vld [vmem:[%s5 + $0x5d8] sm:$0xff]
  %v1542 = vld [vmem:[%s5 + $0x5e0] sm:$0xff]
  %v1543 = vld [vmem:[%s5 + $0x5e8] sm:$0xff]
  %v1544 = vld [vmem:[%s5 + $0x5f0] sm:$0xff]
  %v1545 = vld [vmem:[%s5 + $0x5f8] sm:$0xff]
  %v1546 = vld [vmem:[%s5 + $0x600] sm:$0xff]
  %v1547 = vld [vmem:[%s5 + $0x608] sm:$0xff]
  %v1548 = vld [vmem:[%s5 + $0x610] sm:$0xff]
  %v1549 = vld [vmem:[%s5 + $0x618] sm:$0xff]
  %v1550 = vld [vmem:[%s5 + $0x620] sm:$0xff]
  %v1551 = vld [vmem:[%s5 + $0x628] sm:$0xff]
  %v1552 = vld [vmem:[%s5 + $0x630] sm:$0xff]
  %v1553 = vld [vmem:[%s5 + $0x638] sm:$0xff]
  %v1554 = vld [vmem:[%s5 + $0x640] sm:$0xff]
  %v1555 = vld [vmem:[%s5 + $0x648] sm:$0xff]
  %v1556 = vld [vmem:[%s5 + $0x650] sm:$0xff]
  %v1557 = vld [vmem:[%s5 + $0x658] sm:$0xff]
  %v1558 = vld [vmem:[%s5 + $0x660] sm:$0xff]
  %v1559 = vld [vmem:[%s5 + $0x668] sm:$0xff]
  %v1560 = vld [vmem:[%s5 + $0x670] sm:$0xff]
  %v1561 = vld [vmem:[%s5 + $0x678] sm:$0xff]
  %v1562 = vld [vmem:[%s5 + $0x680] sm:$0xff]
  %v1563 = vld [vmem:[%s5 + $0x688] sm:$0xff]
  %v1564 = vld [vmem:[%s5 + $0x690] sm:$0xff]
  %v1565 = vld [vmem:[%s5 + $0x698] sm:$0xff]
  %v1566 = vld [vmem:[%s5 + $0x6a0] sm:$0xff]
  %v1567 = vld [vmem:[%s5 + $0x6a8] sm:$0xff]
  %v1568 = vld [vmem:[%s5 + $0x6b0] sm:$0xff]
  %v1569 = vld [vmem:[%s5 + $0x6b8] sm:$0xff]
  %v1570 = vld [vmem:[%s5 + $0x6c0] sm:$0xff]
  %v1571 = vld [vmem:[%s5 + $0x6c8] sm:$0xff]
  %v1572 = vld [vmem:[%s5 + $0x6d0] sm:$0xff]
  %v1573 = vld [vmem:[%s5 + $0x6d8] sm:$0xff]
  %v1574 = vld [vmem:[%s5 + $0x6e0] sm:$0xff]
  %v1575 = vld [vmem:[%s5 + $0x6e8] sm:$0xff]
  %v1576 = vld [vmem:[%s5 + $0x6f0] sm:$0xff]
  %v1577 = vld [vmem:[%s5 + $0x6f8] sm:$0xff]
  %v1578 = vld [vmem:[%s5 + $0x700] sm:$0xff]
  %v1579 = vld [vmem:[%s5 + $0x708] sm:$0xff]
  %v1580 = vld [vmem:[%s5 + $0x710] sm:$0xff]
  %v1581 = vld [vmem:[%s5 + $0x718] sm:$0xff]
  %v1582 = vld [vmem:[%s5 + $0x720] sm:$0xff]
  %v1583 = vld [vmem:[%s5 + $0x728] sm:$0xff]
  %v1584 = vld [vmem:[%s5 + $0x730] sm:$0xff]
  %v1585 = vld [vmem:[%s5 + $0x738] sm:$0xff]
  %v1586 = vld [vmem:[%s5 + $0x740] sm:$0xff]
  %v1587 = vld [vmem:[%s5 + $0x748] sm:$0xff]
  %v1588 = vld [vmem:[%s5 + $0x750] sm:$0xff]
  %v1589 = vld [vmem:[%s5 + $0x758] sm:$0xff]
  %v1590 = vld [vmem:[%s5 + $0x760] sm:$0xff]
  %v1591 = vld [vmem:[%s5 + $0x768] sm:$0xff]
  %v1592 = vld [vmem:[%s5 + $0x770] sm:$0xff]
  %v1593 = vld [vmem:[%s5 + $0x778] sm:$0xff]
  %v1594 = vld [vmem:[%s5 + $0x780] sm:$0xff]
  %v1595 = vld [vmem:[%s5 + $0x788] sm:$0xff]
  %v1596 = vld [vmem:[%s5 + $0x790] sm:$0xff]
  %v1597 = vld [vmem:[%s5 + $0x798] sm:$0xff]
  %v1598 = vld [vmem:[%s5 + $0x7a0] sm:$0xff]
  %v1599 = vld [vmem:[%s5 + $0x7a8] sm:$0xff]
  %v1600 = vld [vmem:[%s5 + $0x7b0] sm:$0xff]
  %v1601 = vld [vmem:[%s5 + $0x7b8] sm:$0xff]
  %v1602 = vld [vmem:[%s5 + $0x7c0] sm:$0xff]
  %v1603 = vld [vmem:[%s5 + $0x7c8] sm:$0xff]
  %v1604 = vld [vmem:[%s5 + $0x7d0] sm:$0xff]
  %v1605 = vld [vmem:[%s5 + $0x7d8] sm:$0xff]
  %v1606 = vld [vmem:[%s5 + $0x7e0] sm:$0xff]
  %v1607 = vld [vmem:[%s5 + $0x7e8] sm:$0xff]
  %v1608 = vld [vmem:[%s5 + $0x7f0] sm:$0xff]
  %v1609 = vld [vmem:[%s5 + $0x7f8] sm:$0xff]
  %v1610 = vld [vmem:[%s5 + $0x800] sm:$0xff]
  %v1611 = vld [vmem:[%s5 + $0x808] sm:$0xff]
  %v1612 = vld [vmem:[%s5 + $0x810] sm:$0xff]
  %v1613 = vld [vmem:[%s5 + $0x818] sm:$0xff]
  %v1614 = vld [vmem:[%s5 + $0x820] sm:$0xff]
  %v1615 = vld [vmem:[%s5 + $0x828] sm:$0xff]
  %v1616 = vld [vmem:[%s5 + $0x830] sm:$0xff]
  %v1617 = vld [vmem:[%s5 + $0x838] sm:$0xff]
  %v1618 = vld [vmem:[%s5 + $0x840] sm:$0xff]
  %v1619 = vld [vmem:[%s5 + $0x848] sm:$0xff]
  %v1620 = vld [vmem:[%s5 + $0x850] sm:$0xff]
  %v1621 = vld [vmem:[%s5 + $0x858] sm:$0xff]
  %v1622 = vld [vmem:[%s5 + $0x860] sm:$0xff]
  %v1623 = vld [vmem:[%s5 + $0x868] sm:$0xff]
  %v1624 = vld [vmem:[%s5 + $0x870] sm:$0xff]
  %v1625 = vld [vmem:[%s5 + $0x878] sm:$0xff]
  %v1626 = vld [vmem:[%s5 + $0x880] sm:$0xff]
  %v1627 = vld [vmem:[%s5 + $0x888] sm:$0xff]
  %v1628 = vld [vmem:[%s5 + $0x890] sm:$0xff]
  %v1629 = vld [vmem:[%s5 + $0x898] sm:$0xff]
  %v1630 = vld [vmem:[%s5 + $0x8a0] sm:$0xff]
  %v1631 = vld [vmem:[%s5 + $0x8a8] sm:$0xff]
  %v1632 = vld [vmem:[%s5 + $0x8b0] sm:$0xff]
  %v1633 = vld [vmem:[%s5 + $0x8b8] sm:$0xff]
  %v1634 = vld [vmem:[%s5 + $0x8c0] sm:$0xff]
  %v1635 = vld [vmem:[%s5 + $0x8c8] sm:$0xff]
  %v1636 = vld [vmem:[%s5 + $0x8d0] sm:$0xff]
  %v1637 = vld [vmem:[%s5 + $0x8d8] sm:$0xff]
  %v1638 = vld [vmem:[%s5 + $0x8e0] sm:$0xff]
  %v1639 = vld [vmem:[%s5 + $0x8e8] sm:$0xff]
  %v1640 = vld [vmem:[%s5 + $0x8f0] sm:$0xff]
  %v1641 = vld [vmem:[%s5 + $0x8f8] sm:$0xff]
  %v1642 = vld [vmem:[%s5 + $0x900] sm:$0xff]
  %v1643 = vld [vmem:[%s5 + $0x908] sm:$0xff]
  %v1644 = vld [vmem:[%s5 + $0x910] sm:$0xff]
  %v1645 = vld [vmem:[%s5 + $0x918] sm:$0xff]
  %v1646 = vld [vmem:[%s5 + $0x920] sm:$0xff]
  %v1647 = vld [vmem:[%s5 + $0x928] sm:$0xff]
  %v1648 = vld [vmem:[%s5 + $0x930] sm:$0xff]
  %v1649 = vld [vmem:[%s5 + $0x938] sm:$0xff]
  %v1650 = vld [vmem:[%s5 + $0x940] sm:$0xff]
  %v1651 = vld [vmem:[%s5 + $0x948] sm:$0xff]
  %v1652 = vld [vmem:[%s5 + $0x950] sm:$0xff]
  %v1653 = vld [vmem:[%s5 + $0x958] sm:$0xff]
  %v1654 = vld [vmem:[%s5 + $0x960] sm:$0xff]
  %v1655 = vld [vmem:[%s5 + $0x968] sm:$0xff]
  %v1656 = vld [vmem:[%s5 + $0x970] sm:$0xff]
  %v1657 = vld [vmem:[%s5 + $0x978] sm:$0xff]
  %v1658 = vld [vmem:[%s5 + $0x980] sm:$0xff]
  %v1659 = vld [vmem:[%s5 + $0x988] sm:$0xff]
  %v1660 = vld [vmem:[%s5 + $0x990] sm:$0xff]
  %v1661 = vld [vmem:[%s5 + $0x998] sm:$0xff]
  %v1662 = vld [vmem:[%s5 + $0x9a0] sm:$0xff]
  %v1663 = vld [vmem:[%s5 + $0x9a8] sm:$0xff]
  %v1664 = vld [vmem:[%s5 + $0x9b0] sm:$0xff]
  %v1665 = vld [vmem:[%s5 + $0x9b8] sm:$0xff]
  %v1666 = vld [vmem:[%s5 + $0x9c0] sm:$0xff]
  %v1667 = vld [vmem:[%s5 + $0x9c8] sm:$0xff]
  %v1668 = vld [vmem:[%s5 + $0x9d0] sm:$0xff]
  %v1669 = vld [vmem:[%s5 + $0x9d8] sm:$0xff]
  %v1670 = vld [vmem:[%s5 + $0x9e0] sm:$0xff]
  %v1671 = vld [vmem:[%s5 + $0x9e8] sm:$0xff]
  %v1672 = vld [vmem:[%s5 + $0x9f0] sm:$0xff]
  %v1673 = vld [vmem:[%s5 + $0x9f8] sm:$0xff]
  %v1674 = vld [vmem:[%s5 + $0xa00] sm:$0xff]
  %v1675 = vld [vmem:[%s5 + $0xa08] sm:$0xff]
  %v1676 = vld [vmem:[%s5 + $0xa10] sm:$0xff]
  %v1677 = vld [vmem:[%s5 + $0xa18] sm:$0xff]
  %v1678 = vld [vmem:[%s5 + $0xa20] sm:$0xff]
  %v1679 = vld [vmem:[%s5 + $0xa28] sm:$0xff]
  %v1680 = vld [vmem:[%s5 + $0xa30] sm:$0xff]
  %v1681 = vld [vmem:[%s5 + $0xa38] sm:$0xff]
  %v1682 = vld [vmem:[%s5 + $0xa40] sm:$0xff]
  %v1683 = vld [vmem:[%s5 + $0xa48] sm:$0xff]
  %v1684 = vld [vmem:[%s5 + $0xa50] sm:$0xff]
  %v1685 = vld [vmem:[%s5 + $0xa58] sm:$0xff]
  %v1686 = vld [vmem:[%s5 + $0xa60] sm:$0xff]
  %v1687 = vld [vmem:[%s5 + $0xa68] sm:$0xff]
  %v1688 = vld [vmem:[%s5 + $0xa70] sm:$0xff]
  %v1689 = vld [vmem:[%s5 + $0xa78] sm:$0xff]
  %v1690 = vld [vmem:[%s5 + $0xa80] sm:$0xff]
  %v1691 = vld [vmem:[%s5 + $0xa88] sm:$0xff]
  %v1692 = vld [vmem:[%s5 + $0xa90] sm:$0xff]
  %v1693 = vld [vmem:[%s5 + $0xa98] sm:$0xff]
  %v1694 = vld [vmem:[%s5 + $0xaa0] sm:$0xff]
  %v1695 = vld [vmem:[%s5 + $0xaa8] sm:$0xff]
  %v1696 = vld [vmem:[%s5 + $0xab0] sm:$0xff]
  %v1697 = vld [vmem:[%s5 + $0xab8] sm:$0xff]
  %v1698 = vld [vmem:[%s5 + $0xac0] sm:$0xff]
  %v1699 = vld [vmem:[%s5 + $0xac8] sm:$0xff]
  %v1700 = vld [vmem:[%s5 + $0xad0] sm:$0xff]
  %v1701 = vld [vmem:[%s5 + $0xad8] sm:$0xff]
  %v1702 = vld [vmem:[%s5 + $0xae0] sm:$0xff]
  %v1703 = vld [vmem:[%s5 + $0xae8] sm:$0xff]
  %v1704 = vld [vmem:[%s5 + $0xaf0] sm:$0xff]
  %v1705 = vld [vmem:[%s5 + $0xaf8] sm:$0xff]
  %v1706 = vld [vmem:[%s5 + $0xb00] sm:$0xff]
  %v1707 = vld [vmem:[%s5 + $0xb08] sm:$0xff]
  %v1708 = vld [vmem:[%s5 + $0xb10] sm:$0xff]
  %v1709 = vld [vmem:[%s5 + $0xb18] sm:$0xff]
  %v1710 = vld [vmem:[%s5 + $0xb20] sm:$0xff]
  %v1711 = vld [vmem:[%s5 + $0xb28] sm:$0xff]
  %v1712 = vld [vmem:[%s5 + $0xb30] sm:$0xff]
  %v1713 = vld [vmem:[%s5 + $0xb38] sm:$0xff]
  %v1714 = vld [vmem:[%s5 + $0xb40] sm:$0xff]
  %v1715 = vld [vmem:[%s5 + $0xb48] sm:$0xff]
  %v1716 = vld [vmem:[%s5 + $0xb50] sm:$0xff]
  %v1717 = vld [vmem:[%s5 + $0xb58] sm:$0xff]
  %v1718 = vld [vmem:[%s5 + $0xb60] sm:$0xff]
  %v1719 = vld [vmem:[%s5 + $0xb68] sm:$0xff]
  %v1720 = vld [vmem:[%s5 + $0xb70] sm:$0xff]
  %v1721 = vld [vmem:[%s5 + $0xb78] sm:$0xff]
  %v1722 = vld [vmem:[%s5 + $0xb80] sm:$0xff]
  %v1723 = vld [vmem:[%s5 + $0xb88] sm:$0xff]
  %v1724 = vld [vmem:[%s5 + $0xb90] sm:$0xff]
  %v1725 = vld [vmem:[%s5 + $0xb98] sm:$0xff]
  %v1726 = vld [vmem:[%s5 + $0xba0] sm:$0xff]
  %v1727 = vld [vmem:[%s5 + $0xba8] sm:$0xff]
  %v1728 = vld [vmem:[%s5 + $0xbb0] sm:$0xff]
  %v1729 = vld [vmem:[%s5 + $0xbb8] sm:$0xff]
  %v1730 = vld [vmem:[%s5 + $0xbc0] sm:$0xff]
  %v1731 = vld [vmem:[%s5 + $0xbc8] sm:$0xff]
  %v1732 = vld [vmem:[%s5 + $0xbd0] sm:$0xff]
  %v1733 = vld [vmem:[%s5 + $0xbd8] sm:$0xff]
  %v1734 = vld [vmem:[%s5 + $0xbe0] sm:$0xff]
  %v1735 = vld [vmem:[%s5 + $0xbe8] sm:$0xff]
  %v1736 = vld [vmem:[%s5 + $0xbf0] sm:$0xff]
  %v1737 = vld [vmem:[%s5 + $0xbf8] sm:$0xff]
  %v1738 = vld [vmem:[%s5 + $0xc00] sm:$0xff]
  %v1739 = vld [vmem:[%s5 + $0xc08] sm:$0xff]
  %v1740 = vld [vmem:[%s5 + $0xc10] sm:$0xff]
  %v1741 = vld [vmem:[%s5 + $0xc18] sm:$0xff]
  %v1742 = vld [vmem:[%s5 + $0xc20] sm:$0xff]
  %v1743 = vld [vmem:[%s5 + $0xc28] sm:$0xff]
  %v1744 = vld [vmem:[%s5 + $0xc30] sm:$0xff]
  %v1745 = vld [vmem:[%s5 + $0xc38] sm:$0xff]
  %v1746 = vld [vmem:[%s5 + $0xc40] sm:$0xff]
  %v1747 = vld [vmem:[%s5 + $0xc48] sm:$0xff]
  %v1748 = vld [vmem:[%s5 + $0xc50] sm:$0xff]
  %v1749 = vld [vmem:[%s5 + $0xc58] sm:$0xff]
  %v1750 = vld [vmem:[%s5 + $0xc60] sm:$0xff]
  %v1751 = vld [vmem:[%s5 + $0xc68] sm:$0xff]
  %v1752 = vld [vmem:[%s5 + $0xc70] sm:$0xff]
  %v1753 = vld [vmem:[%s5 + $0xc78] sm:$0xff]
  %v1754 = vld [vmem:[%s6] sm:$0xff]
  %v1755 = vld [vmem:[%s6 + $0x8] sm:$0x3]
  %v1758 = vlaneseq
  %v1759 = vshrl.u32 %v1758, 7
  %v1760 = vsub.s32 0, %v1759
  %v1761 = vrot.slane %v1754, %v1760
  %v1762 = vlaneseq
  %v1763 = vshrl.u32 %v1762, 7
  %v1764 = vsub.s32 1, %v1763
  %v1765 = vrot.slane %v1754, %v1764
  %v1766 = vlaneseq
  %v1767 = vshrl.u32 %v1766, 7
  %v1768 = vsub.s32 2, %v1767
  %v1769 = vrot.slane %v1754, %v1768
  %v1770 = vlaneseq
  %v1771 = vshrl.u32 %v1770, 7
  %v1772 = vsub.s32 3, %v1771
  %v1773 = vrot.slane %v1754, %v1772
  %v1774 = vlaneseq
  %v1775 = vshrl.u32 %v1774, 7
  %v1776 = vsub.s32 4, %v1775
  %v1777 = vrot.slane %v1754, %v1776
  %v1778 = vlaneseq
  %v1779 = vshrl.u32 %v1778, 7
  %v1780 = vsub.s32 5, %v1779
  %v1781 = vrot.slane %v1754, %v1780
  %v1782 = vlaneseq
  %v1783 = vshrl.u32 %v1782, 7
  %v1784 = vsub.s32 6, %v1783
  %v1785 = vrot.slane %v1754, %v1784
  %v1786 = vlaneseq
  %v1787 = vshrl.u32 %v1786, 7
  %v1788 = vsub.s32 7, %v1787
  %v1789 = vrot.slane %v1754, %v1788
  %v1790 = vlaneseq
  %v1791 = vshrl.u32 %v1790, 7
  %v1792 = vsub.s32 0, %v1791
  %v1793 = vrot.slane %v1755, %v1792
  %v1794 = vlaneseq
  %v1795 = vshrl.u32 %v1794, 7
  %v1796 = vsub.s32 1, %v1795
  %v1797 = vrot.slane %v1755, %v1796
  %v2208 = vunpack.c.l.b16 %v1354
  %v2209 = vunpack.c.h.b16 %v1354
  %v2210 = vunpack.c.l.b16 %v1355
  %v2211 = vunpack.c.h.b16 %v1355
  %v2212 = vunpack.c.l.b16 %v1356
  %v2213 = vunpack.c.h.b16 %v1356
  %v2214 = vunpack.c.l.b16 %v1357
  %v2215 = vunpack.c.h.b16 %v1357
  %v2216 = vunpack.c.l.b16 %v1358
  %v2217 = vunpack.c.h.b16 %v1358
  %v2218 = vunpack.c.l.b16 %v1359
  %v2219 = vunpack.c.h.b16 %v1359
  %v2220 = vunpack.c.l.b16 %v1360
  %v2221 = vunpack.c.h.b16 %v1360
  %v2222 = vunpack.c.l.b16 %v1361
  %v2223 = vunpack.c.h.b16 %v1361
  %v2224 = vunpack.c.l.b16 %v1362
  %v2225 = vunpack.c.h.b16 %v1362
  %v2226 = vunpack.c.l.b16 %v1363
  %v2227 = vunpack.c.h.b16 %v1363
  %v2228 = vunpack.c.l.b16 %v1364
  %v2229 = vunpack.c.h.b16 %v1364
  %v2230 = vunpack.c.l.b16 %v1365
  %v2231 = vunpack.c.h.b16 %v1365
  %v2232 = vunpack.c.l.b16 %v1366
  %v2233 = vunpack.c.h.b16 %v1366
  %v2234 = vunpack.c.l.b16 %v1367
  %v2235 = vunpack.c.h.b16 %v1367
  %v2236 = vunpack.c.l.b16 %v1368
  %v2237 = vunpack.c.h.b16 %v1368
  %v2238 = vunpack.c.l.b16 %v1369
  %v2239 = vunpack.c.h.b16 %v1369
  %v2240 = vunpack.c.l.b16 %v1370
  %v2241 = vunpack.c.h.b16 %v1370
  %v2242 = vunpack.c.l.b16 %v1371
  %v2243 = vunpack.c.h.b16 %v1371
  %v2244 = vunpack.c.l.b16 %v1372
  %v2245 = vunpack.c.h.b16 %v1372
  %v2246 = vunpack.c.l.b16 %v1373
  %v2247 = vunpack.c.h.b16 %v1373
  %v2248 = vunpack.c.l.b16 %v1374
  %v2249 = vunpack.c.h.b16 %v1374
  %v2250 = vunpack.c.l.b16 %v1375
  %v2251 = vunpack.c.h.b16 %v1375
  %v2252 = vunpack.c.l.b16 %v1376
  %v2253 = vunpack.c.h.b16 %v1376
  %v2254 = vunpack.c.l.b16 %v1377
  %v2255 = vunpack.c.h.b16 %v1377
  %v2256 = vunpack.c.l.b16 %v1378
  %v2257 = vunpack.c.h.b16 %v1378
  %v2258 = vunpack.c.l.b16 %v1379
  %v2259 = vunpack.c.h.b16 %v1379
  %v2260 = vunpack.c.l.b16 %v1380
  %v2261 = vunpack.c.h.b16 %v1380
  %v2262 = vunpack.c.l.b16 %v1381
  %v2263 = vunpack.c.h.b16 %v1381
  %v2264 = vunpack.c.l.b16 %v1382
  %v2265 = vunpack.c.h.b16 %v1382
  %v2266 = vunpack.c.l.b16 %v1383
  %v2267 = vunpack.c.h.b16 %v1383
  %v2268 = vunpack.c.l.b16 %v1384
  %v2269 = vunpack.c.h.b16 %v1384
  %v2270 = vunpack.c.l.b16 %v1385
  %v2271 = vunpack.c.h.b16 %v1385
  %v2272 = vunpack.c.l.b16 %v1386
  %v2273 = vunpack.c.h.b16 %v1386
  %v2274 = vunpack.c.l.b16 %v1387
  %v2275 = vunpack.c.h.b16 %v1387
  %v2276 = vunpack.c.l.b16 %v1388
  %v2277 = vunpack.c.h.b16 %v1388
  %v2278 = vunpack.c.l.b16 %v1389
  %v2279 = vunpack.c.h.b16 %v1389
  %v2280 = vunpack.c.l.b16 %v1390
  %v2281 = vunpack.c.h.b16 %v1390
  %v2282 = vunpack.c.l.b16 %v1391
  %v2283 = vunpack.c.h.b16 %v1391
  %v2284 = vunpack.c.l.b16 %v1392
  %v2285 = vunpack.c.h.b16 %v1392
  %v2286 = vunpack.c.l.b16 %v1393
  %v2287 = vunpack.c.h.b16 %v1393
  %v2288 = vunpack.c.l.b16 %v1394
  %v2289 = vunpack.c.h.b16 %v1394
  %v2290 = vunpack.c.l.b16 %v1395
  %v2291 = vunpack.c.h.b16 %v1395
  %v2292 = vunpack.c.l.b16 %v1396
  %v2293 = vunpack.c.h.b16 %v1396
  %v2294 = vunpack.c.l.b16 %v1397
  %v2295 = vunpack.c.h.b16 %v1397
  %v2296 = vunpack.c.l.b16 %v1398
  %v2297 = vunpack.c.h.b16 %v1398
  %v2298 = vunpack.c.l.b16 %v1399
  %v2299 = vunpack.c.h.b16 %v1399
  %v2300 = vunpack.c.l.b16 %v1400
  %v2301 = vunpack.c.h.b16 %v1400
  %v2302 = vunpack.c.l.b16 %v1401
  %v2303 = vunpack.c.h.b16 %v1401
  %v2304 = vunpack.c.l.b16 %v1402
  %v2305 = vunpack.c.h.b16 %v1402
  %v2306 = vunpack.c.l.b16 %v1403
  %v2307 = vunpack.c.h.b16 %v1403
  %v2308 = vunpack.c.l.b16 %v1404
  %v2309 = vunpack.c.h.b16 %v1404
  %v2310 = vunpack.c.l.b16 %v1405
  %v2311 = vunpack.c.h.b16 %v1405
  %v2312 = vunpack.c.l.b16 %v1406
  %v2313 = vunpack.c.h.b16 %v1406
  %v2314 = vunpack.c.l.b16 %v1407
  %v2315 = vunpack.c.h.b16 %v1407
  %v2316 = vunpack.c.l.b16 %v1408
  %v2317 = vunpack.c.h.b16 %v1408
  %v2318 = vunpack.c.l.b16 %v1409
  %v2319 = vunpack.c.h.b16 %v1409
  %v2320 = vunpack.c.l.b16 %v1410
  %v2321 = vunpack.c.h.b16 %v1410
  %v2322 = vunpack.c.l.b16 %v1411
  %v2323 = vunpack.c.h.b16 %v1411
  %v2324 = vunpack.c.l.b16 %v1412
  %v2325 = vunpack.c.h.b16 %v1412
  %v2326 = vunpack.c.l.b16 %v1413
  %v2327 = vunpack.c.h.b16 %v1413
  %v2328 = vunpack.c.l.b16 %v1414
  %v2329 = vunpack.c.h.b16 %v1414
  %v2330 = vunpack.c.l.b16 %v1415
  %v2331 = vunpack.c.h.b16 %v1415
  %v2332 = vunpack.c.l.b16 %v1416
  %v2333 = vunpack.c.h.b16 %v1416
  %v2334 = vunpack.c.l.b16 %v1417
  %v2335 = vunpack.c.h.b16 %v1417
  %v2336 = vunpack.c.l.b16 %v1418
  %v2337 = vunpack.c.h.b16 %v1418
  %v2338 = vunpack.c.l.b16 %v1419
  %v2339 = vunpack.c.h.b16 %v1419
  %v2340 = vunpack.c.l.b16 %v1420
  %v2341 = vunpack.c.h.b16 %v1420
  %v2342 = vunpack.c.l.b16 %v1421
  %v2343 = vunpack.c.h.b16 %v1421
  %v2344 = vunpack.c.l.b16 %v1422
  %v2345 = vunpack.c.h.b16 %v1422
  %v2346 = vunpack.c.l.b16 %v1423
  %v2347 = vunpack.c.h.b16 %v1423
  %v2348 = vunpack.c.l.b16 %v1424
  %v2349 = vunpack.c.h.b16 %v1424
  %v2350 = vunpack.c.l.b16 %v1425
  %v2351 = vunpack.c.h.b16 %v1425
  %v2352 = vunpack.c.l.b16 %v1426
  %v2353 = vunpack.c.h.b16 %v1426
  %v2354 = vunpack.c.l.b16 %v1427
  %v2355 = vunpack.c.h.b16 %v1427
  %v2356 = vunpack.c.l.b16 %v1428
  %v2357 = vunpack.c.h.b16 %v1428
  %v2358 = vunpack.c.l.b16 %v1429
  %v2359 = vunpack.c.h.b16 %v1429
  %v2360 = vunpack.c.l.b16 %v1430
  %v2361 = vunpack.c.h.b16 %v1430
  %v2362 = vunpack.c.l.b16 %v1431
  %v2363 = vunpack.c.h.b16 %v1431
  %v2364 = vunpack.c.l.b16 %v1432
  %v2365 = vunpack.c.h.b16 %v1432
  %v2366 = vunpack.c.l.b16 %v1433
  %v2367 = vunpack.c.h.b16 %v1433
  %v2368 = vunpack.c.l.b16 %v1434
  %v2369 = vunpack.c.h.b16 %v1434
  %v2370 = vunpack.c.l.b16 %v1435
  %v2371 = vunpack.c.h.b16 %v1435
  %v2372 = vunpack.c.l.b16 %v1436
  %v2373 = vunpack.c.h.b16 %v1436
  %v2374 = vunpack.c.l.b16 %v1437
  %v2375 = vunpack.c.h.b16 %v1437
  %v2376 = vunpack.c.l.b16 %v1438
  %v2377 = vunpack.c.h.b16 %v1438
  %v2378 = vunpack.c.l.b16 %v1439
  %v2379 = vunpack.c.h.b16 %v1439
  %v2380 = vunpack.c.l.b16 %v1440
  %v2381 = vunpack.c.h.b16 %v1440
  %v2382 = vunpack.c.l.b16 %v1441
  %v2383 = vunpack.c.h.b16 %v1441
  %v2384 = vunpack.c.l.b16 %v1442
  %v2385 = vunpack.c.h.b16 %v1442
  %v2386 = vunpack.c.l.b16 %v1443
  %v2387 = vunpack.c.h.b16 %v1443
  %v2388 = vunpack.c.l.b16 %v1444
  %v2389 = vunpack.c.h.b16 %v1444
  %v2390 = vunpack.c.l.b16 %v1445
  %v2391 = vunpack.c.h.b16 %v1445
  %v2392 = vunpack.c.l.b16 %v1446
  %v2393 = vunpack.c.h.b16 %v1446
  %v2394 = vunpack.c.l.b16 %v1447
  %v2395 = vunpack.c.h.b16 %v1447
  %v2396 = vunpack.c.l.b16 %v1448
  %v2397 = vunpack.c.h.b16 %v1448
  %v2398 = vunpack.c.l.b16 %v1449
  %v2399 = vunpack.c.h.b16 %v1449
  %v2400 = vunpack.c.l.b16 %v1450
  %v2401 = vunpack.c.h.b16 %v1450
  %v2402 = vunpack.c.l.b16 %v1451
  %v2403 = vunpack.c.h.b16 %v1451
  %v2404 = vunpack.c.l.b16 %v1452
  %v2405 = vunpack.c.h.b16 %v1452
  %v2406 = vunpack.c.l.b16 %v1453
  %v2407 = vunpack.c.h.b16 %v1453
  %v2408 = vunpack.c.l.b16 %v1454
  %v2409 = vunpack.c.h.b16 %v1454
  %v2410 = vunpack.c.l.b16 %v1455
  %v2411 = vunpack.c.h.b16 %v1455
  %v2412 = vunpack.c.l.b16 %v1456
  %v2413 = vunpack.c.h.b16 %v1456
  %v2414 = vunpack.c.l.b16 %v1457
  %v2415 = vunpack.c.h.b16 %v1457
  %v2416 = vunpack.c.l.b16 %v1458
  %v2417 = vunpack.c.h.b16 %v1458
  %v2418 = vunpack.c.l.b16 %v1459
  %v2419 = vunpack.c.h.b16 %v1459
  %v2420 = vunpack.c.l.b16 %v1460
  %v2421 = vunpack.c.h.b16 %v1460
  %v2422 = vunpack.c.l.b16 %v1461
  %v2423 = vunpack.c.h.b16 %v1461
  %v2424 = vunpack.c.l.b16 %v1462
  %v2425 = vunpack.c.h.b16 %v1462
  %v2426 = vunpack.c.l.b16 %v1463
  %v2427 = vunpack.c.h.b16 %v1463
  %v2428 = vunpack.c.l.b16 %v1464
  %v2429 = vunpack.c.h.b16 %v1464
  %v2430 = vunpack.c.l.b16 %v1465
  %v2431 = vunpack.c.h.b16 %v1465
  %v2432 = vunpack.c.l.b16 %v1466
  %v2433 = vunpack.c.h.b16 %v1466
  %v2434 = vunpack.c.l.b16 %v1467
  %v2435 = vunpack.c.h.b16 %v1467
  %v2436 = vunpack.c.l.b16 %v1468
  %v2437 = vunpack.c.h.b16 %v1468
  %v2438 = vunpack.c.l.b16 %v1469
  %v2439 = vunpack.c.h.b16 %v1469
  %v2440 = vunpack.c.l.b16 %v1470
  %v2441 = vunpack.c.h.b16 %v1470
  %v2442 = vunpack.c.l.b16 %v1471
  %v2443 = vunpack.c.h.b16 %v1471
  %v2444 = vunpack.c.l.b16 %v1472
  %v2445 = vunpack.c.h.b16 %v1472
  %v2446 = vunpack.c.l.b16 %v1473
  %v2447 = vunpack.c.h.b16 %v1473
  %v2448 = vunpack.c.l.b16 %v1474
  %v2449 = vunpack.c.h.b16 %v1474
  %v2450 = vunpack.c.l.b16 %v1475
  %v2451 = vunpack.c.h.b16 %v1475
  %v2452 = vunpack.c.l.b16 %v1476
  %v2453 = vunpack.c.h.b16 %v1476
  %v2454 = vunpack.c.l.b16 %v1477
  %v2455 = vunpack.c.h.b16 %v1477
  %v2456 = vunpack.c.l.b16 %v1478
  %v2457 = vunpack.c.h.b16 %v1478
  %v2458 = vunpack.c.l.b16 %v1479
  %v2459 = vunpack.c.h.b16 %v1479
  %v2460 = vunpack.c.l.b16 %v1480
  %v2461 = vunpack.c.h.b16 %v1480
  %v2462 = vunpack.c.l.b16 %v1481
  %v2463 = vunpack.c.h.b16 %v1481
  %v2464 = vunpack.c.l.b16 %v1482
  %v2465 = vunpack.c.h.b16 %v1482
  %v2466 = vunpack.c.l.b16 %v1483
  %v2467 = vunpack.c.h.b16 %v1483
  %v2468 = vunpack.c.l.b16 %v1484
  %v2469 = vunpack.c.h.b16 %v1484
  %v2470 = vunpack.c.l.b16 %v1485
  %v2471 = vunpack.c.h.b16 %v1485
  %v2472 = vunpack.c.l.b16 %v1486
  %v2473 = vunpack.c.h.b16 %v1486
  %v2474 = vunpack.c.l.b16 %v1487
  %v2475 = vunpack.c.h.b16 %v1487
  %v2476 = vunpack.c.l.b16 %v1488
  %v2477 = vunpack.c.h.b16 %v1488
  %v2478 = vunpack.c.l.b16 %v1489
  %v2479 = vunpack.c.h.b16 %v1489
  %v2480 = vunpack.c.l.b16 %v1490
  %v2481 = vunpack.c.h.b16 %v1490
  %v2482 = vunpack.c.l.b16 %v1491
  %v2483 = vunpack.c.h.b16 %v1491
  %v2484 = vunpack.c.l.b16 %v1492
  %v2485 = vunpack.c.h.b16 %v1492
  %v2486 = vunpack.c.l.b16 %v1493
  %v2487 = vunpack.c.h.b16 %v1493
  %v2488 = vunpack.c.l.b16 %v1494
  %v2489 = vunpack.c.h.b16 %v1494
  %v2490 = vunpack.c.l.b16 %v1495
  %v2491 = vunpack.c.h.b16 %v1495
  %v2492 = vunpack.c.l.b16 %v1496
  %v2493 = vunpack.c.h.b16 %v1496
  %v2494 = vunpack.c.l.b16 %v1497
  %v2495 = vunpack.c.h.b16 %v1497
  %v2496 = vunpack.c.l.b16 %v1498
  %v2497 = vunpack.c.h.b16 %v1498
  %v2498 = vunpack.c.l.b16 %v1499
  %v2499 = vunpack.c.h.b16 %v1499
  %v2500 = vunpack.c.l.b16 %v1500
  %v2501 = vunpack.c.h.b16 %v1500
  %v2502 = vunpack.c.l.b16 %v1501
  %v2503 = vunpack.c.h.b16 %v1501
  %v2504 = vunpack.c.l.b16 %v1502
  %v2505 = vunpack.c.h.b16 %v1502
  %v2506 = vunpack.c.l.b16 %v1503
  %v2507 = vunpack.c.h.b16 %v1503
  %v2508 = vunpack.c.l.b16 %v1504
  %v2509 = vunpack.c.h.b16 %v1504
  %v2510 = vunpack.c.l.b16 %v1505
  %v2511 = vunpack.c.h.b16 %v1505
  %v2512 = vunpack.c.l.b16 %v1506
  %v2513 = vunpack.c.h.b16 %v1506
  %v2514 = vunpack.c.l.b16 %v1507
  %v2515 = vunpack.c.h.b16 %v1507
  %v2516 = vunpack.c.l.b16 %v1508
  %v2517 = vunpack.c.h.b16 %v1508
  %v2518 = vunpack.c.l.b16 %v1509
  %v2519 = vunpack.c.h.b16 %v1509
  %v2520 = vunpack.c.l.b16 %v1510
  %v2521 = vunpack.c.h.b16 %v1510
  %v2522 = vunpack.c.l.b16 %v1511
  %v2523 = vunpack.c.h.b16 %v1511
  %v2524 = vunpack.c.l.b16 %v1512
  %v2525 = vunpack.c.h.b16 %v1512
  %v2526 = vunpack.c.l.b16 %v1513
  %v2527 = vunpack.c.h.b16 %v1513
  %v2528 = vunpack.c.l.b16 %v1514
  %v2529 = vunpack.c.h.b16 %v1514
  %v2530 = vunpack.c.l.b16 %v1515
  %v2531 = vunpack.c.h.b16 %v1515
  %v2532 = vunpack.c.l.b16 %v1516
  %v2533 = vunpack.c.h.b16 %v1516
  %v2534 = vunpack.c.l.b16 %v1517
  %v2535 = vunpack.c.h.b16 %v1517
  %v2536 = vunpack.c.l.b16 %v1518
  %v2537 = vunpack.c.h.b16 %v1518
  %v2538 = vunpack.c.l.b16 %v1519
  %v2539 = vunpack.c.h.b16 %v1519
  %v2540 = vunpack.c.l.b16 %v1520
  %v2541 = vunpack.c.h.b16 %v1520
  %v2542 = vunpack.c.l.b16 %v1521
  %v2543 = vunpack.c.h.b16 %v1521
  %v2544 = vunpack.c.l.b16 %v1522
  %v2545 = vunpack.c.h.b16 %v1522
  %v2546 = vunpack.c.l.b16 %v1523
  %v2547 = vunpack.c.h.b16 %v1523
  %v2548 = vunpack.c.l.b16 %v1524
  %v2549 = vunpack.c.h.b16 %v1524
  %v2550 = vunpack.c.l.b16 %v1525
  %v2551 = vunpack.c.h.b16 %v1525
  %v2552 = vunpack.c.l.b16 %v1526
  %v2553 = vunpack.c.h.b16 %v1526
  %v2554 = vunpack.c.l.b16 %v1527
  %v2555 = vunpack.c.h.b16 %v1527
  %v2556 = vunpack.c.l.b16 %v1528
  %v2557 = vunpack.c.h.b16 %v1528
  %v2558 = vunpack.c.l.b16 %v1529
  %v2559 = vunpack.c.h.b16 %v1529
  %v2560 = vunpack.c.l.b16 %v1530
  %v2561 = vunpack.c.h.b16 %v1530
  %v2562 = vunpack.c.l.b16 %v1531
  %v2563 = vunpack.c.h.b16 %v1531
  %v2564 = vunpack.c.l.b16 %v1532
  %v2565 = vunpack.c.h.b16 %v1532
  %v2566 = vunpack.c.l.b16 %v1533
  %v2567 = vunpack.c.h.b16 %v1533
  %v2568 = vunpack.c.l.b16 %v1534
  %v2569 = vunpack.c.h.b16 %v1534
  %v2570 = vunpack.c.l.b16 %v1535
  %v2571 = vunpack.c.h.b16 %v1535
  %v2572 = vunpack.c.l.b16 %v1536
  %v2573 = vunpack.c.h.b16 %v1536
  %v2574 = vunpack.c.l.b16 %v1537
  %v2575 = vunpack.c.h.b16 %v1537
  %v2576 = vunpack.c.l.b16 %v1538
  %v2577 = vunpack.c.h.b16 %v1538
  %v2578 = vunpack.c.l.b16 %v1539
  %v2579 = vunpack.c.h.b16 %v1539
  %v2580 = vunpack.c.l.b16 %v1540
  %v2581 = vunpack.c.h.b16 %v1540
  %v2582 = vunpack.c.l.b16 %v1541
  %v2583 = vunpack.c.h.b16 %v1541
  %v2584 = vunpack.c.l.b16 %v1542
  %v2585 = vunpack.c.h.b16 %v1542
  %v2586 = vunpack.c.l.b16 %v1543
  %v2587 = vunpack.c.h.b16 %v1543
  %v2588 = vunpack.c.l.b16 %v1544
  %v2589 = vunpack.c.h.b16 %v1544
  %v2590 = vunpack.c.l.b16 %v1545
  %v2591 = vunpack.c.h.b16 %v1545
  %v2592 = vunpack.c.l.b16 %v1546
  %v2593 = vunpack.c.h.b16 %v1546
  %v2594 = vunpack.c.l.b16 %v1547
  %v2595 = vunpack.c.h.b16 %v1547
  %v2596 = vunpack.c.l.b16 %v1548
  %v2597 = vunpack.c.h.b16 %v1548
  %v2598 = vunpack.c.l.b16 %v1549
  %v2599 = vunpack.c.h.b16 %v1549
  %v2600 = vunpack.c.l.b16 %v1550
  %v2601 = vunpack.c.h.b16 %v1550
  %v2602 = vunpack.c.l.b16 %v1551
  %v2603 = vunpack.c.h.b16 %v1551
  %v2604 = vunpack.c.l.b16 %v1552
  %v2605 = vunpack.c.h.b16 %v1552
  %v2606 = vunpack.c.l.b16 %v1553
  %v2607 = vunpack.c.h.b16 %v1553
  %v2608 = vunpack.c.l.b16 %v1554
  %v2609 = vunpack.c.h.b16 %v1554
  %v2610 = vunpack.c.l.b16 %v1555
  %v2611 = vunpack.c.h.b16 %v1555
  %v2612 = vunpack.c.l.b16 %v1556
  %v2613 = vunpack.c.h.b16 %v1556
  %v2614 = vunpack.c.l.b16 %v1557
  %v2615 = vunpack.c.h.b16 %v1557
  %v2616 = vunpack.c.l.b16 %v1558
  %v2617 = vunpack.c.h.b16 %v1558
  %v2618 = vunpack.c.l.b16 %v1559
  %v2619 = vunpack.c.h.b16 %v1559
  %v2620 = vunpack.c.l.b16 %v1560
  %v2621 = vunpack.c.h.b16 %v1560
  %v2622 = vunpack.c.l.b16 %v1561
  %v2623 = vunpack.c.h.b16 %v1561
  %v2624 = vunpack.c.l.b16 %v1562
  %v2625 = vunpack.c.h.b16 %v1562
  %v2626 = vunpack.c.l.b16 %v1563
  %v2627 = vunpack.c.h.b16 %v1563
  %v2628 = vunpack.c.l.b16 %v1564
  %v2629 = vunpack.c.h.b16 %v1564
  %v2630 = vunpack.c.l.b16 %v1565
  %v2631 = vunpack.c.h.b16 %v1565
  %v2632 = vunpack.c.l.b16 %v1566
  %v2633 = vunpack.c.h.b16 %v1566
  %v2634 = vunpack.c.l.b16 %v1567
  %v2635 = vunpack.c.h.b16 %v1567
  %v2636 = vunpack.c.l.b16 %v1568
  %v2637 = vunpack.c.h.b16 %v1568
  %v2638 = vunpack.c.l.b16 %v1569
  %v2639 = vunpack.c.h.b16 %v1569
  %v2640 = vunpack.c.l.b16 %v1570
  %v2641 = vunpack.c.h.b16 %v1570
  %v2642 = vunpack.c.l.b16 %v1571
  %v2643 = vunpack.c.h.b16 %v1571
  %v2644 = vunpack.c.l.b16 %v1572
  %v2645 = vunpack.c.h.b16 %v1572
  %v2646 = vunpack.c.l.b16 %v1573
  %v2647 = vunpack.c.h.b16 %v1573
  %v2648 = vunpack.c.l.b16 %v1574
  %v2649 = vunpack.c.h.b16 %v1574
  %v2650 = vunpack.c.l.b16 %v1575
  %v2651 = vunpack.c.h.b16 %v1575
  %v2652 = vunpack.c.l.b16 %v1576
  %v2653 = vunpack.c.h.b16 %v1576
  %v2654 = vunpack.c.l.b16 %v1577
  %v2655 = vunpack.c.h.b16 %v1577
  %v2656 = vunpack.c.l.b16 %v1578
  %v2657 = vunpack.c.h.b16 %v1578
  %v2658 = vunpack.c.l.b16 %v1579
  %v2659 = vunpack.c.h.b16 %v1579
  %v2660 = vunpack.c.l.b16 %v1580
  %v2661 = vunpack.c.h.b16 %v1580
  %v2662 = vunpack.c.l.b16 %v1581
  %v2663 = vunpack.c.h.b16 %v1581
  %v2664 = vunpack.c.l.b16 %v1582
  %v2665 = vunpack.c.h.b16 %v1582
  %v2666 = vunpack.c.l.b16 %v1583
  %v2667 = vunpack.c.h.b16 %v1583
  %v2668 = vunpack.c.l.b16 %v1584
  %v2669 = vunpack.c.h.b16 %v1584
  %v2670 = vunpack.c.l.b16 %v1585
  %v2671 = vunpack.c.h.b16 %v1585
  %v2672 = vunpack.c.l.b16 %v1586
  %v2673 = vunpack.c.h.b16 %v1586
  %v2674 = vunpack.c.l.b16 %v1587
  %v2675 = vunpack.c.h.b16 %v1587
  %v2676 = vunpack.c.l.b16 %v1588
  %v2677 = vunpack.c.h.b16 %v1588
  %v2678 = vunpack.c.l.b16 %v1589
  %v2679 = vunpack.c.h.b16 %v1589
  %v2680 = vunpack.c.l.b16 %v1590
  %v2681 = vunpack.c.h.b16 %v1590
  %v2682 = vunpack.c.l.b16 %v1591
  %v2683 = vunpack.c.h.b16 %v1591
  %v2684 = vunpack.c.l.b16 %v1592
  %v2685 = vunpack.c.h.b16 %v1592
  %v2686 = vunpack.c.l.b16 %v1593
  %v2687 = vunpack.c.h.b16 %v1593
  %v2688 = vunpack.c.l.b16 %v1594
  %v2689 = vunpack.c.h.b16 %v1594
  %v2690 = vunpack.c.l.b16 %v1595
  %v2691 = vunpack.c.h.b16 %v1595
  %v2692 = vunpack.c.l.b16 %v1596
  %v2693 = vunpack.c.h.b16 %v1596
  %v2694 = vunpack.c.l.b16 %v1597
  %v2695 = vunpack.c.h.b16 %v1597
  %v2696 = vunpack.c.l.b16 %v1598
  %v2697 = vunpack.c.h.b16 %v1598
  %v2698 = vunpack.c.l.b16 %v1599
  %v2699 = vunpack.c.h.b16 %v1599
  %v2700 = vunpack.c.l.b16 %v1600
  %v2701 = vunpack.c.h.b16 %v1600
  %v2702 = vunpack.c.l.b16 %v1601
  %v2703 = vunpack.c.h.b16 %v1601
  %v2704 = vunpack.c.l.b16 %v1602
  %v2705 = vunpack.c.h.b16 %v1602
  %v2706 = vunpack.c.l.b16 %v1603
  %v2707 = vunpack.c.h.b16 %v1603
  %v2708 = vunpack.c.l.b16 %v1604
  %v2709 = vunpack.c.h.b16 %v1604
  %v2710 = vunpack.c.l.b16 %v1605
  %v2711 = vunpack.c.h.b16 %v1605
  %v2712 = vunpack.c.l.b16 %v1606
  %v2713 = vunpack.c.h.b16 %v1606
  %v2714 = vunpack.c.l.b16 %v1607
  %v2715 = vunpack.c.h.b16 %v1607
  %v2716 = vunpack.c.l.b16 %v1608
  %v2717 = vunpack.c.h.b16 %v1608
  %v2718 = vunpack.c.l.b16 %v1609
  %v2719 = vunpack.c.h.b16 %v1609
  %v2720 = vunpack.c.l.b16 %v1610
  %v2721 = vunpack.c.h.b16 %v1610
  %v2722 = vunpack.c.l.b16 %v1611
  %v2723 = vunpack.c.h.b16 %v1611
  %v2724 = vunpack.c.l.b16 %v1612
  %v2725 = vunpack.c.h.b16 %v1612
  %v2726 = vunpack.c.l.b16 %v1613
  %v2727 = vunpack.c.h.b16 %v1613
  %v2728 = vunpack.c.l.b16 %v1614
  %v2729 = vunpack.c.h.b16 %v1614
  %v2730 = vunpack.c.l.b16 %v1615
  %v2731 = vunpack.c.h.b16 %v1615
  %v2732 = vunpack.c.l.b16 %v1616
  %v2733 = vunpack.c.h.b16 %v1616
  %v2734 = vunpack.c.l.b16 %v1617
  %v2735 = vunpack.c.h.b16 %v1617
  %v2736 = vunpack.c.l.b16 %v1618
  %v2737 = vunpack.c.h.b16 %v1618
  %v2738 = vunpack.c.l.b16 %v1619
  %v2739 = vunpack.c.h.b16 %v1619
  %v2740 = vunpack.c.l.b16 %v1620
  %v2741 = vunpack.c.h.b16 %v1620
  %v2742 = vunpack.c.l.b16 %v1621
  %v2743 = vunpack.c.h.b16 %v1621
  %v2744 = vunpack.c.l.b16 %v1622
  %v2745 = vunpack.c.h.b16 %v1622
  %v2746 = vunpack.c.l.b16 %v1623
  %v2747 = vunpack.c.h.b16 %v1623
  %v2748 = vunpack.c.l.b16 %v1624
  %v2749 = vunpack.c.h.b16 %v1624
  %v2750 = vunpack.c.l.b16 %v1625
  %v2751 = vunpack.c.h.b16 %v1625
  %v2752 = vunpack.c.l.b16 %v1626
  %v2753 = vunpack.c.h.b16 %v1626
  %v2754 = vunpack.c.l.b16 %v1627
  %v2755 = vunpack.c.h.b16 %v1627
  %v2756 = vunpack.c.l.b16 %v1628
  %v2757 = vunpack.c.h.b16 %v1628
  %v2758 = vunpack.c.l.b16 %v1629
  %v2759 = vunpack.c.h.b16 %v1629
  %v2760 = vunpack.c.l.b16 %v1630
  %v2761 = vunpack.c.h.b16 %v1630
  %v2762 = vunpack.c.l.b16 %v1631
  %v2763 = vunpack.c.h.b16 %v1631
  %v2764 = vunpack.c.l.b16 %v1632
  %v2765 = vunpack.c.h.b16 %v1632
  %v2766 = vunpack.c.l.b16 %v1633
  %v2767 = vunpack.c.h.b16 %v1633
  %v2768 = vunpack.c.l.b16 %v1634
  %v2769 = vunpack.c.h.b16 %v1634
  %v2770 = vunpack.c.l.b16 %v1635
  %v2771 = vunpack.c.h.b16 %v1635
  %v2772 = vunpack.c.l.b16 %v1636
  %v2773 = vunpack.c.h.b16 %v1636
  %v2774 = vunpack.c.l.b16 %v1637
  %v2775 = vunpack.c.h.b16 %v1637
  %v2776 = vunpack.c.l.b16 %v1638
  %v2777 = vunpack.c.h.b16 %v1638
  %v2778 = vunpack.c.l.b16 %v1639
  %v2779 = vunpack.c.h.b16 %v1639
  %v2780 = vunpack.c.l.b16 %v1640
  %v2781 = vunpack.c.h.b16 %v1640
  %v2782 = vunpack.c.l.b16 %v1641
  %v2783 = vunpack.c.h.b16 %v1641
  %v2784 = vunpack.c.l.b16 %v1642
  %v2785 = vunpack.c.h.b16 %v1642
  %v2786 = vunpack.c.l.b16 %v1643
  %v2787 = vunpack.c.h.b16 %v1643
  %v2788 = vunpack.c.l.b16 %v1644
  %v2789 = vunpack.c.h.b16 %v1644
  %v2790 = vunpack.c.l.b16 %v1645
  %v2791 = vunpack.c.h.b16 %v1645
  %v2792 = vunpack.c.l.b16 %v1646
  %v2793 = vunpack.c.h.b16 %v1646
  %v2794 = vunpack.c.l.b16 %v1647
  %v2795 = vunpack.c.h.b16 %v1647
  %v2796 = vunpack.c.l.b16 %v1648
  %v2797 = vunpack.c.h.b16 %v1648
  %v2798 = vunpack.c.l.b16 %v1649
  %v2799 = vunpack.c.h.b16 %v1649
  %v2800 = vunpack.c.l.b16 %v1650
  %v2801 = vunpack.c.h.b16 %v1650
  %v2802 = vunpack.c.l.b16 %v1651
  %v2803 = vunpack.c.h.b16 %v1651
  %v2804 = vunpack.c.l.b16 %v1652
  %v2805 = vunpack.c.h.b16 %v1652
  %v2806 = vunpack.c.l.b16 %v1653
  %v2807 = vunpack.c.h.b16 %v1653
  %v2808 = vunpack.c.l.b16 %v1654
  %v2809 = vunpack.c.h.b16 %v1654
  %v2810 = vunpack.c.l.b16 %v1655
  %v2811 = vunpack.c.h.b16 %v1655
  %v2812 = vunpack.c.l.b16 %v1656
  %v2813 = vunpack.c.h.b16 %v1656
  %v2814 = vunpack.c.l.b16 %v1657
  %v2815 = vunpack.c.h.b16 %v1657
  %v2816 = vunpack.c.l.b16 %v1658
  %v2817 = vunpack.c.h.b16 %v1658
  %v2818 = vunpack.c.l.b16 %v1659
  %v2819 = vunpack.c.h.b16 %v1659
  %v2820 = vunpack.c.l.b16 %v1660
  %v2821 = vunpack.c.h.b16 %v1660
  %v2822 = vunpack.c.l.b16 %v1661
  %v2823 = vunpack.c.h.b16 %v1661
  %v2824 = vunpack.c.l.b16 %v1662
  %v2825 = vunpack.c.h.b16 %v1662
  %v2826 = vunpack.c.l.b16 %v1663
  %v2827 = vunpack.c.h.b16 %v1663
  %v2828 = vunpack.c.l.b16 %v1664
  %v2829 = vunpack.c.h.b16 %v1664
  %v2830 = vunpack.c.l.b16 %v1665
  %v2831 = vunpack.c.h.b16 %v1665
  %v2832 = vunpack.c.l.b16 %v1666
  %v2833 = vunpack.c.h.b16 %v1666
  %v2834 = vunpack.c.l.b16 %v1667
  %v2835 = vunpack.c.h.b16 %v1667
  %v2836 = vunpack.c.l.b16 %v1668
  %v2837 = vunpack.c.h.b16 %v1668
  %v2838 = vunpack.c.l.b16 %v1669
  %v2839 = vunpack.c.h.b16 %v1669
  %v2840 = vunpack.c.l.b16 %v1670
  %v2841 = vunpack.c.h.b16 %v1670
  %v2842 = vunpack.c.l.b16 %v1671
  %v2843 = vunpack.c.h.b16 %v1671
  %v2844 = vunpack.c.l.b16 %v1672
  %v2845 = vunpack.c.h.b16 %v1672
  %v2846 = vunpack.c.l.b16 %v1673
  %v2847 = vunpack.c.h.b16 %v1673
  %v2848 = vunpack.c.l.b16 %v1674
  %v2849 = vunpack.c.h.b16 %v1674
  %v2850 = vunpack.c.l.b16 %v1675
  %v2851 = vunpack.c.h.b16 %v1675
  %v2852 = vunpack.c.l.b16 %v1676
  %v2853 = vunpack.c.h.b16 %v1676
  %v2854 = vunpack.c.l.b16 %v1677
  %v2855 = vunpack.c.h.b16 %v1677
  %v2856 = vunpack.c.l.b16 %v1678
  %v2857 = vunpack.c.h.b16 %v1678
  %v2858 = vunpack.c.l.b16 %v1679
  %v2859 = vunpack.c.h.b16 %v1679
  %v2860 = vunpack.c.l.b16 %v1680
  %v2861 = vunpack.c.h.b16 %v1680
  %v2862 = vunpack.c.l.b16 %v1681
  %v2863 = vunpack.c.h.b16 %v1681
  %v2864 = vunpack.c.l.b16 %v1682
  %v2865 = vunpack.c.h.b16 %v1682
  %v2866 = vunpack.c.l.b16 %v1683
  %v2867 = vunpack.c.h.b16 %v1683
  %v2868 = vunpack.c.l.b16 %v1684
  %v2869 = vunpack.c.h.b16 %v1684
  %v2870 = vunpack.c.l.b16 %v1685
  %v2871 = vunpack.c.h.b16 %v1685
  %v2872 = vunpack.c.l.b16 %v1686
  %v2873 = vunpack.c.h.b16 %v1686
  %v2874 = vunpack.c.l.b16 %v1687
  %v2875 = vunpack.c.h.b16 %v1687
  %v2876 = vunpack.c.l.b16 %v1688
  %v2877 = vunpack.c.h.b16 %v1688
  %v2878 = vunpack.c.l.b16 %v1689
  %v2879 = vunpack.c.h.b16 %v1689
  %v2880 = vunpack.c.l.b16 %v1690
  %v2881 = vunpack.c.h.b16 %v1690
  %v2882 = vunpack.c.l.b16 %v1691
  %v2883 = vunpack.c.h.b16 %v1691
  %v2884 = vunpack.c.l.b16 %v1692
  %v2885 = vunpack.c.h.b16 %v1692
  %v2886 = vunpack.c.l.b16 %v1693
  %v2887 = vunpack.c.h.b16 %v1693
  %v2888 = vunpack.c.l.b16 %v1694
  %v2889 = vunpack.c.h.b16 %v1694
  %v2890 = vunpack.c.l.b16 %v1695
  %v2891 = vunpack.c.h.b16 %v1695
  %v2892 = vunpack.c.l.b16 %v1696
  %v2893 = vunpack.c.h.b16 %v1696
  %v2894 = vunpack.c.l.b16 %v1697
  %v2895 = vunpack.c.h.b16 %v1697
  %v2896 = vunpack.c.l.b16 %v1698
  %v2897 = vunpack.c.h.b16 %v1698
  %v2898 = vunpack.c.l.b16 %v1699
  %v2899 = vunpack.c.h.b16 %v1699
  %v2900 = vunpack.c.l.b16 %v1700
  %v2901 = vunpack.c.h.b16 %v1700
  %v2902 = vunpack.c.l.b16 %v1701
  %v2903 = vunpack.c.h.b16 %v1701
  %v2904 = vunpack.c.l.b16 %v1702
  %v2905 = vunpack.c.h.b16 %v1702
  %v2906 = vunpack.c.l.b16 %v1703
  %v2907 = vunpack.c.h.b16 %v1703
  %v2908 = vunpack.c.l.b16 %v1704
  %v2909 = vunpack.c.h.b16 %v1704
  %v2910 = vunpack.c.l.b16 %v1705
  %v2911 = vunpack.c.h.b16 %v1705
  %v2912 = vunpack.c.l.b16 %v1706
  %v2913 = vunpack.c.h.b16 %v1706
  %v2914 = vunpack.c.l.b16 %v1707
  %v2915 = vunpack.c.h.b16 %v1707
  %v2916 = vunpack.c.l.b16 %v1708
  %v2917 = vunpack.c.h.b16 %v1708
  %v2918 = vunpack.c.l.b16 %v1709
  %v2919 = vunpack.c.h.b16 %v1709
  %v2920 = vunpack.c.l.b16 %v1710
  %v2921 = vunpack.c.h.b16 %v1710
  %v2922 = vunpack.c.l.b16 %v1711
  %v2923 = vunpack.c.h.b16 %v1711
  %v2924 = vunpack.c.l.b16 %v1712
  %v2925 = vunpack.c.h.b16 %v1712
  %v2926 = vunpack.c.l.b16 %v1713
  %v2927 = vunpack.c.h.b16 %v1713
  %v2928 = vunpack.c.l.b16 %v1714
  %v2929 = vunpack.c.h.b16 %v1714
  %v2930 = vunpack.c.l.b16 %v1715
  %v2931 = vunpack.c.h.b16 %v1715
  %v2932 = vunpack.c.l.b16 %v1716
  %v2933 = vunpack.c.h.b16 %v1716
  %v2934 = vunpack.c.l.b16 %v1717
  %v2935 = vunpack.c.h.b16 %v1717
  %v2936 = vunpack.c.l.b16 %v1718
  %v2937 = vunpack.c.h.b16 %v1718
  %v2938 = vunpack.c.l.b16 %v1719
  %v2939 = vunpack.c.h.b16 %v1719
  %v2940 = vunpack.c.l.b16 %v1720
  %v2941 = vunpack.c.h.b16 %v1720
  %v2942 = vunpack.c.l.b16 %v1721
  %v2943 = vunpack.c.h.b16 %v1721
  %v2944 = vunpack.c.l.b16 %v1722
  %v2945 = vunpack.c.h.b16 %v1722
  %v2946 = vunpack.c.l.b16 %v1723
  %v2947 = vunpack.c.h.b16 %v1723
  %v2948 = vunpack.c.l.b16 %v1724
  %v2949 = vunpack.c.h.b16 %v1724
  %v2950 = vunpack.c.l.b16 %v1725
  %v2951 = vunpack.c.h.b16 %v1725
  %v2952 = vunpack.c.l.b16 %v1726
  %v2953 = vunpack.c.h.b16 %v1726
  %v2954 = vunpack.c.l.b16 %v1727
  %v2955 = vunpack.c.h.b16 %v1727
  %v2956 = vunpack.c.l.b16 %v1728
  %v2957 = vunpack.c.h.b16 %v1728
  %v2958 = vunpack.c.l.b16 %v1729
  %v2959 = vunpack.c.h.b16 %v1729
  %v2960 = vunpack.c.l.b16 %v1730
  %v2961 = vunpack.c.h.b16 %v1730
  %v2962 = vunpack.c.l.b16 %v1731
  %v2963 = vunpack.c.h.b16 %v1731
  %v2964 = vunpack.c.l.b16 %v1732
  %v2965 = vunpack.c.h.b16 %v1732
  %v2966 = vunpack.c.l.b16 %v1733
  %v2967 = vunpack.c.h.b16 %v1733
  %v2968 = vunpack.c.l.b16 %v1734
  %v2969 = vunpack.c.h.b16 %v1734
  %v2970 = vunpack.c.l.b16 %v1735
  %v2971 = vunpack.c.h.b16 %v1735
  %v2972 = vunpack.c.l.b16 %v1736
  %v2973 = vunpack.c.h.b16 %v1736
  %v2974 = vunpack.c.l.b16 %v1737
  %v2975 = vunpack.c.h.b16 %v1737
  %v2976 = vunpack.c.l.b16 %v1738
  %v2977 = vunpack.c.h.b16 %v1738
  %v2978 = vunpack.c.l.b16 %v1739
  %v2979 = vunpack.c.h.b16 %v1739
  %v2980 = vunpack.c.l.b16 %v1740
  %v2981 = vunpack.c.h.b16 %v1740
  %v2982 = vunpack.c.l.b16 %v1741
  %v2983 = vunpack.c.h.b16 %v1741
  %v2984 = vunpack.c.l.b16 %v1742
  %v2985 = vunpack.c.h.b16 %v1742
  %v2986 = vunpack.c.l.b16 %v1743
  %v2987 = vunpack.c.h.b16 %v1743
  %v2988 = vunpack.c.l.b16 %v1744
  %v2989 = vunpack.c.h.b16 %v1744
  %v2990 = vunpack.c.l.b16 %v1745
  %v2991 = vunpack.c.h.b16 %v1745
  %v2992 = vunpack.c.l.b16 %v1746
  %v2993 = vunpack.c.h.b16 %v1746
  %v2994 = vunpack.c.l.b16 %v1747
  %v2995 = vunpack.c.h.b16 %v1747
  %v2996 = vunpack.c.l.b16 %v1748
  %v2997 = vunpack.c.h.b16 %v1748
  %v2998 = vunpack.c.l.b16 %v1749
  %v2999 = vunpack.c.h.b16 %v1749
  %v3000 = vunpack.c.l.b16 %v1750
  %v3001 = vunpack.c.h.b16 %v1750
  %v3002 = vunpack.c.l.b16 %v1751
  %v3003 = vunpack.c.h.b16 %v1751
  %v3004 = vunpack.c.l.b16 %v1752
  %v3005 = vunpack.c.h.b16 %v1752
  %v3006 = vunpack.c.l.b16 %v1753
  %v3007 = vunpack.c.h.b16 %v1753
  %v3008 = vpack.c.b16 %v2218, %v2208
  %v3009 = vpack.c.b16 %v2219, %v2209
  %v3010 = vpack.c.b16 %v2220, %v2210
  %v3011 = vpack.c.b16 %v2221, %v2211
  %v3012 = vpack.c.b16 %v2222, %v2212
  %v3013 = vpack.c.b16 %v2223, %v2213
  %v3014 = vpack.c.b16 %v2224, %v2214
  %v3015 = vpack.c.b16 %v2225, %v2215
  %v3016 = vpack.c.b16 %v2226, %v2216
  %v3017 = vpack.c.b16 %v2227, %v2217
  %v3018 = vpack.c.b16 %v2238, %v2228
  %v3019 = vpack.c.b16 %v2239, %v2229
  %v3020 = vpack.c.b16 %v2240, %v2230
  %v3021 = vpack.c.b16 %v2241, %v2231
  %v3022 = vpack.c.b16 %v2242, %v2232
  %v3023 = vpack.c.b16 %v2243, %v2233
  %v3024 = vpack.c.b16 %v2244, %v2234
  %v3025 = vpack.c.b16 %v2245, %v2235
  %v3026 = vpack.c.b16 %v2246, %v2236
  %v3027 = vpack.c.b16 %v2247, %v2237
  %v3028 = vpack.c.b16 %v2258, %v2248
  %v3029 = vpack.c.b16 %v2259, %v2249
  %v3030 = vpack.c.b16 %v2260, %v2250
  %v3031 = vpack.c.b16 %v2261, %v2251
  %v3032 = vpack.c.b16 %v2262, %v2252
  %v3033 = vpack.c.b16 %v2263, %v2253
  %v3034 = vpack.c.b16 %v2264, %v2254
  %v3035 = vpack.c.b16 %v2265, %v2255
  %v3036 = vpack.c.b16 %v2266, %v2256
  %v3037 = vpack.c.b16 %v2267, %v2257
  %v3038 = vpack.c.b16 %v2278, %v2268
  %v3039 = vpack.c.b16 %v2279, %v2269
  %v3040 = vpack.c.b16 %v2280, %v2270
  %v3041 = vpack.c.b16 %v2281, %v2271
  %v3042 = vpack.c.b16 %v2282, %v2272
  %v3043 = vpack.c.b16 %v2283, %v2273
  %v3044 = vpack.c.b16 %v2284, %v2274
  %v3045 = vpack.c.b16 %v2285, %v2275
  %v3046 = vpack.c.b16 %v2286, %v2276
  %v3047 = vpack.c.b16 %v2287, %v2277
  %v3048 = vpack.c.b16 %v2298, %v2288
  %v3049 = vpack.c.b16 %v2299, %v2289
  %v3050 = vpack.c.b16 %v2300, %v2290
  %v3051 = vpack.c.b16 %v2301, %v2291
  %v3052 = vpack.c.b16 %v2302, %v2292
  %v3053 = vpack.c.b16 %v2303, %v2293
  %v3054 = vpack.c.b16 %v2304, %v2294
  %v3055 = vpack.c.b16 %v2305, %v2295
  %v3056 = vpack.c.b16 %v2306, %v2296
  %v3057 = vpack.c.b16 %v2307, %v2297
  %v3058 = vpack.c.b16 %v2318, %v2308
  %v3059 = vpack.c.b16 %v2319, %v2309
  %v3060 = vpack.c.b16 %v2320, %v2310
  %v3061 = vpack.c.b16 %v2321, %v2311
  %v3062 = vpack.c.b16 %v2322, %v2312
  %v3063 = vpack.c.b16 %v2323, %v2313
  %v3064 = vpack.c.b16 %v2324, %v2314
  %v3065 = vpack.c.b16 %v2325, %v2315
  %v3066 = vpack.c.b16 %v2326, %v2316
  %v3067 = vpack.c.b16 %v2327, %v2317
  %v3068 = vpack.c.b16 %v2338, %v2328
  %v3069 = vpack.c.b16 %v2339, %v2329
  %v3070 = vpack.c.b16 %v2340, %v2330
  %v3071 = vpack.c.b16 %v2341, %v2331
  %v3072 = vpack.c.b16 %v2342, %v2332
  %v3073 = vpack.c.b16 %v2343, %v2333
  %v3074 = vpack.c.b16 %v2344, %v2334
  %v3075 = vpack.c.b16 %v2345, %v2335
  %v3076 = vpack.c.b16 %v2346, %v2336
  %v3077 = vpack.c.b16 %v2347, %v2337
  %v3078 = vpack.c.b16 %v2358, %v2348
  %v3079 = vpack.c.b16 %v2359, %v2349
  %v3080 = vpack.c.b16 %v2360, %v2350
  %v3081 = vpack.c.b16 %v2361, %v2351
  %v3082 = vpack.c.b16 %v2362, %v2352
  %v3083 = vpack.c.b16 %v2363, %v2353
  %v3084 = vpack.c.b16 %v2364, %v2354
  %v3085 = vpack.c.b16 %v2365, %v2355
  %v3086 = vpack.c.b16 %v2366, %v2356
  %v3087 = vpack.c.b16 %v2367, %v2357
  %v3088 = vpack.c.b16 %v2378, %v2368
  %v3089 = vpack.c.b16 %v2379, %v2369
  %v3090 = vpack.c.b16 %v2380, %v2370
  %v3091 = vpack.c.b16 %v2381, %v2371
  %v3092 = vpack.c.b16 %v2382, %v2372
  %v3093 = vpack.c.b16 %v2383, %v2373
  %v3094 = vpack.c.b16 %v2384, %v2374
  %v3095 = vpack.c.b16 %v2385, %v2375
  %v3096 = vpack.c.b16 %v2386, %v2376
  %v3097 = vpack.c.b16 %v2387, %v2377
  %v3098 = vpack.c.b16 %v2398, %v2388
  %v3099 = vpack.c.b16 %v2399, %v2389
  %v3100 = vpack.c.b16 %v2400, %v2390
  %v3101 = vpack.c.b16 %v2401, %v2391
  %v3102 = vpack.c.b16 %v2402, %v2392
  %v3103 = vpack.c.b16 %v2403, %v2393
  %v3104 = vpack.c.b16 %v2404, %v2394
  %v3105 = vpack.c.b16 %v2405, %v2395
  %v3106 = vpack.c.b16 %v2406, %v2396
  %v3107 = vpack.c.b16 %v2407, %v2397
  %v3108 = vpack.c.b16 %v2418, %v2408
  %v3109 = vpack.c.b16 %v2419, %v2409
  %v3110 = vpack.c.b16 %v2420, %v2410
  %v3111 = vpack.c.b16 %v2421, %v2411
  %v3112 = vpack.c.b16 %v2422, %v2412
  %v3113 = vpack.c.b16 %v2423, %v2413
  %v3114 = vpack.c.b16 %v2424, %v2414
  %v3115 = vpack.c.b16 %v2425, %v2415
  %v3116 = vpack.c.b16 %v2426, %v2416
  %v3117 = vpack.c.b16 %v2427, %v2417
  %v3118 = vpack.c.b16 %v2438, %v2428
  %v3119 = vpack.c.b16 %v2439, %v2429
  %v3120 = vpack.c.b16 %v2440, %v2430
  %v3121 = vpack.c.b16 %v2441, %v2431
  %v3122 = vpack.c.b16 %v2442, %v2432
  %v3123 = vpack.c.b16 %v2443, %v2433
  %v3124 = vpack.c.b16 %v2444, %v2434
  %v3125 = vpack.c.b16 %v2445, %v2435
  %v3126 = vpack.c.b16 %v2446, %v2436
  %v3127 = vpack.c.b16 %v2447, %v2437
  %v3128 = vpack.c.b16 %v2458, %v2448
  %v3129 = vpack.c.b16 %v2459, %v2449
  %v3130 = vpack.c.b16 %v2460, %v2450
  %v3131 = vpack.c.b16 %v2461, %v2451
  %v3132 = vpack.c.b16 %v2462, %v2452
  %v3133 = vpack.c.b16 %v2463, %v2453
  %v3134 = vpack.c.b16 %v2464, %v2454
  %v3135 = vpack.c.b16 %v2465, %v2455
  %v3136 = vpack.c.b16 %v2466, %v2456
  %v3137 = vpack.c.b16 %v2467, %v2457
  %v3138 = vpack.c.b16 %v2478, %v2468
  %v3139 = vpack.c.b16 %v2479, %v2469
  %v3140 = vpack.c.b16 %v2480, %v2470
  %v3141 = vpack.c.b16 %v2481, %v2471
  %v3142 = vpack.c.b16 %v2482, %v2472
  %v3143 = vpack.c.b16 %v2483, %v2473
  %v3144 = vpack.c.b16 %v2484, %v2474
  %v3145 = vpack.c.b16 %v2485, %v2475
  %v3146 = vpack.c.b16 %v2486, %v2476
  %v3147 = vpack.c.b16 %v2487, %v2477
  %v3148 = vpack.c.b16 %v2498, %v2488
  %v3149 = vpack.c.b16 %v2499, %v2489
  %v3150 = vpack.c.b16 %v2500, %v2490
  %v3151 = vpack.c.b16 %v2501, %v2491
  %v3152 = vpack.c.b16 %v2502, %v2492
  %v3153 = vpack.c.b16 %v2503, %v2493
  %v3154 = vpack.c.b16 %v2504, %v2494
  %v3155 = vpack.c.b16 %v2505, %v2495
  %v3156 = vpack.c.b16 %v2506, %v2496
  %v3157 = vpack.c.b16 %v2507, %v2497
  %v3158 = vpack.c.b16 %v2518, %v2508
  %v3159 = vpack.c.b16 %v2519, %v2509
  %v3160 = vpack.c.b16 %v2520, %v2510
  %v3161 = vpack.c.b16 %v2521, %v2511
  %v3162 = vpack.c.b16 %v2522, %v2512
  %v3163 = vpack.c.b16 %v2523, %v2513
  %v3164 = vpack.c.b16 %v2524, %v2514
  %v3165 = vpack.c.b16 %v2525, %v2515
  %v3166 = vpack.c.b16 %v2526, %v2516
  %v3167 = vpack.c.b16 %v2527, %v2517
  %v3168 = vpack.c.b16 %v2538, %v2528
  %v3169 = vpack.c.b16 %v2539, %v2529
  %v3170 = vpack.c.b16 %v2540, %v2530
  %v3171 = vpack.c.b16 %v2541, %v2531
  %v3172 = vpack.c.b16 %v2542, %v2532
  %v3173 = vpack.c.b16 %v2543, %v2533
  %v3174 = vpack.c.b16 %v2544, %v2534
  %v3175 = vpack.c.b16 %v2545, %v2535
  %v3176 = vpack.c.b16 %v2546, %v2536
  %v3177 = vpack.c.b16 %v2547, %v2537
  %v3178 = vpack.c.b16 %v2558, %v2548
  %v3179 = vpack.c.b16 %v2559, %v2549
  %v3180 = vpack.c.b16 %v2560, %v2550
  %v3181 = vpack.c.b16 %v2561, %v2551
  %v3182 = vpack.c.b16 %v2562, %v2552
  %v3183 = vpack.c.b16 %v2563, %v2553
  %v3184 = vpack.c.b16 %v2564, %v2554
  %v3185 = vpack.c.b16 %v2565, %v2555
  %v3186 = vpack.c.b16 %v2566, %v2556
  %v3187 = vpack.c.b16 %v2567, %v2557
  %v3188 = vpack.c.b16 %v2578, %v2568
  %v3189 = vpack.c.b16 %v2579, %v2569
  %v3190 = vpack.c.b16 %v2580, %v2570
  %v3191 = vpack.c.b16 %v2581, %v2571
  %v3192 = vpack.c.b16 %v2582, %v2572
  %v3193 = vpack.c.b16 %v2583, %v2573
  %v3194 = vpack.c.b16 %v2584, %v2574
  %v3195 = vpack.c.b16 %v2585, %v2575
  %v3196 = vpack.c.b16 %v2586, %v2576
  %v3197 = vpack.c.b16 %v2587, %v2577
  %v3198 = vpack.c.b16 %v2598, %v2588
  %v3199 = vpack.c.b16 %v2599, %v2589
  %v3200 = vpack.c.b16 %v2600, %v2590
  %v3201 = vpack.c.b16 %v2601, %v2591
  %v3202 = vpack.c.b16 %v2602, %v2592
  %v3203 = vpack.c.b16 %v2603, %v2593
  %v3204 = vpack.c.b16 %v2604, %v2594
  %v3205 = vpack.c.b16 %v2605, %v2595
  %v3206 = vpack.c.b16 %v2606, %v2596
  %v3207 = vpack.c.b16 %v2607, %v2597
  %v3208 = vpack.c.b16 %v2618, %v2608
  %v3209 = vpack.c.b16 %v2619, %v2609
  %v3210 = vpack.c.b16 %v2620, %v2610
  %v3211 = vpack.c.b16 %v2621, %v2611
  %v3212 = vpack.c.b16 %v2622, %v2612
  %v3213 = vpack.c.b16 %v2623, %v2613
  %v3214 = vpack.c.b16 %v2624, %v2614
  %v3215 = vpack.c.b16 %v2625, %v2615
  %v3216 = vpack.c.b16 %v2626, %v2616
  %v3217 = vpack.c.b16 %v2627, %v2617
  %v3218 = vpack.c.b16 %v2638, %v2628
  %v3219 = vpack.c.b16 %v2639, %v2629
  %v3220 = vpack.c.b16 %v2640, %v2630
  %v3221 = vpack.c.b16 %v2641, %v2631
  %v3222 = vpack.c.b16 %v2642, %v2632
  %v3223 = vpack.c.b16 %v2643, %v2633
  %v3224 = vpack.c.b16 %v2644, %v2634
  %v3225 = vpack.c.b16 %v2645, %v2635
  %v3226 = vpack.c.b16 %v2646, %v2636
  %v3227 = vpack.c.b16 %v2647, %v2637
  %v3228 = vpack.c.b16 %v2658, %v2648
  %v3229 = vpack.c.b16 %v2659, %v2649
  %v3230 = vpack.c.b16 %v2660, %v2650
  %v3231 = vpack.c.b16 %v2661, %v2651
  %v3232 = vpack.c.b16 %v2662, %v2652
  %v3233 = vpack.c.b16 %v2663, %v2653
  %v3234 = vpack.c.b16 %v2664, %v2654
  %v3235 = vpack.c.b16 %v2665, %v2655
  %v3236 = vpack.c.b16 %v2666, %v2656
  %v3237 = vpack.c.b16 %v2667, %v2657
  %v3238 = vpack.c.b16 %v2678, %v2668
  %v3239 = vpack.c.b16 %v2679, %v2669
  %v3240 = vpack.c.b16 %v2680, %v2670
  %v3241 = vpack.c.b16 %v2681, %v2671
  %v3242 = vpack.c.b16 %v2682, %v2672
  %v3243 = vpack.c.b16 %v2683, %v2673
  %v3244 = vpack.c.b16 %v2684, %v2674
  %v3245 = vpack.c.b16 %v2685, %v2675
  %v3246 = vpack.c.b16 %v2686, %v2676
  %v3247 = vpack.c.b16 %v2687, %v2677
  %v3248 = vpack.c.b16 %v2698, %v2688
  %v3249 = vpack.c.b16 %v2699, %v2689
  %v3250 = vpack.c.b16 %v2700, %v2690
  %v3251 = vpack.c.b16 %v2701, %v2691
  %v3252 = vpack.c.b16 %v2702, %v2692
  %v3253 = vpack.c.b16 %v2703, %v2693
  %v3254 = vpack.c.b16 %v2704, %v2694
  %v3255 = vpack.c.b16 %v2705, %v2695
  %v3256 = vpack.c.b16 %v2706, %v2696
  %v3257 = vpack.c.b16 %v2707, %v2697
  %v3258 = vpack.c.b16 %v2718, %v2708
  %v3259 = vpack.c.b16 %v2719, %v2709
  %v3260 = vpack.c.b16 %v2720, %v2710
  %v3261 = vpack.c.b16 %v2721, %v2711
  %v3262 = vpack.c.b16 %v2722, %v2712
  %v3263 = vpack.c.b16 %v2723, %v2713
  %v3264 = vpack.c.b16 %v2724, %v2714
  %v3265 = vpack.c.b16 %v2725, %v2715
  %v3266 = vpack.c.b16 %v2726, %v2716
  %v3267 = vpack.c.b16 %v2727, %v2717
  %v3268 = vpack.c.b16 %v2738, %v2728
  %v3269 = vpack.c.b16 %v2739, %v2729
  %v3270 = vpack.c.b16 %v2740, %v2730
  %v3271 = vpack.c.b16 %v2741, %v2731
  %v3272 = vpack.c.b16 %v2742, %v2732
  %v3273 = vpack.c.b16 %v2743, %v2733
  %v3274 = vpack.c.b16 %v2744, %v2734
  %v3275 = vpack.c.b16 %v2745, %v2735
  %v3276 = vpack.c.b16 %v2746, %v2736
  %v3277 = vpack.c.b16 %v2747, %v2737
  %v3278 = vpack.c.b16 %v2758, %v2748
  %v3279 = vpack.c.b16 %v2759, %v2749
  %v3280 = vpack.c.b16 %v2760, %v2750
  %v3281 = vpack.c.b16 %v2761, %v2751
  %v3282 = vpack.c.b16 %v2762, %v2752
  %v3283 = vpack.c.b16 %v2763, %v2753
  %v3284 = vpack.c.b16 %v2764, %v2754
  %v3285 = vpack.c.b16 %v2765, %v2755
  %v3286 = vpack.c.b16 %v2766, %v2756
  %v3287 = vpack.c.b16 %v2767, %v2757
  %v3288 = vpack.c.b16 %v2778, %v2768
  %v3289 = vpack.c.b16 %v2779, %v2769
  %v3290 = vpack.c.b16 %v2780, %v2770
  %v3291 = vpack.c.b16 %v2781, %v2771
  %v3292 = vpack.c.b16 %v2782, %v2772
  %v3293 = vpack.c.b16 %v2783, %v2773
  %v3294 = vpack.c.b16 %v2784, %v2774
  %v3295 = vpack.c.b16 %v2785, %v2775
  %v3296 = vpack.c.b16 %v2786, %v2776
  %v3297 = vpack.c.b16 %v2787, %v2777
  %v3298 = vpack.c.b16 %v2798, %v2788
  %v3299 = vpack.c.b16 %v2799, %v2789
  %v3300 = vpack.c.b16 %v2800, %v2790
  %v3301 = vpack.c.b16 %v2801, %v2791
  %v3302 = vpack.c.b16 %v2802, %v2792
  %v3303 = vpack.c.b16 %v2803, %v2793
  %v3304 = vpack.c.b16 %v2804, %v2794
  %v3305 = vpack.c.b16 %v2805, %v2795
  %v3306 = vpack.c.b16 %v2806, %v2796
  %v3307 = vpack.c.b16 %v2807, %v2797
  %v3308 = vpack.c.b16 %v2818, %v2808
  %v3309 = vpack.c.b16 %v2819, %v2809
  %v3310 = vpack.c.b16 %v2820, %v2810
  %v3311 = vpack.c.b16 %v2821, %v2811
  %v3312 = vpack.c.b16 %v2822, %v2812
  %v3313 = vpack.c.b16 %v2823, %v2813
  %v3314 = vpack.c.b16 %v2824, %v2814
  %v3315 = vpack.c.b16 %v2825, %v2815
  %v3316 = vpack.c.b16 %v2826, %v2816
  %v3317 = vpack.c.b16 %v2827, %v2817
  %v3318 = vpack.c.b16 %v2838, %v2828
  %v3319 = vpack.c.b16 %v2839, %v2829
  %v3320 = vpack.c.b16 %v2840, %v2830
  %v3321 = vpack.c.b16 %v2841, %v2831
  %v3322 = vpack.c.b16 %v2842, %v2832
  %v3323 = vpack.c.b16 %v2843, %v2833
  %v3324 = vpack.c.b16 %v2844, %v2834
  %v3325 = vpack.c.b16 %v2845, %v2835
  %v3326 = vpack.c.b16 %v2846, %v2836
  %v3327 = vpack.c.b16 %v2847, %v2837
  %v3328 = vpack.c.b16 %v2858, %v2848
  %v3329 = vpack.c.b16 %v2859, %v2849
  %v3330 = vpack.c.b16 %v2860, %v2850
  %v3331 = vpack.c.b16 %v2861, %v2851
  %v3332 = vpack.c.b16 %v2862, %v2852
  %v3333 = vpack.c.b16 %v2863, %v2853
  %v3334 = vpack.c.b16 %v2864, %v2854
  %v3335 = vpack.c.b16 %v2865, %v2855
  %v3336 = vpack.c.b16 %v2866, %v2856
  %v3337 = vpack.c.b16 %v2867, %v2857
  %v3338 = vpack.c.b16 %v2878, %v2868
  %v3339 = vpack.c.b16 %v2879, %v2869
  %v3340 = vpack.c.b16 %v2880, %v2870
  %v3341 = vpack.c.b16 %v2881, %v2871
  %v3342 = vpack.c.b16 %v2882, %v2872
  %v3343 = vpack.c.b16 %v2883, %v2873
  %v3344 = vpack.c.b16 %v2884, %v2874
  %v3345 = vpack.c.b16 %v2885, %v2875
  %v3346 = vpack.c.b16 %v2886, %v2876
  %v3347 = vpack.c.b16 %v2887, %v2877
  %v3348 = vpack.c.b16 %v2898, %v2888
  %v3349 = vpack.c.b16 %v2899, %v2889
  %v3350 = vpack.c.b16 %v2900, %v2890
  %v3351 = vpack.c.b16 %v2901, %v2891
  %v3352 = vpack.c.b16 %v2902, %v2892
  %v3353 = vpack.c.b16 %v2903, %v2893
  %v3354 = vpack.c.b16 %v2904, %v2894
  %v3355 = vpack.c.b16 %v2905, %v2895
  %v3356 = vpack.c.b16 %v2906, %v2896
  %v3357 = vpack.c.b16 %v2907, %v2897
  %v3358 = vpack.c.b16 %v2918, %v2908
  %v3359 = vpack.c.b16 %v2919, %v2909
  %v3360 = vpack.c.b16 %v2920, %v2910
  %v3361 = vpack.c.b16 %v2921, %v2911
  %v3362 = vpack.c.b16 %v2922, %v2912
  %v3363 = vpack.c.b16 %v2923, %v2913
  %v3364 = vpack.c.b16 %v2924, %v2914
  %v3365 = vpack.c.b16 %v2925, %v2915
  %v3366 = vpack.c.b16 %v2926, %v2916
  %v3367 = vpack.c.b16 %v2927, %v2917
  %v3368 = vpack.c.b16 %v2938, %v2928
  %v3369 = vpack.c.b16 %v2939, %v2929
  %v3370 = vpack.c.b16 %v2940, %v2930
  %v3371 = vpack.c.b16 %v2941, %v2931
  %v3372 = vpack.c.b16 %v2942, %v2932
  %v3373 = vpack.c.b16 %v2943, %v2933
  %v3374 = vpack.c.b16 %v2944, %v2934
  %v3375 = vpack.c.b16 %v2945, %v2935
  %v3376 = vpack.c.b16 %v2946, %v2936
  %v3377 = vpack.c.b16 %v2947, %v2937
  %v3378 = vpack.c.b16 %v2958, %v2948
  %v3379 = vpack.c.b16 %v2959, %v2949
  %v3380 = vpack.c.b16 %v2960, %v2950
  %v3381 = vpack.c.b16 %v2961, %v2951
  %v3382 = vpack.c.b16 %v2962, %v2952
  %v3383 = vpack.c.b16 %v2963, %v2953
  %v3384 = vpack.c.b16 %v2964, %v2954
  %v3385 = vpack.c.b16 %v2965, %v2955
  %v3386 = vpack.c.b16 %v2966, %v2956
  %v3387 = vpack.c.b16 %v2967, %v2957
  %v3388 = vpack.c.b16 %v2978, %v2968
  %v3389 = vpack.c.b16 %v2979, %v2969
  %v3390 = vpack.c.b16 %v2980, %v2970
  %v3391 = vpack.c.b16 %v2981, %v2971
  %v3392 = vpack.c.b16 %v2982, %v2972
  %v3393 = vpack.c.b16 %v2983, %v2973
  %v3394 = vpack.c.b16 %v2984, %v2974
  %v3395 = vpack.c.b16 %v2985, %v2975
  %v3396 = vpack.c.b16 %v2986, %v2976
  %v3397 = vpack.c.b16 %v2987, %v2977
  %v3398 = vpack.c.b16 %v2998, %v2988
  %v3399 = vpack.c.b16 %v2999, %v2989
  %v3400 = vpack.c.b16 %v3000, %v2990
  %v3401 = vpack.c.b16 %v3001, %v2991
  %v3402 = vpack.c.b16 %v3002, %v2992
  %v3403 = vpack.c.b16 %v3003, %v2993
  %v3404 = vpack.c.b16 %v3004, %v2994
  %v3405 = vpack.c.b16 %v3005, %v2995
  %v3406 = vpack.c.b16 %v3006, %v2996
  %v3407 = vpack.c.b16 %v3007, %v2997
  %3808 = vmatprep.subr.bf16.mxu0 %v3009
  %3809 = vmatpush1.bf16.msra.mxu0 %v3008
  %3810 = vmatprep.subr.bf16.mxu0 %v3019
  %3811 = vmatpush1.bf16.msra.mxu0 %v3018
  %3812 = vmatprep.subr.bf16.mxu0 %v3029
  %3813 = vmatpush1.bf16.msra.mxu0 %v3028
  %3814 = vmatprep.subr.bf16.mxu0 %v3039
  %3815 = vmatpush1.bf16.msra.mxu0 %v3038
  %3816 = vmatprep.subr.bf16.mxu0 %v3049
  %3817 = vmatpush1.bf16.msra.mxu0 %v3048
  %3818 = vmatprep.subr.bf16.mxu0 %v3059
  %3819 = vmatpush1.bf16.msra.mxu0 %v3058
  %3820 = vmatprep.subr.bf16.mxu0 %v3069
  %3821 = vmatpush1.bf16.msra.mxu0 %v3068
  %3822 = vmatprep.subr.bf16.mxu0 %v3079
  %3823 = vmatpush1.bf16.msra.mxu0 %v3078
  %3824 = vmatprep.subr.bf16.mxu0 %v3089
  %3825 = vmatpush1.bf16.msra.mxu0 %v3088
  %3826 = vmatprep.subr.bf16.mxu0 %v3099
  %3827 = vmatpush1.bf16.msra.mxu0 %v3098
  %3828 = vmatprep.subr.bf16.mxu0 %v3109
  %3829 = vmatpush1.bf16.msra.mxu0 %v3108
  %3830 = vmatprep.subr.bf16.mxu0 %v3119
  %3831 = vmatpush1.bf16.msra.mxu0 %v3118
  %3832 = vmatprep.subr.bf16.mxu0 %v3129
  %3833 = vmatpush1.bf16.msra.mxu0 %v3128
  %3834 = vmatprep.subr.bf16.mxu0 %v3139
  %3835 = vmatpush1.bf16.msra.mxu0 %v3138
  %3836 = vmatprep.subr.bf16.mxu0 %v3149
  %3837 = vmatpush1.bf16.msra.mxu0 %v3148
  %3838 = vmatprep.subr.bf16.mxu0 %v3159
  %3839 = vmatpush1.bf16.msra.mxu0 %v3158
  %3840 = vmatprep.mubr.bf16.mxu0 %v1350
  %3841 = vmatmul.mubr.bf16.gmra.mrb[0].mxu0 %v1349
  %v3842 = vpop.f32.mrb[0].mxu0
  %v3843 = vadd.f32 %v1761, %v3842
  %v3844 = vpop.f32.mrb[0].mxu0
  %v3845 = vadd.f32 %v1765, %v3844
  %v3846 = vpop.f32.mrb[0].mxu0
  %v3847 = vpop.f32.mrb[0].mxu0
  %3848 = vdwg.mxu0
  %3849 = vmatprep.subr.bf16.mxu0 %v3169
  %3850 = vmatpush1.bf16.msra.mxu0 %v3168
  %3851 = vmatprep.subr.bf16.mxu0 %v3179
  %3852 = vmatpush1.bf16.msra.mxu0 %v3178
  %3853 = vmatprep.subr.bf16.mxu0 %v3189
  %3854 = vmatpush1.bf16.msra.mxu0 %v3188
  %3855 = vmatprep.subr.bf16.mxu0 %v3199
  %3856 = vmatpush1.bf16.msra.mxu0 %v3198
  %3857 = vmatprep.subr.bf16.mxu0 %v3209
  %3858 = vmatpush1.bf16.msra.mxu0 %v3208
  %3859 = vmatprep.subr.bf16.mxu0 %v3219
  %3860 = vmatpush1.bf16.msra.mxu0 %v3218
  %3861 = vmatprep.subr.bf16.mxu0 %v3229
  %3862 = vmatpush1.bf16.msra.mxu0 %v3228
  %3863 = vmatprep.subr.bf16.mxu0 %v3239
  %3864 = vmatpush1.bf16.msra.mxu0 %v3238
  %3865 = vmatprep.subr.bf16.mxu0 %v3249
  %3866 = vmatpush1.bf16.msra.mxu0 %v3248
  %3867 = vmatprep.subr.bf16.mxu0 %v3259
  %3868 = vmatpush1.bf16.msra.mxu0 %v3258
  %3869 = vmatprep.subr.bf16.mxu0 %v3269
  %3870 = vmatpush1.bf16.msra.mxu0 %v3268
  %3871 = vmatprep.subr.bf16.mxu0 %v3279
  %3872 = vmatpush1.bf16.msra.mxu0 %v3278
  %3873 = vmatprep.subr.bf16.mxu0 %v3289
  %3874 = vmatpush1.bf16.msra.mxu0 %v3288
  %3875 = vmatprep.subr.bf16.mxu0 %v3299
  %3876 = vmatpush1.bf16.msra.mxu0 %v3298
  %3877 = vmatprep.subr.bf16.mxu0 %v3309
  %3878 = vmatpush1.bf16.msra.mxu0 %v3308
  %3879 = vmatprep.subr.bf16.mxu0 %v3319
  %3880 = vmatpush1.bf16.msra.mxu0 %v3318
  %3881 = vmatprep.mubr.bf16.mxu0 %v1352
  %3882 = vmatmul.mubr.bf16.gmra.mrb[0].mxu0 %v1351
  %v3883 = vpop.f32.mrb[0].mxu0
  %v3884 = vadd.f32 %v3843, %v3883
  %v3885 = vpop.f32.mrb[0].mxu0
  %v3886 = vadd.f32 %v3845, %v3885
  %v3887 = vpop.f32.mrb[0].mxu0
  %v3888 = vpop.f32.mrb[0].mxu0
  %3889 = vdwg.mxu0
  %3890 = vmatprep.subr.bf16.mxu0 %v3329
  %3891 = vmatpush1.bf16.msra.mxu0 %v3328
  %3892 = vmatprep.subr.bf16.mxu0 %v3339
  %3893 = vmatpush1.bf16.msra.mxu0 %v3338
  %3894 = vmatprep.subr.bf16.mxu0 %v3349
  %3895 = vmatpush1.bf16.msra.mxu0 %v3348
  %3896 = vmatprep.subr.bf16.mxu0 %v3359
  %3897 = vmatpush1.bf16.msra.mxu0 %v3358
  %3898 = vmatprep.subr.bf16.mxu0 %v3369
  %3899 = vmatpush1.bf16.msra.mxu0 %v3368
  %3900 = vmatprep.subr.bf16.mxu0 %v3379
  %3901 = vmatpush1.bf16.msra.mxu0 %v3378
  %3902 = vmatprep.subr.bf16.mxu0 %v3389
  %3903 = vmatpush1.bf16.msra.mxu0 %v3388
  %3904 = vmatprep.subr.bf16.mxu0 %v3399
  %3905 = vmatpush1.bf16.msra.mxu0 %v3398
  %3906 = vmatprep.subr.bf16.mxu0 0
  %3907 = vmatpush1.bf16.msra.mxu0 0
  %3908 = vmatprep.subr.bf16.mxu0 0
  %3909 = vmatpush1.bf16.msra.mxu0 0
  %3910 = vmatprep.subr.bf16.mxu0 0
  %3911 = vmatpush1.bf16.msra.mxu0 0
  %3912 = vmatprep.subr.bf16.mxu0 0
  %3913 = vmatpush1.bf16.msra.mxu0 0
  %3914 = vmatprep.subr.bf16.mxu0 0
  %3915 = vmatpush1.bf16.msra.mxu0 0
  %3916 = vmatprep.subr.bf16.mxu0 0
  %3917 = vmatpush1.bf16.msra.mxu0 0
  %3918 = vmatprep.subr.bf16.mxu0 0
  %3919 = vmatpush1.bf16.msra.mxu0 0
  %3920 = vmatprep.subr.bf16.mxu0 0
  %3921 = vmatpush1.bf16.msra.mxu0 0
  %3922 = vmatprep.mubr.bf16.mxu0 0
  %3923 = vmatmul.mubr.bf16.gmra.mrb[0].mxu0 %v1353
  %v3924 = vpop.f32.mrb[0].mxu0
  %v3925 = vadd.f32 %v3884, %v3924
  %v3926 = vpop.f32.mrb[0].mxu0
  %v3927 = vadd.f32 %v3886, %v3926
  %v3928 = vpop.f32.mrb[0].mxu0
  %v3929 = vpop.f32.mrb[0].mxu0
  %3930 = vdwg.mxu0
  %3931 = vmatprep.subr.bf16.mxu0 %v3011
  %3932 = vmatpush1.bf16.msra.mxu0 %v3010
  %3933 = vmatprep.subr.bf16.mxu0 %v3021
  %3934 = vmatpush1.bf16.msra.mxu0 %v3020
  %3935 = vmatprep.subr.bf16.mxu0 %v3031
  %3936 = vmatpush1.bf16.msra.mxu0 %v3030
  %3937 = vmatprep.subr.bf16.mxu0 %v3041
  %3938 = vmatpush1.bf16.msra.mxu0 %v3040
  %3939 = vmatprep.subr.bf16.mxu0 %v3051
  %3940 = vmatpush1.bf16.msra.mxu0 %v3050
  %3941 = vmatprep.subr.bf16.mxu0 %v3061
  %3942 = vmatpush1.bf16.msra.mxu0 %v3060
  %3943 = vmatprep.subr.bf16.mxu0 %v3071
  %3944 = vmatpush1.bf16.msra.mxu0 %v3070
  %3945 = vmatprep.subr.bf16.mxu0 %v3081
  %3946 = vmatpush1.bf16.msra.mxu0 %v3080
  %3947 = vmatprep.subr.bf16.mxu0 %v3091
  %3948 = vmatpush1.bf16.msra.mxu0 %v3090
  %3949 = vmatprep.subr.bf16.mxu0 %v3101
  %3950 = vmatpush1.bf16.msra.mxu0 %v3100
  %3951 = vmatprep.subr.bf16.mxu0 %v3111
  %3952 = vmatpush1.bf16.msra.mxu0 %v3110
  %3953 = vmatprep.subr.bf16.mxu0 %v3121
  %3954 = vmatpush1.bf16.msra.mxu0 %v3120
  %3955 = vmatprep.subr.bf16.mxu0 %v3131
  %3956 = vmatpush1.bf16.msra.mxu0 %v3130
  %3957 = vmatprep.subr.bf16.mxu0 %v3141
  %3958 = vmatpush1.bf16.msra.mxu0 %v3140
  %3959 = vmatprep.subr.bf16.mxu0 %v3151
  %3960 = vmatpush1.bf16.msra.mxu0 %v3150
  %3961 = vmatprep.subr.bf16.mxu0 %v3161
  %3962 = vmatpush1.bf16.msra.mxu0 %v3160
  %3963 = vmatprep.mubr.bf16.mxu0 %v1350
  %3964 = vmatmul.mubr.bf16.gmra.mrb[0].mxu0 %v1349
  %v3965 = vpop.f32.mrb[0].mxu0
  %v3966 = vadd.f32 %v1769, %v3965
  %v3967 = vpop.f32.mrb[0].mxu0
  %v3968 = vadd.f32 %v1773, %v3967
  %v3969 = vpop.f32.mrb[0].mxu0
  %v3970 = vpop.f32.mrb[0].mxu0
  %3971 = vdwg.mxu0
  %3972 = vmatprep.subr.bf16.mxu0 %v3171
  %3973 = vmatpush1.bf16.msra.mxu0 %v3170
  %3974 = vmatprep.subr.bf16.mxu0 %v3181
  %3975 = vmatpush1.bf16.msra.mxu0 %v3180
  %3976 = vmatprep.subr.bf16.mxu0 %v3191
  %3977 = vmatpush1.bf16.msra.mxu0 %v3190
  %3978 = vmatprep.subr.bf16.mxu0 %v3201
  %3979 = vmatpush1.bf16.msra.mxu0 %v3200
  %3980 = vmatprep.subr.bf16.mxu0 %v3211
  %3981 = vmatpush1.bf16.msra.mxu0 %v3210
  %3982 = vmatprep.subr.bf16.mxu0 %v3221
  %3983 = vmatpush1.bf16.msra.mxu0 %v3220
  %3984 = vmatprep.subr.bf16.mxu0 %v3231
  %3985 = vmatpush1.bf16.msra.mxu0 %v3230
  %3986 = vmatprep.subr.bf16.mxu0 %v3241
  %3987 = vmatpush1.bf16.msra.mxu0 %v3240
  %3988 = vmatprep.subr.bf16.mxu0 %v3251
  %3989 = vmatpush1.bf16.msra.mxu0 %v3250
  %3990 = vmatprep.subr.bf16.mxu0 %v3261
  %3991 = vmatpush1.bf16.msra.mxu0 %v3260
  %3992 = vmatprep.subr.bf16.mxu0 %v3271
  %3993 = vmatpush1.bf16.msra.mxu0 %v3270
  %3994 = vmatprep.subr.bf16.mxu0 %v3281
  %3995 = vmatpush1.bf16.msra.mxu0 %v3280
  %3996 = vmatprep.subr.bf16.mxu0 %v3291
  %3997 = vmatpush1.bf16.msra.mxu0 %v3290
  %3998 = vmatprep.subr.bf16.mxu0 %v3301
  %3999 = vmatpush1.bf16.msra.mxu0 %v3300
  %4000 = vmatprep.subr.bf16.mxu0 %v3311
  %4001 = vmatpush1.bf16.msra.mxu0 %v3310
  %4002 = vmatprep.subr.bf16.mxu0 %v3321
  %4003 = vmatpush1.bf16.msra.mxu0 %v3320
  %4004 = vmatprep.mubr.bf16.mxu0 %v1352
  %4005 = vmatmul.mubr.bf16.gmra.mrb[0].mxu0 %v1351
  %v4006 = vpop.f32.mrb[0].mxu0
  %v4007 = vadd.f32 %v3966, %v4006
  %v4008 = vpop.f32.mrb[0].mxu0
  %v4009 = vadd.f32 %v3968, %v4008
  %v4010 = vpop.f32.mrb[0].mxu0
  %v4011 = vpop.f32.mrb[0].mxu0
  %4012 = vdwg.mxu0
  %4013 = vmatprep.subr.bf16.mxu0 %v3331
  %4014 = vmatpush1.bf16.msra.mxu0 %v3330
  %4015 = vmatprep.subr.bf16.mxu0 %v3341
  %4016 = vmatpush1.bf16.msra.mxu0 %v3340
  %4017 = vmatprep.subr.bf16.mxu0 %v3351
  %4018 = vmatpush1.bf16.msra.mxu0 %v3350
  %4019 = vmatprep.subr.bf16.mxu0 %v3361
  %4020 = vmatpush1.bf16.msra.mxu0 %v3360
  %4021 = vmatprep.subr.bf16.mxu0 %v3371
  %4022 = vmatpush1.bf16.msra.mxu0 %v3370
  %4023 = vmatprep.subr.bf16.mxu0 %v3381
  %4024 = vmatpush1.bf16.msra.mxu0 %v3380
  %4025 = vmatprep.subr.bf16.mxu0 %v3391
  %4026 = vmatpush1.bf16.msra.mxu0 %v3390
  %4027 = vmatprep.subr.bf16.mxu0 %v3401
  %4028 = vmatpush1.bf16.msra.mxu0 %v3400
  %4029 = vmatprep.subr.bf16.mxu0 0
  %4030 = vmatpush1.bf16.msra.mxu0 0
  %4031 = vmatprep.subr.bf16.mxu0 0
  %4032 = vmatpush1.bf16.msra.mxu0 0
  %4033 = vmatprep.subr.bf16.mxu0 0
  %4034 = vmatpush1.bf16.msra.mxu0 0
  %4035 = vmatprep.subr.bf16.mxu0 0
  %4036 = vmatpush1.bf16.msra.mxu0 0
  %4037 = vmatprep.subr.bf16.mxu0 0
  %4038 = vmatpush1.bf16.msra.mxu0 0
  %4039 = vmatprep.subr.bf16.mxu0 0
  %4040 = vmatpush1.bf16.msra.mxu0 0
  %4041 = vmatprep.subr.bf16.mxu0 0
  %4042 = vmatpush1.bf16.msra.mxu0 0
  %4043 = vmatprep.subr.bf16.mxu0 0
  %4044 = vmatpush1.bf16.msra.mxu0 0
  %4045 = vmatprep.mubr.bf16.mxu0 0
  %4046 = vmatmul.mubr.bf16.gmra.mrb[0].mxu0 %v1353
  %v4047 = vpop.f32.mrb[0].mxu0
  %v4048 = vadd.f32 %v4007, %v4047
  %v4049 = vpop.f32.mrb[0].mxu0
  %v4050 = vadd.f32 %v4009, %v4049
  %v4051 = vpop.f32.mrb[0].mxu0
  %v4052 = vpop.f32.mrb[0].mxu0
  %4053 = vdwg.mxu0
  %4054 = vmatprep.subr.bf16.mxu0 %v3013
  %4055 = vmatpush1.bf16.msra.mxu0 %v3012
  %4056 = vmatprep.subr.bf16.mxu0 %v3023
  %4057 = vmatpush1.bf16.msra.mxu0 %v3022
  %4058 = vmatprep.subr.bf16.mxu0 %v3033
  %4059 = vmatpush1.bf16.msra.mxu0 %v3032
  %4060 = vmatprep.subr.bf16.mxu0 %v3043
  %4061 = vmatpush1.bf16.msra.mxu0 %v3042
  %4062 = vmatprep.subr.bf16.mxu0 %v3053
  %4063 = vmatpush1.bf16.msra.mxu0 %v3052
  %4064 = vmatprep.subr.bf16.mxu0 %v3063
  %4065 = vmatpush1.bf16.msra.mxu0 %v3062
  %4066 = vmatprep.subr.bf16.mxu0 %v3073
  %4067 = vmatpush1.bf16.msra.mxu0 %v3072
  %4068 = vmatprep.subr.bf16.mxu0 %v3083
  %4069 = vmatpush1.bf16.msra.mxu0 %v3082
  %4070 = vmatprep.subr.bf16.mxu0 %v3093
  %4071 = vmatpush1.bf16.msra.mxu0 %v3092
  %4072 = vmatprep.subr.bf16.mxu0 %v3103
  %4073 = vmatpush1.bf16.msra.mxu0 %v3102
  %4074 = vmatprep.subr.bf16.mxu0 %v3113
  %4075 = vmatpush1.bf16.msra.mxu0 %v3112
  %4076 = vmatprep.subr.bf16.mxu0 %v3123
  %4077 = vmatpush1.bf16.msra.mxu0 %v3122
  %4078 = vmatprep.subr.bf16.mxu0 %v3133
  %4079 = vmatpush1.bf16.msra.mxu0 %v3132
  %4080 = vmatprep.subr.bf16.mxu0 %v3143
  %4081 = vmatpush1.bf16.msra.mxu0 %v3142
  %4082 = vmatprep.subr.bf16.mxu0 %v3153
  %4083 = vmatpush1.bf16.msra.mxu0 %v3152
  %4084 = vmatprep.subr.bf16.mxu0 %v3163
  %4085 = vmatpush1.bf16.msra.mxu0 %v3162
  %4086 = vmatprep.mubr.bf16.mxu0 %v1350
  %4087 = vmatmul.mubr.bf16.gmra.mrb[0].mxu0 %v1349
  %v4088 = vpop.f32.mrb[0].mxu0
  %v4089 = vadd.f32 %v1777, %v4088
  %v4090 = vpop.f32.mrb[0].mxu0
  %v4091 = vadd.f32 %v1781, %v4090
  %v4092 = vpop.f32.mrb[0].mxu0
  %v4093 = vpop.f32.mrb[0].mxu0
  %4094 = vdwg.mxu0
  %4095 = vmatprep.subr.bf16.mxu0 %v3173
  %4096 = vmatpush1.bf16.msra.mxu0 %v3172
  %4097 = vmatprep.subr.bf16.mxu0 %v3183
  %4098 = vmatpush1.bf16.msra.mxu0 %v3182
  %4099 = vmatprep.subr.bf16.mxu0 %v3193
  %4100 = vmatpush1.bf16.msra.mxu0 %v3192
  %4101 = vmatprep.subr.bf16.mxu0 %v3203
  %4102 = vmatpush1.bf16.msra.mxu0 %v3202
  %4103 = vmatprep.subr.bf16.mxu0 %v3213
  %4104 = vmatpush1.bf16.msra.mxu0 %v3212
  %4105 = vmatprep.subr.bf16.mxu0 %v3223
  %4106 = vmatpush1.bf16.msra.mxu0 %v3222
  %4107 = vmatprep.subr.bf16.mxu0 %v3233
  %4108 = vmatpush1.bf16.msra.mxu0 %v3232
  %4109 = vmatprep.subr.bf16.mxu0 %v3243
  %4110 = vmatpush1.bf16.msra.mxu0 %v3242
  %4111 = vmatprep.subr.bf16.mxu0 %v3253
  %4112 = vmatpush1.bf16.msra.mxu0 %v3252
  %4113 = vmatprep.subr.bf16.mxu0 %v3263
  %4114 = vmatpush1.bf16.msra.mxu0 %v3262
  %4115 = vmatprep.subr.bf16.mxu0 %v3273
  %4116 = vmatpush1.bf16.msra.mxu0 %v3272
  %4117 = vmatprep.subr.bf16.mxu0 %v3283
  %4118 = vmatpush1.bf16.msra.mxu0 %v3282
  %4119 = vmatprep.subr.bf16.mxu0 %v3293
  %4120 = vmatpush1.bf16.msra.mxu0 %v3292
  %4121 = vmatprep.subr.bf16.mxu0 %v3303
  %4122 = vmatpush1.bf16.msra.mxu0 %v3302
  %4123 = vmatprep.subr.bf16.mxu0 %v3313
  %4124 = vmatpush1.bf16.msra.mxu0 %v3312
  %4125 = vmatprep.subr.bf16.mxu0 %v3323
  %4126 = vmatpush1.bf16.msra.mxu0 %v3322
  %4127 = vmatprep.mubr.bf16.mxu0 %v1352
  %4128 = vmatmul.mubr.bf16.gmra.mrb[0].mxu0 %v1351
  %v4129 = vpop.f32.mrb[0].mxu0
  %v4130 = vadd.f32 %v4089, %v4129
  %v4131 = vpop.f32.mrb[0].mxu0
  %v4132 = vadd.f32 %v4091, %v4131
  %v4133 = vpop.f32.mrb[0].mxu0
  %v4134 = vpop.f32.mrb[0].mxu0
  %4135 = vdwg.mxu0
  %4136 = vmatprep.subr.bf16.mxu0 %v3333
  %4137 = vmatpush1.bf16.msra.mxu0 %v3332
  %4138 = vmatprep.subr.bf16.mxu0 %v3343
  %4139 = vmatpush1.bf16.msra.mxu0 %v3342
  %4140 = vmatprep.subr.bf16.mxu0 %v3353
  %4141 = vmatpush1.bf16.msra.mxu0 %v3352
  %4142 = vmatprep.subr.bf16.mxu0 %v3363
  %4143 = vmatpush1.bf16.msra.mxu0 %v3362
  %4144 = vmatprep.subr.bf16.mxu0 %v3373
  %4145 = vmatpush1.bf16.msra.mxu0 %v3372
  %4146 = vmatprep.subr.bf16.mxu0 %v3383
  %4147 = vmatpush1.bf16.msra.mxu0 %v3382
  %4148 = vmatprep.subr.bf16.mxu0 %v3393
  %4149 = vmatpush1.bf16.msra.mxu0 %v3392
  %4150 = vmatprep.subr.bf16.mxu0 %v3403
  %4151 = vmatpush1.bf16.msra.mxu0 %v3402
  %4152 = vmatprep.subr.bf16.mxu0 0
  %4153 = vmatpush1.bf16.msra.mxu0 0
  %4154 = vmatprep.subr.bf16.mxu0 0
  %4155 = vmatpush1.bf16.msra.mxu0 0
  %4156 = vmatprep.subr.bf16.mxu0 0
  %4157 = vmatpush1.bf16.msra.mxu0 0
  %4158 = vmatprep.subr.bf16.mxu0 0
  %4159 = vmatpush1.bf16.msra.mxu0 0
  %4160 = vmatprep.subr.bf16.mxu0 0
  %4161 = vmatpush1.bf16.msra.mxu0 0
  %4162 = vmatprep.subr.bf16.mxu0 0
  %4163 = vmatpush1.bf16.msra.mxu0 0
  %4164 = vmatprep.subr.bf16.mxu0 0
  %4165 = vmatpush1.bf16.msra.mxu0 0
  %4166 = vmatprep.subr.bf16.mxu0 0
  %4167 = vmatpush1.bf16.msra.mxu0 0
  %4168 = vmatprep.mubr.bf16.mxu0 0
  %4169 = vmatmul.mubr.bf16.gmra.mrb[0].mxu0 %v1353
  %v4170 = vpop.f32.mrb[0].mxu0
  %v4171 = vadd.f32 %v4130, %v4170
  %v4172 = vpop.f32.mrb[0].mxu0
  %v4173 = vadd.f32 %v4132, %v4172
  %v4174 = vpop.f32.mrb[0].mxu0
  %v4175 = vpop.f32.mrb[0].mxu0
  %4176 = vdwg.mxu0
  %4177 = vmatprep.subr.bf16.mxu0 %v3015
  %4178 = vmatpush1.bf16.msra.mxu0 %v3014
  %4179 = vmatprep.subr.bf16.mxu0 %v3025
  %4180 = vmatpush1.bf16.msra.mxu0 %v3024
  %4181 = vmatprep.subr.bf16.mxu0 %v3035
  %4182 = vmatpush1.bf16.msra.mxu0 %v3034
  %4183 = vmatprep.subr.bf16.mxu0 %v3045
  %4184 = vmatpush1.bf16.msra.mxu0 %v3044
  %4185 = vmatprep.subr.bf16.mxu0 %v3055
  %4186 = vmatpush1.bf16.msra.mxu0 %v3054
  %4187 = vmatprep.subr.bf16.mxu0 %v3065
  %4188 = vmatpush1.bf16.msra.mxu0 %v3064
  %4189 = vmatprep.subr.bf16.mxu0 %v3075
  %4190 = vmatpush1.bf16.msra.mxu0 %v3074
  %4191 = vmatprep.subr.bf16.mxu0 %v3085
  %4192 = vmatpush1.bf16.msra.mxu0 %v3084
  %4193 = vmatprep.subr.bf16.mxu0 %v3095
  %4194 = vmatpush1.bf16.msra.mxu0 %v3094
  %4195 = vmatprep.subr.bf16.mxu0 %v3105
  %4196 = vmatpush1.bf16.msra.mxu0 %v3104
  %4197 = vmatprep.subr.bf16.mxu0 %v3115
  %4198 = vmatpush1.bf16.msra.mxu0 %v3114
  %4199 = vmatprep.subr.bf16.mxu0 %v3125
  %4200 = vmatpush1.bf16.msra.mxu0 %v3124
  %4201 = vmatprep.subr.bf16.mxu0 %v3135
  %4202 = vmatpush1.bf16.msra.mxu0 %v3134
  %4203 = vmatprep.subr.bf16.mxu0 %v3145
  %4204 = vmatpush1.bf16.msra.mxu0 %v3144
  %4205 = vmatprep.subr.bf16.mxu0 %v3155
  %4206 = vmatpush1.bf16.msra.mxu0 %v3154
  %4207 = vmatprep.subr.bf16.mxu0 %v3165
  %4208 = vmatpush1.bf16.msra.mxu0 %v3164
  %4209 = vmatprep.mubr.bf16.mxu0 %v1350
  %4210 = vmatmul.mubr.bf16.gmra.mrb[0].mxu0 %v1349
  %v4211 = vpop.f32.mrb[0].mxu0
  %v4212 = vadd.f32 %v1785, %v4211
  %v4213 = vpop.f32.mrb[0].mxu0
  %v4214 = vadd.f32 %v1789, %v4213
  %v4215 = vpop.f32.mrb[0].mxu0
  %v4216 = vpop.f32.mrb[0].mxu0
  %4217 = vdwg.mxu0
  %4218 = vmatprep.subr.bf16.mxu0 %v3175
  %4219 = vmatpush1.bf16.msra.mxu0 %v3174
  %4220 = vmatprep.subr.bf16.mxu0 %v3185
  %4221 = vmatpush1.bf16.msra.mxu0 %v3184
  %4222 = vmatprep.subr.bf16.mxu0 %v3195
  %4223 = vmatpush1.bf16.msra.mxu0 %v3194
  %4224 = vmatprep.subr.bf16.mxu0 %v3205
  %4225 = vmatpush1.bf16.msra.mxu0 %v3204
  %4226 = vmatprep.subr.bf16.mxu0 %v3215
  %4227 = vmatpush1.bf16.msra.mxu0 %v3214
  %4228 = vmatprep.subr.bf16.mxu0 %v3225
  %4229 = vmatpush1.bf16.msra.mxu0 %v3224
  %4230 = vmatprep.subr.bf16.mxu0 %v3235
  %4231 = vmatpush1.bf16.msra.mxu0 %v3234
  %4232 = vmatprep.subr.bf16.mxu0 %v3245
  %4233 = vmatpush1.bf16.msra.mxu0 %v3244
  %4234 = vmatprep.subr.bf16.mxu0 %v3255
  %4235 = vmatpush1.bf16.msra.mxu0 %v3254
  %4236 = vmatprep.subr.bf16.mxu0 %v3265
  %4237 = vmatpush1.bf16.msra.mxu0 %v3264
  %4238 = vmatprep.subr.bf16.mxu0 %v3275
  %4239 = vmatpush1.bf16.msra.mxu0 %v3274
  %4240 = vmatprep.subr.bf16.mxu0 %v3285
  %4241 = vmatpush1.bf16.msra.mxu0 %v3284
  %4242 = vmatprep.subr.bf16.mxu0 %v3295
  %4243 = vmatpush1.bf16.msra.mxu0 %v3294
  %4244 = vmatprep.subr.bf16.mxu0 %v3305
  %4245 = vmatpush1.bf16.msra.mxu0 %v3304
  %4246 = vmatprep.subr.bf16.mxu0 %v3315
  %4247 = vmatpush1.bf16.msra.mxu0 %v3314
  %4248 = vmatprep.subr.bf16.mxu0 %v3325
  %4249 = vmatpush1.bf16.msra.mxu0 %v3324
  %4250 = vmatprep.mubr.bf16.mxu0 %v1352
  %4251 = vmatmul.mubr.bf16.gmra.mrb[0].mxu0 %v1351
  %v4252 = vpop.f32.mrb[0].mxu0
  %v4253 = vadd.f32 %v4212, %v4252
  %v4254 = vpop.f32.mrb[0].mxu0
  %v4255 = vadd.f32 %v4214, %v4254
  %v4256 = vpop.f32.mrb[0].mxu0
  %v4257 = vpop.f32.mrb[0].mxu0
  %4258 = vdwg.mxu0
  %4259 = vmatprep.subr.bf16.mxu0 %v3335
  %4260 = vmatpush1.bf16.msra.mxu0 %v3334
  %4261 = vmatprep.subr.bf16.mxu0 %v3345
  %4262 = vmatpush1.bf16.msra.mxu0 %v3344
  %4263 = vmatprep.subr.bf16.mxu0 %v3355
  %4264 = vmatpush1.bf16.msra.mxu0 %v3354
  %4265 = vmatprep.subr.bf16.mxu0 %v3365
  %4266 = vmatpush1.bf16.msra.mxu0 %v3364
  %4267 = vmatprep.subr.bf16.mxu0 %v3375
  %4268 = vmatpush1.bf16.msra.mxu0 %v3374
  %4269 = vmatprep.subr.bf16.mxu0 %v3385
  %4270 = vmatpush1.bf16.msra.mxu0 %v3384
  %4271 = vmatprep.subr.bf16.mxu0 %v3395
  %4272 = vmatpush1.bf16.msra.mxu0 %v3394
  %4273 = vmatprep.subr.bf16.mxu0 %v3405
  %4274 = vmatpush1.bf16.msra.mxu0 %v3404
  %4275 = vmatprep.subr.bf16.mxu0 0
  %4276 = vmatpush1.bf16.msra.mxu0 0
  %4277 = vmatprep.subr.bf16.mxu0 0
  %4278 = vmatpush1.bf16.msra.mxu0 0
  %4279 = vmatprep.subr.bf16.mxu0 0
  %4280 = vmatpush1.bf16.msra.mxu0 0
  %4281 = vmatprep.subr.bf16.mxu0 0
  %4282 = vmatpush1.bf16.msra.mxu0 0
  %4283 = vmatprep.subr.bf16.mxu0 0
  %4284 = vmatpush1.bf16.msra.mxu0 0
  %4285 = vmatprep.subr.bf16.mxu0 0
  %4286 = vmatpush1.bf16.msra.mxu0 0
  %4287 = vmatprep.subr.bf16.mxu0 0
  %4288 = vmatpush1.bf16.msra.mxu0 0
  %4289 = vmatprep.subr.bf16.mxu0 0
  %4290 = vmatpush1.bf16.msra.mxu0 0
  %4291 = vmatprep.mubr.bf16.mxu0 0
  %4292 = vmatmul.mubr.bf16.gmra.mrb[0].mxu0 %v1353
  %v4293 = vpop.f32.mrb[0].mxu0
  %v4294 = vadd.f32 %v4253, %v4293
  %v4295 = vpop.f32.mrb[0].mxu0
  %v4296 = vadd.f32 %v4255, %v4295
  %v4297 = vpop.f32.mrb[0].mxu0
  %v4298 = vpop.f32.mrb[0].mxu0
  %4299 = vdwg.mxu0
  %4300 = vmatprep.subr.bf16.mxu0 %v3017
  %4301 = vmatpush1.bf16.msra.mxu0 %v3016
  %4302 = vmatprep.subr.bf16.mxu0 %v3027
  %4303 = vmatpush1.bf16.msra.mxu0 %v3026
  %4304 = vmatprep.subr.bf16.mxu0 %v3037
  %4305 = vmatpush1.bf16.msra.mxu0 %v3036
  %4306 = vmatprep.subr.bf16.mxu0 %v3047
  %4307 = vmatpush1.bf16.msra.mxu0 %v3046
  %4308 = vmatprep.subr.bf16.mxu0 %v3057
  %4309 = vmatpush1.bf16.msra.mxu0 %v3056
  %4310 = vmatprep.subr.bf16.mxu0 %v3067
  %4311 = vmatpush1.bf16.msra.mxu0 %v3066
  %4312 = vmatprep.subr.bf16.mxu0 %v3077
  %4313 = vmatpush1.bf16.msra.mxu0 %v3076
  %4314 = vmatprep.subr.bf16.mxu0 %v3087
  %4315 = vmatpush1.bf16.msra.mxu0 %v3086
  %4316 = vmatprep.subr.bf16.mxu0 %v3097
  %4317 = vmatpush1.bf16.msra.mxu0 %v3096
  %4318 = vmatprep.subr.bf16.mxu0 %v3107
  %4319 = vmatpush1.bf16.msra.mxu0 %v3106
  %4320 = vmatprep.subr.bf16.mxu0 %v3117
  %4321 = vmatpush1.bf16.msra.mxu0 %v3116
  %4322 = vmatprep.subr.bf16.mxu0 %v3127
  %4323 = vmatpush1.bf16.msra.mxu0 %v3126
  %4324 = vmatprep.subr.bf16.mxu0 %v3137
  %4325 = vmatpush1.bf16.msra.mxu0 %v3136
  %4326 = vmatprep.subr.bf16.mxu0 %v3147
  %4327 = vmatpush1.bf16.msra.mxu0 %v3146
  %4328 = vmatprep.subr.bf16.mxu0 %v3157
  %4329 = vmatpush1.bf16.msra.mxu0 %v3156
  %4330 = vmatprep.subr.bf16.mxu0 %v3167
  %4331 = vmatpush1.bf16.msra.mxu0 %v3166
  %4332 = vmatprep.mubr.bf16.mxu0 %v1350
  %4333 = vmatmul.mubr.bf16.gmra.mrb[0].mxu0 %v1349
  %v4334 = vpop.f32.mrb[0].mxu0
  %v4335 = vadd.f32 %v1793, %v4334
  %v4336 = vpop.f32.mrb[0].mxu0
  %v4337 = vadd.f32 %v1797, %v4336
  %v4338 = vpop.f32.mrb[0].mxu0
  %v4339 = vpop.f32.mrb[0].mxu0
  %4340 = vdwg.mxu0
  %4341 = vmatprep.subr.bf16.mxu0 %v3177
  %4342 = vmatpush1.bf16.msra.mxu0 %v3176
  %4343 = vmatprep.subr.bf16.mxu0 %v3187
  %4344 = vmatpush1.bf16.msra.mxu0 %v3186
  %4345 = vmatprep.subr.bf16.mxu0 %v3197
  %4346 = vmatpush1.bf16.msra.mxu0 %v3196
  %4347 = vmatprep.subr.bf16.mxu0 %v3207
  %4348 = vmatpush1.bf16.msra.mxu0 %v3206
  %4349 = vmatprep.subr.bf16.mxu0 %v3217
  %4350 = vmatpush1.bf16.msra.mxu0 %v3216
  %4351 = vmatprep.subr.bf16.mxu0 %v3227
  %4352 = vmatpush1.bf16.msra.mxu0 %v3226
  %4353 = vmatprep.subr.bf16.mxu0 %v3237
  %4354 = vmatpush1.bf16.msra.mxu0 %v3236
  %4355 = vmatprep.subr.bf16.mxu0 %v3247
  %4356 = vmatpush1.bf16.msra.mxu0 %v3246
  %4357 = vmatprep.subr.bf16.mxu0 %v3257
  %4358 = vmatpush1.bf16.msra.mxu0 %v3256
  %4359 = vmatprep.subr.bf16.mxu0 %v3267
  %4360 = vmatpush1.bf16.msra.mxu0 %v3266
  %4361 = vmatprep.subr.bf16.mxu0 %v3277
  %4362 = vmatpush1.bf16.msra.mxu0 %v3276
  %4363 = vmatprep.subr.bf16.mxu0 %v3287
  %4364 = vmatpush1.bf16.msra.mxu0 %v3286
  %4365 = vmatprep.subr.bf16.mxu0 %v3297
  %4366 = vmatpush1.bf16.msra.mxu0 %v3296
  %4367 = vmatprep.subr.bf16.mxu0 %v3307
  %4368 = vmatpush1.bf16.msra.mxu0 %v3306
  %4369 = vmatprep.subr.bf16.mxu0 %v3317
  %4370 = vmatpush1.bf16.msra.mxu0 %v3316
  %4371 = vmatprep.subr.bf16.mxu0 %v3327
  %4372 = vmatpush1.bf16.msra.mxu0 %v3326
  %4373 = vmatprep.mubr.bf16.mxu0 %v1352
  %4374 = vmatmul.mubr.bf16.gmra.mrb[0].mxu0 %v1351
  %v4375 = vpop.f32.mrb[0].mxu0
  %v4376 = vadd.f32 %v4335, %v4375
  %v4377 = vpop.f32.mrb[0].mxu0
  %v4378 = vadd.f32 %v4337, %v4377
  %v4379 = vpop.f32.mrb[0].mxu0
  %v4380 = vpop.f32.mrb[0].mxu0
  %4381 = vdwg.mxu0
  %4382 = vmatprep.subr.bf16.mxu0 %v3337
  %4383 = vmatpush1.bf16.msra.mxu0 %v3336
  %4384 = vmatprep.subr.bf16.mxu0 %v3347
  %4385 = vmatpush1.bf16.msra.mxu0 %v3346
  %4386 = vmatprep.subr.bf16.mxu0 %v3357
  %4387 = vmatpush1.bf16.msra.mxu0 %v3356
  %4388 = vmatprep.subr.bf16.mxu0 %v3367
  %4389 = vmatpush1.bf16.msra.mxu0 %v3366
  %4390 = vmatprep.subr.bf16.mxu0 %v3377
  %4391 = vmatpush1.bf16.msra.mxu0 %v3376
  %4392 = vmatprep.subr.bf16.mxu0 %v3387
  %4393 = vmatpush1.bf16.msra.mxu0 %v3386
  %4394 = vmatprep.subr.bf16.mxu0 %v3397
  %4395 = vmatpush1.bf16.msra.mxu0 %v3396
  %4396 = vmatprep.subr.bf16.mxu0 %v3407
  %4397 = vmatpush1.bf16.msra.mxu0 %v3406
  %4398 = vmatprep.subr.bf16.mxu0 0
  %4399 = vmatpush1.bf16.msra.mxu0 0
  %4400 = vmatprep.subr.bf16.mxu0 0
  %4401 = vmatpush1.bf16.msra.mxu0 0
  %4402 = vmatprep.subr.bf16.mxu0 0
  %4403 = vmatpush1.bf16.msra.mxu0 0
  %4404 = vmatprep.subr.bf16.mxu0 0
  %4405 = vmatpush1.bf16.msra.mxu0 0
  %4406 = vmatprep.subr.bf16.mxu0 0
  %4407 = vmatpush1.bf16.msra.mxu0 0
  %4408 = vmatprep.subr.bf16.mxu0 0
  %4409 = vmatpush1.bf16.msra.mxu0 0
  %4410 = vmatprep.subr.bf16.mxu0 0
  %4411 = vmatpush1.bf16.msra.mxu0 0
  %4412 = vmatprep.subr.bf16.mxu0 0
  %4413 = vmatpush1.bf16.msra.mxu0 0
  %4414 = vmatprep.mubr.bf16.mxu0 0
  %4415 = vmatmul.mubr.bf16.gmra.mrb[0].mxu0 %v1353
  %v4416 = vpop.f32.mrb[0].mxu0
  %v4417 = vadd.f32 %v4376, %v4416
  %v4418 = vpop.f32.mrb[0].mxu0
  %v4419 = vadd.f32 %v4378, %v4418
  %v4420 = vpop.f32.mrb[0].mxu0
  %v4421 = vpop.f32.mrb[0].mxu0
  %4422 = vdwg.mxu0
  %v4423 = vmax.f32 %v3925, 0.0
  %v4424 = vmax.f32 %v3927, 0.0
  %v4425 = vmax.f32 %v4048, 0.0
  %v4426 = vmax.f32 %v4050, 0.0
  %v4427 = vmax.f32 %v4171, 0.0
  %v4428 = vmax.f32 %v4173, 0.0
  %v4429 = vmax.f32 %v4294, 0.0
  %v4430 = vmax.f32 %v4296, 0.0
  %v4431 = vmax.f32 %v4417, 0.0
  %v4432 = vmax.f32 %v4419, 0.0
  %v4433 = vpack.c.bf16 %v4423, %v4423
  %v4434 = vpack.c.bf16 %v4424, %v4424
  %v4435 = vpack.c.bf16 %v4425, %v4425
  %v4436 = vpack.c.bf16 %v4426, %v4426
  %v4437 = vpack.c.bf16 %v4427, %v4427
  %v4438 = vpack.c.bf16 %v4428, %v4428
  %v4439 = vpack.c.bf16 %v4429, %v4429
  %v4440 = vpack.c.bf16 %v4430, %v4430
  %v4441 = vpack.c.bf16 %v4431, %v4431
  %v4442 = vpack.c.bf16 %v4432, %v4432
  %v4443 = vld [vmem:[%s7] sm:$0xff]
  %v4444 = vld [vmem:[%s7 + $0x8] sm:$0xff]
  %v4445 = vld [vmem:[%s7 + $0x10] sm:$0xf]
  %v4446 = vld [vmem:[%s7 + $0x14] sm:$0xff]
  %v4447 = vld [vmem:[%s7 + $0x1c] sm:$0xff]
  %v4448 = vld [vmem:[%s7 + $0x24] sm:$0xf]
  %v4449 = vld [vmem:[%s7 + $0x28] sm:$0xff]
  %v4450 = vld [vmem:[%s7 + $0x30] sm:$0xff]
  %v4451 = vld [vmem:[%s7 + $0x38] sm:$0xf]
  %v4452 = vld [vmem:[%s7 + $0x3c] sm:$0xff]
  %v4453 = vld [vmem:[%s7 + $0x44] sm:$0xff]
  %v4454 = vld [vmem:[%s7 + $0x4c] sm:$0xf]
  %v4455 = vld [vmem:[%s7 + $0x50] sm:$0xff]
  %v4456 = vld [vmem:[%s7 + $0x58] sm:$0xff]
  %v4457 = vld [vmem:[%s7 + $0x60] sm:$0xf]
  %v4458 = vld [vmem:[%s7 + $0x64] sm:$0xff]
  %v4459 = vld [vmem:[%s7 + $0x6c] sm:$0xff]
  %v4460 = vld [vmem:[%s7 + $0x74] sm:$0xf]
  %v4461 = vld [vmem:[%s7 + $0x78] sm:$0xff]
  %v4462 = vld [vmem:[%s7 + $0x80] sm:$0xff]
  %v4463 = vld [vmem:[%s7 + $0x88] sm:$0xf]
  %v4464 = vld [vmem:[%s7 + $0x8c] sm:$0xff]
  %v4465 = vld [vmem:[%s7 + $0x94] sm:$0xff]
  %v4466 = vld [vmem:[%s7 + $0x9c] sm:$0xf]
  %v4467 = vld [vmem:[%s7 + $0xa0] sm:$0xff]
  %v4468 = vld [vmem:[%s7 + $0xa8] sm:$0xff]
  %v4469 = vld [vmem:[%s7 + $0xb0] sm:$0xf]
  %v4470 = vld [vmem:[%s7 + $0xb4] sm:$0xff]
  %v4471 = vld [vmem:[%s7 + $0xbc] sm:$0xff]
  %v4472 = vld [vmem:[%s7 + $0xc4] sm:$0xf]
  %v4473 = vld [vmem:[%s7 + $0xc8] sm:$0xff]
  %v4474 = vld [vmem:[%s7 + $0xd0] sm:$0xff]
  %v4475 = vld [vmem:[%s7 + $0xd8] sm:$0xf]
  %v4476 = vld [vmem:[%s7 + $0xdc] sm:$0xff]
  %v4477 = vld [vmem:[%s7 + $0xe4] sm:$0xff]
  %v4478 = vld [vmem:[%s7 + $0xec] sm:$0xf]
  %v4479 = vld [vmem:[%s7 + $0xf0] sm:$0xff]
  %v4480 = vld [vmem:[%s7 + $0xf8] sm:$0xff]
  %v4481 = vld [vmem:[%s7 + $0x100] sm:$0xf]
  %v4482 = vld [vmem:[%s7 + $0x104] sm:$0xff]
  %v4483 = vld [vmem:[%s7 + $0x10c] sm:$0xff]
  %v4484 = vld [vmem:[%s7 + $0x114] sm:$0xf]
  %v4485 = vld [vmem:[%s7 + $0x118] sm:$0xff]
  %v4486 = vld [vmem:[%s7 + $0x120] sm:$0xff]
  %v4487 = vld [vmem:[%s7 + $0x128] sm:$0xf]
  %v4488 = vld [vmem:[%s7 + $0x12c] sm:$0xff]
  %v4489 = vld [vmem:[%s7 + $0x134] sm:$0xff]
  %v4490 = vld [vmem:[%s7 + $0x13c] sm:$0xf]
  %v4491 = vld [vmem:[%s7 + $0x140] sm:$0xff]
  %v4492 = vld [vmem:[%s7 + $0x148] sm:$0xff]
  %v4493 = vld [vmem:[%s7 + $0x150] sm:$0xf]
  %v4494 = vld [vmem:[%s7 + $0x154] sm:$0xff]
  %v4495 = vld [vmem:[%s7 + $0x15c] sm:$0xff]
  %v4496 = vld [vmem:[%s7 + $0x164] sm:$0xf]
  %v4497 = vld [vmem:[%s7 + $0x168] sm:$0xff]
  %v4498 = vld [vmem:[%s7 + $0x170] sm:$0xff]
  %v4499 = vld [vmem:[%s7 + $0x178] sm:$0xf]
  %v4500 = vld [vmem:[%s7 + $0x17c] sm:$0xff]
  %v4501 = vld [vmem:[%s7 + $0x184] sm:$0xff]
  %v4502 = vld [vmem:[%s7 + $0x18c] sm:$0xf]
  %v4503 = vld [vmem:[%s7 + $0x190] sm:$0xff]
  %v4504 = vld [vmem:[%s7 + $0x198] sm:$0xff]
  %v4505 = vld [vmem:[%s7 + $0x1a0] sm:$0xf]
  %v4506 = vld [vmem:[%s7 + $0x1a4] sm:$0xff]
  %v4507 = vld [vmem:[%s7 + $0x1ac] sm:$0xff]
  %v4508 = vld [vmem:[%s7 + $0x1b4] sm:$0xf]
  %v4509 = vld [vmem:[%s7 + $0x1b8] sm:$0xff]
  %v4510 = vld [vmem:[%s7 + $0x1c0] sm:$0xff]
  %v4511 = vld [vmem:[%s7 + $0x1c8] sm:$0xf]
  %v4512 = vld [vmem:[%s7 + $0x1cc] sm:$0xff]
  %v4513 = vld [vmem:[%s7 + $0x1d4] sm:$0xff]
  %v4514 = vld [vmem:[%s7 + $0x1dc] sm:$0xf]
  %v4515 = vld [vmem:[%s7 + $0x1e0] sm:$0xff]
  %v4516 = vld [vmem:[%s7 + $0x1e8] sm:$0xff]
  %v4517 = vld [vmem:[%s7 + $0x1f0] sm:$0xf]
  %v4518 = vld [vmem:[%s7 + $0x1f4] sm:$0xff]
  %v4519 = vld [vmem:[%s7 + $0x1fc] sm:$0xff]
  %v4520 = vld [vmem:[%s7 + $0x204] sm:$0xf]
  %v4521 = vld [vmem:[%s7 + $0x208] sm:$0xff]
  %v4522 = vld [vmem:[%s7 + $0x210] sm:$0xff]
  %v4523 = vld [vmem:[%s7 + $0x218] sm:$0xf]
  %v4524 = vld [vmem:[%s7 + $0x21c] sm:$0xff]
  %v4525 = vld [vmem:[%s7 + $0x224] sm:$0xff]
  %v4526 = vld [vmem:[%s7 + $0x22c] sm:$0xf]
  %v4527 = vld [vmem:[%s7 + $0x230] sm:$0xff]
  %v4528 = vld [vmem:[%s7 + $0x238] sm:$0xff]
  %v4529 = vld [vmem:[%s7 + $0x240] sm:$0xf]
  %v4530 = vld [vmem:[%s7 + $0x244] sm:$0xff]
  %v4531 = vld [vmem:[%s7 + $0x24c] sm:$0xff]
  %v4532 = vld [vmem:[%s7 + $0x254] sm:$0xf]
  %v4533 = vld [vmem:[%s7 + $0x258] sm:$0xff]
  %v4534 = vld [vmem:[%s7 + $0x260] sm:$0xff]
  %v4535 = vld [vmem:[%s7 + $0x268] sm:$0xf]
  %v4536 = vld [vmem:[%s7 + $0x26c] sm:$0xff]
  %v4537 = vld [vmem:[%s7 + $0x274] sm:$0xff]
  %v4538 = vld [vmem:[%s7 + $0x27c] sm:$0xf]
  %v4539 = vld [vmem:[%s7 + $0x280] sm:$0xff]
  %v4540 = vld [vmem:[%s7 + $0x288] sm:$0xff]
  %v4541 = vld [vmem:[%s7 + $0x290] sm:$0xf]
  %v4542 = vld [vmem:[%s7 + $0x294] sm:$0xff]
  %v4543 = vld [vmem:[%s7 + $0x29c] sm:$0xff]
  %v4544 = vld [vmem:[%s7 + $0x2a4] sm:$0xf]
  %v4545 = vld [vmem:[%s7 + $0x2a8] sm:$0xff]
  %v4546 = vld [vmem:[%s7 + $0x2b0] sm:$0xff]
  %v4547 = vld [vmem:[%s7 + $0x2b8] sm:$0xf]
  %v4548 = vld [vmem:[%s7 + $0x2bc] sm:$0xff]
  %v4549 = vld [vmem:[%s7 + $0x2c4] sm:$0xff]
  %v4550 = vld [vmem:[%s7 + $0x2cc] sm:$0xf]
  %v4551 = vld [vmem:[%s7 + $0x2d0] sm:$0xff]
  %v4552 = vld [vmem:[%s7 + $0x2d8] sm:$0xff]
  %v4553 = vld [vmem:[%s7 + $0x2e0] sm:$0xf]
  %v4554 = vld [vmem:[%s7 + $0x2e4] sm:$0xff]
  %v4555 = vld [vmem:[%s7 + $0x2ec] sm:$0xff]
  %v4556 = vld [vmem:[%s7 + $0x2f4] sm:$0xf]
  %v4557 = vld [vmem:[%s7 + $0x2f8] sm:$0xff]
  %v4558 = vld [vmem:[%s7 + $0x300] sm:$0xff]
  %v4559 = vld [vmem:[%s7 + $0x308] sm:$0xf]
  %v4560 = vld [vmem:[%s7 + $0x30c] sm:$0xff]
  %v4561 = vld [vmem:[%s7 + $0x314] sm:$0xff]
  %v4562 = vld [vmem:[%s7 + $0x31c] sm:$0xf]
  %v4563 = vld [vmem:[%s7 + $0x320] sm:$0xff]
  %v4564 = vld [vmem:[%s7 + $0x328] sm:$0xff]
  %v4565 = vld [vmem:[%s7 + $0x330] sm:$0xf]
  %v4566 = vld [vmem:[%s7 + $0x334] sm:$0xff]
  %v4567 = vld [vmem:[%s7 + $0x33c] sm:$0xff]
  %v4568 = vld [vmem:[%s7 + $0x344] sm:$0xf]
  %v4569 = vld [vmem:[%s7 + $0x348] sm:$0xff]
  %v4570 = vld [vmem:[%s7 + $0x350] sm:$0xff]
  %v4571 = vld [vmem:[%s7 + $0x358] sm:$0xf]
  %v4572 = vld [vmem:[%s7 + $0x35c] sm:$0xff]
  %v4573 = vld [vmem:[%s7 + $0x364] sm:$0xff]
  %v4574 = vld [vmem:[%s7 + $0x36c] sm:$0xf]
  %v4575 = vld [vmem:[%s7 + $0x370] sm:$0xff]
  %v4576 = vld [vmem:[%s7 + $0x378] sm:$0xff]
  %v4577 = vld [vmem:[%s7 + $0x380] sm:$0xf]
  %v4578 = vld [vmem:[%s7 + $0x384] sm:$0xff]
  %v4579 = vld [vmem:[%s7 + $0x38c] sm:$0xff]
  %v4580 = vld [vmem:[%s7 + $0x394] sm:$0xf]
  %v4581 = vld [vmem:[%s7 + $0x398] sm:$0xff]
  %v4582 = vld [vmem:[%s7 + $0x3a0] sm:$0xff]
  %v4583 = vld [vmem:[%s7 + $0x3a8] sm:$0xf]
  %v4584 = vld [vmem:[%s7 + $0x3ac] sm:$0xff]
  %v4585 = vld [vmem:[%s7 + $0x3b4] sm:$0xff]
  %v4586 = vld [vmem:[%s7 + $0x3bc] sm:$0xf]
  %v4587 = vld [vmem:[%s7 + $0x3c0] sm:$0xff]
  %v4588 = vld [vmem:[%s7 + $0x3c8] sm:$0xff]
  %v4589 = vld [vmem:[%s7 + $0x3d0] sm:$0xf]
  %v4590 = vld [vmem:[%s7 + $0x3d4] sm:$0xff]
  %v4591 = vld [vmem:[%s7 + $0x3dc] sm:$0xff]
  %v4592 = vld [vmem:[%s7 + $0x3e4] sm:$0xf]
  %v4593 = vld [vmem:[%s7 + $0x3e8] sm:$0xff]
  %v4594 = vld [vmem:[%s7 + $0x3f0] sm:$0xff]
  %v4595 = vld [vmem:[%s7 + $0x3f8] sm:$0xf]
  %v4596 = vld [vmem:[%s7 + $0x3fc] sm:$0xff]
  %v4597 = vld [vmem:[%s7 + $0x404] sm:$0xff]
  %v4598 = vld [vmem:[%s7 + $0x40c] sm:$0xf]
  %v4599 = vld [vmem:[%s7 + $0x410] sm:$0xff]
  %v4600 = vld [vmem:[%s7 + $0x418] sm:$0xff]
  %v4601 = vld [vmem:[%s7 + $0x420] sm:$0xf]
  %v4602 = vld [vmem:[%s7 + $0x424] sm:$0xff]
  %v4603 = vld [vmem:[%s7 + $0x42c] sm:$0xff]
  %v4604 = vld [vmem:[%s7 + $0x434] sm:$0xf]
  %v4605 = vld [vmem:[%s7 + $0x438] sm:$0xff]
  %v4606 = vld [vmem:[%s7 + $0x440] sm:$0xff]
  %v4607 = vld [vmem:[%s7 + $0x448] sm:$0xf]
  %v4608 = vld [vmem:[%s7 + $0x44c] sm:$0xff]
  %v4609 = vld [vmem:[%s7 + $0x454] sm:$0xff]
  %v4610 = vld [vmem:[%s7 + $0x45c] sm:$0xf]
  %v4611 = vld [vmem:[%s7 + $0x460] sm:$0xff]
  %v4612 = vld [vmem:[%s7 + $0x468] sm:$0xff]
  %v4613 = vld [vmem:[%s7 + $0x470] sm:$0xf]
  %v4614 = vld [vmem:[%s7 + $0x474] sm:$0xff]
  %v4615 = vld [vmem:[%s7 + $0x47c] sm:$0xff]
  %v4616 = vld [vmem:[%s7 + $0x484] sm:$0xf]
  %v4617 = vld [vmem:[%s7 + $0x488] sm:$0xff]
  %v4618 = vld [vmem:[%s7 + $0x490] sm:$0xff]
  %v4619 = vld [vmem:[%s7 + $0x498] sm:$0xf]
  %v4620 = vld [vmem:[%s7 + $0x49c] sm:$0xff]
  %v4621 = vld [vmem:[%s7 + $0x4a4] sm:$0xff]
  %v4622 = vld [vmem:[%s7 + $0x4ac] sm:$0xf]
  %v4623 = vld [vmem:[%s7 + $0x4b0] sm:$0xff]
  %v4624 = vld [vmem:[%s7 + $0x4b8] sm:$0xff]
  %v4625 = vld [vmem:[%s7 + $0x4c0] sm:$0xf]
  %v4626 = vld [vmem:[%s7 + $0x4c4] sm:$0xff]
  %v4627 = vld [vmem:[%s7 + $0x4cc] sm:$0xff]
  %v4628 = vld [vmem:[%s7 + $0x4d4] sm:$0xf]
  %v4629 = vld [vmem:[%s7 + $0x4d8] sm:$0xff]
  %v4630 = vld [vmem:[%s7 + $0x4e0] sm:$0xff]
  %v4631 = vld [vmem:[%s7 + $0x4e8] sm:$0xf]
  %v4632 = vld [vmem:[%s7 + $0x4ec] sm:$0xff]
  %v4633 = vld [vmem:[%s7 + $0x4f4] sm:$0xff]
  %v4634 = vld [vmem:[%s7 + $0x4fc] sm:$0xf]
  %v4635 = vld [vmem:[%s7 + $0x500] sm:$0xff]
  %v4636 = vld [vmem:[%s7 + $0x508] sm:$0xff]
  %v4637 = vld [vmem:[%s7 + $0x510] sm:$0xf]
  %v4638 = vld [vmem:[%s7 + $0x514] sm:$0xff]
  %v4639 = vld [vmem:[%s7 + $0x51c] sm:$0xff]
  %v4640 = vld [vmem:[%s7 + $0x524] sm:$0xf]
  %v4641 = vld [vmem:[%s7 + $0x528] sm:$0xff]
  %v4642 = vld [vmem:[%s7 + $0x530] sm:$0xff]
  %v4643 = vld [vmem:[%s7 + $0x538] sm:$0xf]
  %v4644 = vld [vmem:[%s7 + $0x53c] sm:$0xff]
  %v4645 = vld [vmem:[%s7 + $0x544] sm:$0xff]
  %v4646 = vld [vmem:[%s7 + $0x54c] sm:$0xf]
  %v4647 = vld [vmem:[%s7 + $0x550] sm:$0xff]
  %v4648 = vld [vmem:[%s7 + $0x558] sm:$0xff]
  %v4649 = vld [vmem:[%s7 + $0x560] sm:$0xf]
  %v4650 = vld [vmem:[%s7 + $0x564] sm:$0xff]
  %v4651 = vld [vmem:[%s7 + $0x56c] sm:$0xff]
  %v4652 = vld [vmem:[%s7 + $0x574] sm:$0xf]
  %v4653 = vld [vmem:[%s7 + $0x578] sm:$0xff]
  %v4654 = vld [vmem:[%s7 + $0x580] sm:$0xff]
  %v4655 = vld [vmem:[%s7 + $0x588] sm:$0xf]
  %v4656 = vld [vmem:[%s7 + $0x58c] sm:$0xff]
  %v4657 = vld [vmem:[%s7 + $0x594] sm:$0xff]
  %v4658 = vld [vmem:[%s7 + $0x59c] sm:$0xf]
  %v4659 = vld [vmem:[%s7 + $0x5a0] sm:$0xff]
  %v4660 = vld [vmem:[%s7 + $0x5a8] sm:$0xff]
  %v4661 = vld [vmem:[%s7 + $0x5b0] sm:$0xf]
  %v4662 = vld [vmem:[%s7 + $0x5b4] sm:$0xff]
  %v4663 = vld [vmem:[%s7 + $0x5bc] sm:$0xff]
  %v4664 = vld [vmem:[%s7 + $0x5c4] sm:$0xf]
  %v4665 = vld [vmem:[%s7 + $0x5c8] sm:$0xff]
  %v4666 = vld [vmem:[%s7 + $0x5d0] sm:$0xff]
  %v4667 = vld [vmem:[%s7 + $0x5d8] sm:$0xf]
  %v4668 = vld [vmem:[%s7 + $0x5dc] sm:$0xff]
  %v4669 = vld [vmem:[%s7 + $0x5e4] sm:$0xff]
  %v4670 = vld [vmem:[%s7 + $0x5ec] sm:$0xf]
  %v4671 = vld [vmem:[%s7 + $0x5f0] sm:$0xff]
  %v4672 = vld [vmem:[%s7 + $0x5f8] sm:$0xff]
  %v4673 = vld [vmem:[%s7 + $0x600] sm:$0xf]
  %v4674 = vld [vmem:[%s7 + $0x604] sm:$0xff]
  %v4675 = vld [vmem:[%s7 + $0x60c] sm:$0xff]
  %v4676 = vld [vmem:[%s7 + $0x614] sm:$0xf]
  %v4677 = vld [vmem:[%s7 + $0x618] sm:$0xff]
  %v4678 = vld [vmem:[%s7 + $0x620] sm:$0xff]
  %v4679 = vld [vmem:[%s7 + $0x628] sm:$0xf]
  %v4680 = vld [vmem:[%s7 + $0x62c] sm:$0xff]
  %v4681 = vld [vmem:[%s7 + $0x634] sm:$0xff]
  %v4682 = vld [vmem:[%s7 + $0x63c] sm:$0xf]
  %v4683 = vld [vmem:[%s7 + $0x640] sm:$0xff]
  %v4684 = vld [vmem:[%s7 + $0x648] sm:$0xff]
  %v4685 = vld [vmem:[%s7 + $0x650] sm:$0xf]
  %v4686 = vld [vmem:[%s7 + $0x654] sm:$0xff]
  %v4687 = vld [vmem:[%s7 + $0x65c] sm:$0xff]
  %v4688 = vld [vmem:[%s7 + $0x664] sm:$0xf]
  %v4689 = vld [vmem:[%s7 + $0x668] sm:$0xff]
  %v4690 = vld [vmem:[%s7 + $0x670] sm:$0xff]
  %v4691 = vld [vmem:[%s7 + $0x678] sm:$0xf]
  %v4692 = vld [vmem:[%s7 + $0x67c] sm:$0xff]
  %v4693 = vld [vmem:[%s7 + $0x684] sm:$0xff]
  %v4694 = vld [vmem:[%s7 + $0x68c] sm:$0xf]
  %v4695 = vld [vmem:[%s7 + $0x690] sm:$0xff]
  %v4696 = vld [vmem:[%s7 + $0x698] sm:$0xff]
  %v4697 = vld [vmem:[%s7 + $0x6a0] sm:$0xf]
  %v4698 = vld [vmem:[%s7 + $0x6a4] sm:$0xff]
  %v4699 = vld [vmem:[%s7 + $0x6ac] sm:$0xff]
  %v4700 = vld [vmem:[%s7 + $0x6b4] sm:$0xf]
  %v4701 = vld [vmem:[%s7 + $0x6b8] sm:$0xff]
  %v4702 = vld [vmem:[%s7 + $0x6c0] sm:$0xff]
  %v4703 = vld [vmem:[%s7 + $0x6c8] sm:$0xf]
  %v4704 = vld [vmem:[%s7 + $0x6cc] sm:$0xff]
  %v4705 = vld [vmem:[%s7 + $0x6d4] sm:$0xff]
  %v4706 = vld [vmem:[%s7 + $0x6dc] sm:$0xf]
  %v4707 = vld [vmem:[%s7 + $0x6e0] sm:$0xff]
  %v4708 = vld [vmem:[%s7 + $0x6e8] sm:$0xff]
  %v4709 = vld [vmem:[%s7 + $0x6f0] sm:$0xf]
  %v4710 = vld [vmem:[%s7 + $0x6f4] sm:$0xff]
  %v4711 = vld [vmem:[%s7 + $0x6fc] sm:$0xff]
  %v4712 = vld [vmem:[%s7 + $0x704] sm:$0xf]
  %v4713 = vld [vmem:[%s7 + $0x708] sm:$0xff]
  %v4714 = vld [vmem:[%s7 + $0x710] sm:$0xff]
  %v4715 = vld [vmem:[%s7 + $0x718] sm:$0xf]
  %v4716 = vld [vmem:[%s7 + $0x71c] sm:$0xff]
  %v4717 = vld [vmem:[%s7 + $0x724] sm:$0xff]
  %v4718 = vld [vmem:[%s7 + $0x72c] sm:$0xf]
  %v4719 = vld [vmem:[%s7 + $0x730] sm:$0xff]
  %v4720 = vld [vmem:[%s7 + $0x738] sm:$0xff]
  %v4721 = vld [vmem:[%s7 + $0x740] sm:$0xf]
  %v4722 = vld [vmem:[%s7 + $0x744] sm:$0xff]
  %v4723 = vld [vmem:[%s7 + $0x74c] sm:$0xff]
  %v4724 = vld [vmem:[%s7 + $0x754] sm:$0xf]
  %v4725 = vld [vmem:[%s7 + $0x758] sm:$0xff]
  %v4726 = vld [vmem:[%s7 + $0x760] sm:$0xff]
  %v4727 = vld [vmem:[%s7 + $0x768] sm:$0xf]
  %v4728 = vld [vmem:[%s7 + $0x76c] sm:$0xff]
  %v4729 = vld [vmem:[%s7 + $0x774] sm:$0xff]
  %v4730 = vld [vmem:[%s7 + $0x77c] sm:$0xf]
  %v4731 = vld [vmem:[%s7 + $0x780] sm:$0xff]
  %v4732 = vld [vmem:[%s7 + $0x788] sm:$0xff]
  %v4733 = vld [vmem:[%s7 + $0x790] sm:$0xf]
  %v4734 = vld [vmem:[%s7 + $0x794] sm:$0xff]
  %v4735 = vld [vmem:[%s7 + $0x79c] sm:$0xff]
  %v4736 = vld [vmem:[%s7 + $0x7a4] sm:$0xf]
  %v4737 = vld [vmem:[%s7 + $0x7a8] sm:$0xff]
  %v4738 = vld [vmem:[%s7 + $0x7b0] sm:$0xff]
  %v4739 = vld [vmem:[%s7 + $0x7b8] sm:$0xf]
  %v4740 = vld [vmem:[%s7 + $0x7bc] sm:$0xff]
  %v4741 = vld [vmem:[%s7 + $0x7c4] sm:$0xff]
  %v4742 = vld [vmem:[%s7 + $0x7cc] sm:$0xf]
  %v4743 = vld [vmem:[%s7 + $0x7d0] sm:$0xff]
  %v4744 = vld [vmem:[%s7 + $0x7d8] sm:$0xff]
  %v4745 = vld [vmem:[%s7 + $0x7e0] sm:$0xf]
  %v4746 = vld [vmem:[%s7 + $0x7e4] sm:$0xff]
  %v4747 = vld [vmem:[%s7 + $0x7ec] sm:$0xff]
  %v4748 = vld [vmem:[%s7 + $0x7f4] sm:$0xf]
  %v4749 = vld [vmem:[%s7 + $0x7f8] sm:$0xff]
  %v4750 = vld [vmem:[%s7 + $0x800] sm:$0xff]
  %v4751 = vld [vmem:[%s7 + $0x808] sm:$0xf]
  %v4752 = vld [vmem:[%s7 + $0x80c] sm:$0xff]
  %v4753 = vld [vmem:[%s7 + $0x814] sm:$0xff]
  %v4754 = vld [vmem:[%s7 + $0x81c] sm:$0xf]
  %v4755 = vld [vmem:[%s7 + $0x820] sm:$0xff]
  %v4756 = vld [vmem:[%s7 + $0x828] sm:$0xff]
  %v4757 = vld [vmem:[%s7 + $0x830] sm:$0xf]
  %v4758 = vld [vmem:[%s7 + $0x834] sm:$0xff]
  %v4759 = vld [vmem:[%s7 + $0x83c] sm:$0xff]
  %v4760 = vld [vmem:[%s7 + $0x844] sm:$0xf]
  %v4761 = vld [vmem:[%s7 + $0x848] sm:$0xff]
  %v4762 = vld [vmem:[%s7 + $0x850] sm:$0xff]
  %v4763 = vld [vmem:[%s7 + $0x858] sm:$0xf]
  %v4764 = vld [vmem:[%s7 + $0x85c] sm:$0xff]
  %v4765 = vld [vmem:[%s7 + $0x864] sm:$0xff]
  %v4766 = vld [vmem:[%s7 + $0x86c] sm:$0xf]
  %v4767 = vld [vmem:[%s7 + $0x870] sm:$0xff]
  %v4768 = vld [vmem:[%s7 + $0x878] sm:$0xff]
  %v4769 = vld [vmem:[%s7 + $0x880] sm:$0xf]
  %v4770 = vld [vmem:[%s7 + $0x884] sm:$0xff]
  %v4771 = vld [vmem:[%s7 + $0x88c] sm:$0xff]
  %v4772 = vld [vmem:[%s7 + $0x894] sm:$0xf]
  %v4773 = vld [vmem:[%s7 + $0x898] sm:$0xff]
  %v4774 = vld [vmem:[%s7 + $0x8a0] sm:$0xff]
  %v4775 = vld [vmem:[%s7 + $0x8a8] sm:$0xf]
  %v4776 = vld [vmem:[%s7 + $0x8ac] sm:$0xff]
  %v4777 = vld [vmem:[%s7 + $0x8b4] sm:$0xff]
  %v4778 = vld [vmem:[%s7 + $0x8bc] sm:$0xf]
  %v4779 = vld [vmem:[%s7 + $0x8c0] sm:$0xff]
  %v4780 = vld [vmem:[%s7 + $0x8c8] sm:$0xff]
  %v4781 = vld [vmem:[%s7 + $0x8d0] sm:$0xf]
  %v4782 = vld [vmem:[%s7 + $0x8d4] sm:$0xff]
  %v4783 = vld [vmem:[%s7 + $0x8dc] sm:$0xff]
  %v4784 = vld [vmem:[%s7 + $0x8e4] sm:$0xf]
  %v4785 = vld [vmem:[%s7 + $0x8e8] sm:$0xff]
  %v4786 = vld [vmem:[%s7 + $0x8f0] sm:$0xff]
  %v4787 = vld [vmem:[%s7 + $0x8f8] sm:$0xf]
  %v4788 = vld [vmem:[%s7 + $0x8fc] sm:$0xff]
  %v4789 = vld [vmem:[%s7 + $0x904] sm:$0xff]
  %v4790 = vld [vmem:[%s7 + $0x90c] sm:$0xf]
  %v4791 = vld [vmem:[%s7 + $0x910] sm:$0xff]
  %v4792 = vld [vmem:[%s7 + $0x918] sm:$0xff]
  %v4793 = vld [vmem:[%s7 + $0x920] sm:$0xf]
  %v4794 = vld [vmem:[%s7 + $0x924] sm:$0xff]
  %v4795 = vld [vmem:[%s7 + $0x92c] sm:$0xff]
  %v4796 = vld [vmem:[%s7 + $0x934] sm:$0xf]
  %v4797 = vld [vmem:[%s7 + $0x938] sm:$0xff]
  %v4798 = vld [vmem:[%s7 + $0x940] sm:$0xff]
  %v4799 = vld [vmem:[%s7 + $0x948] sm:$0xf]
  %v4800 = vld [vmem:[%s7 + $0x94c] sm:$0xff]
  %v4801 = vld [vmem:[%s7 + $0x954] sm:$0xff]
  %v4802 = vld [vmem:[%s7 + $0x95c] sm:$0xf]
  %v4803 = vld [vmem:[%s7 + $0x960] sm:$0xff]
  %v4804 = vld [vmem:[%s7 + $0x968] sm:$0xff]
  %v4805 = vld [vmem:[%s7 + $0x970] sm:$0xf]
  %v4806 = vld [vmem:[%s7 + $0x974] sm:$0xff]
  %v4807 = vld [vmem:[%s7 + $0x97c] sm:$0xff]
  %v4808 = vld [vmem:[%s7 + $0x984] sm:$0xf]
  %v4809 = vld [vmem:[%s7 + $0x988] sm:$0xff]
  %v4810 = vld [vmem:[%s7 + $0x990] sm:$0xff]
  %v4811 = vld [vmem:[%s7 + $0x998] sm:$0xf]
  %v4812 = vld [vmem:[%s7 + $0x99c] sm:$0xff]
  %v4813 = vld [vmem:[%s7 + $0x9a4] sm:$0xff]
  %v4814 = vld [vmem:[%s7 + $0x9ac] sm:$0xf]
  %v4815 = vld [vmem:[%s7 + $0x9b0] sm:$0xff]
  %v4816 = vld [vmem:[%s7 + $0x9b8] sm:$0xff]
  %v4817 = vld [vmem:[%s7 + $0x9c0] sm:$0xf]
  %v4818 = vld [vmem:[%s7 + $0x9c4] sm:$0xff]
  %v4819 = vld [vmem:[%s7 + $0x9cc] sm:$0xff]
  %v4820 = vld [vmem:[%s7 + $0x9d4] sm:$0xf]
  %v4821 = vld [vmem:[%s7 + $0x9d8] sm:$0xff]
  %v4822 = vld [vmem:[%s7 + $0x9e0] sm:$0xff]
  %v4823 = vld [vmem:[%s7 + $0x9e8] sm:$0xf]
  %v4824 = vld [vmem:[%s7 + $0x9ec] sm:$0xff]
  %v4825 = vld [vmem:[%s7 + $0x9f4] sm:$0xff]
  %v4826 = vld [vmem:[%s7 + $0x9fc] sm:$0xf]
  %v4827 = vld [vmem:[%s7 + $0xa00] sm:$0xff]
  %v4828 = vld [vmem:[%s7 + $0xa08] sm:$0xff]
  %v4829 = vld [vmem:[%s7 + $0xa10] sm:$0xf]
  %v4830 = vld [vmem:[%s7 + $0xa14] sm:$0xff]
  %v4831 = vld [vmem:[%s7 + $0xa1c] sm:$0xff]
  %v4832 = vld [vmem:[%s7 + $0xa24] sm:$0xf]
  %v4833 = vld [vmem:[%s7 + $0xa28] sm:$0xff]
  %v4834 = vld [vmem:[%s7 + $0xa30] sm:$0xff]
  %v4835 = vld [vmem:[%s7 + $0xa38] sm:$0xf]
  %v4836 = vld [vmem:[%s7 + $0xa3c] sm:$0xff]
  %v4837 = vld [vmem:[%s7 + $0xa44] sm:$0xff]
  %v4838 = vld [vmem:[%s7 + $0xa4c] sm:$0xf]
  %v4839 = vld [vmem:[%s7 + $0xa50] sm:$0xff]
  %v4840 = vld [vmem:[%s7 + $0xa58] sm:$0xff]
  %v4841 = vld [vmem:[%s7 + $0xa60] sm:$0xf]
  %v4842 = vld [vmem:[%s7 + $0xa64] sm:$0xff]
  %v4843 = vld [vmem:[%s7 + $0xa6c] sm:$0xff]
  %v4844 = vld [vmem:[%s7 + $0xa74] sm:$0xf]
  %v4845 = vld [vmem:[%s7 + $0xa78] sm:$0xff]
  %v4846 = vld [vmem:[%s7 + $0xa80] sm:$0xff]
  %v4847 = vld [vmem:[%s7 + $0xa88] sm:$0xf]
  %v4848 = vld [vmem:[%s7 + $0xa8c] sm:$0xff]
  %v4849 = vld [vmem:[%s7 + $0xa94] sm:$0xff]
  %v4850 = vld [vmem:[%s7 + $0xa9c] sm:$0xf]
  %v4851 = vld [vmem:[%s7 + $0xaa0] sm:$0xff]
  %v4852 = vld [vmem:[%s7 + $0xaa8] sm:$0xff]
  %v4853 = vld [vmem:[%s7 + $0xab0] sm:$0xf]
  %v4854 = vld [vmem:[%s7 + $0xab4] sm:$0xff]
  %v4855 = vld [vmem:[%s7 + $0xabc] sm:$0xff]
  %v4856 = vld [vmem:[%s7 + $0xac4] sm:$0xf]
  %v4857 = vld [vmem:[%s7 + $0xac8] sm:$0xff]
  %v4858 = vld [vmem:[%s7 + $0xad0] sm:$0xff]
  %v4859 = vld [vmem:[%s7 + $0xad8] sm:$0xf]
  %v4860 = vld [vmem:[%s7 + $0xadc] sm:$0xff]
  %v4861 = vld [vmem:[%s7 + $0xae4] sm:$0xff]
  %v4862 = vld [vmem:[%s7 + $0xaec] sm:$0xf]
  %v4863 = vld [vmem:[%s7 + $0xaf0] sm:$0xff]
  %v4864 = vld [vmem:[%s7 + $0xaf8] sm:$0xff]
  %v4865 = vld [vmem:[%s7 + $0xb00] sm:$0xf]
  %v4866 = vld [vmem:[%s7 + $0xb04] sm:$0xff]
  %v4867 = vld [vmem:[%s7 + $0xb0c] sm:$0xff]
  %v4868 = vld [vmem:[%s7 + $0xb14] sm:$0xf]
  %v4869 = vld [vmem:[%s7 + $0xb18] sm:$0xff]
  %v4870 = vld [vmem:[%s7 + $0xb20] sm:$0xff]
  %v4871 = vld [vmem:[%s7 + $0xb28] sm:$0xf]
  %v4872 = vld [vmem:[%s7 + $0xb2c] sm:$0xff]
  %v4873 = vld [vmem:[%s7 + $0xb34] sm:$0xff]
  %v4874 = vld [vmem:[%s7 + $0xb3c] sm:$0xf]
  %v4875 = vld [vmem:[%s7 + $0xb40] sm:$0xff]
  %v4876 = vld [vmem:[%s7 + $0xb48] sm:$0xff]
  %v4877 = vld [vmem:[%s7 + $0xb50] sm:$0xf]
  %v4878 = vld [vmem:[%s7 + $0xb54] sm:$0xff]
  %v4879 = vld [vmem:[%s7 + $0xb5c] sm:$0xff]
  %v4880 = vld [vmem:[%s7 + $0xb64] sm:$0xf]
  %v4881 = vld [vmem:[%s7 + $0xb68] sm:$0xff]
  %v4882 = vld [vmem:[%s7 + $0xb70] sm:$0xff]
  %v4883 = vld [vmem:[%s7 + $0xb78] sm:$0xf]
  %v4884 = vld [vmem:[%s7 + $0xb7c] sm:$0xff]
  %v4885 = vld [vmem:[%s7 + $0xb84] sm:$0xff]
  %v4886 = vld [vmem:[%s7 + $0xb8c] sm:$0xf]
  %v4887 = vld [vmem:[%s7 + $0xb90] sm:$0xff]
  %v4888 = vld [vmem:[%s7 + $0xb98] sm:$0xff]
  %v4889 = vld [vmem:[%s7 + $0xba0] sm:$0xf]
  %v4890 = vld [vmem:[%s7 + $0xba4] sm:$0xff]
  %v4891 = vld [vmem:[%s7 + $0xbac] sm:$0xff]
  %v4892 = vld [vmem:[%s7 + $0xbb4] sm:$0xf]
  %v4893 = vld [vmem:[%s7 + $0xbb8] sm:$0xff]
  %v4894 = vld [vmem:[%s7 + $0xbc0] sm:$0xff]
  %v4895 = vld [vmem:[%s7 + $0xbc8] sm:$0xf]
  %v4896 = vld [vmem:[%s7 + $0xbcc] sm:$0xff]
  %v4897 = vld [vmem:[%s7 + $0xbd4] sm:$0xff]
  %v4898 = vld [vmem:[%s7 + $0xbdc] sm:$0xf]
  %v4899 = vld [vmem:[%s7 + $0xbe0] sm:$0xff]
  %v4900 = vld [vmem:[%s7 + $0xbe8] sm:$0xff]
  %v4901 = vld [vmem:[%s7 + $0xbf0] sm:$0xf]
  %v4902 = vld [vmem:[%s7 + $0xbf4] sm:$0xff]
  %v4903 = vld [vmem:[%s7 + $0xbfc] sm:$0xff]
  %v4904 = vld [vmem:[%s7 + $0xc04] sm:$0xf]
  %v4905 = vld [vmem:[%s7 + $0xc08] sm:$0xff]
  %v4906 = vld [vmem:[%s7 + $0xc10] sm:$0xff]
  %v4907 = vld [vmem:[%s7 + $0xc18] sm:$0xf]
  %v4908 = vld [vmem:[%s7 + $0xc1c] sm:$0xff]
  %v4909 = vld [vmem:[%s7 + $0xc24] sm:$0xff]
  %v4910 = vld [vmem:[%s7 + $0xc2c] sm:$0xf]
  %v4911 = vld [vmem:[%s7 + $0xc30] sm:$0xff]
  %v4912 = vld [vmem:[%s7 + $0xc38] sm:$0xff]
  %v4913 = vld [vmem:[%s7 + $0xc40] sm:$0xf]
  %v4914 = vld [vmem:[%s7 + $0xc44] sm:$0xff]
  %v4915 = vld [vmem:[%s7 + $0xc4c] sm:$0xff]
  %v4916 = vld [vmem:[%s7 + $0xc54] sm:$0xf]
  %v4917 = vld [vmem:[%s7 + $0xc58] sm:$0xff]
  %v4918 = vld [vmem:[%s7 + $0xc60] sm:$0xff]
  %v4919 = vld [vmem:[%s7 + $0xc68] sm:$0xf]
  %v4920 = vld [vmem:[%s7 + $0xc6c] sm:$0xff]
  %v4921 = vld [vmem:[%s7 + $0xc74] sm:$0xff]
  %v4922 = vld [vmem:[%s7 + $0xc7c] sm:$0xf]
  %v4923 = vld [vmem:[%s8] sm:$0x1f]
  %v4925 = vlaneseq
  %v4926 = vshrl.u32 %v4925, 7
  %v4927 = vsub.s32 0, %v4926
  %v4928 = vrot.slane %v4923, %v4927
  %v4929 = vlaneseq
  %v4930 = vshrl.u32 %v4929, 7
  %v4931 = vsub.s32 1, %v4930
  %v4932 = vrot.slane %v4923, %v4931
  %v4933 = vlaneseq
  %v4934 = vshrl.u32 %v4933, 7
  %v4935 = vsub.s32 2, %v4934
  %v4936 = vrot.slane %v4923, %v4935
  %v4937 = vlaneseq
  %v4938 = vshrl.u32 %v4937, 7
  %v4939 = vsub.s32 3, %v4938
  %v4940 = vrot.slane %v4923, %v4939
  %v4941 = vlaneseq
  %v4942 = vshrl.u32 %v4941, 7
  %v4943 = vsub.s32 4, %v4942
  %v4944 = vrot.slane %v4923, %v4943
  %v5430 = vunpack.c.l.b16 %v4443
  %v5431 = vunpack.c.h.b16 %v4443
  %v5432 = vunpack.c.l.b16 %v4444
  %v5433 = vunpack.c.h.b16 %v4444
  %v5434 = vunpack.c.l.b16 %v4445
  %v5435 = vunpack.c.l.b16 %v4446
  %v5436 = vunpack.c.h.b16 %v4446
  %v5437 = vunpack.c.l.b16 %v4447
  %v5438 = vunpack.c.h.b16 %v4447
  %v5439 = vunpack.c.l.b16 %v4448
  %v5440 = vunpack.c.l.b16 %v4449
  %v5441 = vunpack.c.h.b16 %v4449
  %v5442 = vunpack.c.l.b16 %v4450
  %v5443 = vunpack.c.h.b16 %v4450
  %v5444 = vunpack.c.l.b16 %v4451
  %v5445 = vunpack.c.l.b16 %v4452
  %v5446 = vunpack.c.h.b16 %v4452
  %v5447 = vunpack.c.l.b16 %v4453
  %v5448 = vunpack.c.h.b16 %v4453
  %v5449 = vunpack.c.l.b16 %v4454
  %v5450 = vunpack.c.l.b16 %v4455
  %v5451 = vunpack.c.h.b16 %v4455
  %v5452 = vunpack.c.l.b16 %v4456
  %v5453 = vunpack.c.h.b16 %v4456
  %v5454 = vunpack.c.l.b16 %v4457
  %v5455 = vunpack.c.l.b16 %v4458
  %v5456 = vunpack.c.h.b16 %v4458
  %v5457 = vunpack.c.l.b16 %v4459
  %v5458 = vunpack.c.h.b16 %v4459
  %v5459 = vunpack.c.l.b16 %v4460
  %v5460 = vunpack.c.l.b16 %v4461
  %v5461 = vunpack.c.h.b16 %v4461
  %v5462 = vunpack.c.l.b16 %v4462
  %v5463 = vunpack.c.h.b16 %v4462
  %v5464 = vunpack.c.l.b16 %v4463
  %v5465 = vunpack.c.l.b16 %v4464
  %v5466 = vunpack.c.h.b16 %v4464
  %v5467 = vunpack.c.l.b16 %v4465
  %v5468 = vunpack.c.h.b16 %v4465
  %v5469 = vunpack.c.l.b16 %v4466
  %v5470 = vunpack.c.l.b16 %v4467
  %v5471 = vunpack.c.h.b16 %v4467
  %v5472 = vunpack.c.l.b16 %v4468
  %v5473 = vunpack.c.h.b16 %v4468
  %v5474 = vunpack.c.l.b16 %v4469
  %v5475 = vunpack.c.l.b16 %v4470
  %v5476 = vunpack.c.h.b16 %v4470
  %v5477 = vunpack.c.l.b16 %v4471
  %v5478 = vunpack.c.h.b16 %v4471
  %v5479 = vunpack.c.l.b16 %v4472
  %v5480 = vunpack.c.l.b16 %v4473
  %v5481 = vunpack.c.h.b16 %v4473
  %v5482 = vunpack.c.l.b16 %v4474
  %v5483 = vunpack.c.h.b16 %v4474
  %v5484 = vunpack.c.l.b16 %v4475
  %v5485 = vunpack.c.l.b16 %v4476
  %v5486 = vunpack.c.h.b16 %v4476
  %v5487 = vunpack.c.l.b16 %v4477
  %v5488 = vunpack.c.h.b16 %v4477
  %v5489 = vunpack.c.l.b16 %v4478
  %v5490 = vunpack.c.l.b16 %v4479
  %v5491 = vunpack.c.h.b16 %v4479
  %v5492 = vunpack.c.l.b16 %v4480
  %v5493 = vunpack.c.h.b16 %v4480
  %v5494 = vunpack.c.l.b16 %v4481
  %v5495 = vunpack.c.l.b16 %v4482
  %v5496 = vunpack.c.h.b16 %v4482
  %v5497 = vunpack.c.l.b16 %v4483
  %v5498 = vunpack.c.h.b16 %v4483
  %v5499 = vunpack.c.l.b16 %v4484
  %v5500 = vunpack.c.l.b16 %v4485
  %v5501 = vunpack.c.h.b16 %v4485
  %v5502 = vunpack.c.l.b16 %v4486
  %v5503 = vunpack.c.h.b16 %v4486
  %v5504 = vunpack.c.l.b16 %v4487
  %v5505 = vunpack.c.l.b16 %v4488
  %v5506 = vunpack.c.h.b16 %v4488
  %v5507 = vunpack.c.l.b16 %v4489
  %v5508 = vunpack.c.h.b16 %v4489
  %v5509 = vunpack.c.l.b16 %v4490
  %v5510 = vunpack.c.l.b16 %v4491
  %v5511 = vunpack.c.h.b16 %v4491
  %v5512 = vunpack.c.l.b16 %v4492
  %v5513 = vunpack.c.h.b16 %v4492
  %v5514 = vunpack.c.l.b16 %v4493
  %v5515 = vunpack.c.l.b16 %v4494
  %v5516 = vunpack.c.h.b16 %v4494
  %v5517 = vunpack.c.l.b16 %v4495
  %v5518 = vunpack.c.h.b16 %v4495
  %v5519 = vunpack.c.l.b16 %v4496
  %v5520 = vunpack.c.l.b16 %v4497
  %v5521 = vunpack.c.h.b16 %v4497
  %v5522 = vunpack.c.l.b16 %v4498
  %v5523 = vunpack.c.h.b16 %v4498
  %v5524 = vunpack.c.l.b16 %v4499
  %v5525 = vunpack.c.l.b16 %v4500
  %v5526 = vunpack.c.h.b16 %v4500
  %v5527 = vunpack.c.l.b16 %v4501
  %v5528 = vunpack.c.h.b16 %v4501
  %v5529 = vunpack.c.l.b16 %v4502
  %v5530 = vunpack.c.l.b16 %v4503
  %v5531 = vunpack.c.h.b16 %v4503
  %v5532 = vunpack.c.l.b16 %v4504
  %v5533 = vunpack.c.h.b16 %v4504
  %v5534 = vunpack.c.l.b16 %v4505
  %v5535 = vunpack.c.l.b16 %v4506
  %v5536 = vunpack.c.h.b16 %v4506
  %v5537 = vunpack.c.l.b16 %v4507
  %v5538 = vunpack.c.h.b16 %v4507
  %v5539 = vunpack.c.l.b16 %v4508
  %v5540 = vunpack.c.l.b16 %v4509
  %v5541 = vunpack.c.h.b16 %v4509
  %v5542 = vunpack.c.l.b16 %v4510
  %v5543 = vunpack.c.h.b16 %v4510
  %v5544 = vunpack.c.l.b16 %v4511
  %v5545 = vunpack.c.l.b16 %v4512
  %v5546 = vunpack.c.h.b16 %v4512
  %v5547 = vunpack.c.l.b16 %v4513
  %v5548 = vunpack.c.h.b16 %v4513
  %v5549 = vunpack.c.l.b16 %v4514
  %v5550 = vunpack.c.l.b16 %v4515
  %v5551 = vunpack.c.h.b16 %v4515
  %v5552 = vunpack.c.l.b16 %v4516
  %v5553 = vunpack.c.h.b16 %v4516
  %v5554 = vunpack.c.l.b16 %v4517
  %v5555 = vunpack.c.l.b16 %v4518
  %v5556 = vunpack.c.h.b16 %v4518
  %v5557 = vunpack.c.l.b16 %v4519
  %v5558 = vunpack.c.h.b16 %v4519
  %v5559 = vunpack.c.l.b16 %v4520
  %v5560 = vunpack.c.l.b16 %v4521
  %v5561 = vunpack.c.h.b16 %v4521
  %v5562 = vunpack.c.l.b16 %v4522
  %v5563 = vunpack.c.h.b16 %v4522
  %v5564 = vunpack.c.l.b16 %v4523
  %v5565 = vunpack.c.l.b16 %v4524
  %v5566 = vunpack.c.h.b16 %v4524
  %v5567 = vunpack.c.l.b16 %v4525
  %v5568 = vunpack.c.h.b16 %v4525
  %v5569 = vunpack.c.l.b16 %v4526
  %v5570 = vunpack.c.l.b16 %v4527
  %v5571 = vunpack.c.h.b16 %v4527
  %v5572 = vunpack.c.l.b16 %v4528
  %v5573 = vunpack.c.h.b16 %v4528
  %v5574 = vunpack.c.l.b16 %v4529
  %v5575 = vunpack.c.l.b16 %v4530
  %v5576 = vunpack.c.h.b16 %v4530
  %v5577 = vunpack.c.l.b16 %v4531
  %v5578 = vunpack.c.h.b16 %v4531
  %v5579 = vunpack.c.l.b16 %v4532
  %v5580 = vunpack.c.l.b16 %v4533
  %v5581 = vunpack.c.h.b16 %v4533
  %v5582 = vunpack.c.l.b16 %v4534
  %v5583 = vunpack.c.h.b16 %v4534
  %v5584 = vunpack.c.l.b16 %v4535
  %v5585 = vunpack.c.l.b16 %v4536
  %v5586 = vunpack.c.h.b16 %v4536
  %v5587 = vunpack.c.l.b16 %v4537
  %v5588 = vunpack.c.h.b16 %v4537
  %v5589 = vunpack.c.l.b16 %v4538
  %v5590 = vunpack.c.l.b16 %v4539
  %v5591 = vunpack.c.h.b16 %v4539
  %v5592 = vunpack.c.l.b16 %v4540
  %v5593 = vunpack.c.h.b16 %v4540
  %v5594 = vunpack.c.l.b16 %v4541
  %v5595 = vunpack.c.l.b16 %v4542
  %v5596 = vunpack.c.h.b16 %v4542
  %v5597 = vunpack.c.l.b16 %v4543
  %v5598 = vunpack.c.h.b16 %v4543
  %v5599 = vunpack.c.l.b16 %v4544
  %v5600 = vunpack.c.l.b16 %v4545
  %v5601 = vunpack.c.h.b16 %v4545
  %v5602 = vunpack.c.l.b16 %v4546
  %v5603 = vunpack.c.h.b16 %v4546
  %v5604 = vunpack.c.l.b16 %v4547
  %v5605 = vunpack.c.l.b16 %v4548
  %v5606 = vunpack.c.h.b16 %v4548
  %v5607 = vunpack.c.l.b16 %v4549
  %v5608 = vunpack.c.h.b16 %v4549
  %v5609 = vunpack.c.l.b16 %v4550
  %v5610 = vunpack.c.l.b16 %v4551
  %v5611 = vunpack.c.h.b16 %v4551
  %v5612 = vunpack.c.l.b16 %v4552
  %v5613 = vunpack.c.h.b16 %v4552
  %v5614 = vunpack.c.l.b16 %v4553
  %v5615 = vunpack.c.l.b16 %v4554
  %v5616 = vunpack.c.h.b16 %v4554
  %v5617 = vunpack.c.l.b16 %v4555
  %v5618 = vunpack.c.h.b16 %v4555
  %v5619 = vunpack.c.l.b16 %v4556
  %v5620 = vunpack.c.l.b16 %v4557
  %v5621 = vunpack.c.h.b16 %v4557
  %v5622 = vunpack.c.l.b16 %v4558
  %v5623 = vunpack.c.h.b16 %v4558
  %v5624 = vunpack.c.l.b16 %v4559
  %v5625 = vunpack.c.l.b16 %v4560
  %v5626 = vunpack.c.h.b16 %v4560
  %v5627 = vunpack.c.l.b16 %v4561
  %v5628 = vunpack.c.h.b16 %v4561
  %v5629 = vunpack.c.l.b16 %v4562
  %v5630 = vunpack.c.l.b16 %v4563
  %v5631 = vunpack.c.h.b16 %v4563
  %v5632 = vunpack.c.l.b16 %v4564
  %v5633 = vunpack.c.h.b16 %v4564
  %v5634 = vunpack.c.l.b16 %v4565
  %v5635 = vunpack.c.l.b16 %v4566
  %v5636 = vunpack.c.h.b16 %v4566
  %v5637 = vunpack.c.l.b16 %v4567
  %v5638 = vunpack.c.h.b16 %v4567
  %v5639 = vunpack.c.l.b16 %v4568
  %v5640 = vunpack.c.l.b16 %v4569
  %v5641 = vunpack.c.h.b16 %v4569
  %v5642 = vunpack.c.l.b16 %v4570
  %v5643 = vunpack.c.h.b16 %v4570
  %v5644 = vunpack.c.l.b16 %v4571
  %v5645 = vunpack.c.l.b16 %v4572
  %v5646 = vunpack.c.h.b16 %v4572
  %v5647 = vunpack.c.l.b16 %v4573
  %v5648 = vunpack.c.h.b16 %v4573
  %v5649 = vunpack.c.l.b16 %v4574
  %v5650 = vunpack.c.l.b16 %v4575
  %v5651 = vunpack.c.h.b16 %v4575
  %v5652 = vunpack.c.l.b16 %v4576
  %v5653 = vunpack.c.h.b16 %v4576
  %v5654 = vunpack.c.l.b16 %v4577
  %v5655 = vunpack.c.l.b16 %v4578
  %v5656 = vunpack.c.h.b16 %v4578
  %v5657 = vunpack.c.l.b16 %v4579
  %v5658 = vunpack.c.h.b16 %v4579
  %v5659 = vunpack.c.l.b16 %v4580
  %v5660 = vunpack.c.l.b16 %v4581
  %v5661 = vunpack.c.h.b16 %v4581
  %v5662 = vunpack.c.l.b16 %v4582
  %v5663 = vunpack.c.h.b16 %v4582
  %v5664 = vunpack.c.l.b16 %v4583
  %v5665 = vunpack.c.l.b16 %v4584
  %v5666 = vunpack.c.h.b16 %v4584
  %v5667 = vunpack.c.l.b16 %v4585
  %v5668 = vunpack.c.h.b16 %v4585
  %v5669 = vunpack.c.l.b16 %v4586
  %v5670 = vunpack.c.l.b16 %v4587
  %v5671 = vunpack.c.h.b16 %v4587
  %v5672 = vunpack.c.l.b16 %v4588
  %v5673 = vunpack.c.h.b16 %v4588
  %v5674 = vunpack.c.l.b16 %v4589
  %v5675 = vunpack.c.l.b16 %v4590
  %v5676 = vunpack.c.h.b16 %v4590
  %v5677 = vunpack.c.l.b16 %v4591
  %v5678 = vunpack.c.h.b16 %v4591
  %v5679 = vunpack.c.l.b16 %v4592
  %v5680 = vunpack.c.l.b16 %v4593
  %v5681 = vunpack.c.h.b16 %v4593
  %v5682 = vunpack.c.l.b16 %v4594
  %v5683 = vunpack.c.h.b16 %v4594
  %v5684 = vunpack.c.l.b16 %v4595
  %v5685 = vunpack.c.l.b16 %v4596
  %v5686 = vunpack.c.h.b16 %v4596
  %v5687 = vunpack.c.l.b16 %v4597
  %v5688 = vunpack.c.h.b16 %v4597
  %v5689 = vunpack.c.l.b16 %v4598
  %v5690 = vunpack.c.l.b16 %v4599
  %v5691 = vunpack.c.h.b16 %v4599
  %v5692 = vunpack.c.l.b16 %v4600
  %v5693 = vunpack.c.h.b16 %v4600
  %v5694 = vunpack.c.l.b16 %v4601
  %v5695 = vunpack.c.l.b16 %v4602
  %v5696 = vunpack.c.h.b16 %v4602
  %v5697 = vunpack.c.l.b16 %v4603
  %v5698 = vunpack.c.h.b16 %v4603
  %v5699 = vunpack.c.l.b16 %v4604
  %v5700 = vunpack.c.l.b16 %v4605
  %v5701 = vunpack.c.h.b16 %v4605
  %v5702 = vunpack.c.l.b16 %v4606
  %v5703 = vunpack.c.h.b16 %v4606
  %v5704 = vunpack.c.l.b16 %v4607
  %v5705 = vunpack.c.l.b16 %v4608
  %v5706 = vunpack.c.h.b16 %v4608
  %v5707 = vunpack.c.l.b16 %v4609
  %v5708 = vunpack.c.h.b16 %v4609
  %v5709 = vunpack.c.l.b16 %v4610
  %v5710 = vunpack.c.l.b16 %v4611
  %v5711 = vunpack.c.h.b16 %v4611
  %v5712 = vunpack.c.l.b16 %v4612
  %v5713 = vunpack.c.h.b16 %v4612
  %v5714 = vunpack.c.l.b16 %v4613
  %v5715 = vunpack.c.l.b16 %v4614
  %v5716 = vunpack.c.h.b16 %v4614
  %v5717 = vunpack.c.l.b16 %v4615
  %v5718 = vunpack.c.h.b16 %v4615
  %v5719 = vunpack.c.l.b16 %v4616
  %v5720 = vunpack.c.l.b16 %v4617
  %v5721 = vunpack.c.h.b16 %v4617
  %v5722 = vunpack.c.l.b16 %v4618
  %v5723 = vunpack.c.h.b16 %v4618
  %v5724 = vunpack.c.l.b16 %v4619
  %v5725 = vunpack.c.l.b16 %v4620
  %v5726 = vunpack.c.h.b16 %v4620
  %v5727 = vunpack.c.l.b16 %v4621
  %v5728 = vunpack.c.h.b16 %v4621
  %v5729 = vunpack.c.l.b16 %v4622
  %v5730 = vunpack.c.l.b16 %v4623
  %v5731 = vunpack.c.h.b16 %v4623
  %v5732 = vunpack.c.l.b16 %v4624
  %v5733 = vunpack.c.h.b16 %v4624
  %v5734 = vunpack.c.l.b16 %v4625
  %v5735 = vunpack.c.l.b16 %v4626
  %v5736 = vunpack.c.h.b16 %v4626
  %v5737 = vunpack.c.l.b16 %v4627
  %v5738 = vunpack.c.h.b16 %v4627
  %v5739 = vunpack.c.l.b16 %v4628
  %v5740 = vunpack.c.l.b16 %v4629
  %v5741 = vunpack.c.h.b16 %v4629
  %v5742 = vunpack.c.l.b16 %v4630
  %v5743 = vunpack.c.h.b16 %v4630
  %v5744 = vunpack.c.l.b16 %v4631
  %v5745 = vunpack.c.l.b16 %v4632
  %v5746 = vunpack.c.h.b16 %v4632
  %v5747 = vunpack.c.l.b16 %v4633
  %v5748 = vunpack.c.h.b16 %v4633
  %v5749 = vunpack.c.l.b16 %v4634
  %v5750 = vunpack.c.l.b16 %v4635
  %v5751 = vunpack.c.h.b16 %v4635
  %v5752 = vunpack.c.l.b16 %v4636
  %v5753 = vunpack.c.h.b16 %v4636
  %v5754 = vunpack.c.l.b16 %v4637
  %v5755 = vunpack.c.l.b16 %v4638
  %v5756 = vunpack.c.h.b16 %v4638
  %v5757 = vunpack.c.l.b16 %v4639
  %v5758 = vunpack.c.h.b16 %v4639
  %v5759 = vunpack.c.l.b16 %v4640
  %v5760 = vunpack.c.l.b16 %v4641
  %v5761 = vunpack.c.h.b16 %v4641
  %v5762 = vunpack.c.l.b16 %v4642
  %v5763 = vunpack.c.h.b16 %v4642
  %v5764 = vunpack.c.l.b16 %v4643
  %v5765 = vunpack.c.l.b16 %v4644
  %v5766 = vunpack.c.h.b16 %v4644
  %v5767 = vunpack.c.l.b16 %v4645
  %v5768 = vunpack.c.h.b16 %v4645
  %v5769 = vunpack.c.l.b16 %v4646
  %v5770 = vunpack.c.l.b16 %v4647
  %v5771 = vunpack.c.h.b16 %v4647
  %v5772 = vunpack.c.l.b16 %v4648
  %v5773 = vunpack.c.h.b16 %v4648
  %v5774 = vunpack.c.l.b16 %v4649
  %v5775 = vunpack.c.l.b16 %v4650
  %v5776 = vunpack.c.h.b16 %v4650
  %v5777 = vunpack.c.l.b16 %v4651
  %v5778 = vunpack.c.h.b16 %v4651
  %v5779 = vunpack.c.l.b16 %v4652
  %v5780 = vunpack.c.l.b16 %v4653
  %v5781 = vunpack.c.h.b16 %v4653
  %v5782 = vunpack.c.l.b16 %v4654
  %v5783 = vunpack.c.h.b16 %v4654
  %v5784 = vunpack.c.l.b16 %v4655
  %v5785 = vunpack.c.l.b16 %v4656
  %v5786 = vunpack.c.h.b16 %v4656
  %v5787 = vunpack.c.l.b16 %v4657
  %v5788 = vunpack.c.h.b16 %v4657
  %v5789 = vunpack.c.l.b16 %v4658
  %v5790 = vunpack.c.l.b16 %v4659
  %v5791 = vunpack.c.h.b16 %v4659
  %v5792 = vunpack.c.l.b16 %v4660
  %v5793 = vunpack.c.h.b16 %v4660
  %v5794 = vunpack.c.l.b16 %v4661
  %v5795 = vunpack.c.l.b16 %v4662
  %v5796 = vunpack.c.h.b16 %v4662
  %v5797 = vunpack.c.l.b16 %v4663
  %v5798 = vunpack.c.h.b16 %v4663
  %v5799 = vunpack.c.l.b16 %v4664
  %v5800 = vunpack.c.l.b16 %v4665
  %v5801 = vunpack.c.h.b16 %v4665
  %v5802 = vunpack.c.l.b16 %v4666
  %v5803 = vunpack.c.h.b16 %v4666
  %v5804 = vunpack.c.l.b16 %v4667
  %v5805 = vunpack.c.l.b16 %v4668
  %v5806 = vunpack.c.h.b16 %v4668
  %v5807 = vunpack.c.l.b16 %v4669
  %v5808 = vunpack.c.h.b16 %v4669
  %v5809 = vunpack.c.l.b16 %v4670
  %v5810 = vunpack.c.l.b16 %v4671
  %v5811 = vunpack.c.h.b16 %v4671
  %v5812 = vunpack.c.l.b16 %v4672
  %v5813 = vunpack.c.h.b16 %v4672
  %v5814 = vunpack.c.l.b16 %v4673
  %v5815 = vunpack.c.l.b16 %v4674
  %v5816 = vunpack.c.h.b16 %v4674
  %v5817 = vunpack.c.l.b16 %v4675
  %v5818 = vunpack.c.h.b16 %v4675
  %v5819 = vunpack.c.l.b16 %v4676
  %v5820 = vunpack.c.l.b16 %v4677
  %v5821 = vunpack.c.h.b16 %v4677
  %v5822 = vunpack.c.l.b16 %v4678
  %v5823 = vunpack.c.h.b16 %v4678
  %v5824 = vunpack.c.l.b16 %v4679
  %v5825 = vunpack.c.l.b16 %v4680
  %v5826 = vunpack.c.h.b16 %v4680
  %v5827 = vunpack.c.l.b16 %v4681
  %v5828 = vunpack.c.h.b16 %v4681
  %v5829 = vunpack.c.l.b16 %v4682
  %v5830 = vunpack.c.l.b16 %v4683
  %v5831 = vunpack.c.h.b16 %v4683
  %v5832 = vunpack.c.l.b16 %v4684
  %v5833 = vunpack.c.h.b16 %v4684
  %v5834 = vunpack.c.l.b16 %v4685
  %v5835 = vunpack.c.l.b16 %v4686
  %v5836 = vunpack.c.h.b16 %v4686
  %v5837 = vunpack.c.l.b16 %v4687
  %v5838 = vunpack.c.h.b16 %v4687
  %v5839 = vunpack.c.l.b16 %v4688
  %v5840 = vunpack.c.l.b16 %v4689
  %v5841 = vunpack.c.h.b16 %v4689
  %v5842 = vunpack.c.l.b16 %v4690
  %v5843 = vunpack.c.h.b16 %v4690
  %v5844 = vunpack.c.l.b16 %v4691
  %v5845 = vunpack.c.l.b16 %v4692
  %v5846 = vunpack.c.h.b16 %v4692
  %v5847 = vunpack.c.l.b16 %v4693
  %v5848 = vunpack.c.h.b16 %v4693
  %v5849 = vunpack.c.l.b16 %v4694
  %v5850 = vunpack.c.l.b16 %v4695
  %v5851 = vunpack.c.h.b16 %v4695
  %v5852 = vunpack.c.l.b16 %v4696
  %v5853 = vunpack.c.h.b16 %v4696
  %v5854 = vunpack.c.l.b16 %v4697
  %v5855 = vunpack.c.l.b16 %v4698
  %v5856 = vunpack.c.h.b16 %v4698
  %v5857 = vunpack.c.l.b16 %v4699
  %v5858 = vunpack.c.h.b16 %v4699
  %v5859 = vunpack.c.l.b16 %v4700
  %v5860 = vunpack.c.l.b16 %v4701
  %v5861 = vunpack.c.h.b16 %v4701
  %v5862 = vunpack.c.l.b16 %v4702
  %v5863 = vunpack.c.h.b16 %v4702
  %v5864 = vunpack.c.l.b16 %v4703
  %v5865 = vunpack.c.l.b16 %v4704
  %v5866 = vunpack.c.h.b16 %v4704
  %v5867 = vunpack.c.l.b16 %v4705
  %v5868 = vunpack.c.h.b16 %v4705
  %v5869 = vunpack.c.l.b16 %v4706
  %v5870 = vunpack.c.l.b16 %v4707
  %v5871 = vunpack.c.h.b16 %v4707
  %v5872 = vunpack.c.l.b16 %v4708
  %v5873 = vunpack.c.h.b16 %v4708
  %v5874 = vunpack.c.l.b16 %v4709
  %v5875 = vunpack.c.l.b16 %v4710
  %v5876 = vunpack.c.h.b16 %v4710
  %v5877 = vunpack.c.l.b16 %v4711
  %v5878 = vunpack.c.h.b16 %v4711
  %v5879 = vunpack.c.l.b16 %v4712
  %v5880 = vunpack.c.l.b16 %v4713
  %v5881 = vunpack.c.h.b16 %v4713
  %v5882 = vunpack.c.l.b16 %v4714
  %v5883 = vunpack.c.h.b16 %v4714
  %v5884 = vunpack.c.l.b16 %v4715
  %v5885 = vunpack.c.l.b16 %v4716
  %v5886 = vunpack.c.h.b16 %v4716
  %v5887 = vunpack.c.l.b16 %v4717
  %v5888 = vunpack.c.h.b16 %v4717
  %v5889 = vunpack.c.l.b16 %v4718
  %v5890 = vunpack.c.l.b16 %v4719
  %v5891 = vunpack.c.h.b16 %v4719
  %v5892 = vunpack.c.l.b16 %v4720
  %v5893 = vunpack.c.h.b16 %v4720
  %v5894 = vunpack.c.l.b16 %v4721
  %v5895 = vunpack.c.l.b16 %v4722
  %v5896 = vunpack.c.h.b16 %v4722
  %v5897 = vunpack.c.l.b16 %v4723
  %v5898 = vunpack.c.h.b16 %v4723
  %v5899 = vunpack.c.l.b16 %v4724
  %v5900 = vunpack.c.l.b16 %v4725
  %v5901 = vunpack.c.h.b16 %v4725
  %v5902 = vunpack.c.l.b16 %v4726
  %v5903 = vunpack.c.h.b16 %v4726
  %v5904 = vunpack.c.l.b16 %v4727
  %v5905 = vunpack.c.l.b16 %v4728
  %v5906 = vunpack.c.h.b16 %v4728
  %v5907 = vunpack.c.l.b16 %v4729
  %v5908 = vunpack.c.h.b16 %v4729
  %v5909 = vunpack.c.l.b16 %v4730
  %v5910 = vunpack.c.l.b16 %v4731
  %v5911 = vunpack.c.h.b16 %v4731
  %v5912 = vunpack.c.l.b16 %v4732
  %v5913 = vunpack.c.h.b16 %v4732
  %v5914 = vunpack.c.l.b16 %v4733
  %v5915 = vunpack.c.l.b16 %v4734
  %v5916 = vunpack.c.h.b16 %v4734
  %v5917 = vunpack.c.l.b16 %v4735
  %v5918 = vunpack.c.h.b16 %v4735
  %v5919 = vunpack.c.l.b16 %v4736
  %v5920 = vunpack.c.l.b16 %v4737
  %v5921 = vunpack.c.h.b16 %v4737
  %v5922 = vunpack.c.l.b16 %v4738
  %v5923 = vunpack.c.h.b16 %v4738
  %v5924 = vunpack.c.l.b16 %v4739
  %v5925 = vunpack.c.l.b16 %v4740
  %v5926 = vunpack.c.h.b16 %v4740
  %v5927 = vunpack.c.l.b16 %v4741
  %v5928 = vunpack.c.h.b16 %v4741
  %v5929 = vunpack.c.l.b16 %v4742
  %v5930 = vunpack.c.l.b16 %v4743
  %v5931 = vunpack.c.h.b16 %v4743
  %v5932 = vunpack.c.l.b16 %v4744
  %v5933 = vunpack.c.h.b16 %v4744
  %v5934 = vunpack.c.l.b16 %v4745
  %v5935 = vunpack.c.l.b16 %v4746
  %v5936 = vunpack.c.h.b16 %v4746
  %v5937 = vunpack.c.l.b16 %v4747
  %v5938 = vunpack.c.h.b16 %v4747
  %v5939 = vunpack.c.l.b16 %v4748
  %v5940 = vunpack.c.l.b16 %v4749
  %v5941 = vunpack.c.h.b16 %v4749
  %v5942 = vunpack.c.l.b16 %v4750
  %v5943 = vunpack.c.h.b16 %v4750
  %v5944 = vunpack.c.l.b16 %v4751
  %v5945 = vunpack.c.l.b16 %v4752
  %v5946 = vunpack.c.h.b16 %v4752
  %v5947 = vunpack.c.l.b16 %v4753
  %v5948 = vunpack.c.h.b16 %v4753
  %v5949 = vunpack.c.l.b16 %v4754
  %v5950 = vunpack.c.l.b16 %v4755
  %v5951 = vunpack.c.h.b16 %v4755
  %v5952 = vunpack.c.l.b16 %v4756
  %v5953 = vunpack.c.h.b16 %v4756
  %v5954 = vunpack.c.l.b16 %v4757
  %v5955 = vunpack.c.l.b16 %v4758
  %v5956 = vunpack.c.h.b16 %v4758
  %v5957 = vunpack.c.l.b16 %v4759
  %v5958 = vunpack.c.h.b16 %v4759
  %v5959 = vunpack.c.l.b16 %v4760
  %v5960 = vunpack.c.l.b16 %v4761
  %v5961 = vunpack.c.h.b16 %v4761
  %v5962 = vunpack.c.l.b16 %v4762
  %v5963 = vunpack.c.h.b16 %v4762
  %v5964 = vunpack.c.l.b16 %v4763
  %v5965 = vunpack.c.l.b16 %v4764
  %v5966 = vunpack.c.h.b16 %v4764
  %v5967 = vunpack.c.l.b16 %v4765
  %v5968 = vunpack.c.h.b16 %v4765
  %v5969 = vunpack.c.l.b16 %v4766
  %v5970 = vunpack.c.l.b16 %v4767
  %v5971 = vunpack.c.h.b16 %v4767
  %v5972 = vunpack.c.l.b16 %v4768
  %v5973 = vunpack.c.h.b16 %v4768
  %v5974 = vunpack.c.l.b16 %v4769
  %v5975 = vunpack.c.l.b16 %v4770
  %v5976 = vunpack.c.h.b16 %v4770
  %v5977 = vunpack.c.l.b16 %v4771
  %v5978 = vunpack.c.h.b16 %v4771
  %v5979 = vunpack.c.l.b16 %v4772
  %v5980 = vunpack.c.l.b16 %v4773
  %v5981 = vunpack.c.h.b16 %v4773
  %v5982 = vunpack.c.l.b16 %v4774
  %v5983 = vunpack.c.h.b16 %v4774
  %v5984 = vunpack.c.l.b16 %v4775
  %v5985 = vunpack.c.l.b16 %v4776
  %v5986 = vunpack.c.h.b16 %v4776
  %v5987 = vunpack.c.l.b16 %v4777
  %v5988 = vunpack.c.h.b16 %v4777
  %v5989 = vunpack.c.l.b16 %v4778
  %v5990 = vunpack.c.l.b16 %v4779
  %v5991 = vunpack.c.h.b16 %v4779
  %v5992 = vunpack.c.l.b16 %v4780
  %v5993 = vunpack.c.h.b16 %v4780
  %v5994 = vunpack.c.l.b16 %v4781
  %v5995 = vunpack.c.l.b16 %v4782
  %v5996 = vunpack.c.h.b16 %v4782
  %v5997 = vunpack.c.l.b16 %v4783
  %v5998 = vunpack.c.h.b16 %v4783
  %v5999 = vunpack.c.l.b16 %v4784
  %v6000 = vunpack.c.l.b16 %v4785
  %v6001 = vunpack.c.h.b16 %v4785
  %v6002 = vunpack.c.l.b16 %v4786
  %v6003 = vunpack.c.h.b16 %v4786
  %v6004 = vunpack.c.l.b16 %v4787
  %v6005 = vunpack.c.l.b16 %v4788
  %v6006 = vunpack.c.h.b16 %v4788
  %v6007 = vunpack.c.l.b16 %v4789
  %v6008 = vunpack.c.h.b16 %v4789
  %v6009 = vunpack.c.l.b16 %v4790
  %v6010 = vunpack.c.l.b16 %v4791
  %v6011 = vunpack.c.h.b16 %v4791
  %v6012 = vunpack.c.l.b16 %v4792
  %v6013 = vunpack.c.h.b16 %v4792
  %v6014 = vunpack.c.l.b16 %v4793
  %v6015 = vunpack.c.l.b16 %v4794
  %v6016 = vunpack.c.h.b16 %v4794
  %v6017 = vunpack.c.l.b16 %v4795
  %v6018 = vunpack.c.h.b16 %v4795
  %v6019 = vunpack.c.l.b16 %v4796
  %v6020 = vunpack.c.l.b16 %v4797
  %v6021 = vunpack.c.h.b16 %v4797
  %v6022 = vunpack.c.l.b16 %v4798
  %v6023 = vunpack.c.h.b16 %v4798
  %v6024 = vunpack.c.l.b16 %v4799
  %v6025 = vunpack.c.l.b16 %v4800
  %v6026 = vunpack.c.h.b16 %v4800
  %v6027 = vunpack.c.l.b16 %v4801
  %v6028 = vunpack.c.h.b16 %v4801
  %v6029 = vunpack.c.l.b16 %v4802
  %v6030 = vunpack.c.l.b16 %v4803
  %v6031 = vunpack.c.h.b16 %v4803
  %v6032 = vunpack.c.l.b16 %v4804
  %v6033 = vunpack.c.h.b16 %v4804
  %v6034 = vunpack.c.l.b16 %v4805
  %v6035 = vunpack.c.l.b16 %v4806
  %v6036 = vunpack.c.h.b16 %v4806
  %v6037 = vunpack.c.l.b16 %v4807
  %v6038 = vunpack.c.h.b16 %v4807
  %v6039 = vunpack.c.l.b16 %v4808
  %v6040 = vunpack.c.l.b16 %v4809
  %v6041 = vunpack.c.h.b16 %v4809
  %v6042 = vunpack.c.l.b16 %v4810
  %v6043 = vunpack.c.h.b16 %v4810
  %v6044 = vunpack.c.l.b16 %v4811
  %v6045 = vunpack.c.l.b16 %v4812
  %v6046 = vunpack.c.h.b16 %v4812
  %v6047 = vunpack.c.l.b16 %v4813
  %v6048 = vunpack.c.h.b16 %v4813
  %v6049 = vunpack.c.l.b16 %v4814
  %v6050 = vunpack.c.l.b16 %v4815
  %v6051 = vunpack.c.h.b16 %v4815
  %v6052 = vunpack.c.l.b16 %v4816
  %v6053 = vunpack.c.h.b16 %v4816
  %v6054 = vunpack.c.l.b16 %v4817
  %v6055 = vunpack.c.l.b16 %v4818
  %v6056 = vunpack.c.h.b16 %v4818
  %v6057 = vunpack.c.l.b16 %v4819
  %v6058 = vunpack.c.h.b16 %v4819
  %v6059 = vunpack.c.l.b16 %v4820
  %v6060 = vunpack.c.l.b16 %v4821
  %v6061 = vunpack.c.h.b16 %v4821
  %v6062 = vunpack.c.l.b16 %v4822
  %v6063 = vunpack.c.h.b16 %v4822
  %v6064 = vunpack.c.l.b16 %v4823
  %v6065 = vunpack.c.l.b16 %v4824
  %v6066 = vunpack.c.h.b16 %v4824
  %v6067 = vunpack.c.l.b16 %v4825
  %v6068 = vunpack.c.h.b16 %v4825
  %v6069 = vunpack.c.l.b16 %v4826
  %v6070 = vunpack.c.l.b16 %v4827
  %v6071 = vunpack.c.h.b16 %v4827
  %v6072 = vunpack.c.l.b16 %v4828
  %v6073 = vunpack.c.h.b16 %v4828
  %v6074 = vunpack.c.l.b16 %v4829
  %v6075 = vunpack.c.l.b16 %v4830
  %v6076 = vunpack.c.h.b16 %v4830
  %v6077 = vunpack.c.l.b16 %v4831
  %v6078 = vunpack.c.h.b16 %v4831
  %v6079 = vunpack.c.l.b16 %v4832
  %v6080 = vunpack.c.l.b16 %v4833
  %v6081 = vunpack.c.h.b16 %v4833
  %v6082 = vunpack.c.l.b16 %v4834
  %v6083 = vunpack.c.h.b16 %v4834
  %v6084 = vunpack.c.l.b16 %v4835
  %v6085 = vunpack.c.l.b16 %v4836
  %v6086 = vunpack.c.h.b16 %v4836
  %v6087 = vunpack.c.l.b16 %v4837
  %v6088 = vunpack.c.h.b16 %v4837
  %v6089 = vunpack.c.l.b16 %v4838
  %v6090 = vunpack.c.l.b16 %v4839
  %v6091 = vunpack.c.h.b16 %v4839
  %v6092 = vunpack.c.l.b16 %v4840
  %v6093 = vunpack.c.h.b16 %v4840
  %v6094 = vunpack.c.l.b16 %v4841
  %v6095 = vunpack.c.l.b16 %v4842
  %v6096 = vunpack.c.h.b16 %v4842
  %v6097 = vunpack.c.l.b16 %v4843
  %v6098 = vunpack.c.h.b16 %v4843
  %v6099 = vunpack.c.l.b16 %v4844
  %v6100 = vunpack.c.l.b16 %v4845
  %v6101 = vunpack.c.h.b16 %v4845
  %v6102 = vunpack.c.l.b16 %v4846
  %v6103 = vunpack.c.h.b16 %v4846
  %v6104 = vunpack.c.l.b16 %v4847
  %v6105 = vunpack.c.l.b16 %v4848
  %v6106 = vunpack.c.h.b16 %v4848
  %v6107 = vunpack.c.l.b16 %v4849
  %v6108 = vunpack.c.h.b16 %v4849
  %v6109 = vunpack.c.l.b16 %v4850
  %v6110 = vunpack.c.l.b16 %v4851
  %v6111 = vunpack.c.h.b16 %v4851
  %v6112 = vunpack.c.l.b16 %v4852
  %v6113 = vunpack.c.h.b16 %v4852
  %v6114 = vunpack.c.l.b16 %v4853
  %v6115 = vunpack.c.l.b16 %v4854
  %v6116 = vunpack.c.h.b16 %v4854
  %v6117 = vunpack.c.l.b16 %v4855
  %v6118 = vunpack.c.h.b16 %v4855
  %v6119 = vunpack.c.l.b16 %v4856
  %v6120 = vunpack.c.l.b16 %v4857
  %v6121 = vunpack.c.h.b16 %v4857
  %v6122 = vunpack.c.l.b16 %v4858
  %v6123 = vunpack.c.h.b16 %v4858
  %v6124 = vunpack.c.l.b16 %v4859
  %v6125 = vunpack.c.l.b16 %v4860
  %v6126 = vunpack.c.h.b16 %v4860
  %v6127 = vunpack.c.l.b16 %v4861
  %v6128 = vunpack.c.h.b16 %v4861
  %v6129 = vunpack.c.l.b16 %v4862
  %v6130 = vunpack.c.l.b16 %v4863
  %v6131 = vunpack.c.h.b16 %v4863
  %v6132 = vunpack.c.l.b16 %v4864
  %v6133 = vunpack.c.h.b16 %v4864
  %v6134 = vunpack.c.l.b16 %v4865
  %v6135 = vunpack.c.l.b16 %v4866
  %v6136 = vunpack.c.h.b16 %v4866
  %v6137 = vunpack.c.l.b16 %v4867
  %v6138 = vunpack.c.h.b16 %v4867
  %v6139 = vunpack.c.l.b16 %v4868
  %v6140 = vunpack.c.l.b16 %v4869
  %v6141 = vunpack.c.h.b16 %v4869
  %v6142 = vunpack.c.l.b16 %v4870
  %v6143 = vunpack.c.h.b16 %v4870
  %v6144 = vunpack.c.l.b16 %v4871
  %v6145 = vunpack.c.l.b16 %v4872
  %v6146 = vunpack.c.h.b16 %v4872
  %v6147 = vunpack.c.l.b16 %v4873
  %v6148 = vunpack.c.h.b16 %v4873
  %v6149 = vunpack.c.l.b16 %v4874
  %v6150 = vunpack.c.l.b16 %v4875
  %v6151 = vunpack.c.h.b16 %v4875
  %v6152 = vunpack.c.l.b16 %v4876
  %v6153 = vunpack.c.h.b16 %v4876
  %v6154 = vunpack.c.l.b16 %v4877
  %v6155 = vunpack.c.l.b16 %v4878
  %v6156 = vunpack.c.h.b16 %v4878
  %v6157 = vunpack.c.l.b16 %v4879
  %v6158 = vunpack.c.h.b16 %v4879
  %v6159 = vunpack.c.l.b16 %v4880
  %v6160 = vunpack.c.l.b16 %v4881
  %v6161 = vunpack.c.h.b16 %v4881
  %v6162 = vunpack.c.l.b16 %v4882
  %v6163 = vunpack.c.h.b16 %v4882
  %v6164 = vunpack.c.l.b16 %v4883
  %v6165 = vunpack.c.l.b16 %v4884
  %v6166 = vunpack.c.h.b16 %v4884
  %v6167 = vunpack.c.l.b16 %v4885
  %v6168 = vunpack.c.h.b16 %v4885
  %v6169 = vunpack.c.l.b16 %v4886
  %v6170 = vunpack.c.l.b16 %v4887
  %v6171 = vunpack.c.h.b16 %v4887
  %v6172 = vunpack.c.l.b16 %v4888
  %v6173 = vunpack.c.h.b16 %v4888
  %v6174 = vunpack.c.l.b16 %v4889
  %v6175 = vunpack.c.l.b16 %v4890
  %v6176 = vunpack.c.h.b16 %v4890
  %v6177 = vunpack.c.l.b16 %v4891
  %v6178 = vunpack.c.h.b16 %v4891
  %v6179 = vunpack.c.l.b16 %v4892
  %v6180 = vunpack.c.l.b16 %v4893
  %v6181 = vunpack.c.h.b16 %v4893
  %v6182 = vunpack.c.l.b16 %v4894
  %v6183 = vunpack.c.h.b16 %v4894
  %v6184 = vunpack.c.l.b16 %v4895
  %v6185 = vunpack.c.l.b16 %v4896
  %v6186 = vunpack.c.h.b16 %v4896
  %v6187 = vunpack.c.l.b16 %v4897
  %v6188 = vunpack.c.h.b16 %v4897
  %v6189 = vunpack.c.l.b16 %v4898
  %v6190 = vunpack.c.l.b16 %v4899
  %v6191 = vunpack.c.h.b16 %v4899
  %v6192 = vunpack.c.l.b16 %v4900
  %v6193 = vunpack.c.h.b16 %v4900
  %v6194 = vunpack.c.l.b16 %v4901
  %v6195 = vunpack.c.l.b16 %v4902
  %v6196 = vunpack.c.h.b16 %v4902
  %v6197 = vunpack.c.l.b16 %v4903
  %v6198 = vunpack.c.h.b16 %v4903
  %v6199 = vunpack.c.l.b16 %v4904
  %v6200 = vunpack.c.l.b16 %v4905
  %v6201 = vunpack.c.h.b16 %v4905
  %v6202 = vunpack.c.l.b16 %v4906
  %v6203 = vunpack.c.h.b16 %v4906
  %v6204 = vunpack.c.l.b16 %v4907
  %v6205 = vunpack.c.l.b16 %v4908
  %v6206 = vunpack.c.h.b16 %v4908
  %v6207 = vunpack.c.l.b16 %v4909
  %v6208 = vunpack.c.h.b16 %v4909
  %v6209 = vunpack.c.l.b16 %v4910
  %v6210 = vunpack.c.l.b16 %v4911
  %v6211 = vunpack.c.h.b16 %v4911
  %v6212 = vunpack.c.l.b16 %v4912
  %v6213 = vunpack.c.h.b16 %v4912
  %v6214 = vunpack.c.l.b16 %v4913
  %v6215 = vunpack.c.l.b16 %v4914
  %v6216 = vunpack.c.h.b16 %v4914
  %v6217 = vunpack.c.l.b16 %v4915
  %v6218 = vunpack.c.h.b16 %v4915
  %v6219 = vunpack.c.l.b16 %v4916
  %v6220 = vunpack.c.l.b16 %v4917
  %v6221 = vunpack.c.h.b16 %v4917
  %v6222 = vunpack.c.l.b16 %v4918
  %v6223 = vunpack.c.h.b16 %v4918
  %v6224 = vunpack.c.l.b16 %v4919
  %v6225 = vunpack.c.l.b16 %v4920
  %v6226 = vunpack.c.h.b16 %v4920
  %v6227 = vunpack.c.l.b16 %v4921
  %v6228 = vunpack.c.h.b16 %v4921
  %v6229 = vunpack.c.l.b16 %v4922
  %v6230 = vpack.c.b16 %v5435, %v5430
  %v6231 = vpack.c.b16 %v5436, %v5431
  %v6232 = vpack.c.b16 %v5437, %v5432
  %v6233 = vpack.c.b16 %v5438, %v5433
  %v6234 = vpack.c.b16 %v5439, %v5434
  %v6235 = vpack.c.b16 %v5445, %v5440
  %v6236 = vpack.c.b16 %v5446, %v5441
  %v6237 = vpack.c.b16 %v5447, %v5442
  %v6238 = vpack.c.b16 %v5448, %v5443
  %v6239 = vpack.c.b16 %v5449, %v5444
  %v6240 = vpack.c.b16 %v5455, %v5450
  %v6241 = vpack.c.b16 %v5456, %v5451
  %v6242 = vpack.c.b16 %v5457, %v5452
  %v6243 = vpack.c.b16 %v5458, %v5453
  %v6244 = vpack.c.b16 %v5459, %v5454
  %v6245 = vpack.c.b16 %v5465, %v5460
  %v6246 = vpack.c.b16 %v5466, %v5461
  %v6247 = vpack.c.b16 %v5467, %v5462
  %v6248 = vpack.c.b16 %v5468, %v5463
  %v6249 = vpack.c.b16 %v5469, %v5464
  %v6250 = vpack.c.b16 %v5475, %v5470
  %v6251 = vpack.c.b16 %v5476, %v5471
  %v6252 = vpack.c.b16 %v5477, %v5472
  %v6253 = vpack.c.b16 %v5478, %v5473
  %v6254 = vpack.c.b16 %v5479, %v5474
  %v6255 = vpack.c.b16 %v5485, %v5480
  %v6256 = vpack.c.b16 %v5486, %v5481
  %v6257 = vpack.c.b16 %v5487, %v5482
  %v6258 = vpack.c.b16 %v5488, %v5483
  %v6259 = vpack.c.b16 %v5489, %v5484
  %v6260 = vpack.c.b16 %v5495, %v5490
  %v6261 = vpack.c.b16 %v5496, %v5491
  %v6262 = vpack.c.b16 %v5497, %v5492
  %v6263 = vpack.c.b16 %v5498, %v5493
  %v6264 = vpack.c.b16 %v5499, %v5494
  %v6265 = vpack.c.b16 %v5505, %v5500
  %v6266 = vpack.c.b16 %v5506, %v5501
  %v6267 = vpack.c.b16 %v5507, %v5502
  %v6268 = vpack.c.b16 %v5508, %v5503
  %v6269 = vpack.c.b16 %v5509, %v5504
  %v6270 = vpack.c.b16 %v5515, %v5510
  %v6271 = vpack.c.b16 %v5516, %v5511
  %v6272 = vpack.c.b16 %v5517, %v5512
  %v6273 = vpack.c.b16 %v5518, %v5513
  %v6274 = vpack.c.b16 %v5519, %v5514
  %v6275 = vpack.c.b16 %v5525, %v5520
  %v6276 = vpack.c.b16 %v5526, %v5521
  %v6277 = vpack.c.b16 %v5527, %v5522
  %v6278 = vpack.c.b16 %v5528, %v5523
  %v6279 = vpack.c.b16 %v5529, %v5524
  %v6280 = vpack.c.b16 %v5535, %v5530
  %v6281 = vpack.c.b16 %v5536, %v5531
  %v6282 = vpack.c.b16 %v5537, %v5532
  %v6283 = vpack.c.b16 %v5538, %v5533
  %v6284 = vpack.c.b16 %v5539, %v5534
  %v6285 = vpack.c.b16 %v5545, %v5540
  %v6286 = vpack.c.b16 %v5546, %v5541
  %v6287 = vpack.c.b16 %v5547, %v5542
  %v6288 = vpack.c.b16 %v5548, %v5543
  %v6289 = vpack.c.b16 %v5549, %v5544
  %v6290 = vpack.c.b16 %v5555, %v5550
  %v6291 = vpack.c.b16 %v5556, %v5551
  %v6292 = vpack.c.b16 %v5557, %v5552
  %v6293 = vpack.c.b16 %v5558, %v5553
  %v6294 = vpack.c.b16 %v5559, %v5554
  %v6295 = vpack.c.b16 %v5565, %v5560
  %v6296 = vpack.c.b16 %v5566, %v5561
  %v6297 = vpack.c.b16 %v5567, %v5562
  %v6298 = vpack.c.b16 %v5568, %v5563
  %v6299 = vpack.c.b16 %v5569, %v5564
  %v6300 = vpack.c.b16 %v5575, %v5570
  %v6301 = vpack.c.b16 %v5576, %v5571
  %v6302 = vpack.c.b16 %v5577, %v5572
  %v6303 = vpack.c.b16 %v5578, %v5573
  %v6304 = vpack.c.b16 %v5579, %v5574
  %v6305 = vpack.c.b16 %v5585, %v5580
  %v6306 = vpack.c.b16 %v5586, %v5581
  %v6307 = vpack.c.b16 %v5587, %v5582
  %v6308 = vpack.c.b16 %v5588, %v5583
  %v6309 = vpack.c.b16 %v5589, %v5584
  %v6310 = vpack.c.b16 %v5595, %v5590
  %v6311 = vpack.c.b16 %v5596, %v5591
  %v6312 = vpack.c.b16 %v5597, %v5592
  %v6313 = vpack.c.b16 %v5598, %v5593
  %v6314 = vpack.c.b16 %v5599, %v5594
  %v6315 = vpack.c.b16 %v5605, %v5600
  %v6316 = vpack.c.b16 %v5606, %v5601
  %v6317 = vpack.c.b16 %v5607, %v5602
  %v6318 = vpack.c.b16 %v5608, %v5603
  %v6319 = vpack.c.b16 %v5609, %v5604
  %v6320 = vpack.c.b16 %v5615, %v5610
  %v6321 = vpack.c.b16 %v5616, %v5611
  %v6322 = vpack.c.b16 %v5617, %v5612
  %v6323 = vpack.c.b16 %v5618, %v5613
  %v6324 = vpack.c.b16 %v5619, %v5614
  %v6325 = vpack.c.b16 %v5625, %v5620
  %v6326 = vpack.c.b16 %v5626, %v5621
  %v6327 = vpack.c.b16 %v5627, %v5622
  %v6328 = vpack.c.b16 %v5628, %v5623
  %v6329 = vpack.c.b16 %v5629, %v5624
  %v6330 = vpack.c.b16 %v5635, %v5630
  %v6331 = vpack.c.b16 %v5636, %v5631
  %v6332 = vpack.c.b16 %v5637, %v5632
  %v6333 = vpack.c.b16 %v5638, %v5633
  %v6334 = vpack.c.b16 %v5639, %v5634
  %v6335 = vpack.c.b16 %v5645, %v5640
  %v6336 = vpack.c.b16 %v5646, %v5641
  %v6337 = vpack.c.b16 %v5647, %v5642
  %v6338 = vpack.c.b16 %v5648, %v5643
  %v6339 = vpack.c.b16 %v5649, %v5644
  %v6340 = vpack.c.b16 %v5655, %v5650
  %v6341 = vpack.c.b16 %v5656, %v5651
  %v6342 = vpack.c.b16 %v5657, %v5652
  %v6343 = vpack.c.b16 %v5658, %v5653
  %v6344 = vpack.c.b16 %v5659, %v5654
  %v6345 = vpack.c.b16 %v5665, %v5660
  %v6346 = vpack.c.b16 %v5666, %v5661
  %v6347 = vpack.c.b16 %v5667, %v5662
  %v6348 = vpack.c.b16 %v5668, %v5663
  %v6349 = vpack.c.b16 %v5669, %v5664
  %v6350 = vpack.c.b16 %v5675, %v5670
  %v6351 = vpack.c.b16 %v5676, %v5671
  %v6352 = vpack.c.b16 %v5677, %v5672
  %v6353 = vpack.c.b16 %v5678, %v5673
  %v6354 = vpack.c.b16 %v5679, %v5674
  %v6355 = vpack.c.b16 %v5685, %v5680
  %v6356 = vpack.c.b16 %v5686, %v5681
  %v6357 = vpack.c.b16 %v5687, %v5682
  %v6358 = vpack.c.b16 %v5688, %v5683
  %v6359 = vpack.c.b16 %v5689, %v5684
  %v6360 = vpack.c.b16 %v5695, %v5690
  %v6361 = vpack.c.b16 %v5696, %v5691
  %v6362 = vpack.c.b16 %v5697, %v5692
  %v6363 = vpack.c.b16 %v5698, %v5693
  %v6364 = vpack.c.b16 %v5699, %v5694
  %v6365 = vpack.c.b16 %v5705, %v5700
  %v6366 = vpack.c.b16 %v5706, %v5701
  %v6367 = vpack.c.b16 %v5707, %v5702
  %v6368 = vpack.c.b16 %v5708, %v5703
  %v6369 = vpack.c.b16 %v5709, %v5704
  %v6370 = vpack.c.b16 %v5715, %v5710
  %v6371 = vpack.c.b16 %v5716, %v5711
  %v6372 = vpack.c.b16 %v5717, %v5712
  %v6373 = vpack.c.b16 %v5718, %v5713
  %v6374 = vpack.c.b16 %v5719, %v5714
  %v6375 = vpack.c.b16 %v5725, %v5720
  %v6376 = vpack.c.b16 %v5726, %v5721
  %v6377 = vpack.c.b16 %v5727, %v5722
  %v6378 = vpack.c.b16 %v5728, %v5723
  %v6379 = vpack.c.b16 %v5729, %v5724
  %v6380 = vpack.c.b16 %v5735, %v5730
  %v6381 = vpack.c.b16 %v5736, %v5731
  %v6382 = vpack.c.b16 %v5737, %v5732
  %v6383 = vpack.c.b16 %v5738, %v5733
  %v6384 = vpack.c.b16 %v5739, %v5734
  %v6385 = vpack.c.b16 %v5745, %v5740
  %v6386 = vpack.c.b16 %v5746, %v5741
  %v6387 = vpack.c.b16 %v5747, %v5742
  %v6388 = vpack.c.b16 %v5748, %v5743
  %v6389 = vpack.c.b16 %v5749, %v5744
  %v6390 = vpack.c.b16 %v5755, %v5750
  %v6391 = vpack.c.b16 %v5756, %v5751
  %v6392 = vpack.c.b16 %v5757, %v5752
  %v6393 = vpack.c.b16 %v5758, %v5753
  %v6394 = vpack.c.b16 %v5759, %v5754
  %v6395 = vpack.c.b16 %v5765, %v5760
  %v6396 = vpack.c.b16 %v5766, %v5761
  %v6397 = vpack.c.b16 %v5767, %v5762
  %v6398 = vpack.c.b16 %v5768, %v5763
  %v6399 = vpack.c.b16 %v5769, %v5764
  %v6400 = vpack.c.b16 %v5775, %v5770
  %v6401 = vpack.c.b16 %v5776, %v5771
  %v6402 = vpack.c.b16 %v5777, %v5772
  %v6403 = vpack.c.b16 %v5778, %v5773
  %v6404 = vpack.c.b16 %v5779, %v5774
  %v6405 = vpack.c.b16 %v5785, %v5780
  %v6406 = vpack.c.b16 %v5786, %v5781
  %v6407 = vpack.c.b16 %v5787, %v5782
  %v6408 = vpack.c.b16 %v5788, %v5783
  %v6409 = vpack.c.b16 %v5789, %v5784
  %v6410 = vpack.c.b16 %v5795, %v5790
  %v6411 = vpack.c.b16 %v5796, %v5791
  %v6412 = vpack.c.b16 %v5797, %v5792
  %v6413 = vpack.c.b16 %v5798, %v5793
  %v6414 = vpack.c.b16 %v5799, %v5794
  %v6415 = vpack.c.b16 %v5805, %v5800
  %v6416 = vpack.c.b16 %v5806, %v5801
  %v6417 = vpack.c.b16 %v5807, %v5802
  %v6418 = vpack.c.b16 %v5808, %v5803
  %v6419 = vpack.c.b16 %v5809, %v5804
  %v6420 = vpack.c.b16 %v5815, %v5810
  %v6421 = vpack.c.b16 %v5816, %v5811
  %v6422 = vpack.c.b16 %v5817, %v5812
  %v6423 = vpack.c.b16 %v5818, %v5813
  %v6424 = vpack.c.b16 %v5819, %v5814
  %v6425 = vpack.c.b16 %v5825, %v5820
  %v6426 = vpack.c.b16 %v5826, %v5821
  %v6427 = vpack.c.b16 %v5827, %v5822
  %v6428 = vpack.c.b16 %v5828, %v5823
  %v6429 = vpack.c.b16 %v5829, %v5824
  %v6430 = vpack.c.b16 %v5835, %v5830
  %v6431 = vpack.c.b16 %v5836, %v5831
  %v6432 = vpack.c.b16 %v5837, %v5832
  %v6433 = vpack.c.b16 %v5838, %v5833
  %v6434 = vpack.c.b16 %v5839, %v5834
  %v6435 = vpack.c.b16 %v5845, %v5840
  %v6436 = vpack.c.b16 %v5846, %v5841
  %v6437 = vpack.c.b16 %v5847, %v5842
  %v6438 = vpack.c.b16 %v5848, %v5843
  %v6439 = vpack.c.b16 %v5849, %v5844
  %v6440 = vpack.c.b16 %v5855, %v5850
  %v6441 = vpack.c.b16 %v5856, %v5851
  %v6442 = vpack.c.b16 %v5857, %v5852
  %v6443 = vpack.c.b16 %v5858, %v5853
  %v6444 = vpack.c.b16 %v5859, %v5854
  %v6445 = vpack.c.b16 %v5865, %v5860
  %v6446 = vpack.c.b16 %v5866, %v5861
  %v6447 = vpack.c.b16 %v5867, %v5862
  %v6448 = vpack.c.b16 %v5868, %v5863
  %v6449 = vpack.c.b16 %v5869, %v5864
  %v6450 = vpack.c.b16 %v5875, %v5870
  %v6451 = vpack.c.b16 %v5876, %v5871
  %v6452 = vpack.c.b16 %v5877, %v5872
  %v6453 = vpack.c.b16 %v5878, %v5873
  %v6454 = vpack.c.b16 %v5879, %v5874
  %v6455 = vpack.c.b16 %v5885, %v5880
  %v6456 = vpack.c.b16 %v5886, %v5881
  %v6457 = vpack.c.b16 %v5887, %v5882
  %v6458 = vpack.c.b16 %v5888, %v5883
  %v6459 = vpack.c.b16 %v5889, %v5884
  %v6460 = vpack.c.b16 %v5895, %v5890
  %v6461 = vpack.c.b16 %v5896, %v5891
  %v6462 = vpack.c.b16 %v5897, %v5892
  %v6463 = vpack.c.b16 %v5898, %v5893
  %v6464 = vpack.c.b16 %v5899, %v5894
  %v6465 = vpack.c.b16 %v5905, %v5900
  %v6466 = vpack.c.b16 %v5906, %v5901
  %v6467 = vpack.c.b16 %v5907, %v5902
  %v6468 = vpack.c.b16 %v5908, %v5903
  %v6469 = vpack.c.b16 %v5909, %v5904
  %v6470 = vpack.c.b16 %v5915, %v5910
  %v6471 = vpack.c.b16 %v5916, %v5911
  %v6472 = vpack.c.b16 %v5917, %v5912
  %v6473 = vpack.c.b16 %v5918, %v5913
  %v6474 = vpack.c.b16 %v5919, %v5914
  %v6475 = vpack.c.b16 %v5925, %v5920
  %v6476 = vpack.c.b16 %v5926, %v5921
  %v6477 = vpack.c.b16 %v5927, %v5922
  %v6478 = vpack.c.b16 %v5928, %v5923
  %v6479 = vpack.c.b16 %v5929, %v5924
  %v6480 = vpack.c.b16 %v5935, %v5930
  %v6481 = vpack.c.b16 %v5936, %v5931
  %v6482 = vpack.c.b16 %v5937, %v5932
  %v6483 = vpack.c.b16 %v5938, %v5933
  %v6484 = vpack.c.b16 %v5939, %v5934
  %v6485 = vpack.c.b16 %v5945, %v5940
  %v6486 = vpack.c.b16 %v5946, %v5941
  %v6487 = vpack.c.b16 %v5947, %v5942
  %v6488 = vpack.c.b16 %v5948, %v5943
  %v6489 = vpack.c.b16 %v5949, %v5944
  %v6490 = vpack.c.b16 %v5955, %v5950
  %v6491 = vpack.c.b16 %v5956, %v5951
  %v6492 = vpack.c.b16 %v5957, %v5952
  %v6493 = vpack.c.b16 %v5958, %v5953
  %v6494 = vpack.c.b16 %v5959, %v5954
  %v6495 = vpack.c.b16 %v5965, %v5960
  %v6496 = vpack.c.b16 %v5966, %v5961
  %v6497 = vpack.c.b16 %v5967, %v5962
  %v6498 = vpack.c.b16 %v5968, %v5963
  %v6499 = vpack.c.b16 %v5969, %v5964
  %v6500 = vpack.c.b16 %v5975, %v5970
  %v6501 = vpack.c.b16 %v5976, %v5971
  %v6502 = vpack.c.b16 %v5977, %v5972
  %v6503 = vpack.c.b16 %v5978, %v5973
  %v6504 = vpack.c.b16 %v5979, %v5974
  %v6505 = vpack.c.b16 %v5985, %v5980
  %v6506 = vpack.c.b16 %v5986, %v5981
  %v6507 = vpack.c.b16 %v5987, %v5982
  %v6508 = vpack.c.b16 %v5988, %v5983
  %v6509 = vpack.c.b16 %v5989, %v5984
  %v6510 = vpack.c.b16 %v5995, %v5990
  %v6511 = vpack.c.b16 %v5996, %v5991
  %v6512 = vpack.c.b16 %v5997, %v5992
  %v6513 = vpack.c.b16 %v5998, %v5993
  %v6514 = vpack.c.b16 %v5999, %v5994
  %v6515 = vpack.c.b16 %v6005, %v6000
  %v6516 = vpack.c.b16 %v6006, %v6001
  %v6517 = vpack.c.b16 %v6007, %v6002
  %v6518 = vpack.c.b16 %v6008, %v6003
  %v6519 = vpack.c.b16 %v6009, %v6004
  %v6520 = vpack.c.b16 %v6015, %v6010
  %v6521 = vpack.c.b16 %v6016, %v6011
  %v6522 = vpack.c.b16 %v6017, %v6012
  %v6523 = vpack.c.b16 %v6018, %v6013
  %v6524 = vpack.c.b16 %v6019, %v6014
  %v6525 = vpack.c.b16 %v6025, %v6020
  %v6526 = vpack.c.b16 %v6026, %v6021
  %v6527 = vpack.c.b16 %v6027, %v6022
  %v6528 = vpack.c.b16 %v6028, %v6023
  %v6529 = vpack.c.b16 %v6029, %v6024
  %v6530 = vpack.c.b16 %v6035, %v6030
  %v6531 = vpack.c.b16 %v6036, %v6031
  %v6532 = vpack.c.b16 %v6037, %v6032
  %v6533 = vpack.c.b16 %v6038, %v6033
  %v6534 = vpack.c.b16 %v6039, %v6034
  %v6535 = vpack.c.b16 %v6045, %v6040
  %v6536 = vpack.c.b16 %v6046, %v6041
  %v6537 = vpack.c.b16 %v6047, %v6042
  %v6538 = vpack.c.b16 %v6048, %v6043
  %v6539 = vpack.c.b16 %v6049, %v6044
  %v6540 = vpack.c.b16 %v6055, %v6050
  %v6541 = vpack.c.b16 %v6056, %v6051
  %v6542 = vpack.c.b16 %v6057, %v6052
  %v6543 = vpack.c.b16 %v6058, %v6053
  %v6544 = vpack.c.b16 %v6059, %v6054
  %v6545 = vpack.c.b16 %v6065, %v6060
  %v6546 = vpack.c.b16 %v6066, %v6061
  %v6547 = vpack.c.b16 %v6067, %v6062
  %v6548 = vpack.c.b16 %v6068, %v6063
  %v6549 = vpack.c.b16 %v6069, %v6064
  %v6550 = vpack.c.b16 %v6075, %v6070
  %v6551 = vpack.c.b16 %v6076, %v6071
  %v6552 = vpack.c.b16 %v6077, %v6072
  %v6553 = vpack.c.b16 %v6078, %v6073
  %v6554 = vpack.c.b16 %v6079, %v6074
  %v6555 = vpack.c.b16 %v6085, %v6080
  %v6556 = vpack.c.b16 %v6086, %v6081
  %v6557 = vpack.c.b16 %v6087, %v6082
  %v6558 = vpack.c.b16 %v6088, %v6083
  %v6559 = vpack.c.b16 %v6089, %v6084
  %v6560 = vpack.c.b16 %v6095, %v6090
  %v6561 = vpack.c.b16 %v6096, %v6091
  %v6562 = vpack.c.b16 %v6097, %v6092
  %v6563 = vpack.c.b16 %v6098, %v6093
  %v6564 = vpack.c.b16 %v6099, %v6094
  %v6565 = vpack.c.b16 %v6105, %v6100
  %v6566 = vpack.c.b16 %v6106, %v6101
  %v6567 = vpack.c.b16 %v6107, %v6102
  %v6568 = vpack.c.b16 %v6108, %v6103
  %v6569 = vpack.c.b16 %v6109, %v6104
  %v6570 = vpack.c.b16 %v6115, %v6110
  %v6571 = vpack.c.b16 %v6116, %v6111
  %v6572 = vpack.c.b16 %v6117, %v6112
  %v6573 = vpack.c.b16 %v6118, %v6113
  %v6574 = vpack.c.b16 %v6119, %v6114
  %v6575 = vpack.c.b16 %v6125, %v6120
  %v6576 = vpack.c.b16 %v6126, %v6121
  %v6577 = vpack.c.b16 %v6127, %v6122
  %v6578 = vpack.c.b16 %v6128, %v6123
  %v6579 = vpack.c.b16 %v6129, %v6124
  %v6580 = vpack.c.b16 %v6135, %v6130
  %v6581 = vpack.c.b16 %v6136, %v6131
  %v6582 = vpack.c.b16 %v6137, %v6132
  %v6583 = vpack.c.b16 %v6138, %v6133
  %v6584 = vpack.c.b16 %v6139, %v6134
  %v6585 = vpack.c.b16 %v6145, %v6140
  %v6586 = vpack.c.b16 %v6146, %v6141
  %v6587 = vpack.c.b16 %v6147, %v6142
  %v6588 = vpack.c.b16 %v6148, %v6143
  %v6589 = vpack.c.b16 %v6149, %v6144
  %v6590 = vpack.c.b16 %v6155, %v6150
  %v6591 = vpack.c.b16 %v6156, %v6151
  %v6592 = vpack.c.b16 %v6157, %v6152
  %v6593 = vpack.c.b16 %v6158, %v6153
  %v6594 = vpack.c.b16 %v6159, %v6154
  %v6595 = vpack.c.b16 %v6165, %v6160
  %v6596 = vpack.c.b16 %v6166, %v6161
  %v6597 = vpack.c.b16 %v6167, %v6162
  %v6598 = vpack.c.b16 %v6168, %v6163
  %v6599 = vpack.c.b16 %v6169, %v6164
  %v6600 = vpack.c.b16 %v6175, %v6170
  %v6601 = vpack.c.b16 %v6176, %v6171
  %v6602 = vpack.c.b16 %v6177, %v6172
  %v6603 = vpack.c.b16 %v6178, %v6173
  %v6604 = vpack.c.b16 %v6179, %v6174
  %v6605 = vpack.c.b16 %v6185, %v6180
  %v6606 = vpack.c.b16 %v6186, %v6181
  %v6607 = vpack.c.b16 %v6187, %v6182
  %v6608 = vpack.c.b16 %v6188, %v6183
  %v6609 = vpack.c.b16 %v6189, %v6184
  %v6610 = vpack.c.b16 %v6195, %v6190
  %v6611 = vpack.c.b16 %v6196, %v6191
  %v6612 = vpack.c.b16 %v6197, %v6192
  %v6613 = vpack.c.b16 %v6198, %v6193
  %v6614 = vpack.c.b16 %v6199, %v6194
  %v6615 = vpack.c.b16 %v6205, %v6200
  %v6616 = vpack.c.b16 %v6206, %v6201
  %v6617 = vpack.c.b16 %v6207, %v6202
  %v6618 = vpack.c.b16 %v6208, %v6203
  %v6619 = vpack.c.b16 %v6209, %v6204
  %v6620 = vpack.c.b16 %v6215, %v6210
  %v6621 = vpack.c.b16 %v6216, %v6211
  %v6622 = vpack.c.b16 %v6217, %v6212
  %v6623 = vpack.c.b16 %v6218, %v6213
  %v6624 = vpack.c.b16 %v6219, %v6214
  %v6625 = vpack.c.b16 %v6225, %v6220
  %v6626 = vpack.c.b16 %v6226, %v6221
  %v6627 = vpack.c.b16 %v6227, %v6222
  %v6628 = vpack.c.b16 %v6228, %v6223
  %v6629 = vpack.c.b16 %v6229, %v6224
  %7030 = vmatprep.subr.bf16.mxu0 %v6231
  %7031 = vmatpush1.bf16.msra.mxu0 %v6230
  %7032 = vmatprep.subr.bf16.mxu0 %v6236
  %7033 = vmatpush1.bf16.msra.mxu0 %v6235
  %7034 = vmatprep.subr.bf16.mxu0 %v6241
  %7035 = vmatpush1.bf16.msra.mxu0 %v6240
  %7036 = vmatprep.subr.bf16.mxu0 %v6246
  %7037 = vmatpush1.bf16.msra.mxu0 %v6245
  %7038 = vmatprep.subr.bf16.mxu0 %v6251
  %7039 = vmatpush1.bf16.msra.mxu0 %v6250
  %7040 = vmatprep.subr.bf16.mxu0 %v6256
  %7041 = vmatpush1.bf16.msra.mxu0 %v6255
  %7042 = vmatprep.subr.bf16.mxu0 %v6261
  %7043 = vmatpush1.bf16.msra.mxu0 %v6260
  %7044 = vmatprep.subr.bf16.mxu0 %v6266
  %7045 = vmatpush1.bf16.msra.mxu0 %v6265
  %7046 = vmatprep.subr.bf16.mxu0 %v6271
  %7047 = vmatpush1.bf16.msra.mxu0 %v6270
  %7048 = vmatprep.subr.bf16.mxu0 %v6276
  %7049 = vmatpush1.bf16.msra.mxu0 %v6275
  %7050 = vmatprep.subr.bf16.mxu0 %v6281
  %7051 = vmatpush1.bf16.msra.mxu0 %v6280
  %7052 = vmatprep.subr.bf16.mxu0 %v6286
  %7053 = vmatpush1.bf16.msra.mxu0 %v6285
  %7054 = vmatprep.subr.bf16.mxu0 %v6291
  %7055 = vmatpush1.bf16.msra.mxu0 %v6290
  %7056 = vmatprep.subr.bf16.mxu0 %v6296
  %7057 = vmatpush1.bf16.msra.mxu0 %v6295
  %7058 = vmatprep.subr.bf16.mxu0 %v6301
  %7059 = vmatpush1.bf16.msra.mxu0 %v6300
  %7060 = vmatprep.subr.bf16.mxu0 %v6306
  %7061 = vmatpush1.bf16.msra.mxu0 %v6305
  %7062 = vmatprep.mubr.bf16.mxu0 %v4434
  %7063 = vmatmul.mubr.bf16.gmra.mrb[0].mxu0 %v4433
  %v7064 = vpop.f32.mrb[0].mxu0
  %v7065 = vadd.f32 %v4928, %v7064
  %v7066 = vpop.f32.mrb[0].mxu0
  %v7067 = vadd.f32 %v4932, %v7066
  %v7068 = vpop.f32.mrb[0].mxu0
  %v7069 = vpop.f32.mrb[0].mxu0
  %7070 = vdwg.mxu0
  %7071 = vmatprep.subr.bf16.mxu0 %v6311
  %7072 = vmatpush1.bf16.msra.mxu0 %v6310
  %7073 = vmatprep.subr.bf16.mxu0 %v6316
  %7074 = vmatpush1.bf16.msra.mxu0 %v6315
  %7075 = vmatprep.subr.bf16.mxu0 %v6321
  %7076 = vmatpush1.bf16.msra.mxu0 %v6320
  %7077 = vmatprep.subr.bf16.mxu0 %v6326
  %7078 = vmatpush1.bf16.msra.mxu0 %v6325
  %7079 = vmatprep.subr.bf16.mxu0 %v6331
  %7080 = vmatpush1.bf16.msra.mxu0 %v6330
  %7081 = vmatprep.subr.bf16.mxu0 %v6336
  %7082 = vmatpush1.bf16.msra.mxu0 %v6335
  %7083 = vmatprep.subr.bf16.mxu0 %v6341
  %7084 = vmatpush1.bf16.msra.mxu0 %v6340
  %7085 = vmatprep.subr.bf16.mxu0 %v6346
  %7086 = vmatpush1.bf16.msra.mxu0 %v6345
  %7087 = vmatprep.subr.bf16.mxu0 %v6351
  %7088 = vmatpush1.bf16.msra.mxu0 %v6350
  %7089 = vmatprep.subr.bf16.mxu0 %v6356
  %7090 = vmatpush1.bf16.msra.mxu0 %v6355
  %7091 = vmatprep.subr.bf16.mxu0 %v6361
  %7092 = vmatpush1.bf16.msra.mxu0 %v6360
  %7093 = vmatprep.subr.bf16.mxu0 %v6366
  %7094 = vmatpush1.bf16.msra.mxu0 %v6365
  %7095 = vmatprep.subr.bf16.mxu0 %v6371
  %7096 = vmatpush1.bf16.msra.mxu0 %v6370
  %7097 = vmatprep.subr.bf16.mxu0 %v6376
  %7098 = vmatpush1.bf16.msra.mxu0 %v6375
  %7099 = vmatprep.subr.bf16.mxu0 %v6381
  %7100 = vmatpush1.bf16.msra.mxu0 %v6380
  %7101 = vmatprep.subr.bf16.mxu0 %v6386
  %7102 = vmatpush1.bf16.msra.mxu0 %v6385
  %7103 = vmatprep.mubr.bf16.mxu0 %v4436
  %7104 = vmatmul.mubr.bf16.gmra.mrb[0].mxu0 %v4435
  %v7105 = vpop.f32.mrb[0].mxu0
  %v7106 = vadd.f32 %v7065, %v7105
  %v7107 = vpop.f32.mrb[0].mxu0
  %v7108 = vadd.f32 %v7067, %v7107
  %v7109 = vpop.f32.mrb[0].mxu0
  %v7110 = vpop.f32.mrb[0].mxu0
  %7111 = vdwg.mxu0
  %7112 = vmatprep.subr.bf16.mxu0 %v6391
  %7113 = vmatpush1.bf16.msra.mxu0 %v6390
  %7114 = vmatprep.subr.bf16.mxu0 %v6396
  %7115 = vmatpush1.bf16.msra.mxu0 %v6395
  %7116 = vmatprep.subr.bf16.mxu0 %v6401
  %7117 = vmatpush1.bf16.msra.mxu0 %v6400
  %7118 = vmatprep.subr.bf16.mxu0 %v6406
  %7119 = vmatpush1.bf16.msra.mxu0 %v6405
  %7120 = vmatprep.subr.bf16.mxu0 %v6411
  %7121 = vmatpush1.bf16.msra.mxu0 %v6410
  %7122 = vmatprep.subr.bf16.mxu0 %v6416
  %7123 = vmatpush1.bf16.msra.mxu0 %v6415
  %7124 = vmatprep.subr.bf16.mxu0 %v6421
  %7125 = vmatpush1.bf16.msra.mxu0 %v6420
  %7126 = vmatprep.subr.bf16.mxu0 %v6426
  %7127 = vmatpush1.bf16.msra.mxu0 %v6425
  %7128 = vmatprep.subr.bf16.mxu0 %v6431
  %7129 = vmatpush1.bf16.msra.mxu0 %v6430
  %7130 = vmatprep.subr.bf16.mxu0 %v6436
  %7131 = vmatpush1.bf16.msra.mxu0 %v6435
  %7132 = vmatprep.subr.bf16.mxu0 %v6441
  %7133 = vmatpush1.bf16.msra.mxu0 %v6440
  %7134 = vmatprep.subr.bf16.mxu0 %v6446
  %7135 = vmatpush1.bf16.msra.mxu0 %v6445
  %7136 = vmatprep.subr.bf16.mxu0 %v6451
  %7137 = vmatpush1.bf16.msra.mxu0 %v6450
  %7138 = vmatprep.subr.bf16.mxu0 %v6456
  %7139 = vmatpush1.bf16.msra.mxu0 %v6455
  %7140 = vmatprep.subr.bf16.mxu0 %v6461
  %7141 = vmatpush1.bf16.msra.mxu0 %v6460
  %7142 = vmatprep.subr.bf16.mxu0 %v6466
  %7143 = vmatpush1.bf16.msra.mxu0 %v6465
  %7144 = vmatprep.mubr.bf16.mxu0 %v4438
  %7145 = vmatmul.mubr.bf16.gmra.mrb[0].mxu0 %v4437
  %v7146 = vpop.f32.mrb[0].mxu0
  %v7147 = vadd.f32 %v7106, %v7146
  %v7148 = vpop.f32.mrb[0].mxu0
  %v7149 = vadd.f32 %v7108, %v7148
  %v7150 = vpop.f32.mrb[0].mxu0
  %v7151 = vpop.f32.mrb[0].mxu0
  %7152 = vdwg.mxu0
  %7153 = vmatprep.subr.bf16.mxu0 %v6471
  %7154 = vmatpush1.bf16.msra.mxu0 %v6470
  %7155 = vmatprep.subr.bf16.mxu0 %v6476
  %7156 = vmatpush1.bf16.msra.mxu0 %v6475
  %7157 = vmatprep.subr.bf16.mxu0 %v6481
  %7158 = vmatpush1.bf16.msra.mxu0 %v6480
  %7159 = vmatprep.subr.bf16.mxu0 %v6486
  %7160 = vmatpush1.bf16.msra.mxu0 %v6485
  %7161 = vmatprep.subr.bf16.mxu0 %v6491
  %7162 = vmatpush1.bf16.msra.mxu0 %v6490
  %7163 = vmatprep.subr.bf16.mxu0 %v6496
  %7164 = vmatpush1.bf16.msra.mxu0 %v6495
  %7165 = vmatprep.subr.bf16.mxu0 %v6501
  %7166 = vmatpush1.bf16.msra.mxu0 %v6500
  %7167 = vmatprep.subr.bf16.mxu0 %v6506
  %7168 = vmatpush1.bf16.msra.mxu0 %v6505
  %7169 = vmatprep.subr.bf16.mxu0 %v6511
  %7170 = vmatpush1.bf16.msra.mxu0 %v6510
  %7171 = vmatprep.subr.bf16.mxu0 %v6516
  %7172 = vmatpush1.bf16.msra.mxu0 %v6515
  %7173 = vmatprep.subr.bf16.mxu0 %v6521
  %7174 = vmatpush1.bf16.msra.mxu0 %v6520
  %7175 = vmatprep.subr.bf16.mxu0 %v6526
  %7176 = vmatpush1.bf16.msra.mxu0 %v6525
  %7177 = vmatprep.subr.bf16.mxu0 %v6531
  %7178 = vmatpush1.bf16.msra.mxu0 %v6530
  %7179 = vmatprep.subr.bf16.mxu0 %v6536
  %7180 = vmatpush1.bf16.msra.mxu0 %v6535
  %7181 = vmatprep.subr.bf16.mxu0 %v6541
  %7182 = vmatpush1.bf16.msra.mxu0 %v6540
  %7183 = vmatprep.subr.bf16.mxu0 %v6546
  %7184 = vmatpush1.bf16.msra.mxu0 %v6545
  %7185 = vmatprep.mubr.bf16.mxu0 %v4440
  %7186 = vmatmul.mubr.bf16.gmra.mrb[0].mxu0 %v4439
  %v7187 = vpop.f32.mrb[0].mxu0
  %v7188 = vadd.f32 %v7147, %v7187
  %v7189 = vpop.f32.mrb[0].mxu0
  %v7190 = vadd.f32 %v7149, %v7189
  %v7191 = vpop.f32.mrb[0].mxu0
  %v7192 = vpop.f32.mrb[0].mxu0
  %7193 = vdwg.mxu0
  %7194 = vmatprep.subr.bf16.mxu0 %v6551
  %7195 = vmatpush1.bf16.msra.mxu0 %v6550
  %7196 = vmatprep.subr.bf16.mxu0 %v6556
  %7197 = vmatpush1.bf16.msra.mxu0 %v6555
  %7198 = vmatprep.subr.bf16.mxu0 %v6561
  %7199 = vmatpush1.bf16.msra.mxu0 %v6560
  %7200 = vmatprep.subr.bf16.mxu0 %v6566
  %7201 = vmatpush1.bf16.msra.mxu0 %v6565
  %7202 = vmatprep.subr.bf16.mxu0 %v6571
  %7203 = vmatpush1.bf16.msra.mxu0 %v6570
  %7204 = vmatprep.subr.bf16.mxu0 %v6576
  %7205 = vmatpush1.bf16.msra.mxu0 %v6575
  %7206 = vmatprep.subr.bf16.mxu0 %v6581
  %7207 = vmatpush1.bf16.msra.mxu0 %v6580
  %7208 = vmatprep.subr.bf16.mxu0 %v6586
  %7209 = vmatpush1.bf16.msra.mxu0 %v6585
  %7210 = vmatprep.subr.bf16.mxu0 %v6591
  %7211 = vmatpush1.bf16.msra.mxu0 %v6590
  %7212 = vmatprep.subr.bf16.mxu0 %v6596
  %7213 = vmatpush1.bf16.msra.mxu0 %v6595
  %7214 = vmatprep.subr.bf16.mxu0 %v6601
  %7215 = vmatpush1.bf16.msra.mxu0 %v6600
  %7216 = vmatprep.subr.bf16.mxu0 %v6606
  %7217 = vmatpush1.bf16.msra.mxu0 %v6605
  %7218 = vmatprep.subr.bf16.mxu0 %v6611
  %7219 = vmatpush1.bf16.msra.mxu0 %v6610
  %7220 = vmatprep.subr.bf16.mxu0 %v6616
  %7221 = vmatpush1.bf16.msra.mxu0 %v6615
  %7222 = vmatprep.subr.bf16.mxu0 %v6621
  %7223 = vmatpush1.bf16.msra.mxu0 %v6620
  %7224 = vmatprep.subr.bf16.mxu0 %v6626
  %7225 = vmatpush1.bf16.msra.mxu0 %v6625
  %7226 = vmatprep.mubr.bf16.mxu0 %v4442
  %7227 = vmatmul.mubr.bf16.gmra.mrb[0].mxu0 %v4441
  %v7228 = vpop.f32.mrb[0].mxu0
  %v7229 = vadd.f32 %v7188, %v7228
  %v7230 = vpop.f32.mrb[0].mxu0
  %v7231 = vadd.f32 %v7190, %v7230
  %v7232 = vpop.f32.mrb[0].mxu0
  %v7233 = vpop.f32.mrb[0].mxu0
  %7234 = vdwg.mxu0
  %7235 = vmatprep.subr.bf16.mxu0 %v6233
  %7236 = vmatpush1.bf16.msra.mxu0 %v6232
  %7237 = vmatprep.subr.bf16.mxu0 %v6238
  %7238 = vmatpush1.bf16.msra.mxu0 %v6237
  %7239 = vmatprep.subr.bf16.mxu0 %v6243
  %7240 = vmatpush1.bf16.msra.mxu0 %v6242
  %7241 = vmatprep.subr.bf16.mxu0 %v6248
  %7242 = vmatpush1.bf16.msra.mxu0 %v6247
  %7243 = vmatprep.subr.bf16.mxu0 %v6253
  %7244 = vmatpush1.bf16.msra.mxu0 %v6252
  %7245 = vmatprep.subr.bf16.mxu0 %v6258
  %7246 = vmatpush1.bf16.msra.mxu0 %v6257
  %7247 = vmatprep.subr.bf16.mxu0 %v6263
  %7248 = vmatpush1.bf16.msra.mxu0 %v6262
  %7249 = vmatprep.subr.bf16.mxu0 %v6268
  %7250 = vmatpush1.bf16.msra.mxu0 %v6267
  %7251 = vmatprep.subr.bf16.mxu0 %v6273
  %7252 = vmatpush1.bf16.msra.mxu0 %v6272
  %7253 = vmatprep.subr.bf16.mxu0 %v6278
  %7254 = vmatpush1.bf16.msra.mxu0 %v6277
  %7255 = vmatprep.subr.bf16.mxu0 %v6283
  %7256 = vmatpush1.bf16.msra.mxu0 %v6282
  %7257 = vmatprep.subr.bf16.mxu0 %v6288
  %7258 = vmatpush1.bf16.msra.mxu0 %v6287
  %7259 = vmatprep.subr.bf16.mxu0 %v6293
  %7260 = vmatpush1.bf16.msra.mxu0 %v6292
  %7261 = vmatprep.subr.bf16.mxu0 %v6298
  %7262 = vmatpush1.bf16.msra.mxu0 %v6297
  %7263 = vmatprep.subr.bf16.mxu0 %v6303
  %7264 = vmatpush1.bf16.msra.mxu0 %v6302
  %7265 = vmatprep.subr.bf16.mxu0 %v6308
  %7266 = vmatpush1.bf16.msra.mxu0 %v6307
  %7267 = vmatprep.mubr.bf16.mxu0 %v4434
  %7268 = vmatmul.mubr.bf16.gmra.mrb[0].mxu0 %v4433
  %v7269 = vpop.f32.mrb[0].mxu0
  %v7270 = vadd.f32 %v4936, %v7269
  %v7271 = vpop.f32.mrb[0].mxu0
  %v7272 = vadd.f32 %v4940, %v7271
  %v7273 = vpop.f32.mrb[0].mxu0
  %v7274 = vpop.f32.mrb[0].mxu0
  %7275 = vdwg.mxu0
  %7276 = vmatprep.subr.bf16.mxu0 %v6313
  %7277 = vmatpush1.bf16.msra.mxu0 %v6312
  %7278 = vmatprep.subr.bf16.mxu0 %v6318
  %7279 = vmatpush1.bf16.msra.mxu0 %v6317
  %7280 = vmatprep.subr.bf16.mxu0 %v6323
  %7281 = vmatpush1.bf16.msra.mxu0 %v6322
  %7282 = vmatprep.subr.bf16.mxu0 %v6328
  %7283 = vmatpush1.bf16.msra.mxu0 %v6327
  %7284 = vmatprep.subr.bf16.mxu0 %v6333
  %7285 = vmatpush1.bf16.msra.mxu0 %v6332
  %7286 = vmatprep.subr.bf16.mxu0 %v6338
  %7287 = vmatpush1.bf16.msra.mxu0 %v6337
  %7288 = vmatprep.subr.bf16.mxu0 %v6343
  %7289 = vmatpush1.bf16.msra.mxu0 %v6342
  %7290 = vmatprep.subr.bf16.mxu0 %v6348
  %7291 = vmatpush1.bf16.msra.mxu0 %v6347
  %7292 = vmatprep.subr.bf16.mxu0 %v6353
  %7293 = vmatpush1.bf16.msra.mxu0 %v6352
  %7294 = vmatprep.subr.bf16.mxu0 %v6358
  %7295 = vmatpush1.bf16.msra.mxu0 %v6357
  %7296 = vmatprep.subr.bf16.mxu0 %v6363
  %7297 = vmatpush1.bf16.msra.mxu0 %v6362
  %7298 = vmatprep.subr.bf16.mxu0 %v6368
  %7299 = vmatpush1.bf16.msra.mxu0 %v6367
  %7300 = vmatprep.subr.bf16.mxu0 %v6373
  %7301 = vmatpush1.bf16.msra.mxu0 %v6372
  %7302 = vmatprep.subr.bf16.mxu0 %v6378
  %7303 = vmatpush1.bf16.msra.mxu0 %v6377
  %7304 = vmatprep.subr.bf16.mxu0 %v6383
  %7305 = vmatpush1.bf16.msra.mxu0 %v6382
  %7306 = vmatprep.subr.bf16.mxu0 %v6388
  %7307 = vmatpush1.bf16.msra.mxu0 %v6387
  %7308 = vmatprep.mubr.bf16.mxu0 %v4436
  %7309 = vmatmul.mubr.bf16.gmra.mrb[0].mxu0 %v4435
  %v7310 = vpop.f32.mrb[0].mxu0
  %v7311 = vadd.f32 %v7270, %v7310
  %v7312 = vpop.f32.mrb[0].mxu0
  %v7313 = vadd.f32 %v7272, %v7312
  %v7314 = vpop.f32.mrb[0].mxu0
  %v7315 = vpop.f32.mrb[0].mxu0
  %7316 = vdwg.mxu0
  %7317 = vmatprep.subr.bf16.mxu0 %v6393
  %7318 = vmatpush1.bf16.msra.mxu0 %v6392
  %7319 = vmatprep.subr.bf16.mxu0 %v6398
  %7320 = vmatpush1.bf16.msra.mxu0 %v6397
  %7321 = vmatprep.subr.bf16.mxu0 %v6403
  %7322 = vmatpush1.bf16.msra.mxu0 %v6402
  %7323 = vmatprep.subr.bf16.mxu0 %v6408
  %7324 = vmatpush1.bf16.msra.mxu0 %v6407
  %7325 = vmatprep.subr.bf16.mxu0 %v6413
  %7326 = vmatpush1.bf16.msra.mxu0 %v6412
  %7327 = vmatprep.subr.bf16.mxu0 %v6418
  %7328 = vmatpush1.bf16.msra.mxu0 %v6417
  %7329 = vmatprep.subr.bf16.mxu0 %v6423
  %7330 = vmatpush1.bf16.msra.mxu0 %v6422
  %7331 = vmatprep.subr.bf16.mxu0 %v6428
  %7332 = vmatpush1.bf16.msra.mxu0 %v6427
  %7333 = vmatprep.subr.bf16.mxu0 %v6433
  %7334 = vmatpush1.bf16.msra.mxu0 %v6432
  %7335 = vmatprep.subr.bf16.mxu0 %v6438
  %7336 = vmatpush1.bf16.msra.mxu0 %v6437
  %7337 = vmatprep.subr.bf16.mxu0 %v6443
  %7338 = vmatpush1.bf16.msra.mxu0 %v6442
  %7339 = vmatprep.subr.bf16.mxu0 %v6448
  %7340 = vmatpush1.bf16.msra.mxu0 %v6447
  %7341 = vmatprep.subr.bf16.mxu0 %v6453
  %7342 = vmatpush1.bf16.msra.mxu0 %v6452
  %7343 = vmatprep.subr.bf16.mxu0 %v6458
  %7344 = vmatpush1.bf16.msra.mxu0 %v6457
  %7345 = vmatprep.subr.bf16.mxu0 %v6463
  %7346 = vmatpush1.bf16.msra.mxu0 %v6462
  %7347 = vmatprep.subr.bf16.mxu0 %v6468
  %7348 = vmatpush1.bf16.msra.mxu0 %v6467
  %7349 = vmatprep.mubr.bf16.mxu0 %v4438
  %7350 = vmatmul.mubr.bf16.gmra.mrb[0].mxu0 %v4437
  %v7351 = vpop.f32.mrb[0].mxu0
  %v7352 = vadd.f32 %v7311, %v7351
  %v7353 = vpop.f32.mrb[0].mxu0
  %v7354 = vadd.f32 %v7313, %v7353
  %v7355 = vpop.f32.mrb[0].mxu0
  %v7356 = vpop.f32.mrb[0].mxu0
  %7357 = vdwg.mxu0
  %7358 = vmatprep.subr.bf16.mxu0 %v6473
  %7359 = vmatpush1.bf16.msra.mxu0 %v6472
  %7360 = vmatprep.subr.bf16.mxu0 %v6478
  %7361 = vmatpush1.bf16.msra.mxu0 %v6477
  %7362 = vmatprep.subr.bf16.mxu0 %v6483
  %7363 = vmatpush1.bf16.msra.mxu0 %v6482
  %7364 = vmatprep.subr.bf16.mxu0 %v6488
  %7365 = vmatpush1.bf16.msra.mxu0 %v6487
  %7366 = vmatprep.subr.bf16.mxu0 %v6493
  %7367 = vmatpush1.bf16.msra.mxu0 %v6492
  %7368 = vmatprep.subr.bf16.mxu0 %v6498
  %7369 = vmatpush1.bf16.msra.mxu0 %v6497
  %7370 = vmatprep.subr.bf16.mxu0 %v6503
  %7371 = vmatpush1.bf16.msra.mxu0 %v6502
  %7372 = vmatprep.subr.bf16.mxu0 %v6508
  %7373 = vmatpush1.bf16.msra.mxu0 %v6507
  %7374 = vmatprep.subr.bf16.mxu0 %v6513
  %7375 = vmatpush1.bf16.msra.mxu0 %v6512
  %7376 = vmatprep.subr.bf16.mxu0 %v6518
  %7377 = vmatpush1.bf16.msra.mxu0 %v6517
  %7378 = vmatprep.subr.bf16.mxu0 %v6523
  %7379 = vmatpush1.bf16.msra.mxu0 %v6522
  %7380 = vmatprep.subr.bf16.mxu0 %v6528
  %7381 = vmatpush1.bf16.msra.mxu0 %v6527
  %7382 = vmatprep.subr.bf16.mxu0 %v6533
  %7383 = vmatpush1.bf16.msra.mxu0 %v6532
  %7384 = vmatprep.subr.bf16.mxu0 %v6538
  %7385 = vmatpush1.bf16.msra.mxu0 %v6537
  %7386 = vmatprep.subr.bf16.mxu0 %v6543
  %7387 = vmatpush1.bf16.msra.mxu0 %v6542
  %7388 = vmatprep.subr.bf16.mxu0 %v6548
  %7389 = vmatpush1.bf16.msra.mxu0 %v6547
  %7390 = vmatprep.mubr.bf16.mxu0 %v4440
  %7391 = vmatmul.mubr.bf16.gmra.mrb[0].mxu0 %v4439
  %v7392 = vpop.f32.mrb[0].mxu0
  %v7393 = vadd.f32 %v7352, %v7392
  %v7394 = vpop.f32.mrb[0].mxu0
  %v7395 = vadd.f32 %v7354, %v7394
  %v7396 = vpop.f32.mrb[0].mxu0
  %v7397 = vpop.f32.mrb[0].mxu0
  %7398 = vdwg.mxu0
  %7399 = vmatprep.subr.bf16.mxu0 %v6553
  %7400 = vmatpush1.bf16.msra.mxu0 %v6552
  %7401 = vmatprep.subr.bf16.mxu0 %v6558
  %7402 = vmatpush1.bf16.msra.mxu0 %v6557
  %7403 = vmatprep.subr.bf16.mxu0 %v6563
  %7404 = vmatpush1.bf16.msra.mxu0 %v6562
  %7405 = vmatprep.subr.bf16.mxu0 %v6568
  %7406 = vmatpush1.bf16.msra.mxu0 %v6567
  %7407 = vmatprep.subr.bf16.mxu0 %v6573
  %7408 = vmatpush1.bf16.msra.mxu0 %v6572
  %7409 = vmatprep.subr.bf16.mxu0 %v6578
  %7410 = vmatpush1.bf16.msra.mxu0 %v6577
  %7411 = vmatprep.subr.bf16.mxu0 %v6583
  %7412 = vmatpush1.bf16.msra.mxu0 %v6582
  %7413 = vmatprep.subr.bf16.mxu0 %v6588
  %7414 = vmatpush1.bf16.msra.mxu0 %v6587
  %7415 = vmatprep.subr.bf16.mxu0 %v6593
  %7416 = vmatpush1.bf16.msra.mxu0 %v6592
  %7417 = vmatprep.subr.bf16.mxu0 %v6598
  %7418 = vmatpush1.bf16.msra.mxu0 %v6597
  %7419 = vmatprep.subr.bf16.mxu0 %v6603
  %7420 = vmatpush1.bf16.msra.mxu0 %v6602
  %7421 = vmatprep.subr.bf16.mxu0 %v6608
  %7422 = vmatpush1.bf16.msra.mxu0 %v6607
  %7423 = vmatprep.subr.bf16.mxu0 %v6613
  %7424 = vmatpush1.bf16.msra.mxu0 %v6612
  %7425 = vmatprep.subr.bf16.mxu0 %v6618
  %7426 = vmatpush1.bf16.msra.mxu0 %v6617
  %7427 = vmatprep.subr.bf16.mxu0 %v6623
  %7428 = vmatpush1.bf16.msra.mxu0 %v6622
  %7429 = vmatprep.subr.bf16.mxu0 %v6628
  %7430 = vmatpush1.bf16.msra.mxu0 %v6627
  %7431 = vmatprep.mubr.bf16.mxu0 %v4442
  %7432 = vmatmul.mubr.bf16.gmra.mrb[0].mxu0 %v4441
  %v7433 = vpop.f32.mrb[0].mxu0
  %v7434 = vadd.f32 %v7393, %v7433
  %v7435 = vpop.f32.mrb[0].mxu0
  %v7436 = vadd.f32 %v7395, %v7435
  %v7437 = vpop.f32.mrb[0].mxu0
  %v7438 = vpop.f32.mrb[0].mxu0
  %7439 = vdwg.mxu0
  %7440 = vmatprep.subr.bf16.mxu0 0
  %7441 = vmatpush1.bf16.msra.mxu0 %v6234
  %7442 = vmatprep.subr.bf16.mxu0 0
  %7443 = vmatpush1.bf16.msra.mxu0 %v6239
  %7444 = vmatprep.subr.bf16.mxu0 0
  %7445 = vmatpush1.bf16.msra.mxu0 %v6244
  %7446 = vmatprep.subr.bf16.mxu0 0
  %7447 = vmatpush1.bf16.msra.mxu0 %v6249
  %7448 = vmatprep.subr.bf16.mxu0 0
  %7449 = vmatpush1.bf16.msra.mxu0 %v6254
  %7450 = vmatprep.subr.bf16.mxu0 0
  %7451 = vmatpush1.bf16.msra.mxu0 %v6259
  %7452 = vmatprep.subr.bf16.mxu0 0
  %7453 = vmatpush1.bf16.msra.mxu0 %v6264
  %7454 = vmatprep.subr.bf16.mxu0 0
  %7455 = vmatpush1.bf16.msra.mxu0 %v6269
  %7456 = vmatprep.subr.bf16.mxu0 0
  %7457 = vmatpush1.bf16.msra.mxu0 %v6274
  %7458 = vmatprep.subr.bf16.mxu0 0
  %7459 = vmatpush1.bf16.msra.mxu0 %v6279
  %7460 = vmatprep.subr.bf16.mxu0 0
  %7461 = vmatpush1.bf16.msra.mxu0 %v6284
  %7462 = vmatprep.subr.bf16.mxu0 0
  %7463 = vmatpush1.bf16.msra.mxu0 %v6289
  %7464 = vmatprep.subr.bf16.mxu0 0
  %7465 = vmatpush1.bf16.msra.mxu0 %v6294
  %7466 = vmatprep.subr.bf16.mxu0 0
  %7467 = vmatpush1.bf16.msra.mxu0 %v6299
  %7468 = vmatprep.subr.bf16.mxu0 0
  %7469 = vmatpush1.bf16.msra.mxu0 %v6304
  %7470 = vmatprep.subr.bf16.mxu0 0
  %7471 = vmatpush1.bf16.msra.mxu0 %v6309
  %7472 = vmatprep.mubr.bf16.mxu0 %v4434
  %7473 = vmatmul.mubr.bf16.gmra.mrb[0].mxu0 %v4433
  %v7474 = vpop.f32.mrb[0].mxu0
  %v7475 = vadd.f32 %v4944, %v7474
  %v7476 = vpop.f32.mrb[0].mxu0
  %v7477 = vpop.f32.mrb[0].mxu0
  %v7478 = vpop.f32.mrb[0].mxu0
  %7479 = vdwg.mxu0
  %7480 = vmatprep.subr.bf16.mxu0 0
  %7481 = vmatpush1.bf16.msra.mxu0 %v6314
  %7482 = vmatprep.subr.bf16.mxu0 0
  %7483 = vmatpush1.bf16.msra.mxu0 %v6319
  %7484 = vmatprep.subr.bf16.mxu0 0
  %7485 = vmatpush1.bf16.msra.mxu0 %v6324
  %7486 = vmatprep.subr.bf16.mxu0 0
  %7487 = vmatpush1.bf16.msra.mxu0 %v6329
  %7488 = vmatprep.subr.bf16.mxu0 0
  %7489 = vmatpush1.bf16.msra.mxu0 %v6334
  %7490 = vmatprep.subr.bf16.mxu0 0
  %7491 = vmatpush1.bf16.msra.mxu0 %v6339
  %7492 = vmatprep.subr.bf16.mxu0 0
  %7493 = vmatpush1.bf16.msra.mxu0 %v6344
  %7494 = vmatprep.subr.bf16.mxu0 0
  %7495 = vmatpush1.bf16.msra.mxu0 %v6349
  %7496 = vmatprep.subr.bf16.mxu0 0
  %7497 = vmatpush1.bf16.msra.mxu0 %v6354
  %7498 = vmatprep.subr.bf16.mxu0 0
  %7499 = vmatpush1.bf16.msra.mxu0 %v6359
  %7500 = vmatprep.subr.bf16.mxu0 0
  %7501 = vmatpush1.bf16.msra.mxu0 %v6364
  %7502 = vmatprep.subr.bf16.mxu0 0
  %7503 = vmatpush1.bf16.msra.mxu0 %v6369
  %7504 = vmatprep.subr.bf16.mxu0 0
  %7505 = vmatpush1.bf16.msra.mxu0 %v6374
  %7506 = vmatprep.subr.bf16.mxu0 0
  %7507 = vmatpush1.bf16.msra.mxu0 %v6379
  %7508 = vmatprep.subr.bf16.mxu0 0
  %7509 = vmatpush1.bf16.msra.mxu0 %v6384
  %7510 = vmatprep.subr.bf16.mxu0 0
  %7511 = vmatpush1.bf16.msra.mxu0 %v6389
  %7512 = vmatprep.mubr.bf16.mxu0 %v4436
  %7513 = vmatmul.mubr.bf16.gmra.mrb[0].mxu0 %v4435
  %v7514 = vpop.f32.mrb[0].mxu0
  %v7515 = vadd.f32 %v7475, %v7514
  %v7516 = vpop.f32.mrb[0].mxu0
  %v7517 = vpop.f32.mrb[0].mxu0
  %v7518 = vpop.f32.mrb[0].mxu0
  %7519 = vdwg.mxu0
  %7520 = vmatprep.subr.bf16.mxu0 0
  %7521 = vmatpush1.bf16.msra.mxu0 %v6394
  %7522 = vmatprep.subr.bf16.mxu0 0
  %7523 = vmatpush1.bf16.msra.mxu0 %v6399
  %7524 = vmatprep.subr.bf16.mxu0 0
  %7525 = vmatpush1.bf16.msra.mxu0 %v6404
  %7526 = vmatprep.subr.bf16.mxu0 0
  %7527 = vmatpush1.bf16.msra.mxu0 %v6409
  %7528 = vmatprep.subr.bf16.mxu0 0
  %7529 = vmatpush1.bf16.msra.mxu0 %v6414
  %7530 = vmatprep.subr.bf16.mxu0 0
  %7531 = vmatpush1.bf16.msra.mxu0 %v6419
  %7532 = vmatprep.subr.bf16.mxu0 0
  %7533 = vmatpush1.bf16.msra.mxu0 %v6424
  %7534 = vmatprep.subr.bf16.mxu0 0
  %7535 = vmatpush1.bf16.msra.mxu0 %v6429
  %7536 = vmatprep.subr.bf16.mxu0 0
  %7537 = vmatpush1.bf16.msra.mxu0 %v6434
  %7538 = vmatprep.subr.bf16.mxu0 0
  %7539 = vmatpush1.bf16.msra.mxu0 %v6439
  %7540 = vmatprep.subr.bf16.mxu0 0
  %7541 = vmatpush1.bf16.msra.mxu0 %v6444
  %7542 = vmatprep.subr.bf16.mxu0 0
  %7543 = vmatpush1.bf16.msra.mxu0 %v6449
  %7544 = vmatprep.subr.bf16.mxu0 0
  %7545 = vmatpush1.bf16.msra.mxu0 %v6454
  %7546 = vmatprep.subr.bf16.mxu0 0
  %7547 = vmatpush1.bf16.msra.mxu0 %v6459
  %7548 = vmatprep.subr.bf16.mxu0 0
  %7549 = vmatpush1.bf16.msra.mxu0 %v6464
  %7550 = vmatprep.subr.bf16.mxu0 0
  %7551 = vmatpush1.bf16.msra.mxu0 %v6469
  %7552 = vmatprep.mubr.bf16.mxu0 %v4438
  %7553 = vmatmul.mubr.bf16.gmra.mrb[0].mxu0 %v4437
  %v7554 = vpop.f32.mrb[0].mxu0
  %v7555 = vadd.f32 %v7515, %v7554
  %v7556 = vpop.f32.mrb[0].mxu0
  %v7557 = vpop.f32.mrb[0].mxu0
  %v7558 = vpop.f32.mrb[0].mxu0
  %7559 = vdwg.mxu0
  %7560 = vmatprep.subr.bf16.mxu0 0
  %7561 = vmatpush1.bf16.msra.mxu0 %v6474
  %7562 = vmatprep.subr.bf16.mxu0 0
  %7563 = vmatpush1.bf16.msra.mxu0 %v6479
  %7564 = vmatprep.subr.bf16.mxu0 0
  %7565 = vmatpush1.bf16.msra.mxu0 %v6484
  %7566 = vmatprep.subr.bf16.mxu0 0
  %7567 = vmatpush1.bf16.msra.mxu0 %v6489
  %7568 = vmatprep.subr.bf16.mxu0 0
  %7569 = vmatpush1.bf16.msra.mxu0 %v6494
  %7570 = vmatprep.subr.bf16.mxu0 0
  %7571 = vmatpush1.bf16.msra.mxu0 %v6499
  %7572 = vmatprep.subr.bf16.mxu0 0
  %7573 = vmatpush1.bf16.msra.mxu0 %v6504
  %7574 = vmatprep.subr.bf16.mxu0 0
  %7575 = vmatpush1.bf16.msra.mxu0 %v6509
  %7576 = vmatprep.subr.bf16.mxu0 0
  %7577 = vmatpush1.bf16.msra.mxu0 %v6514
  %7578 = vmatprep.subr.bf16.mxu0 0
  %7579 = vmatpush1.bf16.msra.mxu0 %v6519
  %7580 = vmatprep.subr.bf16.mxu0 0
  %7581 = vmatpush1.bf16.msra.mxu0 %v6524
  %7582 = vmatprep.subr.bf16.mxu0 0
  %7583 = vmatpush1.bf16.msra.mxu0 %v6529
  %7584 = vmatprep.subr.bf16.mxu0 0
  %7585 = vmatpush1.bf16.msra.mxu0 %v6534
  %7586 = vmatprep.subr.bf16.mxu0 0
  %7587 = vmatpush1.bf16.msra.mxu0 %v6539
  %7588 = vmatprep.subr.bf16.mxu0 0
  %7589 = vmatpush1.bf16.msra.mxu0 %v6544
  %7590 = vmatprep.subr.bf16.mxu0 0
  %7591 = vmatpush1.bf16.msra.mxu0 %v6549
  %7592 = vmatprep.mubr.bf16.mxu0 %v4440
  %7593 = vmatmul.mubr.bf16.gmra.mrb[0].mxu0 %v4439
  %v7594 = vpop.f32.mrb[0].mxu0
  %v7595 = vadd.f32 %v7555, %v7594
  %v7596 = vpop.f32.mrb[0].mxu0
  %v7597 = vpop.f32.mrb[0].mxu0
  %v7598 = vpop.f32.mrb[0].mxu0
  %7599 = vdwg.mxu0
  %7600 = vmatprep.subr.bf16.mxu0 0
  %7601 = vmatpush1.bf16.msra.mxu0 %v6554
  %7602 = vmatprep.subr.bf16.mxu0 0
  %7603 = vmatpush1.bf16.msra.mxu0 %v6559
  %7604 = vmatprep.subr.bf16.mxu0 0
  %7605 = vmatpush1.bf16.msra.mxu0 %v6564
  %7606 = vmatprep.subr.bf16.mxu0 0
  %7607 = vmatpush1.bf16.msra.mxu0 %v6569
  %7608 = vmatprep.subr.bf16.mxu0 0
  %7609 = vmatpush1.bf16.msra.mxu0 %v6574
  %7610 = vmatprep.subr.bf16.mxu0 0
  %7611 = vmatpush1.bf16.msra.mxu0 %v6579
  %7612 = vmatprep.subr.bf16.mxu0 0
  %7613 = vmatpush1.bf16.msra.mxu0 %v6584
  %7614 = vmatprep.subr.bf16.mxu0 0
  %7615 = vmatpush1.bf16.msra.mxu0 %v6589
  %7616 = vmatprep.subr.bf16.mxu0 0
  %7617 = vmatpush1.bf16.msra.mxu0 %v6594
  %7618 = vmatprep.subr.bf16.mxu0 0
  %7619 = vmatpush1.bf16.msra.mxu0 %v6599
  %7620 = vmatprep.subr.bf16.mxu0 0
  %7621 = vmatpush1.bf16.msra.mxu0 %v6604
  %7622 = vmatprep.subr.bf16.mxu0 0
  %7623 = vmatpush1.bf16.msra.mxu0 %v6609
  %7624 = vmatprep.subr.bf16.mxu0 0
  %7625 = vmatpush1.bf16.msra.mxu0 %v6614
  %7626 = vmatprep.subr.bf16.mxu0 0
  %7627 = vmatpush1.bf16.msra.mxu0 %v6619
  %7628 = vmatprep.subr.bf16.mxu0 0
  %7629 = vmatpush1.bf16.msra.mxu0 %v6624
  %7630 = vmatprep.subr.bf16.mxu0 0
  %7631 = vmatpush1.bf16.msra.mxu0 %v6629
  %7632 = vmatprep.mubr.bf16.mxu0 %v4442
  %7633 = vmatmul.mubr.bf16.gmra.mrb[0].mxu0 %v4441
  %v7634 = vpop.f32.mrb[0].mxu0
  %v7635 = vadd.f32 %v7595, %v7634
  %v7636 = vpop.f32.mrb[0].mxu0
  %v7637 = vpop.f32.mrb[0].mxu0
  %v7638 = vpop.f32.mrb[0].mxu0
  %7639 = vdwg.mxu0
  %v7640 = vmax.f32 %v7229, 0.0
  %v7641 = vmax.f32 %v7231, 0.0
  %v7642 = vmax.f32 %v7434, 0.0
  %v7643 = vmax.f32 %v7436, 0.0
  %v7644 = vmax.f32 %v7635, 0.0
  %v7645 = vpack.c.bf16 %v7640, %v7640
  %v7646 = vpack.c.bf16 %v7641, %v7641
  %v7647 = vpack.c.bf16 %v7642, %v7642
  %v7648 = vpack.c.bf16 %v7643, %v7643
  %v7649 = vpack.c.bf16 %v7644, %v7644
  %v7650 = vld [vmem:[%s9] sm:$0xf]
  %v7651 = vld [vmem:[%s9 + $0x4] sm:$0xf]
  %v7652 = vld [vmem:[%s9 + $0x8] sm:$0xf]
  %v7653 = vld [vmem:[%s9 + $0xc] sm:$0xf]
  %v7654 = vld [vmem:[%s9 + $0x10] sm:$0xf]
  %v7655 = vld [vmem:[%s9 + $0x14] sm:$0xf]
  %v7656 = vld [vmem:[%s9 + $0x18] sm:$0xf]
  %v7657 = vld [vmem:[%s9 + $0x1c] sm:$0xf]
  %v7658 = vld [vmem:[%s9 + $0x20] sm:$0xf]
  %v7659 = vld [vmem:[%s9 + $0x24] sm:$0xf]
  %v7660 = vld [vmem:[%s9 + $0x28] sm:$0xf]
  %v7661 = vld [vmem:[%s9 + $0x2c] sm:$0xf]
  %v7662 = vld [vmem:[%s9 + $0x30] sm:$0xf]
  %v7663 = vld [vmem:[%s9 + $0x34] sm:$0xf]
  %v7664 = vld [vmem:[%s9 + $0x38] sm:$0xf]
  %v7665 = vld [vmem:[%s9 + $0x3c] sm:$0xf]
  %v7666 = vld [vmem:[%s9 + $0x40] sm:$0xf]
  %v7667 = vld [vmem:[%s9 + $0x44] sm:$0xf]
  %v7668 = vld [vmem:[%s9 + $0x48] sm:$0xf]
  %v7669 = vld [vmem:[%s9 + $0x4c] sm:$0xf]
  %v7670 = vld [vmem:[%s9 + $0x50] sm:$0xf]
  %v7671 = vld [vmem:[%s9 + $0x54] sm:$0xf]
  %v7672 = vld [vmem:[%s9 + $0x58] sm:$0xf]
  %v7673 = vld [vmem:[%s9 + $0x5c] sm:$0xf]
  %v7674 = vld [vmem:[%s9 + $0x60] sm:$0xf]
  %v7675 = vld [vmem:[%s9 + $0x64] sm:$0xf]
  %v7676 = vld [vmem:[%s9 + $0x68] sm:$0xf]
  %v7677 = vld [vmem:[%s9 + $0x6c] sm:$0xf]
  %v7678 = vld [vmem:[%s9 + $0x70] sm:$0xf]
  %v7679 = vld [vmem:[%s9 + $0x74] sm:$0xf]
  %v7680 = vld [vmem:[%s9 + $0x78] sm:$0xf]
  %v7681 = vld [vmem:[%s9 + $0x7c] sm:$0xf]
  %v7682 = vld [vmem:[%s9 + $0x80] sm:$0xf]
  %v7683 = vld [vmem:[%s9 + $0x84] sm:$0xf]
  %v7684 = vld [vmem:[%s9 + $0x88] sm:$0xf]
  %v7685 = vld [vmem:[%s9 + $0x8c] sm:$0xf]
  %v7686 = vld [vmem:[%s9 + $0x90] sm:$0xf]
  %v7687 = vld [vmem:[%s9 + $0x94] sm:$0xf]
  %v7688 = vld [vmem:[%s9 + $0x98] sm:$0xf]
  %v7689 = vld [vmem:[%s9 + $0x9c] sm:$0xf]
  %v7690 = vld [vmem:[%s9 + $0xa0] sm:$0xf]
  %v7691 = vld [vmem:[%s9 + $0xa4] sm:$0xf]
  %v7692 = vld [vmem:[%s9 + $0xa8] sm:$0xf]
  %v7693 = vld [vmem:[%s9 + $0xac] sm:$0xf]
  %v7694 = vld [vmem:[%s9 + $0xb0] sm:$0xf]
  %v7695 = vld [vmem:[%s9 + $0xb4] sm:$0xf]
  %v7696 = vld [vmem:[%s9 + $0xb8] sm:$0xf]
  %v7697 = vld [vmem:[%s9 + $0xbc] sm:$0xf]
  %v7698 = vld [vmem:[%s9 + $0xc0] sm:$0xf]
  %v7699 = vld [vmem:[%s9 + $0xc4] sm:$0xf]
  %v7700 = vld [vmem:[%s9 + $0xc8] sm:$0xf]
  %v7701 = vld [vmem:[%s9 + $0xcc] sm:$0xf]
  %v7702 = vld [vmem:[%s9 + $0xd0] sm:$0xf]
  %v7703 = vld [vmem:[%s9 + $0xd4] sm:$0xf]
  %v7704 = vld [vmem:[%s9 + $0xd8] sm:$0xf]
  %v7705 = vld [vmem:[%s9 + $0xdc] sm:$0xf]
  %v7706 = vld [vmem:[%s9 + $0xe0] sm:$0xf]
  %v7707 = vld [vmem:[%s9 + $0xe4] sm:$0xf]
  %v7708 = vld [vmem:[%s9 + $0xe8] sm:$0xf]
  %v7709 = vld [vmem:[%s9 + $0xec] sm:$0xf]
  %v7710 = vld [vmem:[%s9 + $0xf0] sm:$0xf]
  %v7711 = vld [vmem:[%s9 + $0xf4] sm:$0xf]
  %v7712 = vld [vmem:[%s9 + $0xf8] sm:$0xf]
  %v7713 = vld [vmem:[%s9 + $0xfc] sm:$0xf]
  %v7714 = vld [vmem:[%s9 + $0x100] sm:$0xf]
  %v7715 = vld [vmem:[%s9 + $0x104] sm:$0xf]
  %v7716 = vld [vmem:[%s9 + $0x108] sm:$0xf]
  %v7717 = vld [vmem:[%s9 + $0x10c] sm:$0xf]
  %v7718 = vld [vmem:[%s9 + $0x110] sm:$0xf]
  %v7719 = vld [vmem:[%s9 + $0x114] sm:$0xf]
  %v7720 = vld [vmem:[%s9 + $0x118] sm:$0xf]
  %v7721 = vld [vmem:[%s9 + $0x11c] sm:$0xf]
  %v7722 = vld [vmem:[%s9 + $0x120] sm:$0xf]
  %v7723 = vld [vmem:[%s9 + $0x124] sm:$0xf]
  %v7724 = vld [vmem:[%s9 + $0x128] sm:$0xf]
  %v7725 = vld [vmem:[%s9 + $0x12c] sm:$0xf]
  %v7726 = vld [vmem:[%s9 + $0x130] sm:$0xf]
  %v7727 = vld [vmem:[%s9 + $0x134] sm:$0xf]
  %v7728 = vld [vmem:[%s9 + $0x138] sm:$0xf]
  %v7729 = vld [vmem:[%s9 + $0x13c] sm:$0xf]
  %v7730 = vld [vmem:[%s10] sm:$0x1]
  %v7732 = vlaneseq
  %v7733 = vshrl.u32 %v7732, 7
  %v7734 = vsub.s32 0, %v7733
  %v7735 = vrot.slane %v7730, %v7734
  %v7817 = vunpack.c.l.b16 %v7650
  %v7818 = vunpack.c.l.b16 %v7651
  %v7819 = vunpack.c.l.b16 %v7652
  %v7820 = vunpack.c.l.b16 %v7653
  %v7821 = vunpack.c.l.b16 %v7654
  %v7822 = vunpack.c.l.b16 %v7655
  %v7823 = vunpack.c.l.b16 %v7656
  %v7824 = vunpack.c.l.b16 %v7657
  %v7825 = vunpack.c.l.b16 %v7658
  %v7826 = vunpack.c.l.b16 %v7659
  %v7827 = vunpack.c.l.b16 %v7660
  %v7828 = vunpack.c.l.b16 %v7661
  %v7829 = vunpack.c.l.b16 %v7662
  %v7830 = vunpack.c.l.b16 %v7663
  %v7831 = vunpack.c.l.b16 %v7664
  %v7832 = vunpack.c.l.b16 %v7665
  %v7833 = vunpack.c.l.b16 %v7666
  %v7834 = vunpack.c.l.b16 %v7667
  %v7835 = vunpack.c.l.b16 %v7668
  %v7836 = vunpack.c.l.b16 %v7669
  %v7837 = vunpack.c.l.b16 %v7670
  %v7838 = vunpack.c.l.b16 %v7671
  %v7839 = vunpack.c.l.b16 %v7672
  %v7840 = vunpack.c.l.b16 %v7673
  %v7841 = vunpack.c.l.b16 %v7674
  %v7842 = vunpack.c.l.b16 %v7675
  %v7843 = vunpack.c.l.b16 %v7676
  %v7844 = vunpack.c.l.b16 %v7677
  %v7845 = vunpack.c.l.b16 %v7678
  %v7846 = vunpack.c.l.b16 %v7679
  %v7847 = vunpack.c.l.b16 %v7680
  %v7848 = vunpack.c.l.b16 %v7681
  %v7849 = vunpack.c.l.b16 %v7682
  %v7850 = vunpack.c.l.b16 %v7683
  %v7851 = vunpack.c.l.b16 %v7684
  %v7852 = vunpack.c.l.b16 %v7685
  %v7853 = vunpack.c.l.b16 %v7686
  %v7854 = vunpack.c.l.b16 %v7687
  %v7855 = vunpack.c.l.b16 %v7688
  %v7856 = vunpack.c.l.b16 %v7689
  %v7857 = vunpack.c.l.b16 %v7690
  %v7858 = vunpack.c.l.b16 %v7691
  %v7859 = vunpack.c.l.b16 %v7692
  %v7860 = vunpack.c.l.b16 %v7693
  %v7861 = vunpack.c.l.b16 %v7694
  %v7862 = vunpack.c.l.b16 %v7695
  %v7863 = vunpack.c.l.b16 %v7696
  %v7864 = vunpack.c.l.b16 %v7697
  %v7865 = vunpack.c.l.b16 %v7698
  %v7866 = vunpack.c.l.b16 %v7699
  %v7867 = vunpack.c.l.b16 %v7700
  %v7868 = vunpack.c.l.b16 %v7701
  %v7869 = vunpack.c.l.b16 %v7702
  %v7870 = vunpack.c.l.b16 %v7703
  %v7871 = vunpack.c.l.b16 %v7704
  %v7872 = vunpack.c.l.b16 %v7705
  %v7873 = vunpack.c.l.b16 %v7706
  %v7874 = vunpack.c.l.b16 %v7707
  %v7875 = vunpack.c.l.b16 %v7708
  %v7876 = vunpack.c.l.b16 %v7709
  %v7877 = vunpack.c.l.b16 %v7710
  %v7878 = vunpack.c.l.b16 %v7711
  %v7879 = vunpack.c.l.b16 %v7712
  %v7880 = vunpack.c.l.b16 %v7713
  %v7881 = vunpack.c.l.b16 %v7714
  %v7882 = vunpack.c.l.b16 %v7715
  %v7883 = vunpack.c.l.b16 %v7716
  %v7884 = vunpack.c.l.b16 %v7717
  %v7885 = vunpack.c.l.b16 %v7718
  %v7886 = vunpack.c.l.b16 %v7719
  %v7887 = vunpack.c.l.b16 %v7720
  %v7888 = vunpack.c.l.b16 %v7721
  %v7889 = vunpack.c.l.b16 %v7722
  %v7890 = vunpack.c.l.b16 %v7723
  %v7891 = vunpack.c.l.b16 %v7724
  %v7892 = vunpack.c.l.b16 %v7725
  %v7893 = vunpack.c.l.b16 %v7726
  %v7894 = vunpack.c.l.b16 %v7727
  %v7895 = vunpack.c.l.b16 %v7728
  %v7896 = vunpack.c.l.b16 %v7729
  %v7897 = vpack.c.b16 %v7818, %v7817
  %v7898 = vpack.c.b16 %v7820, %v7819
  %v7899 = vpack.c.b16 %v7822, %v7821
  %v7900 = vpack.c.b16 %v7824, %v7823
  %v7901 = vpack.c.b16 %v7826, %v7825
  %v7902 = vpack.c.b16 %v7828, %v7827
  %v7903 = vpack.c.b16 %v7830, %v7829
  %v7904 = vpack.c.b16 %v7832, %v7831
  %v7905 = vpack.c.b16 %v7834, %v7833
  %v7906 = vpack.c.b16 %v7836, %v7835
  %v7907 = vpack.c.b16 %v7838, %v7837
  %v7908 = vpack.c.b16 %v7840, %v7839
  %v7909 = vpack.c.b16 %v7842, %v7841
  %v7910 = vpack.c.b16 %v7844, %v7843
  %v7911 = vpack.c.b16 %v7846, %v7845
  %v7912 = vpack.c.b16 %v7848, %v7847
  %v7913 = vpack.c.b16 %v7850, %v7849
  %v7914 = vpack.c.b16 %v7852, %v7851
  %v7915 = vpack.c.b16 %v7854, %v7853
  %v7916 = vpack.c.b16 %v7856, %v7855
  %v7917 = vpack.c.b16 %v7858, %v7857
  %v7918 = vpack.c.b16 %v7860, %v7859
  %v7919 = vpack.c.b16 %v7862, %v7861
  %v7920 = vpack.c.b16 %v7864, %v7863
  %v7921 = vpack.c.b16 %v7866, %v7865
  %v7922 = vpack.c.b16 %v7868, %v7867
  %v7923 = vpack.c.b16 %v7870, %v7869
  %v7924 = vpack.c.b16 %v7872, %v7871
  %v7925 = vpack.c.b16 %v7874, %v7873
  %v7926 = vpack.c.b16 %v7876, %v7875
  %v7927 = vpack.c.b16 %v7878, %v7877
  %v7928 = vpack.c.b16 %v7880, %v7879
  %v7929 = vpack.c.b16 %v7882, %v7881
  %v7930 = vpack.c.b16 %v7884, %v7883
  %v7931 = vpack.c.b16 %v7886, %v7885
  %v7932 = vpack.c.b16 %v7888, %v7887
  %v7933 = vpack.c.b16 %v7890, %v7889
  %v7934 = vpack.c.b16 %v7892, %v7891
  %v7935 = vpack.c.b16 %v7894, %v7893
  %v7936 = vpack.c.b16 %v7896, %v7895
  %7977 = vmatprep.subr.bf16.mxu0 0
  %7978 = vmatpush1.bf16.msra.mxu0 %v7897
  %7979 = vmatprep.subr.bf16.mxu0 0
  %7980 = vmatpush1.bf16.msra.mxu0 %v7898
  %7981 = vmatprep.subr.bf16.mxu0 0
  %7982 = vmatpush1.bf16.msra.mxu0 %v7899
  %7983 = vmatprep.subr.bf16.mxu0 0
  %7984 = vmatpush1.bf16.msra.mxu0 %v7900
  %7985 = vmatprep.subr.bf16.mxu0 0
  %7986 = vmatpush1.bf16.msra.mxu0 %v7901
  %7987 = vmatprep.subr.bf16.mxu0 0
  %7988 = vmatpush1.bf16.msra.mxu0 %v7902
  %7989 = vmatprep.subr.bf16.mxu0 0
  %7990 = vmatpush1.bf16.msra.mxu0 %v7903
  %7991 = vmatprep.subr.bf16.mxu0 0
  %7992 = vmatpush1.bf16.msra.mxu0 %v7904
  %7993 = vmatprep.subr.bf16.mxu0 0
  %7994 = vmatpush1.bf16.msra.mxu0 %v7905
  %7995 = vmatprep.subr.bf16.mxu0 0
  %7996 = vmatpush1.bf16.msra.mxu0 %v7906
  %7997 = vmatprep.subr.bf16.mxu0 0
  %7998 = vmatpush1.bf16.msra.mxu0 %v7907
  %7999 = vmatprep.subr.bf16.mxu0 0
  %8000 = vmatpush1.bf16.msra.mxu0 %v7908
  %8001 = vmatprep.subr.bf16.mxu0 0
  %8002 = vmatpush1.bf16.msra.mxu0 %v7909
  %8003 = vmatprep.subr.bf16.mxu0 0
  %8004 = vmatpush1.bf16.msra.mxu0 %v7910
  %8005 = vmatprep.subr.bf16.mxu0 0
  %8006 = vmatpush1.bf16.msra.mxu0 %v7911
  %8007 = vmatprep.subr.bf16.mxu0 0
  %8008 = vmatpush1.bf16.msra.mxu0 %v7912
  %8009 = vmatprep.mubr.bf16.mxu0 %v7646
  %8010 = vmatmul.mubr.bf16.gmra.mrb[0].mxu0 %v7645
  %v8011 = vpop.f32.mrb[0].mxu0
  %v8012 = vadd.f32 %v7735, %v8011
  %v8013 = vpop.f32.mrb[0].mxu0
  %v8014 = vpop.f32.mrb[0].mxu0
  %v8015 = vpop.f32.mrb[0].mxu0
  %8016 = vdwg.mxu0
  %8017 = vmatprep.subr.bf16.mxu0 0
  %8018 = vmatpush1.bf16.msra.mxu0 %v7913
  %8019 = vmatprep.subr.bf16.mxu0 0
  %8020 = vmatpush1.bf16.msra.mxu0 %v7914
  %8021 = vmatprep.subr.bf16.mxu0 0
  %8022 = vmatpush1.bf16.msra.mxu0 %v7915
  %8023 = vmatprep.subr.bf16.mxu0 0
  %8024 = vmatpush1.bf16.msra.mxu0 %v7916
  %8025 = vmatprep.subr.bf16.mxu0 0
  %8026 = vmatpush1.bf16.msra.mxu0 %v7917
  %8027 = vmatprep.subr.bf16.mxu0 0
  %8028 = vmatpush1.bf16.msra.mxu0 %v7918
  %8029 = vmatprep.subr.bf16.mxu0 0
  %8030 = vmatpush1.bf16.msra.mxu0 %v7919
  %8031 = vmatprep.subr.bf16.mxu0 0
  %8032 = vmatpush1.bf16.msra.mxu0 %v7920
  %8033 = vmatprep.subr.bf16.mxu0 0
  %8034 = vmatpush1.bf16.msra.mxu0 %v7921
  %8035 = vmatprep.subr.bf16.mxu0 0
  %8036 = vmatpush1.bf16.msra.mxu0 %v7922
  %8037 = vmatprep.subr.bf16.mxu0 0
  %8038 = vmatpush1.bf16.msra.mxu0 %v7923
  %8039 = vmatprep.subr.bf16.mxu0 0
  %8040 = vmatpush1.bf16.msra.mxu0 %v7924
  %8041 = vmatprep.subr.bf16.mxu0 0
  %8042 = vmatpush1.bf16.msra.mxu0 %v7925
  %8043 = vmatprep.subr.bf16.mxu0 0
  %8044 = vmatpush1.bf16.msra.mxu0 %v7926
  %8045 = vmatprep.subr.bf16.mxu0 0
  %8046 = vmatpush1.bf16.msra.mxu0 %v7927
  %8047 = vmatprep.subr.bf16.mxu0 0
  %8048 = vmatpush1.bf16.msra.mxu0 %v7928
  %8049 = vmatprep.mubr.bf16.mxu0 %v7648
  %8050 = vmatmul.mubr.bf16.gmra.mrb[0].mxu0 %v7647
  %v8051 = vpop.f32.mrb[0].mxu0
  %v8052 = vadd.f32 %v8012, %v8051
  %v8053 = vpop.f32.mrb[0].mxu0
  %v8054 = vpop.f32.mrb[0].mxu0
  %v8055 = vpop.f32.mrb[0].mxu0
  %8056 = vdwg.mxu0
  %8057 = vmatprep.subr.bf16.mxu0 0
  %8058 = vmatpush1.bf16.msra.mxu0 %v7929
  %8059 = vmatprep.subr.bf16.mxu0 0
  %8060 = vmatpush1.bf16.msra.mxu0 %v7930
  %8061 = vmatprep.subr.bf16.mxu0 0
  %8062 = vmatpush1.bf16.msra.mxu0 %v7931
  %8063 = vmatprep.subr.bf16.mxu0 0
  %8064 = vmatpush1.bf16.msra.mxu0 %v7932
  %8065 = vmatprep.subr.bf16.mxu0 0
  %8066 = vmatpush1.bf16.msra.mxu0 %v7933
  %8067 = vmatprep.subr.bf16.mxu0 0
  %8068 = vmatpush1.bf16.msra.mxu0 %v7934
  %8069 = vmatprep.subr.bf16.mxu0 0
  %8070 = vmatpush1.bf16.msra.mxu0 %v7935
  %8071 = vmatprep.subr.bf16.mxu0 0
  %8072 = vmatpush1.bf16.msra.mxu0 %v7936
  %8073 = vmatprep.subr.bf16.mxu0 0
  %8074 = vmatpush1.bf16.msra.mxu0 0
  %8075 = vmatprep.subr.bf16.mxu0 0
  %8076 = vmatpush1.bf16.msra.mxu0 0
  %8077 = vmatprep.subr.bf16.mxu0 0
  %8078 = vmatpush1.bf16.msra.mxu0 0
  %8079 = vmatprep.subr.bf16.mxu0 0
  %8080 = vmatpush1.bf16.msra.mxu0 0
  %8081 = vmatprep.subr.bf16.mxu0 0
  %8082 = vmatpush1.bf16.msra.mxu0 0
  %8083 = vmatprep.subr.bf16.mxu0 0
  %8084 = vmatpush1.bf16.msra.mxu0 0
  %8085 = vmatprep.subr.bf16.mxu0 0
  %8086 = vmatpush1.bf16.msra.mxu0 0
  %8087 = vmatprep.subr.bf16.mxu0 0
  %8088 = vmatpush1.bf16.msra.mxu0 0
  %8089 = vmatprep.mubr.bf16.mxu0 0
  %8090 = vmatmul.mubr.bf16.gmra.mrb[0].mxu0 %v7649
  %v8091 = vpop.f32.mrb[0].mxu0
  %v8092 = vadd.f32 %v8052, %v8091
  %v8093 = vpop.f32.mrb[0].mxu0
  %v8094 = vpop.f32.mrb[0].mxu0
  %v8095 = vpop.f32.mrb[0].mxu0
  %8096 = vdwg.mxu0
  %8097 = vst [vmem:[%s11] sm:$0xff] %v8092
  // Predicated region
  $region46: #{_lambda_.1} parent=0 // pred_check
    _
  $region47: #{_lambda_.1} parent=0 // pred_check_branch
    %8099 = sbr.rel (0) target = $region49
  $region48: #{_lambda_.1} parent=0 // pred_region
    _
  $region49: #{_lambda_.1} parent=0 // pred_fallthru
    _
  // Predicated region
  $region50: #{_lambda_.1} parent=0 // pred_check
    _
  $region51: #{_lambda_.1} parent=0 // pred_check_branch
    %8101 = sbr.rel (0) target = $region53
  $region52: #{_lambda_.1} parent=0 // pred_region
    _
  $region53: #{_lambda_.1} parent=0 // pred_fallthru
    _

</llo_original>
